<compile_context>
chip_gen: v7x
topology: tpu7x:2x2x1
jax: 0.10.0
libtpu: 0.0.40
codegen_flags: <defaults>
</compile_context>

<pallas_src>
import functools
import math

import jax
import jax.numpy as jnp
from jax.experimental import pallas as pl
from jax.experimental.pallas import tpu as pltpu


def _divisor_leq(n, target):
    """Largest divisor of n that is <= target (>= 1)."""
    t = max(1, min(n, target))
    while n % t:
        t -= 1
    return t


def _encoder_layer_kernel(x_ref,
                          wqkv_ref, bqkv_ref, wo_ref, bo_ref,
                          w1_ref, b1_ref, w2_ref, b2_ref,
                          g1_ref, be1_ref, g2_ref, be2_ref,
                          o_ref,
                          head_out_scr, ffn_acc_scr,
                          *, nhead, key_tile, ffn_tile):
    """One batch tile per grid step.  x_ref block is (bt, S, D)."""
    bt, S, D = x_ref.shape
    H = nhead
    hd = D // H
    M = bt * S
    cdt = wqkv_ref.dtype                                  # matmul input dtype (bf16)

    x = x_ref[...].astype(jnp.float32).reshape(M, D)      # merge leading dims (free)
    xc = x.astype(cdt)

    # ---- fused QKV projection: one (M, D) @ (D, 3D) matmul (full MXU fill) --
    qkv = jnp.dot(xc, wqkv_ref[...],
                  preferred_element_type=jnp.float32) + bqkv_ref[...]

    # ---- per-head attention core, keys tiled flash-style --------------------
    # Per-head q/k/v are static lane slices of the fused projection (free when
    # hd % 128 == 0).  Each head's output goes straight into its lane slot of
    # the head-concat VMEM scratch, so nothing f32 is carried across heads.
    # TODO(synk): for very long S, additionally tile queries (flash over q) so
    # the O(bt*S*D) activations stay within the v7x 64 MiB budget.
    nkt = S // key_tile
    for h in range(H):
        q3 = qkv[:, h * hd:(h + 1) * hd].reshape(bt, S, hd).astype(cdt)
        k3 = qkv[:, D + h * hd:D + (h + 1) * hd].reshape(bt, S, hd).astype(cdt)
        v3 = qkv[:, 2 * D + h * hd:2 * D + (h + 1) * hd].reshape(bt, S, hd).astype(cdt)

        m_i = jnp.full((bt, S, 1), -jnp.inf, jnp.float32)
        l_i = jnp.zeros((bt, S, 1), jnp.float32)
        acc = jnp.zeros((bt, S, hd), jnp.float32)
        for t in range(nkt):                              # online softmax over key tiles
            kt = k3[:, t * key_tile:(t + 1) * key_tile, :]
            vt = v3[:, t * key_tile:(t + 1) * key_tile, :]
            s = jnp.einsum('bqd,bkd->bqk', q3, kt,
                           preferred_element_type=jnp.float32)   # (bt, S, key_tile)
            m_new = jnp.maximum(m_i, jnp.max(s, axis=-1, keepdims=True))
            alpha = jnp.exp(m_i - m_new)
            p = jnp.exp(s - m_new)
            l_i = alpha * l_i + jnp.sum(p, axis=-1, keepdims=True)
            acc = alpha * acc + jnp.einsum('bqk,bkd->bqd', p.astype(cdt), vt,
                                           preferred_element_type=jnp.float32)
            m_i = m_new
        o_h = acc * pl.reciprocal(l_i, approx=True)       # (bt, S, hd)
        head_out_scr[:, h * hd:(h + 1) * hd] = o_h.reshape(M, hd)

    # ---- output projection: one full-K (M, D) @ (D, D) matmul ---------------
    attn = jnp.dot(head_out_scr[...].astype(cdt), wo_ref[...],
                   preferred_element_type=jnp.float32) + bo_ref[...]

    # ---- residual + LayerNorm1 (dropout1 = identity in eval mode) -----------
    y = x + attn
    mu = jnp.mean(y, axis=-1, keepdims=True)
    var = jnp.mean((y - mu) ** 2, axis=-1, keepdims=True)
    y = (y - mu) * jax.lax.rsqrt(var + 1e-5) * g1_ref[...] + be1_ref[...]
    yc = y.astype(cdt)

    # ---- FFN: linear1 -> relu -> linear2, tiled over dim_feedforward --------
    F = w1_ref.shape[1]
    ffn_acc_scr[...] = jnp.zeros_like(ffn_acc_scr)
    for c in range(F // ffn_tile):
        c0 = c * ffn_tile
        h1 = jnp.dot(yc, w1_ref[:, c0:c0 + ffn_tile],
                     preferred_element_type=jnp.float32) + b1_ref[:, c0:c0 + ffn_tile]
        h1 = jnp.maximum(h1, 0.0).astype(cdt)             # bf16 before the 2nd matmul
        ffn_acc_scr[...] += jnp.dot(h1, w2_ref[c0:c0 + ffn_tile, :],
                                    preferred_element_type=jnp.float32)

    # ---- residual + LayerNorm2 (dropout / dropout2 = identity) --------------
    z = y + ffn_acc_scr[...] + b2_ref[...]
    mu2 = jnp.mean(z, axis=-1, keepdims=True)
    var2 = jnp.mean((z - mu2) ** 2, axis=-1, keepdims=True)
    z = (z - mu2) * jax.lax.rsqrt(var2 + 1e-5) * g2_ref[...] + be2_ref[...]

    o_ref[...] = z.reshape(bt, S, D).astype(o_ref.dtype)


def prepare_params(raw, *, d_model, nhead, weight_dtype=jnp.bfloat16):
    """Host-side one-time conversion of PyTorch-layout weights.

    * Q/K/V weights are fused into a single pre-transposed (D, 3D) matrix with
      the 1/sqrt(head_dim) scale folded into the Q columns and Q bias.
    * All matmul weights are pre-transposed and cast to bf16; biases and
      LayerNorm parameters stay f32.
    Performance contract: d_model and d_model//nhead should be multiples of
    128 and dim_feedforward a multiple of 128 for lane-dense MXU tiles;
    smaller values (as in the demo) are correct but use masked ops.
    """
    D, H = d_model, nhead
    assert D % H == 0, "d_model must be divisible by nhead"
    hd = D // H
    scale = 1.0 / math.sqrt(hd)

    wq = jnp.transpose(raw['in_proj_weight'][0:D]) * scale        # (D_in, D_out)
    wk = jnp.transpose(raw['in_proj_weight'][D:2 * D])
    wv = jnp.transpose(raw['in_proj_weight'][2 * D:3 * D])
    bq = raw['in_proj_bias'][0:D] * scale
    bk = raw['in_proj_bias'][D:2 * D]
    bv = raw['in_proj_bias'][2 * D:3 * D]

    return dict(
        nhead=H,
        wqkv=jnp.concatenate([wq, wk, wv], axis=1).astype(weight_dtype),   # (D, 3D)
        bqkv=jnp.concatenate([bq, bk, bv]).reshape(1, 3 * D).astype(jnp.float32),
        wo=jnp.transpose(raw['out_proj_weight']).astype(weight_dtype),     # (D, D)
        bo=raw['out_proj_bias'].reshape(1, D).astype(jnp.float32),
        w1=jnp.transpose(raw['linear1_weight']).astype(weight_dtype),      # (D, F)
        b1=raw['linear1_bias'].reshape(1, -1).astype(jnp.float32),
        w2=jnp.transpose(raw['linear2_weight']).astype(weight_dtype),      # (F, D)
        b2=raw['linear2_bias'].reshape(1, D).astype(jnp.float32),
        g1=raw['norm1_weight'].reshape(1, D).astype(jnp.float32),
        be1=raw['norm1_bias'].reshape(1, D).astype(jnp.float32),
        g2=raw['norm2_weight'].reshape(1, D).astype(jnp.float32),
        be2=raw['norm2_bias'].reshape(1, D).astype(jnp.float32),
    )


def transformer_encoder_layer(src, kparams, *, batch_tile=None):
    """src: (S, N, D) — PyTorch MultiheadAttention convention.  Returns (S, N, D)."""
    S, N, D = src.shape
    H = int(kparams['nhead'])
    F = kparams['w1'].shape[1]

    order = ('wqkv', 'bqkv', 'wo', 'bo', 'w1', 'b1', 'w2', 'b2',
             'g1', 'be1', 'g2', 'be2')
    weights = [kparams[k] for k in order]
    w_bytes = sum(int(w.size) * w.dtype.itemsize for w in weights)

    key_tile = _divisor_leq(S, 512)        # flash-style key tiling
    ffn_tile = _divisor_leq(F, 1024)       # FFN tiled over dim_feedforward

    # Per-core VMEM budget with headroom: ~48 MiB on v7x (64 MiB physical),
    # ~96 MiB on v5e/v6e (128 MiB physical).
    try:
        vmem_phys = int(pltpu.get_tpu_info().vmem_capacity_bytes)
    except Exception:
        vmem_phys = 128 * 1024 * 1024
    vmem_cap = (vmem_phys * 3) // 4

    def vmem_need(bt):
        m = bt * S
        blk = bt * S * D * src.dtype.itemsize
        act = 4 * m * (12 * D + 3 * ffn_tile) + 8 * bt * S * key_tile + 6 * m * D
        return 2 * w_bytes + 4 * blk + act + (8 << 20)

    # ---- batch-tile selection (MXU M fill, pipeline depth, VMEM budget) -----
    if batch_tile is not None:
        bt = max(1, min(int(batch_tile), N))
    else:
        bt = max(1, min(N, pl.cdiv(512, S)))               # fatten MXU M: bt*S >= ~512
        # keep >= 4 pipeline steps when that does not starve the MXU M dim
        while N // bt < 4 and bt > 1 and (bt // 2) * S >= 256:
            bt //= 2
    while bt > 1 and vmem_need(bt) > vmem_cap:
        bt = max(1, bt // 2)

    n_pad = pl.cdiv(N, bt) * bt                            # pad batch; never silently bt=1
    grid = (n_pad // bt,)
    vmem_limit = int(min(max(vmem_need(bt), 32 * 1024 * 1024), vmem_cap))

    # Kernel works batch-major internally; convert PyTorch's (S, N, D) layout
    # once on each side of the pallas_call.
    # TODO(synk): an (S, N, D)-native kernel would drop these two HBM
    # round-trips, but needs cross-layout transposes / non-leading-batch
    # dot_generals inside the kernel (restricted in Mosaic); left as follow-up.
    x = jnp.transpose(src, (1, 0, 2))                      # (N, S, D)
    if n_pad != N:
        x = jnp.pad(x, ((0, n_pad - N), (0, 0), (0, 0)))

    flops = 2 * n_pad * S * (3 * D * D + 2 * S * D + D * D + 2 * D * F)
    cost = pl.CostEstimate(
        flops=int(flops),
        transcendentals=int(n_pad * H * S * S),
        bytes_accessed=int(2 * n_pad * S * D * src.dtype.itemsize + w_bytes))

    kernel = functools.partial(_encoder_layer_kernel, nhead=H,
                               key_tile=key_tile, ffn_tile=ffn_tile)

    def resident_spec(arr, single_buffer):
        nd = arr.ndim

        def idx(b):
            return (0,) * nd

        if single_buffer:
            # Constant index map -> never re-fetched; single-buffering halves
            # its resident VMEM footprint.
            return pl.BlockSpec(arr.shape, idx, pipeline_mode=pl.Buffered(1))
        return pl.BlockSpec(arr.shape, idx)

    def run(single_buffer_weights):
        out = pl.pallas_call(
            kernel,
            out_shape=jax.ShapeDtypeStruct((n_pad, S, D), src.dtype),
            grid=grid,
            in_specs=[pl.BlockSpec((bt, S, D), lambda b: (b, 0, 0))] +
                     [resident_spec(w, single_buffer_weights) for w in weights],
            out_specs=pl.BlockSpec((bt, S, D), lambda b: (b, 0, 0)),
            scratch_shapes=[pltpu.VMEM((bt * S, D), jnp.float32),   # head-concat attn out
                            pltpu.VMEM((bt * S, D), jnp.float32)],  # FFN accumulator
            compiler_params=pltpu.CompilerParams(
                dimension_semantics=("parallel",),
                vmem_limit_bytes=vmem_limit),
            cost_estimate=cost,
        )(x, *weights)
        return jax.block_until_ready(out)

    try:
        out = run(True)
    except Exception:      # pl.Buffered / pipeline_mode unsupported -> default buffering
        out = run(False)

    out = out[:N] if n_pad != N else out
    return jnp.transpose(out, (1, 0, 2))                   # back to (S, N, D)


def _reference_encoder_layer(src, raw, nhead):
    """Pure-JAX f32 reference (PyTorch TransformerEncoderLayer, eval mode)."""
    S, N, D = src.shape
    hd = D // nhead

    def ln(x, g, b):
        mu = jnp.mean(x, axis=-1, keepdims=True)
        var = jnp.mean((x - mu) ** 2, axis=-1, keepdims=True)
        return (x - mu) * jax.lax.rsqrt(var + 1e-5) * g + b

    qkv = jnp.einsum('snd,ed->sne', src, raw['in_proj_weight']) + raw['in_proj_bias']
    q, k, v = qkv[..., :D], qkv[..., D:2 * D], qkv[..., 2 * D:]
    q = q.reshape(S, N, nhead, hd) / math.sqrt(hd)
    k = k.reshape(S, N, nhead, hd)
    v = v.reshape(S, N, nhead, hd)
    s = jnp.einsum('qnhd,knhd->nhqk', q, k)
    p = jax.nn.softmax(s, axis=-1)
    o = jnp.einsum('nhqk,knhd->qnhd', p, v).reshape(S, N, D)
    attn = o @ raw['out_proj_weight'].T + raw['out_proj_bias']

    x = ln(src + attn, raw['norm1_weight'], raw['norm1_bias'])
    h = jax.nn.relu(x @ raw['linear1_weight'].T + raw['linear1_bias'])
    y = ln(x + h @ raw['linear2_weight'].T + raw['linear2_bias'],
           raw['norm2_weight'], raw['norm2_bias'])
    return y


if __name__ == "__main__":
    # Small shapes consistent with the module: seq=8, batch=6, d_model=32,
    # nhead=4, dim_feedforward=64.  (Real deployments should keep d_model and
    # head_dim multiples of 128 and S a multiple of 8 for lane-dense tiles.)
    S, N, D, H, F = 8, 6, 32, 4, 64

    key = jax.random.PRNGKey(0)
    ks = jax.random.split(key, 10)
    init = lambda k, shape: 0.05 * jax.random.normal(k, shape, jnp.float32)

    raw = dict(
        in_proj_weight=init(ks[0], (3 * D, D)),   # nn.MultiheadAttention.in_proj_weight
        in_proj_bias=init(ks[1], (3 * D,)),       # in_proj_bias
        out_proj_weight=init(ks[2], (D, D)),      # out_proj.weight
        out_proj_bias=init(ks[3], (D,)),          # out_proj.bias
        linear1_weight=init(ks[4], (F, D)),       # linear1.weight
        linear1_bias=init(ks[5], (F,)),           # linear1.bias
        linear2_weight=init(ks[6], (D, F)),       # linear2.weight
        linear2_bias=init(ks[7], (D,)),           # linear2.bias
        norm1_weight=jnp.ones((D,), jnp.float32),
        norm1_bias=jnp.zeros((D,), jnp.float32),
        norm2_weight=jnp.ones((D,), jnp.float32),
        norm2_bias=jnp.zeros((D,), jnp.float32),
    )
    kparams = prepare_params(raw, d_model=D, nhead=H, weight_dtype=jnp.bfloat16)

    src = jax.random.normal(ks[8], (S, N, D), jnp.float32)

    # batch_tile=4 with N=6 exercises batch padding and a 2-step grid.
    out = transformer_encoder_layer(src, kparams, batch_tile=4)
    out = jax.block_until_ready(out)
    assert out.shape == (S, N, D) and out.dtype == jnp.float32
    assert bool(jnp.all(jnp.isfinite(out)))

    # f32 reference (PyTorch semantics, eval mode); kernel uses bf16 weights /
    # activations and an approx softmax reciprocal, so compare loosely.
    ref = _reference_encoder_layer(src, raw, H)
    err = float(jnp.max(jnp.abs(out - ref)))
    assert err < 0.1, f"max abs error {err}"
    print("KERNEL_OK")
</pallas_src>

<mosaic_0001>
module attributes {stable_mosaic.version = 11 : i64} {
  func.func @_encoder_layer_kernel(%arg0: i32, %arg1: memref<4x8x32xf32, #tpu.memory_space<vmem>>, %arg2: memref<32x96xbf16, #tpu.memory_space<vmem>>, %arg3: memref<1x96xf32, #tpu.memory_space<vmem>>, %arg4: memref<32x32xbf16, #tpu.memory_space<vmem>>, %arg5: memref<1x32xf32, #tpu.memory_space<vmem>>, %arg6: memref<32x64xbf16, #tpu.memory_space<vmem>>, %arg7: memref<1x64xf32, #tpu.memory_space<vmem>>, %arg8: memref<64x32xbf16, #tpu.memory_space<vmem>>, %arg9: memref<1x32xf32, #tpu.memory_space<vmem>>, %arg10: memref<1x32xf32, #tpu.memory_space<vmem>>, %arg11: memref<1x32xf32, #tpu.memory_space<vmem>>, %arg12: memref<1x32xf32, #tpu.memory_space<vmem>>, %arg13: memref<1x32xf32, #tpu.memory_space<vmem>>, %arg14: memref<4x8x32xf32, #tpu.memory_space<vmem>>, %arg15: memref<32x32xf32, #tpu.memory_space<vmem>>, %arg16: memref<32x32xf32, #tpu.memory_space<vmem>>) attributes {dimension_semantics = [#tpu.dimension_semantics<parallel>], iteration_bounds = array<i64: 2>, scalar_prefetch = 0 : i64, scratch_operands = 2 : i64, tpu.core_type = #tpu.core_type<tc>, window_params = [{transform_indices = @transform_0, window_bounds = array<i64: 4, 8, 32>}, {pipeline_mode = #tpu.pipeline_mode<synchronous>, transform_indices = @transform_1, window_bounds = array<i64: 32, 96>}, {pipeline_mode = #tpu.pipeline_mode<synchronous>, transform_indices = @transform_2, window_bounds = array<i64: 1, 96>}, {pipeline_mode = #tpu.pipeline_mode<synchronous>, transform_indices = @transform_3, window_bounds = array<i64: 32, 32>}, {pipeline_mode = #tpu.pipeline_mode<synchronous>, transform_indices = @transform_4, window_bounds = array<i64: 1, 32>}, {pipeline_mode = #tpu.pipeline_mode<synchronous>, transform_indices = @transform_5, window_bounds = array<i64: 32, 64>}, {pipeline_mode = #tpu.pipeline_mode<synchronous>, transform_indices = @transform_6, window_bounds = array<i64: 1, 64>}, {pipeline_mode = #tpu.pipeline_mode<synchronous>, transform_indices = @transform_7, window_bounds = array<i64: 64, 32>}, {pipeline_mode = #tpu.pipeline_mode<synchronous>, transform_indices = @transform_8, window_bounds = array<i64: 1, 32>}, {pipeline_mode = #tpu.pipeline_mode<synchronous>, transform_indices = @transform_9, window_bounds = array<i64: 1, 32>}, {pipeline_mode = #tpu.pipeline_mode<synchronous>, transform_indices = @transform_10, window_bounds = array<i64: 1, 32>}, {pipeline_mode = #tpu.pipeline_mode<synchronous>, transform_indices = @transform_11, window_bounds = array<i64: 1, 32>}, {pipeline_mode = #tpu.pipeline_mode<synchronous>, transform_indices = @transform_12, window_bounds = array<i64: 1, 32>}, {transform_indices = @transform_13, window_bounds = array<i64: 4, 8, 32>}]} {
    %c0 = arith.constant 0 : index
    %c0_0 = arith.constant 0 : index
    %c0_1 = arith.constant 0 : index
    %0 = vector.load %arg1[%c0, %c0_0, %c0_1] : memref<4x8x32xf32, #tpu.memory_space<vmem>>, vector<4x8x32xf32>
    %1 = vector.shape_cast %0 : vector<4x8x32xf32> to vector<32x32xf32>
    %2 = arith.truncf %1 : vector<32x32xf32> to vector<32x32xbf16>
    %c0_2 = arith.constant 0 : index
    %c0_3 = arith.constant 0 : index
    %3 = vector.load %arg2[%c0_2, %c0_3] : memref<32x96xbf16, #tpu.memory_space<vmem>>, vector<32x96xbf16>
    %cst = arith.constant dense<0.000000e+00> : vector<32x96xf32>
    %4 = tpu.matmul %2, %3, %cst {dimension_numbers = #tpu.dot_dimension_numbers<[1], [0], [0], [1], [0, 0, 1, 1], [], []>} : vector<32x32xbf16>, vector<32x96xbf16>, vector<32x96xf32> -> vector<32x96xf32>
    %c0_4 = arith.constant 0 : index
    %c0_5 = arith.constant 0 : index
    %5 = vector.load %arg3[%c0_4, %c0_5] : memref<1x96xf32, #tpu.memory_space<vmem>>, vector<1x96xf32>
    %6 = vector.broadcast %5 : vector<1x96xf32> to vector<32x96xf32>
    %7 = arith.addf %4, %6 : vector<32x96xf32>
    %8 = vector.extract_strided_slice %7 {offsets = [0, 0], sizes = [32, 8], strides = [1, 1]} : vector<32x96xf32> to vector<32x8xf32>
    %9 = vector.shape_cast %8 : vector<32x8xf32> to vector<4x8x8xf32>
    %10 = arith.truncf %9 : vector<4x8x8xf32> to vector<4x8x8xbf16>
    %11 = vector.extract_strided_slice %7 {offsets = [0, 32], sizes = [32, 8], strides = [1, 1]} : vector<32x96xf32> to vector<32x8xf32>
    %12 = vector.shape_cast %11 : vector<32x8xf32> to vector<4x8x8xf32>
    %13 = arith.truncf %12 : vector<4x8x8xf32> to vector<4x8x8xbf16>
    %14 = vector.extract_strided_slice %7 {offsets = [0, 64], sizes = [32, 8], strides = [1, 1]} : vector<32x96xf32> to vector<32x8xf32>
    %15 = vector.shape_cast %14 : vector<32x8xf32> to vector<4x8x8xf32>
    %16 = arith.truncf %15 : vector<4x8x8xf32> to vector<4x8x8xbf16>
    %cst_6 = arith.constant 0xFF800000 : f32
    %17 = vector.broadcast %cst_6 : f32 to vector<4x8x1xf32>
    %cst_7 = arith.constant 0.000000e+00 : f32
    %18 = vector.broadcast %cst_7 : f32 to vector<4x8x1xf32>
    %cst_8 = arith.constant 0.000000e+00 : f32
    %19 = vector.broadcast %cst_8 : f32 to vector<4x8x8xf32>
    "tpu.trace_start"() <{level = 10 : i32, message = "bqd,bkd->bqk"}> : () -> ()
    %cst_9 = arith.constant dense<0.000000e+00> : vector<4x8x8xf32>
    %20 = tpu.matmul %10, %13, %cst_9 {dimension_numbers = #tpu.dot_dimension_numbers<[2], [2], [1], [1], [0, 0, 0, 1, 1, 1], [0], [0]>} : vector<4x8x8xbf16>, vector<4x8x8xbf16>, vector<4x8x8xf32> -> vector<4x8x8xf32>
    "tpu.trace_stop"() : () -> ()
    %cst_10 = arith.constant dense<0xFF800000> : vector<4x8xf32>
    %21 = vector.multi_reduction <maximumf>, %20, %cst_10 [2] : vector<4x8x8xf32> to vector<4x8xf32>
    %22 = vector.shape_cast %21 : vector<4x8xf32> to vector<4x8x1xf32>
    %23 = arith.maximumf %17, %22 : vector<4x8x1xf32>
    %24 = arith.subf %17, %23 : vector<4x8x1xf32>
    %25 = math.exp %24 : vector<4x8x1xf32>
    %26 = vector.broadcast %23 : vector<4x8x1xf32> to vector<4x8x8xf32>
    %27 = arith.subf %20, %26 : vector<4x8x8xf32>
    %28 = math.exp %27 : vector<4x8x8xf32>
    %29 = arith.mulf %25, %18 : vector<4x8x1xf32>
    %cst_11 = arith.constant dense<0.000000e+00> : vector<4x8xf32>
    %30 = vector.multi_reduction <add>, %28, %cst_11 [2] : vector<4x8x8xf32> to vector<4x8xf32>
    %31 = vector.shape_cast %30 : vector<4x8xf32> to vector<4x8x1xf32>
    %32 = arith.addf %29, %31 : vector<4x8x1xf32>
    %33 = vector.broadcast %25 : vector<4x8x1xf32> to vector<4x8x8xf32>
    %34 = arith.mulf %33, %19 : vector<4x8x8xf32>
    %35 = arith.truncf %28 : vector<4x8x8xf32> to vector<4x8x8xbf16>
    "tpu.trace_start"() <{level = 10 : i32, message = "bqk,bkd->bqd"}> : () -> ()
    %cst_12 = arith.constant dense<0.000000e+00> : vector<4x8x8xf32>
    %36 = tpu.matmul %35, %16, %cst_12 {dimension_numbers = #tpu.dot_dimension_numbers<[2], [1], [1], [2], [0, 0, 0, 1, 1, 2], [0], [0]>} : vector<4x8x8xbf16>, vector<4x8x8xbf16>, vector<4x8x8xf32> -> vector<4x8x8xf32>
    "tpu.trace_stop"() : () -> ()
    %37 = arith.addf %34, %36 : vector<4x8x8xf32>
    %38 = tpu.reciprocal %32 {approx = true} : vector<4x8x1xf32> -> vector<4x8x1xf32>
    %39 = vector.broadcast %38 : vector<4x8x1xf32> to vector<4x8x8xf32>
    %40 = arith.mulf %37, %39 : vector<4x8x8xf32>
    %41 = vector.shape_cast %40 : vector<4x8x8xf32> to vector<32x8xf32>
    %c0_13 = arith.constant 0 : index
    %c0_14 = arith.constant 0 : index
    %42 = vector.load %arg15[%c0_13, %c0_14] : memref<32x32xf32, #tpu.memory_space<vmem>>, vector<32x8xf32>
    tpu.vector_store %arg15[%c0_13, %c0_14], %41 {strides = array<i32>} : memref<32x32xf32, #tpu.memory_space<vmem>>, vector<32x8xf32>,
    %43 = vector.extract_strided_slice %7 {offsets = [0, 8], sizes = [32, 8], strides = [1, 1]} : vector<32x96xf32> to vector<32x8xf32>
    %44 = vector.shape_cast %43 : vector<32x8xf32> to vector<4x8x8xf32>
    %45 = arith.truncf %44 : vector<4x8x8xf32> to vector<4x8x8xbf16>
    %46 = vector.extract_strided_slice %7 {offsets = [0, 40], sizes = [32, 8], strides = [1, 1]} : vector<32x96xf32> to vector<32x8xf32>
    %47 = vector.shape_cast %46 : vector<32x8xf32> to vector<4x8x8xf32>
    %48 = arith.truncf %47 : vector<4x8x8xf32> to vector<4x8x8xbf16>
    %49 = vector.extract_strided_slice %7 {offsets = [0, 72], sizes = [32, 8], strides = [1, 1]} : vector<32x96xf32> to vector<32x8xf32>
    %50 = vector.shape_cast %49 : vector<32x8xf32> to vector<4x8x8xf32>
    %51 = arith.truncf %50 : vector<4x8x8xf32> to vector<4x8x8xbf16>
    %cst_15 = arith.constant 0xFF800000 : f32
    %52 = vector.broadcast %cst_15 : f32 to vector<4x8x1xf32>
    %cst_16 = arith.constant 0.000000e+00 : f32
    %53 = vector.broadcast %cst_16 : f32 to vector<4x8x1xf32>
    %cst_17 = arith.constant 0.000000e+00 : f32
    %54 = vector.broadcast %cst_17 : f32 to vector<4x8x8xf32>
    "tpu.trace_start"() <{level = 10 : i32, message = "bqd,bkd->bqk"}> : () -> ()
    %cst_18 = arith.constant dense<0.000000e+00> : vector<4x8x8xf32>
    %55 = tpu.matmul %45, %48, %cst_18 {dimension_numbers = #tpu.dot_dimension_numbers<[2], [2], [1], [1], [0, 0, 0, 1, 1, 1], [0], [0]>} : vector<4x8x8xbf16>, vector<4x8x8xbf16>, vector<4x8x8xf32> -> vector<4x8x8xf32>
    "tpu.trace_stop"() : () -> ()
    %cst_19 = arith.constant dense<0xFF800000> : vector<4x8xf32>
    %56 = vector.multi_reduction <maximumf>, %55, %cst_19 [2] : vector<4x8x8xf32> to vector<4x8xf32>
    %57 = vector.shape_cast %56 : vector<4x8xf32> to vector<4x8x1xf32>
    %58 = arith.maximumf %52, %57 : vector<4x8x1xf32>
    %59 = arith.subf %52, %58 : vector<4x8x1xf32>
    %60 = math.exp %59 : vector<4x8x1xf32>
    %61 = vector.broadcast %58 : vector<4x8x1xf32> to vector<4x8x8xf32>
    %62 = arith.subf %55, %61 : vector<4x8x8xf32>
    %63 = math.exp %62 : vector<4x8x8xf32>
    %64 = arith.mulf %60, %53 : vector<4x8x1xf32>
    %cst_20 = arith.constant dense<0.000000e+00> : vector<4x8xf32>
    %65 = vector.multi_reduction <add>, %63, %cst_20 [2] : vector<4x8x8xf32> to vector<4x8xf32>
    %66 = vector.shape_cast %65 : vector<4x8xf32> to vector<4x8x1xf32>
    %67 = arith.addf %64, %66 : vector<4x8x1xf32>
    %68 = vector.broadcast %60 : vector<4x8x1xf32> to vector<4x8x8xf32>
    %69 = arith.mulf %68, %54 : vector<4x8x8xf32>
    %70 = arith.truncf %63 : vector<4x8x8xf32> to vector<4x8x8xbf16>
    "tpu.trace_start"() <{level = 10 : i32, message = "bqk,bkd->bqd"}> : () -> ()
    %cst_21 = arith.constant dense<0.000000e+00> : vector<4x8x8xf32>
    %71 = tpu.matmul %70, %51, %cst_21 {dimension_numbers = #tpu.dot_dimension_numbers<[2], [1], [1], [2], [0, 0, 0, 1, 1, 2], [0], [0]>} : vector<4x8x8xbf16>, vector<4x8x8xbf16>, vector<4x8x8xf32> -> vector<4x8x8xf32>
    "tpu.trace_stop"() : () -> ()
    %72 = arith.addf %69, %71 : vector<4x8x8xf32>
    %73 = tpu.reciprocal %67 {approx = true} : vector<4x8x1xf32> -> vector<4x8x1xf32>
    %74 = vector.broadcast %73 : vector<4x8x1xf32> to vector<4x8x8xf32>
    %75 = arith.mulf %72, %74 : vector<4x8x8xf32>
    %76 = vector.shape_cast %75 : vector<4x8x8xf32> to vector<32x8xf32>
    %c0_22 = arith.constant 0 : index
    %c8 = arith.constant 8 : index
    %77 = vector.load %arg15[%c0_22, %c8] : memref<32x32xf32, #tpu.memory_space<vmem>>, vector<32x8xf32>
    tpu.vector_store %arg15[%c0_22, %c8], %76 {strides = array<i32>} : memref<32x32xf32, #tpu.memory_space<vmem>>, vector<32x8xf32>,
    %78 = vector.extract_strided_slice %7 {offsets = [0, 16], sizes = [32, 8], strides = [1, 1]} : vector<32x96xf32> to vector<32x8xf32>
    %79 = vector.shape_cast %78 : vector<32x8xf32> to vector<4x8x8xf32>
    %80 = arith.truncf %79 : vector<4x8x8xf32> to vector<4x8x8xbf16>
    %81 = vector.extract_strided_slice %7 {offsets = [0, 48], sizes = [32, 8], strides = [1, 1]} : vector<32x96xf32> to vector<32x8xf32>
    %82 = vector.shape_cast %81 : vector<32x8xf32> to vector<4x8x8xf32>
    %83 = arith.truncf %82 : vector<4x8x8xf32> to vector<4x8x8xbf16>
    %84 = vector.extract_strided_slice %7 {offsets = [0, 80], sizes = [32, 8], strides = [1, 1]} : vector<32x96xf32> to vector<32x8xf32>
    %85 = vector.shape_cast %84 : vector<32x8xf32> to vector<4x8x8xf32>
    %86 = arith.truncf %85 : vector<4x8x8xf32> to vector<4x8x8xbf16>
    %cst_23 = arith.constant 0xFF800000 : f32
    %87 = vector.broadcast %cst_23 : f32 to vector<4x8x1xf32>
    %cst_24 = arith.constant 0.000000e+00 : f32
    %88 = vector.broadcast %cst_24 : f32 to vector<4x8x1xf32>
    %cst_25 = arith.constant 0.000000e+00 : f32
    %89 = vector.broadcast %cst_25 : f32 to vector<4x8x8xf32>
    "tpu.trace_start"() <{level = 10 : i32, message = "bqd,bkd->bqk"}> : () -> ()
    %cst_26 = arith.constant dense<0.000000e+00> : vector<4x8x8xf32>
    %90 = tpu.matmul %80, %83, %cst_26 {dimension_numbers = #tpu.dot_dimension_numbers<[2], [2], [1], [1], [0, 0, 0, 1, 1, 1], [0], [0]>} : vector<4x8x8xbf16>, vector<4x8x8xbf16>, vector<4x8x8xf32> -> vector<4x8x8xf32>
    "tpu.trace_stop"() : () -> ()
    %cst_27 = arith.constant dense<0xFF800000> : vector<4x8xf32>
    %91 = vector.multi_reduction <maximumf>, %90, %cst_27 [2] : vector<4x8x8xf32> to vector<4x8xf32>
    %92 = vector.shape_cast %91 : vector<4x8xf32> to vector<4x8x1xf32>
    %93 = arith.maximumf %87, %92 : vector<4x8x1xf32>
    %94 = arith.subf %87, %93 : vector<4x8x1xf32>
    %95 = math.exp %94 : vector<4x8x1xf32>
    %96 = vector.broadcast %93 : vector<4x8x1xf32> to vector<4x8x8xf32>
    %97 = arith.subf %90, %96 : vector<4x8x8xf32>
    %98 = math.exp %97 : vector<4x8x8xf32>
    %99 = arith.mulf %95, %88 : vector<4x8x1xf32>
    %cst_28 = arith.constant dense<0.000000e+00> : vector<4x8xf32>
    %100 = vector.multi_reduction <add>, %98, %cst_28 [2] : vector<4x8x8xf32> to vector<4x8xf32>
    %101 = vector.shape_cast %100 : vector<4x8xf32> to vector<4x8x1xf32>
    %102 = arith.addf %99, %101 : vector<4x8x1xf32>
    %103 = vector.broadcast %95 : vector<4x8x1xf32> to vector<4x8x8xf32>
    %104 = arith.mulf %103, %89 : vector<4x8x8xf32>
    %105 = arith.truncf %98 : vector<4x8x8xf32> to vector<4x8x8xbf16>
    "tpu.trace_start"() <{level = 10 : i32, message = "bqk,bkd->bqd"}> : () -> ()
    %cst_29 = arith.constant dense<0.000000e+00> : vector<4x8x8xf32>
    %106 = tpu.matmul %105, %86, %cst_29 {dimension_numbers = #tpu.dot_dimension_numbers<[2], [1], [1], [2], [0, 0, 0, 1, 1, 2], [0], [0]>} : vector<4x8x8xbf16>, vector<4x8x8xbf16>, vector<4x8x8xf32> -> vector<4x8x8xf32>
    "tpu.trace_stop"() : () -> ()
    %107 = arith.addf %104, %106 : vector<4x8x8xf32>
    %108 = tpu.reciprocal %102 {approx = true} : vector<4x8x1xf32> -> vector<4x8x1xf32>
    %109 = vector.broadcast %108 : vector<4x8x1xf32> to vector<4x8x8xf32>
    %110 = arith.mulf %107, %109 : vector<4x8x8xf32>
    %111 = vector.shape_cast %110 : vector<4x8x8xf32> to vector<32x8xf32>
    %c0_30 = arith.constant 0 : index
    %c16 = arith.constant 16 : index
    %112 = vector.load %arg15[%c0_30, %c16] : memref<32x32xf32, #tpu.memory_space<vmem>>, vector<32x8xf32>
    tpu.vector_store %arg15[%c0_30, %c16], %111 {strides = array<i32>} : memref<32x32xf32, #tpu.memory_space<vmem>>, vector<32x8xf32>,
    %113 = vector.extract_strided_slice %7 {offsets = [0, 24], sizes = [32, 8], strides = [1, 1]} : vector<32x96xf32> to vector<32x8xf32>
    %114 = vector.shape_cast %113 : vector<32x8xf32> to vector<4x8x8xf32>
    %115 = arith.truncf %114 : vector<4x8x8xf32> to vector<4x8x8xbf16>
    %116 = vector.extract_strided_slice %7 {offsets = [0, 56], sizes = [32, 8], strides = [1, 1]} : vector<32x96xf32> to vector<32x8xf32>
    %117 = vector.shape_cast %116 : vector<32x8xf32> to vector<4x8x8xf32>
    %118 = arith.truncf %117 : vector<4x8x8xf32> to vector<4x8x8xbf16>
    %119 = vector.extract_strided_slice %7 {offsets = [0, 88], sizes = [32, 8], strides = [1, 1]} : vector<32x96xf32> to vector<32x8xf32>
    %120 = vector.shape_cast %119 : vector<32x8xf32> to vector<4x8x8xf32>
    %121 = arith.truncf %120 : vector<4x8x8xf32> to vector<4x8x8xbf16>
    %cst_31 = arith.constant 0xFF800000 : f32
    %122 = vector.broadcast %cst_31 : f32 to vector<4x8x1xf32>
    %cst_32 = arith.constant 0.000000e+00 : f32
    %123 = vector.broadcast %cst_32 : f32 to vector<4x8x1xf32>
    %cst_33 = arith.constant 0.000000e+00 : f32
    %124 = vector.broadcast %cst_33 : f32 to vector<4x8x8xf32>
    "tpu.trace_start"() <{level = 10 : i32, message = "bqd,bkd->bqk"}> : () -> ()
    %cst_34 = arith.constant dense<0.000000e+00> : vector<4x8x8xf32>
    %125 = tpu.matmul %115, %118, %cst_34 {dimension_numbers = #tpu.dot_dimension_numbers<[2], [2], [1], [1], [0, 0, 0, 1, 1, 1], [0], [0]>} : vector<4x8x8xbf16>, vector<4x8x8xbf16>, vector<4x8x8xf32> -> vector<4x8x8xf32>
    "tpu.trace_stop"() : () -> ()
    %cst_35 = arith.constant dense<0xFF800000> : vector<4x8xf32>
    %126 = vector.multi_reduction <maximumf>, %125, %cst_35 [2] : vector<4x8x8xf32> to vector<4x8xf32>
    %127 = vector.shape_cast %126 : vector<4x8xf32> to vector<4x8x1xf32>
    %128 = arith.maximumf %122, %127 : vector<4x8x1xf32>
    %129 = arith.subf %122, %128 : vector<4x8x1xf32>
    %130 = math.exp %129 : vector<4x8x1xf32>
    %131 = vector.broadcast %128 : vector<4x8x1xf32> to vector<4x8x8xf32>
    %132 = arith.subf %125, %131 : vector<4x8x8xf32>
    %133 = math.exp %132 : vector<4x8x8xf32>
    %134 = arith.mulf %130, %123 : vector<4x8x1xf32>
    %cst_36 = arith.constant dense<0.000000e+00> : vector<4x8xf32>
    %135 = vector.multi_reduction <add>, %133, %cst_36 [2] : vector<4x8x8xf32> to vector<4x8xf32>
    %136 = vector.shape_cast %135 : vector<4x8xf32> to vector<4x8x1xf32>
    %137 = arith.addf %134, %136 : vector<4x8x1xf32>
    %138 = vector.broadcast %130 : vector<4x8x1xf32> to vector<4x8x8xf32>
    %139 = arith.mulf %138, %124 : vector<4x8x8xf32>
    %140 = arith.truncf %133 : vector<4x8x8xf32> to vector<4x8x8xbf16>
    "tpu.trace_start"() <{level = 10 : i32, message = "bqk,bkd->bqd"}> : () -> ()
    %cst_37 = arith.constant dense<0.000000e+00> : vector<4x8x8xf32>
    %141 = tpu.matmul %140, %121, %cst_37 {dimension_numbers = #tpu.dot_dimension_numbers<[2], [1], [1], [2], [0, 0, 0, 1, 1, 2], [0], [0]>} : vector<4x8x8xbf16>, vector<4x8x8xbf16>, vector<4x8x8xf32> -> vector<4x8x8xf32>
    "tpu.trace_stop"() : () -> ()
    %142 = arith.addf %139, %141 : vector<4x8x8xf32>
    %143 = tpu.reciprocal %137 {approx = true} : vector<4x8x1xf32> -> vector<4x8x1xf32>
    %144 = vector.broadcast %143 : vector<4x8x1xf32> to vector<4x8x8xf32>
    %145 = arith.mulf %142, %144 : vector<4x8x8xf32>
    %146 = vector.shape_cast %145 : vector<4x8x8xf32> to vector<32x8xf32>
    %c0_38 = arith.constant 0 : index
    %c24 = arith.constant 24 : index
    %147 = vector.load %arg15[%c0_38, %c24] : memref<32x32xf32, #tpu.memory_space<vmem>>, vector<32x8xf32>
    tpu.vector_store %arg15[%c0_38, %c24], %146 {strides = array<i32>} : memref<32x32xf32, #tpu.memory_space<vmem>>, vector<32x8xf32>,
    %c0_39 = arith.constant 0 : index
    %c0_40 = arith.constant 0 : index
    %148 = vector.load %arg15[%c0_39, %c0_40] : memref<32x32xf32, #tpu.memory_space<vmem>>, vector<32x32xf32>
    %149 = arith.truncf %148 : vector<32x32xf32> to vector<32x32xbf16>
    %c0_41 = arith.constant 0 : index
    %c0_42 = arith.constant 0 : index
    %150 = vector.load %arg4[%c0_41, %c0_42] : memref<32x32xbf16, #tpu.memory_space<vmem>>, vector<32x32xbf16>
    %cst_43 = arith.constant dense<0.000000e+00> : vector<32x32xf32>
    %151 = tpu.matmul %149, %150, %cst_43 {dimension_numbers = #tpu.dot_dimension_numbers<[1], [0], [0], [1], [0, 0, 1, 1], [], []>} : vector<32x32xbf16>, vector<32x32xbf16>, vector<32x32xf32> -> vector<32x32xf32>
    %c0_44 = arith.constant 0 : index
    %c0_45 = arith.constant 0 : index
    %152 = vector.load %arg5[%c0_44, %c0_45] : memref<1x32xf32, #tpu.memory_space<vmem>>, vector<1x32xf32>
    %153 = vector.broadcast %152 : vector<1x32xf32> to vector<32x32xf32>
    %154 = arith.addf %151, %153 : vector<32x32xf32>
    %155 = arith.addf %1, %154 : vector<32x32xf32>
    %cst_46 = arith.constant dense<0.000000e+00> : vector<32xf32>
    %156 = vector.multi_reduction <add>, %155, %cst_46 [1] : vector<32x32xf32> to vector<32xf32>
    %157 = vector.shape_cast %156 : vector<32xf32> to vector<32x1xf32>
    %cst_47 = arith.constant 3.200000e+01 : f32
    %158 = vector.broadcast %cst_47 : f32 to vector<32x1xf32>
    %159 = arith.divf %157, %158 : vector<32x1xf32>
    %160 = vector.broadcast %159 : vector<32x1xf32> to vector<32x32xf32>
    %161 = arith.subf %155, %160 : vector<32x32xf32>
    %162 = arith.mulf %161, %161 : vector<32x32xf32>
    %cst_48 = arith.constant dense<0.000000e+00> : vector<32xf32>
    %163 = vector.multi_reduction <add>, %162, %cst_48 [1] : vector<32x32xf32> to vector<32xf32>
    %164 = vector.shape_cast %163 : vector<32xf32> to vector<32x1xf32>
    %cst_49 = arith.constant 3.200000e+01 : f32
    %165 = vector.broadcast %cst_49 : f32 to vector<32x1xf32>
    %166 = arith.divf %164, %165 : vector<32x1xf32>
    %167 = vector.broadcast %159 : vector<32x1xf32> to vector<32x32xf32>
    %168 = arith.subf %155, %167 : vector<32x32xf32>
    %cst_50 = arith.constant 9.99999974E-6 : f32
    %169 = vector.broadcast %cst_50 : f32 to vector<32x1xf32>
    %170 = arith.addf %166, %169 : vector<32x1xf32>
    %171 = math.rsqrt %170 : vector<32x1xf32>
    %172 = vector.broadcast %171 : vector<32x1xf32> to vector<32x32xf32>
    %173 = arith.mulf %168, %172 : vector<32x32xf32>
    %c0_51 = arith.constant 0 : index
    %c0_52 = arith.constant 0 : index
    %174 = vector.load %arg10[%c0_51, %c0_52] : memref<1x32xf32, #tpu.memory_space<vmem>>, vector<1x32xf32>
    %175 = vector.broadcast %174 : vector<1x32xf32> to vector<32x32xf32>
    %176 = arith.mulf %173, %175 : vector<32x32xf32>
    %c0_53 = arith.constant 0 : index
    %c0_54 = arith.constant 0 : index
    %177 = vector.load %arg11[%c0_53, %c0_54] : memref<1x32xf32, #tpu.memory_space<vmem>>, vector<1x32xf32>
    %178 = vector.broadcast %177 : vector<1x32xf32> to vector<32x32xf32>
    %179 = arith.addf %176, %178 : vector<32x32xf32>
    %180 = arith.truncf %179 : vector<32x32xf32> to vector<32x32xbf16>
    %cst_55 = arith.constant 0.000000e+00 : f32
    %181 = vector.broadcast %cst_55 : f32 to vector<32x32xf32>
    %c0_56 = arith.constant 0 : index
    %c0_57 = arith.constant 0 : index
    %182 = vector.load %arg16[%c0_56, %c0_57] : memref<32x32xf32, #tpu.memory_space<vmem>>, vector<32x32xf32>
    tpu.vector_store %arg16[%c0_56, %c0_57], %181 {strides = array<i32>} : memref<32x32xf32, #tpu.memory_space<vmem>>, vector<32x32xf32>,
    %c0_58 = arith.constant 0 : index
    %c0_59 = arith.constant 0 : index
    %183 = vector.load %arg6[%c0_58, %c0_59] : memref<32x64xbf16, #tpu.memory_space<vmem>>, vector<32x64xbf16>
    %cst_60 = arith.constant dense<0.000000e+00> : vector<32x64xf32>
    %184 = tpu.matmul %180, %183, %cst_60 {dimension_numbers = #tpu.dot_dimension_numbers<[1], [0], [0], [1], [0, 0, 1, 1], [], []>} : vector<32x32xbf16>, vector<32x64xbf16>, vector<32x64xf32> -> vector<32x64xf32>
    %c0_61 = arith.constant 0 : index
    %c0_62 = arith.constant 0 : index
    %185 = vector.load %arg7[%c0_61, %c0_62] : memref<1x64xf32, #tpu.memory_space<vmem>>, vector<1x64xf32>
    %186 = vector.broadcast %185 : vector<1x64xf32> to vector<32x64xf32>
    %187 = arith.addf %184, %186 : vector<32x64xf32>
    %cst_63 = arith.constant 0.000000e+00 : f32
    %188 = vector.broadcast %cst_63 : f32 to vector<32x64xf32>
    %189 = arith.maximumf %187, %188 : vector<32x64xf32>
    %190 = arith.truncf %189 : vector<32x64xf32> to vector<32x64xbf16>
    %c0_64 = arith.constant 0 : index
    %c0_65 = arith.constant 0 : index
    %191 = vector.load %arg16[%c0_64, %c0_65] : memref<32x32xf32, #tpu.memory_space<vmem>>, vector<32x32xf32>
    %c0_66 = arith.constant 0 : index
    %c0_67 = arith.constant 0 : index
    %192 = vector.load %arg8[%c0_66, %c0_67] : memref<64x32xbf16, #tpu.memory_space<vmem>>, vector<64x32xbf16>
    %cst_68 = arith.constant dense<0.000000e+00> : vector<32x32xf32>
    %193 = tpu.matmul %190, %192, %cst_68 {dimension_numbers = #tpu.dot_dimension_numbers<[1], [0], [0], [1], [0, 0, 1, 1], [], []>} : vector<32x64xbf16>, vector<64x32xbf16>, vector<32x32xf32> -> vector<32x32xf32>
    %194 = arith.addf %191, %193 : vector<32x32xf32>
    %c0_69 = arith.constant 0 : index
    %c0_70 = arith.constant 0 : index
    %195 = vector.load %arg16[%c0_69, %c0_70] : memref<32x32xf32, #tpu.memory_space<vmem>>, vector<32x32xf32>
    tpu.vector_store %arg16[%c0_69, %c0_70], %194 {strides = array<i32>} : memref<32x32xf32, #tpu.memory_space<vmem>>, vector<32x32xf32>,
    %c0_71 = arith.constant 0 : index
    %c0_72 = arith.constant 0 : index
    %196 = vector.load %arg16[%c0_71, %c0_72] : memref<32x32xf32, #tpu.memory_space<vmem>>, vector<32x32xf32>
    %197 = arith.addf %179, %196 : vector<32x32xf32>
    %c0_73 = arith.constant 0 : index
    %c0_74 = arith.constant 0 : index
    %198 = vector.load %arg9[%c0_73, %c0_74] : memref<1x32xf32, #tpu.memory_space<vmem>>, vector<1x32xf32>
    %199 = vector.broadcast %198 : vector<1x32xf32> to vector<32x32xf32>
    %200 = arith.addf %197, %199 : vector<32x32xf32>
    %cst_75 = arith.constant dense<0.000000e+00> : vector<32xf32>
    %201 = vector.multi_reduction <add>, %200, %cst_75 [1] : vector<32x32xf32> to vector<32xf32>
    %202 = vector.shape_cast %201 : vector<32xf32> to vector<32x1xf32>
    %cst_76 = arith.constant 3.200000e+01 : f32
    %203 = vector.broadcast %cst_76 : f32 to vector<32x1xf32>
    %204 = arith.divf %202, %203 : vector<32x1xf32>
    %205 = vector.broadcast %204 : vector<32x1xf32> to vector<32x32xf32>
    %206 = arith.subf %200, %205 : vector<32x32xf32>
    %207 = arith.mulf %206, %206 : vector<32x32xf32>
    %cst_77 = arith.constant dense<0.000000e+00> : vector<32xf32>
    %208 = vector.multi_reduction <add>, %207, %cst_77 [1] : vector<32x32xf32> to vector<32xf32>
    %209 = vector.shape_cast %208 : vector<32xf32> to vector<32x1xf32>
    %cst_78 = arith.constant 3.200000e+01 : f32
    %210 = vector.broadcast %cst_78 : f32 to vector<32x1xf32>
    %211 = arith.divf %209, %210 : vector<32x1xf32>
    %212 = vector.broadcast %204 : vector<32x1xf32> to vector<32x32xf32>
    %213 = arith.subf %200, %212 : vector<32x32xf32>
    %cst_79 = arith.constant 9.99999974E-6 : f32
    %214 = vector.broadcast %cst_79 : f32 to vector<32x1xf32>
    %215 = arith.addf %211, %214 : vector<32x1xf32>
    %216 = math.rsqrt %215 : vector<32x1xf32>
    %217 = vector.broadcast %216 : vector<32x1xf32> to vector<32x32xf32>
    %218 = arith.mulf %213, %217 : vector<32x32xf32>
    %c0_80 = arith.constant 0 : index
    %c0_81 = arith.constant 0 : index
    %219 = vector.load %arg12[%c0_80, %c0_81] : memref<1x32xf32, #tpu.memory_space<vmem>>, vector<1x32xf32>
    %220 = vector.broadcast %219 : vector<1x32xf32> to vector<32x32xf32>
    %221 = arith.mulf %218, %220 : vector<32x32xf32>
    %c0_82 = arith.constant 0 : index
    %c0_83 = arith.constant 0 : index
    %222 = vector.load %arg13[%c0_82, %c0_83] : memref<1x32xf32, #tpu.memory_space<vmem>>, vector<1x32xf32>
    %223 = vector.broadcast %222 : vector<1x32xf32> to vector<32x32xf32>
    %224 = arith.addf %221, %223 : vector<32x32xf32>
    %225 = vector.shape_cast %224 : vector<32x32xf32> to vector<4x8x32xf32>
    %c0_84 = arith.constant 0 : index
    %c0_85 = arith.constant 0 : index
    %c0_86 = arith.constant 0 : index
    %226 = vector.load %arg14[%c0_84, %c0_85, %c0_86] : memref<4x8x32xf32, #tpu.memory_space<vmem>>, vector<4x8x32xf32>
    tpu.vector_store %arg14[%c0_84, %c0_85, %c0_86], %225 {strides = array<i32>} : memref<4x8x32xf32, #tpu.memory_space<vmem>>, vector<4x8x32xf32>,
    return
  }
  func.func @transform_0(%arg0: i32) -> (i32, i32, i32) {
    %c0_i32 = arith.constant 0 : i32
    %c0_i32_0 = arith.constant 0 : i32
    %c0_i32_1 = arith.constant 0 : i32
    return %arg0, %c0_i32, %c0_i32_0 : i32, i32, i32
  }
  func.func @transform_1(%arg0: i32) -> (i32, i32) {
    %c0_i32 = arith.constant 0 : i32
    %c0_i32_0 = arith.constant 0 : i32
    %c0_i32_1 = arith.constant 0 : i32
    return %c0_i32, %c0_i32_0 : i32, i32
  }
  func.func @transform_2(%arg0: i32) -> (i32, i32) {
    %c0_i32 = arith.constant 0 : i32
    %c0_i32_0 = arith.constant 0 : i32
    %c0_i32_1 = arith.constant 0 : i32
    return %c0_i32, %c0_i32_0 : i32, i32
  }
  func.func @transform_3(%arg0: i32) -> (i32, i32) {
    %c0_i32 = arith.constant 0 : i32
    %c0_i32_0 = arith.constant 0 : i32
    %c0_i32_1 = arith.constant 0 : i32
    return %c0_i32, %c0_i32_0 : i32, i32
  }
  func.func @transform_4(%arg0: i32) -> (i32, i32) {
    %c0_i32 = arith.constant 0 : i32
    %c0_i32_0 = arith.constant 0 : i32
    %c0_i32_1 = arith.constant 0 : i32
    return %c0_i32, %c0_i32_0 : i32, i32
  }
  func.func @transform_5(%arg0: i32) -> (i32, i32) {
    %c0_i32 = arith.constant 0 : i32
    %c0_i32_0 = arith.constant 0 : i32
    %c0_i32_1 = arith.constant 0 : i32
    return %c0_i32, %c0_i32_0 : i32, i32
  }
  func.func @transform_6(%arg0: i32) -> (i32, i32) {
    %c0_i32 = arith.constant 0 : i32
    %c0_i32_0 = arith.constant 0 : i32
    %c0_i32_1 = arith.constant 0 : i32
    return %c0_i32, %c0_i32_0 : i32, i32
  }
  func.func @transform_7(%arg0: i32) -> (i32, i32) {
    %c0_i32 = arith.constant 0 : i32
    %c0_i32_0 = arith.constant 0 : i32
    %c0_i32_1 = arith.constant 0 : i32
    return %c0_i32, %c0_i32_0 : i32, i32
  }
  func.func @transform_8(%arg0: i32) -> (i32, i32) {
    %c0_i32 = arith.constant 0 : i32
    %c0_i32_0 = arith.constant 0 : i32
    %c0_i32_1 = arith.constant 0 : i32
    return %c0_i32, %c0_i32_0 : i32, i32
  }
  func.func @transform_9(%arg0: i32) -> (i32, i32) {
    %c0_i32 = arith.constant 0 : i32
    %c0_i32_0 = arith.constant 0 : i32
    %c0_i32_1 = arith.constant 0 : i32
    return %c0_i32, %c0_i32_0 : i32, i32
  }
  func.func @transform_10(%arg0: i32) -> (i32, i32) {
    %c0_i32 = arith.constant 0 : i32
    %c0_i32_0 = arith.constant 0 : i32
    %c0_i32_1 = arith.constant 0 : i32
    return %c0_i32, %c0_i32_0 : i32, i32
  }
  func.func @transform_11(%arg0: i32) -> (i32, i32) {
    %c0_i32 = arith.constant 0 : i32
    %c0_i32_0 = arith.constant 0 : i32
    %c0_i32_1 = arith.constant 0 : i32
    return %c0_i32, %c0_i32_0 : i32, i32
  }
  func.func @transform_12(%arg0: i32) -> (i32, i32) {
    %c0_i32 = arith.constant 0 : i32
    %c0_i32_0 = arith.constant 0 : i32
    %c0_i32_1 = arith.constant 0 : i32
    return %c0_i32, %c0_i32_0 : i32, i32
  }
  func.func @transform_13(%arg0: i32) -> (i32, i32, i32) {
    %c0_i32 = arith.constant 0 : i32
    %c0_i32_0 = arith.constant 0 : i32
    %c0_i32_1 = arith.constant 0 : i32
    return %arg0, %c0_i32, %c0_i32_0 : i32, i32, i32
  }
}

module attributes {stable_mosaic.version = 11 : i64} {
  func.func @_encoder_layer_kernel(%arg0: i32, %arg1: memref<4x8x32xf32, #tpu.memory_space<vmem>>, %arg2: memref<32x96xbf16, #tpu.memory_space<vmem>>, %arg3: memref<1x96xf32, #tpu.memory_space<vmem>>, %arg4: memref<32x32xbf16, #tpu.memory_space<vmem>>, %arg5: memref<1x32xf32, #tpu.memory_space<vmem>>, %arg6: memref<32x64xbf16, #tpu.memory_space<vmem>>, %arg7: memref<1x64xf32, #tpu.memory_space<vmem>>, %arg8: memref<64x32xbf16, #tpu.memory_space<vmem>>, %arg9: memref<1x32xf32, #tpu.memory_space<vmem>>, %arg10: memref<1x32xf32, #tpu.memory_space<vmem>>, %arg11: memref<1x32xf32, #tpu.memory_space<vmem>>, %arg12: memref<1x32xf32, #tpu.memory_space<vmem>>, %arg13: memref<1x32xf32, #tpu.memory_space<vmem>>, %arg14: memref<4x8x32xf32, #tpu.memory_space<vmem>>, %arg15: memref<32x32xf32, #tpu.memory_space<vmem>>, %arg16: memref<32x32xf32, #tpu.memory_space<vmem>>) attributes {dimension_semantics = [#tpu.dimension_semantics<parallel>], iteration_bounds = array<i64: 2>, scalar_prefetch = 0 : i64, scratch_operands = 2 : i64, tpu.core_type = #tpu.core_type<tc>, window_params = [{transform_indices = @transform_0, window_bounds = array<i64: 4, 8, 32>}, {pipeline_mode = #tpu.pipeline_mode<synchronous>, transform_indices = @transform_1, window_bounds = array<i64: 32, 96>}, {pipeline_mode = #tpu.pipeline_mode<synchronous>, transform_indices = @transform_2, window_bounds = array<i64: 1, 96>}, {pipeline_mode = #tpu.pipeline_mode<synchronous>, transform_indices = @transform_3, window_bounds = array<i64: 32, 32>}, {pipeline_mode = #tpu.pipeline_mode<synchronous>, transform_indices = @transform_4, window_bounds = array<i64: 1, 32>}, {pipeline_mode = #tpu.pipeline_mode<synchronous>, transform_indices = @transform_5, window_bounds = array<i64: 32, 64>}, {pipeline_mode = #tpu.pipeline_mode<synchronous>, transform_indices = @transform_6, window_bounds = array<i64: 1, 64>}, {pipeline_mode = #tpu.pipeline_mode<synchronous>, transform_indices = @transform_7, window_bounds = array<i64: 64, 32>}, {pipeline_mode = #tpu.pipeline_mode<synchronous>, transform_indices = @transform_8, window_bounds = array<i64: 1, 32>}, {pipeline_mode = #tpu.pipeline_mode<synchronous>, transform_indices = @transform_9, window_bounds = array<i64: 1, 32>}, {pipeline_mode = #tpu.pipeline_mode<synchronous>, transform_indices = @transform_10, window_bounds = array<i64: 1, 32>}, {pipeline_mode = #tpu.pipeline_mode<synchronous>, transform_indices = @transform_11, window_bounds = array<i64: 1, 32>}, {pipeline_mode = #tpu.pipeline_mode<synchronous>, transform_indices = @transform_12, window_bounds = array<i64: 1, 32>}, {transform_indices = @transform_13, window_bounds = array<i64: 4, 8, 32>}]} {
    %c0 = arith.constant 0 : index
    %c0_0 = arith.constant 0 : index
    %c0_1 = arith.constant 0 : index
    %0 = vector.load %arg1[%c0, %c0_0, %c0_1] : memref<4x8x32xf32, #tpu.memory_space<vmem>>, vector<4x8x32xf32>
    %1 = vector.shape_cast %0 : vector<4x8x32xf32> to vector<32x32xf32>
    %2 = arith.truncf %1 : vector<32x32xf32> to vector<32x32xbf16>
    %c0_2 = arith.constant 0 : index
    %c0_3 = arith.constant 0 : index
    %3 = vector.load %arg2[%c0_2, %c0_3] : memref<32x96xbf16, #tpu.memory_space<vmem>>, vector<32x96xbf16>
    %cst = arith.constant dense<0.000000e+00> : vector<32x96xf32>
    %4 = tpu.matmul %2, %3, %cst {dimension_numbers = #tpu.dot_dimension_numbers<[1], [0], [0], [1], [0, 0, 1, 1], [], []>} : vector<32x32xbf16>, vector<32x96xbf16>, vector<32x96xf32> -> vector<32x96xf32>
    %c0_4 = arith.constant 0 : index
    %c0_5 = arith.constant 0 : index
    %5 = vector.load %arg3[%c0_4, %c0_5] : memref<1x96xf32, #tpu.memory_space<vmem>>, vector<1x96xf32>
    %6 = vector.broadcast %5 : vector<1x96xf32> to vector<32x96xf32>
    %7 = arith.addf %4, %6 : vector<32x96xf32>
    %8 = vector.extract_strided_slice %7 {offsets = [0, 0], sizes = [32, 8], strides = [1, 1]} : vector<32x96xf32> to vector<32x8xf32>
    %9 = vector.shape_cast %8 : vector<32x8xf32> to vector<4x8x8xf32>
    %10 = arith.truncf %9 : vector<4x8x8xf32> to vector<4x8x8xbf16>
    %11 = vector.extract_strided_slice %7 {offsets = [0, 32], sizes = [32, 8], strides = [1, 1]} : vector<32x96xf32> to vector<32x8xf32>
    %12 = vector.shape_cast %11 : vector<32x8xf32> to vector<4x8x8xf32>
    %13 = arith.truncf %12 : vector<4x8x8xf32> to vector<4x8x8xbf16>
    %14 = vector.extract_strided_slice %7 {offsets = [0, 64], sizes = [32, 8], strides = [1, 1]} : vector<32x96xf32> to vector<32x8xf32>
    %15 = vector.shape_cast %14 : vector<32x8xf32> to vector<4x8x8xf32>
    %16 = arith.truncf %15 : vector<4x8x8xf32> to vector<4x8x8xbf16>
    %cst_6 = arith.constant 0xFF800000 : f32
    %17 = vector.broadcast %cst_6 : f32 to vector<4x8x1xf32>
    %cst_7 = arith.constant 0.000000e+00 : f32
    %18 = vector.broadcast %cst_7 : f32 to vector<4x8x1xf32>
    %cst_8 = arith.constant 0.000000e+00 : f32
    %19 = vector.broadcast %cst_8 : f32 to vector<4x8x8xf32>
    "tpu.trace_start"() <{level = 10 : i32, message = "bqd,bkd->bqk"}> : () -> ()
    %cst_9 = arith.constant dense<0.000000e+00> : vector<4x8x8xf32>
    %20 = tpu.matmul %10, %13, %cst_9 {dimension_numbers = #tpu.dot_dimension_numbers<[2], [2], [1], [1], [0, 0, 0, 1, 1, 1], [0], [0]>} : vector<4x8x8xbf16>, vector<4x8x8xbf16>, vector<4x8x8xf32> -> vector<4x8x8xf32>
    "tpu.trace_stop"() : () -> ()
    %cst_10 = arith.constant dense<0xFF800000> : vector<4x8xf32>
    %21 = vector.multi_reduction <maximumf>, %20, %cst_10 [2] : vector<4x8x8xf32> to vector<4x8xf32>
    %22 = vector.shape_cast %21 : vector<4x8xf32> to vector<4x8x1xf32>
    %23 = arith.maximumf %17, %22 : vector<4x8x1xf32>
    %24 = arith.subf %17, %23 : vector<4x8x1xf32>
    %25 = math.exp %24 : vector<4x8x1xf32>
    %26 = vector.broadcast %23 : vector<4x8x1xf32> to vector<4x8x8xf32>
    %27 = arith.subf %20, %26 : vector<4x8x8xf32>
    %28 = math.exp %27 : vector<4x8x8xf32>
    %29 = arith.mulf %25, %18 : vector<4x8x1xf32>
    %cst_11 = arith.constant dense<0.000000e+00> : vector<4x8xf32>
    %30 = vector.multi_reduction <add>, %28, %cst_11 [2] : vector<4x8x8xf32> to vector<4x8xf32>
    %31 = vector.shape_cast %30 : vector<4x8xf32> to vector<4x8x1xf32>
    %32 = arith.addf %29, %31 : vector<4x8x1xf32>
    %33 = vector.broadcast %25 : vector<4x8x1xf32> to vector<4x8x8xf32>
    %34 = arith.mulf %33, %19 : vector<4x8x8xf32>
    %35 = arith.truncf %28 : vector<4x8x8xf32> to vector<4x8x8xbf16>
    "tpu.trace_start"() <{level = 10 : i32, message = "bqk,bkd->bqd"}> : () -> ()
    %cst_12 = arith.constant dense<0.000000e+00> : vector<4x8x8xf32>
    %36 = tpu.matmul %35, %16, %cst_12 {dimension_numbers = #tpu.dot_dimension_numbers<[2], [1], [1], [2], [0, 0, 0, 1, 1, 2], [0], [0]>} : vector<4x8x8xbf16>, vector<4x8x8xbf16>, vector<4x8x8xf32> -> vector<4x8x8xf32>
    "tpu.trace_stop"() : () -> ()
    %37 = arith.addf %34, %36 : vector<4x8x8xf32>
    %38 = tpu.reciprocal %32 {approx = true} : vector<4x8x1xf32> -> vector<4x8x1xf32>
    %39 = vector.broadcast %38 : vector<4x8x1xf32> to vector<4x8x8xf32>
    %40 = arith.mulf %37, %39 : vector<4x8x8xf32>
    %41 = vector.shape_cast %40 : vector<4x8x8xf32> to vector<32x8xf32>
    %c0_13 = arith.constant 0 : index
    %c0_14 = arith.constant 0 : index
    %42 = vector.load %arg15[%c0_13, %c0_14] : memref<32x32xf32, #tpu.memory_space<vmem>>, vector<32x8xf32>
    tpu.vector_store %arg15[%c0_13, %c0_14], %41 {strides = array<i32>} : memref<32x32xf32, #tpu.memory_space<vmem>>, vector<32x8xf32>,
    %43 = vector.extract_strided_slice %7 {offsets = [0, 8], sizes = [32, 8], strides = [1, 1]} : vector<32x96xf32> to vector<32x8xf32>
    %44 = vector.shape_cast %43 : vector<32x8xf32> to vector<4x8x8xf32>
    %45 = arith.truncf %44 : vector<4x8x8xf32> to vector<4x8x8xbf16>
    %46 = vector.extract_strided_slice %7 {offsets = [0, 40], sizes = [32, 8], strides = [1, 1]} : vector<32x96xf32> to vector<32x8xf32>
    %47 = vector.shape_cast %46 : vector<32x8xf32> to vector<4x8x8xf32>
    %48 = arith.truncf %47 : vector<4x8x8xf32> to vector<4x8x8xbf16>
    %49 = vector.extract_strided_slice %7 {offsets = [0, 72], sizes = [32, 8], strides = [1, 1]} : vector<32x96xf32> to vector<32x8xf32>
    %50 = vector.shape_cast %49 : vector<32x8xf32> to vector<4x8x8xf32>
    %51 = arith.truncf %50 : vector<4x8x8xf32> to vector<4x8x8xbf16>
    %cst_15 = arith.constant 0xFF800000 : f32
    %52 = vector.broadcast %cst_15 : f32 to vector<4x8x1xf32>
    %cst_16 = arith.constant 0.000000e+00 : f32
    %53 = vector.broadcast %cst_16 : f32 to vector<4x8x1xf32>
    %cst_17 = arith.constant 0.000000e+00 : f32
    %54 = vector.broadcast %cst_17 : f32 to vector<4x8x8xf32>
    "tpu.trace_start"() <{level = 10 : i32, message = "bqd,bkd->bqk"}> : () -> ()
    %cst_18 = arith.constant dense<0.000000e+00> : vector<4x8x8xf32>
    %55 = tpu.matmul %45, %48, %cst_18 {dimension_numbers = #tpu.dot_dimension_numbers<[2], [2], [1], [1], [0, 0, 0, 1, 1, 1], [0], [0]>} : vector<4x8x8xbf16>, vector<4x8x8xbf16>, vector<4x8x8xf32> -> vector<4x8x8xf32>
    "tpu.trace_stop"() : () -> ()
    %cst_19 = arith.constant dense<0xFF800000> : vector<4x8xf32>
    %56 = vector.multi_reduction <maximumf>, %55, %cst_19 [2] : vector<4x8x8xf32> to vector<4x8xf32>
    %57 = vector.shape_cast %56 : vector<4x8xf32> to vector<4x8x1xf32>
    %58 = arith.maximumf %52, %57 : vector<4x8x1xf32>
    %59 = arith.subf %52, %58 : vector<4x8x1xf32>
    %60 = math.exp %59 : vector<4x8x1xf32>
    %61 = vector.broadcast %58 : vector<4x8x1xf32> to vector<4x8x8xf32>
    %62 = arith.subf %55, %61 : vector<4x8x8xf32>
    %63 = math.exp %62 : vector<4x8x8xf32>
    %64 = arith.mulf %60, %53 : vector<4x8x1xf32>
    %cst_20 = arith.constant dense<0.000000e+00> : vector<4x8xf32>
    %65 = vector.multi_reduction <add>, %63, %cst_20 [2] : vector<4x8x8xf32> to vector<4x8xf32>
    %66 = vector.shape_cast %65 : vector<4x8xf32> to vector<4x8x1xf32>
    %67 = arith.addf %64, %66 : vector<4x8x1xf32>
    %68 = vector.broadcast %60 : vector<4x8x1xf32> to vector<4x8x8xf32>
    %69 = arith.mulf %68, %54 : vector<4x8x8xf32>
    %70 = arith.truncf %63 : vector<4x8x8xf32> to vector<4x8x8xbf16>
    "tpu.trace_start"() <{level = 10 : i32, message = "bqk,bkd->bqd"}> : () -> ()
    %cst_21 = arith.constant dense<0.000000e+00> : vector<4x8x8xf32>
    %71 = tpu.matmul %70, %51, %cst_21 {dimension_numbers = #tpu.dot_dimension_numbers<[2], [1], [1], [2], [0, 0, 0, 1, 1, 2], [0], [0]>} : vector<4x8x8xbf16>, vector<4x8x8xbf16>, vector<4x8x8xf32> -> vector<4x8x8xf32>
    "tpu.trace_stop"() : () -> ()
    %72 = arith.addf %69, %71 : vector<4x8x8xf32>
    %73 = tpu.reciprocal %67 {approx = true} : vector<4x8x1xf32> -> vector<4x8x1xf32>
    %74 = vector.broadcast %73 : vector<4x8x1xf32> to vector<4x8x8xf32>
    %75 = arith.mulf %72, %74 : vector<4x8x8xf32>
    %76 = vector.shape_cast %75 : vector<4x8x8xf32> to vector<32x8xf32>
    %c0_22 = arith.constant 0 : index
    %c8 = arith.constant 8 : index
    %77 = vector.load %arg15[%c0_22, %c8] : memref<32x32xf32, #tpu.memory_space<vmem>>, vector<32x8xf32>
    tpu.vector_store %arg15[%c0_22, %c8], %76 {strides = array<i32>} : memref<32x32xf32, #tpu.memory_space<vmem>>, vector<32x8xf32>,
    %78 = vector.extract_strided_slice %7 {offsets = [0, 16], sizes = [32, 8], strides = [1, 1]} : vector<32x96xf32> to vector<32x8xf32>
    %79 = vector.shape_cast %78 : vector<32x8xf32> to vector<4x8x8xf32>
    %80 = arith.truncf %79 : vector<4x8x8xf32> to vector<4x8x8xbf16>
    %81 = vector.extract_strided_slice %7 {offsets = [0, 48], sizes = [32, 8], strides = [1, 1]} : vector<32x96xf32> to vector<32x8xf32>
    %82 = vector.shape_cast %81 : vector<32x8xf32> to vector<4x8x8xf32>
    %83 = arith.truncf %82 : vector<4x8x8xf32> to vector<4x8x8xbf16>
    %84 = vector.extract_strided_slice %7 {offsets = [0, 80], sizes = [32, 8], strides = [1, 1]} : vector<32x96xf32> to vector<32x8xf32>
    %85 = vector.shape_cast %84 : vector<32x8xf32> to vector<4x8x8xf32>
    %86 = arith.truncf %85 : vector<4x8x8xf32> to vector<4x8x8xbf16>
    %cst_23 = arith.constant 0xFF800000 : f32
    %87 = vector.broadcast %cst_23 : f32 to vector<4x8x1xf32>
    %cst_24 = arith.constant 0.000000e+00 : f32
    %88 = vector.broadcast %cst_24 : f32 to vector<4x8x1xf32>
    %cst_25 = arith.constant 0.000000e+00 : f32
    %89 = vector.broadcast %cst_25 : f32 to vector<4x8x8xf32>
    "tpu.trace_start"() <{level = 10 : i32, message = "bqd,bkd->bqk"}> : () -> ()
    %cst_26 = arith.constant dense<0.000000e+00> : vector<4x8x8xf32>
    %90 = tpu.matmul %80, %83, %cst_26 {dimension_numbers = #tpu.dot_dimension_numbers<[2], [2], [1], [1], [0, 0, 0, 1, 1, 1], [0], [0]>} : vector<4x8x8xbf16>, vector<4x8x8xbf16>, vector<4x8x8xf32> -> vector<4x8x8xf32>
    "tpu.trace_stop"() : () -> ()
    %cst_27 = arith.constant dense<0xFF800000> : vector<4x8xf32>
    %91 = vector.multi_reduction <maximumf>, %90, %cst_27 [2] : vector<4x8x8xf32> to vector<4x8xf32>
    %92 = vector.shape_cast %91 : vector<4x8xf32> to vector<4x8x1xf32>
    %93 = arith.maximumf %87, %92 : vector<4x8x1xf32>
    %94 = arith.subf %87, %93 : vector<4x8x1xf32>
    %95 = math.exp %94 : vector<4x8x1xf32>
    %96 = vector.broadcast %93 : vector<4x8x1xf32> to vector<4x8x8xf32>
    %97 = arith.subf %90, %96 : vector<4x8x8xf32>
    %98 = math.exp %97 : vector<4x8x8xf32>
    %99 = arith.mulf %95, %88 : vector<4x8x1xf32>
    %cst_28 = arith.constant dense<0.000000e+00> : vector<4x8xf32>
    %100 = vector.multi_reduction <add>, %98, %cst_28 [2] : vector<4x8x8xf32> to vector<4x8xf32>
    %101 = vector.shape_cast %100 : vector<4x8xf32> to vector<4x8x1xf32>
    %102 = arith.addf %99, %101 : vector<4x8x1xf32>
    %103 = vector.broadcast %95 : vector<4x8x1xf32> to vector<4x8x8xf32>
    %104 = arith.mulf %103, %89 : vector<4x8x8xf32>
    %105 = arith.truncf %98 : vector<4x8x8xf32> to vector<4x8x8xbf16>
    "tpu.trace_start"() <{level = 10 : i32, message = "bqk,bkd->bqd"}> : () -> ()
    %cst_29 = arith.constant dense<0.000000e+00> : vector<4x8x8xf32>
    %106 = tpu.matmul %105, %86, %cst_29 {dimension_numbers = #tpu.dot_dimension_numbers<[2], [1], [1], [2], [0, 0, 0, 1, 1, 2], [0], [0]>} : vector<4x8x8xbf16>, vector<4x8x8xbf16>, vector<4x8x8xf32> -> vector<4x8x8xf32>
    "tpu.trace_stop"() : () -> ()
    %107 = arith.addf %104, %106 : vector<4x8x8xf32>
    %108 = tpu.reciprocal %102 {approx = true} : vector<4x8x1xf32> -> vector<4x8x1xf32>
    %109 = vector.broadcast %108 : vector<4x8x1xf32> to vector<4x8x8xf32>
    %110 = arith.mulf %107, %109 : vector<4x8x8xf32>
    %111 = vector.shape_cast %110 : vector<4x8x8xf32> to vector<32x8xf32>
    %c0_30 = arith.constant 0 : index
    %c16 = arith.constant 16 : index
    %112 = vector.load %arg15[%c0_30, %c16] : memref<32x32xf32, #tpu.memory_space<vmem>>, vector<32x8xf32>
    tpu.vector_store %arg15[%c0_30, %c16], %111 {strides = array<i32>} : memref<32x32xf32, #tpu.memory_space<vmem>>, vector<32x8xf32>,
    %113 = vector.extract_strided_slice %7 {offsets = [0, 24], sizes = [32, 8], strides = [1, 1]} : vector<32x96xf32> to vector<32x8xf32>
    %114 = vector.shape_cast %113 : vector<32x8xf32> to vector<4x8x8xf32>
    %115 = arith.truncf %114 : vector<4x8x8xf32> to vector<4x8x8xbf16>
    %116 = vector.extract_strided_slice %7 {offsets = [0, 56], sizes = [32, 8], strides = [1, 1]} : vector<32x96xf32> to vector<32x8xf32>
    %117 = vector.shape_cast %116 : vector<32x8xf32> to vector<4x8x8xf32>
    %118 = arith.truncf %117 : vector<4x8x8xf32> to vector<4x8x8xbf16>
    %119 = vector.extract_strided_slice %7 {offsets = [0, 88], sizes = [32, 8], strides = [1, 1]} : vector<32x96xf32> to vector<32x8xf32>
    %120 = vector.shape_cast %119 : vector<32x8xf32> to vector<4x8x8xf32>
    %121 = arith.truncf %120 : vector<4x8x8xf32> to vector<4x8x8xbf16>
    %cst_31 = arith.constant 0xFF800000 : f32
    %122 = vector.broadcast %cst_31 : f32 to vector<4x8x1xf32>
    %cst_32 = arith.constant 0.000000e+00 : f32
    %123 = vector.broadcast %cst_32 : f32 to vector<4x8x1xf32>
    %cst_33 = arith.constant 0.000000e+00 : f32
    %124 = vector.broadcast %cst_33 : f32 to vector<4x8x8xf32>
    "tpu.trace_start"() <{level = 10 : i32, message = "bqd,bkd->bqk"}> : () -> ()
    %cst_34 = arith.constant dense<0.000000e+00> : vector<4x8x8xf32>
    %125 = tpu.matmul %115, %118, %cst_34 {dimension_numbers = #tpu.dot_dimension_numbers<[2], [2], [1], [1], [0, 0, 0, 1, 1, 1], [0], [0]>} : vector<4x8x8xbf16>, vector<4x8x8xbf16>, vector<4x8x8xf32> -> vector<4x8x8xf32>
    "tpu.trace_stop"() : () -> ()
    %cst_35 = arith.constant dense<0xFF800000> : vector<4x8xf32>
    %126 = vector.multi_reduction <maximumf>, %125, %cst_35 [2] : vector<4x8x8xf32> to vector<4x8xf32>
    %127 = vector.shape_cast %126 : vector<4x8xf32> to vector<4x8x1xf32>
    %128 = arith.maximumf %122, %127 : vector<4x8x1xf32>
    %129 = arith.subf %122, %128 : vector<4x8x1xf32>
    %130 = math.exp %129 : vector<4x8x1xf32>
    %131 = vector.broadcast %128 : vector<4x8x1xf32> to vector<4x8x8xf32>
    %132 = arith.subf %125, %131 : vector<4x8x8xf32>
    %133 = math.exp %132 : vector<4x8x8xf32>
    %134 = arith.mulf %130, %123 : vector<4x8x1xf32>
    %cst_36 = arith.constant dense<0.000000e+00> : vector<4x8xf32>
    %135 = vector.multi_reduction <add>, %133, %cst_36 [2] : vector<4x8x8xf32> to vector<4x8xf32>
    %136 = vector.shape_cast %135 : vector<4x8xf32> to vector<4x8x1xf32>
    %137 = arith.addf %134, %136 : vector<4x8x1xf32>
    %138 = vector.broadcast %130 : vector<4x8x1xf32> to vector<4x8x8xf32>
    %139 = arith.mulf %138, %124 : vector<4x8x8xf32>
    %140 = arith.truncf %133 : vector<4x8x8xf32> to vector<4x8x8xbf16>
    "tpu.trace_start"() <{level = 10 : i32, message = "bqk,bkd->bqd"}> : () -> ()
    %cst_37 = arith.constant dense<0.000000e+00> : vector<4x8x8xf32>
    %141 = tpu.matmul %140, %121, %cst_37 {dimension_numbers = #tpu.dot_dimension_numbers<[2], [1], [1], [2], [0, 0, 0, 1, 1, 2], [0], [0]>} : vector<4x8x8xbf16>, vector<4x8x8xbf16>, vector<4x8x8xf32> -> vector<4x8x8xf32>
    "tpu.trace_stop"() : () -> ()
    %142 = arith.addf %139, %141 : vector<4x8x8xf32>
    %143 = tpu.reciprocal %137 {approx = true} : vector<4x8x1xf32> -> vector<4x8x1xf32>
    %144 = vector.broadcast %143 : vector<4x8x1xf32> to vector<4x8x8xf32>
    %145 = arith.mulf %142, %144 : vector<4x8x8xf32>
    %146 = vector.shape_cast %145 : vector<4x8x8xf32> to vector<32x8xf32>
    %c0_38 = arith.constant 0 : index
    %c24 = arith.constant 24 : index
    %147 = vector.load %arg15[%c0_38, %c24] : memref<32x32xf32, #tpu.memory_space<vmem>>, vector<32x8xf32>
    tpu.vector_store %arg15[%c0_38, %c24], %146 {strides = array<i32>} : memref<32x32xf32, #tpu.memory_space<vmem>>, vector<32x8xf32>,
    %c0_39 = arith.constant 0 : index
    %c0_40 = arith.constant 0 : index
    %148 = vector.load %arg15[%c0_39, %c0_40] : memref<32x32xf32, #tpu.memory_space<vmem>>, vector<32x32xf32>
    %149 = arith.truncf %148 : vector<32x32xf32> to vector<32x32xbf16>
    %c0_41 = arith.constant 0 : index
    %c0_42 = arith.constant 0 : index
    %150 = vector.load %arg4[%c0_41, %c0_42] : memref<32x32xbf16, #tpu.memory_space<vmem>>, vector<32x32xbf16>
    %cst_43 = arith.constant dense<0.000000e+00> : vector<32x32xf32>
    %151 = tpu.matmul %149, %150, %cst_43 {dimension_numbers = #tpu.dot_dimension_numbers<[1], [0], [0], [1], [0, 0, 1, 1], [], []>} : vector<32x32xbf16>, vector<32x32xbf16>, vector<32x32xf32> -> vector<32x32xf32>
    %c0_44 = arith.constant 0 : index
    %c0_45 = arith.constant 0 : index
    %152 = vector.load %arg5[%c0_44, %c0_45] : memref<1x32xf32, #tpu.memory_space<vmem>>, vector<1x32xf32>
    %153 = vector.broadcast %152 : vector<1x32xf32> to vector<32x32xf32>
    %154 = arith.addf %151, %153 : vector<32x32xf32>
    %155 = arith.addf %1, %154 : vector<32x32xf32>
    %cst_46 = arith.constant dense<0.000000e+00> : vector<32xf32>
    %156 = vector.multi_reduction <add>, %155, %cst_46 [1] : vector<32x32xf32> to vector<32xf32>
    %157 = vector.shape_cast %156 : vector<32xf32> to vector<32x1xf32>
    %cst_47 = arith.constant 3.200000e+01 : f32
    %158 = vector.broadcast %cst_47 : f32 to vector<32x1xf32>
    %159 = arith.divf %157, %158 : vector<32x1xf32>
    %160 = vector.broadcast %159 : vector<32x1xf32> to vector<32x32xf32>
    %161 = arith.subf %155, %160 : vector<32x32xf32>
    %162 = arith.mulf %161, %161 : vector<32x32xf32>
    %cst_48 = arith.constant dense<0.000000e+00> : vector<32xf32>
    %163 = vector.multi_reduction <add>, %162, %cst_48 [1] : vector<32x32xf32> to vector<32xf32>
    %164 = vector.shape_cast %163 : vector<32xf32> to vector<32x1xf32>
    %cst_49 = arith.constant 3.200000e+01 : f32
    %165 = vector.broadcast %cst_49 : f32 to vector<32x1xf32>
    %166 = arith.divf %164, %165 : vector<32x1xf32>
    %167 = vector.broadcast %159 : vector<32x1xf32> to vector<32x32xf32>
    %168 = arith.subf %155, %167 : vector<32x32xf32>
    %cst_50 = arith.constant 9.99999974E-6 : f32
    %169 = vector.broadcast %cst_50 : f32 to vector<32x1xf32>
    %170 = arith.addf %166, %169 : vector<32x1xf32>
    %171 = math.rsqrt %170 : vector<32x1xf32>
    %172 = vector.broadcast %171 : vector<32x1xf32> to vector<32x32xf32>
    %173 = arith.mulf %168, %172 : vector<32x32xf32>
    %c0_51 = arith.constant 0 : index
    %c0_52 = arith.constant 0 : index
    %174 = vector.load %arg10[%c0_51, %c0_52] : memref<1x32xf32, #tpu.memory_space<vmem>>, vector<1x32xf32>
    %175 = vector.broadcast %174 : vector<1x32xf32> to vector<32x32xf32>
    %176 = arith.mulf %173, %175 : vector<32x32xf32>
    %c0_53 = arith.constant 0 : index
    %c0_54 = arith.constant 0 : index
    %177 = vector.load %arg11[%c0_53, %c0_54] : memref<1x32xf32, #tpu.memory_space<vmem>>, vector<1x32xf32>
    %178 = vector.broadcast %177 : vector<1x32xf32> to vector<32x32xf32>
    %179 = arith.addf %176, %178 : vector<32x32xf32>
    %180 = arith.truncf %179 : vector<32x32xf32> to vector<32x32xbf16>
    %cst_55 = arith.constant 0.000000e+00 : f32
    %181 = vector.broadcast %cst_55 : f32 to vector<32x32xf32>
    %c0_56 = arith.constant 0 : index
    %c0_57 = arith.constant 0 : index
    %182 = vector.load %arg16[%c0_56, %c0_57] : memref<32x32xf32, #tpu.memory_space<vmem>>, vector<32x32xf32>
    tpu.vector_store %arg16[%c0_56, %c0_57], %181 {strides = array<i32>} : memref<32x32xf32, #tpu.memory_space<vmem>>, vector<32x32xf32>,
    %c0_58 = arith.constant 0 : index
    %c0_59 = arith.constant 0 : index
    %183 = vector.load %arg6[%c0_58, %c0_59] : memref<32x64xbf16, #tpu.memory_space<vmem>>, vector<32x64xbf16>
    %cst_60 = arith.constant dense<0.000000e+00> : vector<32x64xf32>
    %184 = tpu.matmul %180, %183, %cst_60 {dimension_numbers = #tpu.dot_dimension_numbers<[1], [0], [0], [1], [0, 0, 1, 1], [], []>} : vector<32x32xbf16>, vector<32x64xbf16>, vector<32x64xf32> -> vector<32x64xf32>
    %c0_61 = arith.constant 0 : index
    %c0_62 = arith.constant 0 : index
    %185 = vector.load %arg7[%c0_61, %c0_62] : memref<1x64xf32, #tpu.memory_space<vmem>>, vector<1x64xf32>
    %186 = vector.broadcast %185 : vector<1x64xf32> to vector<32x64xf32>
    %187 = arith.addf %184, %186 : vector<32x64xf32>
    %cst_63 = arith.constant 0.000000e+00 : f32
    %188 = vector.broadcast %cst_63 : f32 to vector<32x64xf32>
    %189 = arith.maximumf %187, %188 : vector<32x64xf32>
    %190 = arith.truncf %189 : vector<32x64xf32> to vector<32x64xbf16>
    %c0_64 = arith.constant 0 : index
    %c0_65 = arith.constant 0 : index
    %191 = vector.load %arg16[%c0_64, %c0_65] : memref<32x32xf32, #tpu.memory_space<vmem>>, vector<32x32xf32>
    %c0_66 = arith.constant 0 : index
    %c0_67 = arith.constant 0 : index
    %192 = vector.load %arg8[%c0_66, %c0_67] : memref<64x32xbf16, #tpu.memory_space<vmem>>, vector<64x32xbf16>
    %cst_68 = arith.constant dense<0.000000e+00> : vector<32x32xf32>
    %193 = tpu.matmul %190, %192, %cst_68 {dimension_numbers = #tpu.dot_dimension_numbers<[1], [0], [0], [1], [0, 0, 1, 1], [], []>} : vector<32x64xbf16>, vector<64x32xbf16>, vector<32x32xf32> -> vector<32x32xf32>
    %194 = arith.addf %191, %193 : vector<32x32xf32>
    %c0_69 = arith.constant 0 : index
    %c0_70 = arith.constant 0 : index
    %195 = vector.load %arg16[%c0_69, %c0_70] : memref<32x32xf32, #tpu.memory_space<vmem>>, vector<32x32xf32>
    tpu.vector_store %arg16[%c0_69, %c0_70], %194 {strides = array<i32>} : memref<32x32xf32, #tpu.memory_space<vmem>>, vector<32x32xf32>,
    %c0_71 = arith.constant 0 : index
    %c0_72 = arith.constant 0 : index
    %196 = vector.load %arg16[%c0_71, %c0_72] : memref<32x32xf32, #tpu.memory_space<vmem>>, vector<32x32xf32>
    %197 = arith.addf %179, %196 : vector<32x32xf32>
    %c0_73 = arith.constant 0 : index
    %c0_74 = arith.constant 0 : index
    %198 = vector.load %arg9[%c0_73, %c0_74] : memref<1x32xf32, #tpu.memory_space<vmem>>, vector<1x32xf32>
    %199 = vector.broadcast %198 : vector<1x32xf32> to vector<32x32xf32>
    %200 = arith.addf %197, %199 : vector<32x32xf32>
    %cst_75 = arith.constant dense<0.000000e+00> : vector<32xf32>
    %201 = vector.multi_reduction <add>, %200, %cst_75 [1] : vector<32x32xf32> to vector<32xf32>
    %202 = vector.shape_cast %201 : vector<32xf32> to vector<32x1xf32>
    %cst_76 = arith.constant 3.200000e+01 : f32
    %203 = vector.broadcast %cst_76 : f32 to vector<32x1xf32>
    %204 = arith.divf %202, %203 : vector<32x1xf32>
    %205 = vector.broadcast %204 : vector<32x1xf32> to vector<32x32xf32>
    %206 = arith.subf %200, %205 : vector<32x32xf32>
    %207 = arith.mulf %206, %206 : vector<32x32xf32>
    %cst_77 = arith.constant dense<0.000000e+00> : vector<32xf32>
    %208 = vector.multi_reduction <add>, %207, %cst_77 [1] : vector<32x32xf32> to vector<32xf32>
    %209 = vector.shape_cast %208 : vector<32xf32> to vector<32x1xf32>
    %cst_78 = arith.constant 3.200000e+01 : f32
    %210 = vector.broadcast %cst_78 : f32 to vector<32x1xf32>
    %211 = arith.divf %209, %210 : vector<32x1xf32>
    %212 = vector.broadcast %204 : vector<32x1xf32> to vector<32x32xf32>
    %213 = arith.subf %200, %212 : vector<32x32xf32>
    %cst_79 = arith.constant 9.99999974E-6 : f32
    %214 = vector.broadcast %cst_79 : f32 to vector<32x1xf32>
    %215 = arith.addf %211, %214 : vector<32x1xf32>
    %216 = math.rsqrt %215 : vector<32x1xf32>
    %217 = vector.broadcast %216 : vector<32x1xf32> to vector<32x32xf32>
    %218 = arith.mulf %213, %217 : vector<32x32xf32>
    %c0_80 = arith.constant 0 : index
    %c0_81 = arith.constant 0 : index
    %219 = vector.load %arg12[%c0_80, %c0_81] : memref<1x32xf32, #tpu.memory_space<vmem>>, vector<1x32xf32>
    %220 = vector.broadcast %219 : vector<1x32xf32> to vector<32x32xf32>
    %221 = arith.mulf %218, %220 : vector<32x32xf32>
    %c0_82 = arith.constant 0 : index
    %c0_83 = arith.constant 0 : index
    %222 = vector.load %arg13[%c0_82, %c0_83] : memref<1x32xf32, #tpu.memory_space<vmem>>, vector<1x32xf32>
    %223 = vector.broadcast %222 : vector<1x32xf32> to vector<32x32xf32>
    %224 = arith.addf %221, %223 : vector<32x32xf32>
    %225 = vector.shape_cast %224 : vector<32x32xf32> to vector<4x8x32xf32>
    %c0_84 = arith.constant 0 : index
    %c0_85 = arith.constant 0 : index
    %c0_86 = arith.constant 0 : index
    %226 = vector.load %arg14[%c0_84, %c0_85, %c0_86] : memref<4x8x32xf32, #tpu.memory_space<vmem>>, vector<4x8x32xf32>
    tpu.vector_store %arg14[%c0_84, %c0_85, %c0_86], %225 {strides = array<i32>} : memref<4x8x32xf32, #tpu.memory_space<vmem>>, vector<4x8x32xf32>,
    return
  }
  func.func @transform_0(%arg0: i32) -> (i32, i32, i32) {
    %c0_i32 = arith.constant 0 : i32
    %c0_i32_0 = arith.constant 0 : i32
    %c0_i32_1 = arith.constant 0 : i32
    return %arg0, %c0_i32, %c0_i32_0 : i32, i32, i32
  }
  func.func @transform_1(%arg0: i32) -> (i32, i32) {
    %c0_i32 = arith.constant 0 : i32
    %c0_i32_0 = arith.constant 0 : i32
    %c0_i32_1 = arith.constant 0 : i32
    return %c0_i32, %c0_i32_0 : i32, i32
  }
  func.func @transform_2(%arg0: i32) -> (i32, i32) {
    %c0_i32 = arith.constant 0 : i32
    %c0_i32_0 = arith.constant 0 : i32
    %c0_i32_1 = arith.constant 0 : i32
    return %c0_i32, %c0_i32_0 : i32, i32
  }
  func.func @transform_3(%arg0: i32) -> (i32, i32) {
    %c0_i32 = arith.constant 0 : i32
    %c0_i32_0 = arith.constant 0 : i32
    %c0_i32_1 = arith.constant 0 : i32
    return %c0_i32, %c0_i32_0 : i32, i32
  }
  func.func @transform_4(%arg0: i32) -> (i32, i32) {
    %c0_i32 = arith.constant 0 : i32
    %c0_i32_0 = arith.constant 0 : i32
    %c0_i32_1 = arith.constant 0 : i32
    return %c0_i32, %c0_i32_0 : i32, i32
  }
  func.func @transform_5(%arg0: i32) -> (i32, i32) {
    %c0_i32 = arith.constant 0 : i32
    %c0_i32_0 = arith.constant 0 : i32
    %c0_i32_1 = arith.constant 0 : i32
    return %c0_i32, %c0_i32_0 : i32, i32
  }
  func.func @transform_6(%arg0: i32) -> (i32, i32) {
    %c0_i32 = arith.constant 0 : i32
    %c0_i32_0 = arith.constant 0 : i32
    %c0_i32_1 = arith.constant 0 : i32
    return %c0_i32, %c0_i32_0 : i32, i32
  }
  func.func @transform_7(%arg0: i32) -> (i32, i32) {
    %c0_i32 = arith.constant 0 : i32
    %c0_i32_0 = arith.constant 0 : i32
    %c0_i32_1 = arith.constant 0 : i32
    return %c0_i32, %c0_i32_0 : i32, i32
  }
  func.func @transform_8(%arg0: i32) -> (i32, i32) {
    %c0_i32 = arith.constant 0 : i32
    %c0_i32_0 = arith.constant 0 : i32
    %c0_i32_1 = arith.constant 0 : i32
    return %c0_i32, %c0_i32_0 : i32, i32
  }
  func.func @transform_9(%arg0: i32) -> (i32, i32) {
    %c0_i32 = arith.constant 0 : i32
    %c0_i32_0 = arith.constant 0 : i32
    %c0_i32_1 = arith.constant 0 : i32
    return %c0_i32, %c0_i32_0 : i32, i32
  }
  func.func @transform_10(%arg0: i32) -> (i32, i32) {
    %c0_i32 = arith.constant 0 : i32
    %c0_i32_0 = arith.constant 0 : i32
    %c0_i32_1 = arith.constant 0 : i32
    return %c0_i32, %c0_i32_0 : i32, i32
  }
  func.func @transform_11(%arg0: i32) -> (i32, i32) {
    %c0_i32 = arith.constant 0 : i32
    %c0_i32_0 = arith.constant 0 : i32
    %c0_i32_1 = arith.constant 0 : i32
    return %c0_i32, %c0_i32_0 : i32, i32
  }
  func.func @transform_12(%arg0: i32) -> (i32, i32) {
    %c0_i32 = arith.constant 0 : i32
    %c0_i32_0 = arith.constant 0 : i32
    %c0_i32_1 = arith.constant 0 : i32
    return %c0_i32, %c0_i32_0 : i32, i32
  }
  func.func @transform_13(%arg0: i32) -> (i32, i32, i32) {
    %c0_i32 = arith.constant 0 : i32
    %c0_i32_0 = arith.constant 0 : i32
    %c0_i32_1 = arith.constant 0 : i32
    return %arg0, %c0_i32, %c0_i32_0 : i32, i32, i32
  }
}

</mosaic_0001>

<llo_original>
// kernel: tpu_custom_call.1
$region0: #{tpu_custom_call.1}
  #allocation0 [shape = 'u32[]', space=smem, size = 0x4, offset = 0x4, fixed_abs, tag = 'smem constant byte address 0x4 - core index']
  #allocation1 [shape = 'u32[144,128]{1,0:T(1,128)}', space=vmem, size = 0x12000, scoped, tag = 'internal scratch']
  #allocation2 [shape = 'f32[32,32]{1,0:T(8,128)}', space=vmem, size = 0x4000, scoped, tag = 'scratch operand']
  #allocation3 [shape = 'f32[32,32]{1,0:T(8,128)}', space=vmem, size = 0x4000, scoped, tag = 'scratch operand']
  %s0 = inlined_call_operand.hbm [shape: f32[8,8,32], index: 0, kind: input, shape index: {}]
  %s1 = inlined_call_operand.vmem [shape: bf16[32,96], index: 1, kind: input, shape index: {}]
  %s2 = inlined_call_operand.vmem [shape: f32[1,96], index: 2, kind: input, shape index: {}]
  %s3 = inlined_call_operand.vmem [shape: bf16[32,32], index: 3, kind: input, shape index: {}]
  %s4 = inlined_call_operand.vmem [shape: f32[1,32], index: 4, kind: input, shape index: {}]
  %s5 = inlined_call_operand.vmem [shape: bf16[32,64], index: 5, kind: input, shape index: {}]
  %s6 = inlined_call_operand.vmem [shape: f32[1,64], index: 6, kind: input, shape index: {}]
  %s7 = inlined_call_operand.vmem [shape: bf16[64,32], index: 7, kind: input, shape index: {}]
  %s8 = inlined_call_operand.vmem [shape: f32[1,32], index: 8, kind: input, shape index: {}]
  %s9 = inlined_call_operand.vmem [shape: f32[1,32], index: 9, kind: input, shape index: {}]
  %s10 = inlined_call_operand.vmem [shape: f32[1,32], index: 10, kind: input, shape index: {}]
  %s11 = inlined_call_operand.vmem [shape: f32[1,32], index: 11, kind: input, shape index: {}]
  %s12 = inlined_call_operand.vmem [shape: f32[1,32], index: 12, kind: input, shape index: {}]
  %s13 = inlined_call_operand.hbm [shape: f32[8,8,32], index: 13, kind: output, shape index: {}]
  %s14 = sld [smem:[#allocation0]]
  $region89: #{tpu_custom_call.1} parent=0
    _
  %s16 = ssub.s32 1, %s14
  %s17 = scalar_select 0, %s16, %s14
  $region1: #{tpu_custom_call.1} parent=0
    #allocation4 [shape = 'u8[32768]{0}', space=vmem, size = 0x8000, scoped, tag = 'input window, operand 0']
    #allocation5 [shape = 's32[2]{0}', space=sflag, size = 0x8, scoped, tag = 'scoped memory for tpu_custom_call.1']
    #allocation6 [shape = 's32[2]{0}', space=sflag, size = 0x8, scoped, tag = 'scoped memory for tpu_custom_call.1']
    #allocation7 [shape = 'u8[32768]{0}', space=vmem, size = 0x8000, scoped, tag = 'output window, operand 0']
    %18 = vsyncpa [#allocation5], 0
    %s19 = scalar_lea.sflag [#allocation5], 1
    %20 = vsyncpa %s19, 0
    %21 = vsyncpa [#allocation6], 0
    %s22 = scalar_lea.sflag [#allocation6], 1
    %23 = vsyncpa %s22, 0
    loop: start=0, step=1, limit=4
    $region2: #{tpu_custom_call.1} parent=1 // loop_pre_header
      _
    $region3: #{tpu_custom_call.1} parent=1 // loop_header
      %s25 = sphi 0, %s29
      %p26 = scmp.ge.s32.totalorder %s25, 4
      %s35 = sphi 0, %s37
      %s38 = sphi 0, %s35
      %s39 = sphi 0, %s38
      %s55 = sphi 0, %s39
      %s59 = sphi 0, %s59
      %s61 = sphi 0, %s59
      %s62 = sphi 0, %s61
      %s76 = sphi 0, %s62
      %s80 = sphi 0, %s80
      %s82 = sphi 0, %s80
      %s83 = sphi 0, %s82
      %s97 = sphi 0, %s83
      %s101 = sphi 0, %s101
      %s103 = sphi 0, %s101
      %s104 = sphi 0, %s103
      %s118 = sphi 0, %s104
      %s122 = sphi 0, %s122
      %s124 = sphi 0, %s122
      %s125 = sphi 0, %s124
      %s139 = sphi 0, %s125
      %s143 = sphi 0, %s143
      %s145 = sphi 0, %s143
      %s146 = sphi 0, %s145
      %s160 = sphi 0, %s146
      %s164 = sphi 0, %s164
      %s166 = sphi 0, %s164
      %s167 = sphi 0, %s166
      %s181 = sphi 0, %s167
      %s185 = sphi 0, %s185
      %s187 = sphi 0, %s185
      %s188 = sphi 0, %s187
      %s202 = sphi 0, %s188
      %s206 = sphi 0, %s206
      %s208 = sphi 0, %s206
      %s209 = sphi 0, %s208
      %s223 = sphi 0, %s209
      %s227 = sphi 0, %s227
      %s229 = sphi 0, %s227
      %s230 = sphi 0, %s229
      %s244 = sphi 0, %s230
      %s248 = sphi 0, %s248
      %s250 = sphi 0, %s248
      %s251 = sphi 0, %s250
      %s265 = sphi 0, %s251
      %s269 = sphi 0, %s269
      %s271 = sphi 0, %s269
      %s272 = sphi 0, %s271
      %s286 = sphi 0, %s272
      %s290 = sphi 0, %s290
      %s292 = sphi 0, %s290
      %s293 = sphi 0, %s292
      %s307 = sphi 0, %s293
      %s313 = sphi 0, %s315
      %s316 = sphi 0, %s313
      %s317 = sphi 0, %s316
      %s333 = sphi 0, %s317
    $region4: #{tpu_custom_call.1} parent=1 // loop_header_branch
      %28 = sbr.rel (%p26) target = $region8
    $region5: #{tpu_custom_call.1} parent=1 // loop_body
      %s30 = ssub.s32 %s25, 1
      %s31 = ssub.s32 %s25, 2
      %s32 = sadd.s32 %s25, 1
      %s33 = ssub.s32 %s25, %s32
      %p34 = scmp.eq.s32.totalorder %s33, 0
      %s36 = sadd.s32 %s35, 1
      %s37 = scalar_select %p34, %s35, %s36
      %p40 = pneg %p34
      %p41 = scmp.eq.s32.totalorder %s25, 1
      %p42 = por %p40, %p41
      %p43 = scmp.ne.s32.totalorder %s35, %s38
      %p44 = scmp.eq.s32.totalorder %s25, 0
      %p45 = por %p43, %p44
      %p46 = scmp.ne.s32.totalorder %s35, %s38
      %p47 = scmp.eq.s32.totalorder %s30, 1
      %p48 = por %p46, %p47
      %p49 = scmp.ne.s32.totalorder %s38, %s39
      %p50 = scmp.eq.s32.totalorder %s30, 0
      %p51 = por %p49, %p50
      %p52 = scmp.ne.s32.totalorder %s38, %s39
      %p53 = scmp.eq.s32.totalorder %s31, 1
      %p54 = por %p52, %p53
      %p56 = scmp.ne.s32.totalorder %s39, %s55
      %p57 = scmp.eq.s32.totalorder %s31, 0
      %p58 = por %p56, %p57
      %s60 = sadd.s32 %s59, 1
      %p63 = scmp.eq.s32.totalorder %s25, 1
      %p64 = scmp.ne.s32.totalorder %s59, %s61
      %p65 = scmp.eq.s32.totalorder %s25, 0
      %p66 = por %p64, %p65
      %p67 = scmp.ne.s32.totalorder %s59, %s61
      %p68 = scmp.eq.s32.totalorder %s30, 1
      %p69 = por %p67, %p68
      %p70 = scmp.ne.s32.totalorder %s61, %s62
      %p71 = scmp.eq.s32.totalorder %s30, 0
      %p72 = por %p70, %p71
      %p73 = scmp.ne.s32.totalorder %s61, %s62
      %p74 = scmp.eq.s32.totalorder %s31, 1
      %p75 = por %p73, %p74
      %p77 = scmp.ne.s32.totalorder %s62, %s76
      %p78 = scmp.eq.s32.totalorder %s31, 0
      %p79 = por %p77, %p78
      %s81 = sadd.s32 %s80, 1
      %p84 = scmp.eq.s32.totalorder %s25, 1
      %p85 = scmp.ne.s32.totalorder %s80, %s82
      %p86 = scmp.eq.s32.totalorder %s25, 0
      %p87 = por %p85, %p86
      %p88 = scmp.ne.s32.totalorder %s80, %s82
      %p89 = scmp.eq.s32.totalorder %s30, 1
      %p90 = por %p88, %p89
      %p91 = scmp.ne.s32.totalorder %s82, %s83
      %p92 = scmp.eq.s32.totalorder %s30, 0
      %p93 = por %p91, %p92
      %p94 = scmp.ne.s32.totalorder %s82, %s83
      %p95 = scmp.eq.s32.totalorder %s31, 1
      %p96 = por %p94, %p95
      %p98 = scmp.ne.s32.totalorder %s83, %s97
      %p99 = scmp.eq.s32.totalorder %s31, 0
      %p100 = por %p98, %p99
      %s102 = sadd.s32 %s101, 1
      %p105 = scmp.eq.s32.totalorder %s25, 1
      %p106 = scmp.ne.s32.totalorder %s101, %s103
      %p107 = scmp.eq.s32.totalorder %s25, 0
      %p108 = por %p106, %p107
      %p109 = scmp.ne.s32.totalorder %s101, %s103
      %p110 = scmp.eq.s32.totalorder %s30, 1
      %p111 = por %p109, %p110
      %p112 = scmp.ne.s32.totalorder %s103, %s104
      %p113 = scmp.eq.s32.totalorder %s30, 0
      %p114 = por %p112, %p113
      %p115 = scmp.ne.s32.totalorder %s103, %s104
      %p116 = scmp.eq.s32.totalorder %s31, 1
      %p117 = por %p115, %p116
      %p119 = scmp.ne.s32.totalorder %s104, %s118
      %p120 = scmp.eq.s32.totalorder %s31, 0
      %p121 = por %p119, %p120
      %s123 = sadd.s32 %s122, 1
      %p126 = scmp.eq.s32.totalorder %s25, 1
      %p127 = scmp.ne.s32.totalorder %s122, %s124
      %p128 = scmp.eq.s32.totalorder %s25, 0
      %p129 = por %p127, %p128
      %p130 = scmp.ne.s32.totalorder %s122, %s124
      %p131 = scmp.eq.s32.totalorder %s30, 1
      %p132 = por %p130, %p131
      %p133 = scmp.ne.s32.totalorder %s124, %s125
      %p134 = scmp.eq.s32.totalorder %s30, 0
      %p135 = por %p133, %p134
      %p136 = scmp.ne.s32.totalorder %s124, %s125
      %p137 = scmp.eq.s32.totalorder %s31, 1
      %p138 = por %p136, %p137
      %p140 = scmp.ne.s32.totalorder %s125, %s139
      %p141 = scmp.eq.s32.totalorder %s31, 0
      %p142 = por %p140, %p141
      %s144 = sadd.s32 %s143, 1
      %p147 = scmp.eq.s32.totalorder %s25, 1
      %p148 = scmp.ne.s32.totalorder %s143, %s145
      %p149 = scmp.eq.s32.totalorder %s25, 0
      %p150 = por %p148, %p149
      %p151 = scmp.ne.s32.totalorder %s143, %s145
      %p152 = scmp.eq.s32.totalorder %s30, 1
      %p153 = por %p151, %p152
      %p154 = scmp.ne.s32.totalorder %s145, %s146
      %p155 = scmp.eq.s32.totalorder %s30, 0
      %p156 = por %p154, %p155
      %p157 = scmp.ne.s32.totalorder %s145, %s146
      %p158 = scmp.eq.s32.totalorder %s31, 1
      %p159 = por %p157, %p158
      %p161 = scmp.ne.s32.totalorder %s146, %s160
      %p162 = scmp.eq.s32.totalorder %s31, 0
      %p163 = por %p161, %p162
      %s165 = sadd.s32 %s164, 1
      %p168 = scmp.eq.s32.totalorder %s25, 1
      %p169 = scmp.ne.s32.totalorder %s164, %s166
      %p170 = scmp.eq.s32.totalorder %s25, 0
      %p171 = por %p169, %p170
      %p172 = scmp.ne.s32.totalorder %s164, %s166
      %p173 = scmp.eq.s32.totalorder %s30, 1
      %p174 = por %p172, %p173
      %p175 = scmp.ne.s32.totalorder %s166, %s167
      %p176 = scmp.eq.s32.totalorder %s30, 0
      %p177 = por %p175, %p176
      %p178 = scmp.ne.s32.totalorder %s166, %s167
      %p179 = scmp.eq.s32.totalorder %s31, 1
      %p180 = por %p178, %p179
      %p182 = scmp.ne.s32.totalorder %s167, %s181
      %p183 = scmp.eq.s32.totalorder %s31, 0
      %p184 = por %p182, %p183
      %s186 = sadd.s32 %s185, 1
      %p189 = scmp.eq.s32.totalorder %s25, 1
      %p190 = scmp.ne.s32.totalorder %s185, %s187
      %p191 = scmp.eq.s32.totalorder %s25, 0
      %p192 = por %p190, %p191
      %p193 = scmp.ne.s32.totalorder %s185, %s187
      %p194 = scmp.eq.s32.totalorder %s30, 1
      %p195 = por %p193, %p194
      %p196 = scmp.ne.s32.totalorder %s187, %s188
      %p197 = scmp.eq.s32.totalorder %s30, 0
      %p198 = por %p196, %p197
      %p199 = scmp.ne.s32.totalorder %s187, %s188
      %p200 = scmp.eq.s32.totalorder %s31, 1
      %p201 = por %p199, %p200
      %p203 = scmp.ne.s32.totalorder %s188, %s202
      %p204 = scmp.eq.s32.totalorder %s31, 0
      %p205 = por %p203, %p204
      %s207 = sadd.s32 %s206, 1
      %p210 = scmp.eq.s32.totalorder %s25, 1
      %p211 = scmp.ne.s32.totalorder %s206, %s208
      %p212 = scmp.eq.s32.totalorder %s25, 0
      %p213 = por %p211, %p212
      %p214 = scmp.ne.s32.totalorder %s206, %s208
      %p215 = scmp.eq.s32.totalorder %s30, 1
      %p216 = por %p214, %p215
      %p217 = scmp.ne.s32.totalorder %s208, %s209
      %p218 = scmp.eq.s32.totalorder %s30, 0
      %p219 = por %p217, %p218
      %p220 = scmp.ne.s32.totalorder %s208, %s209
      %p221 = scmp.eq.s32.totalorder %s31, 1
      %p222 = por %p220, %p221
      %p224 = scmp.ne.s32.totalorder %s209, %s223
      %p225 = scmp.eq.s32.totalorder %s31, 0
      %p226 = por %p224, %p225
      %s228 = sadd.s32 %s227, 1
      %p231 = scmp.eq.s32.totalorder %s25, 1
      %p232 = scmp.ne.s32.totalorder %s227, %s229
      %p233 = scmp.eq.s32.totalorder %s25, 0
      %p234 = por %p232, %p233
      %p235 = scmp.ne.s32.totalorder %s227, %s229
      %p236 = scmp.eq.s32.totalorder %s30, 1
      %p237 = por %p235, %p236
      %p238 = scmp.ne.s32.totalorder %s229, %s230
      %p239 = scmp.eq.s32.totalorder %s30, 0
      %p240 = por %p238, %p239
      %p241 = scmp.ne.s32.totalorder %s229, %s230
      %p242 = scmp.eq.s32.totalorder %s31, 1
      %p243 = por %p241, %p242
      %p245 = scmp.ne.s32.totalorder %s230, %s244
      %p246 = scmp.eq.s32.totalorder %s31, 0
      %p247 = por %p245, %p246
      %s249 = sadd.s32 %s248, 1
      %p252 = scmp.eq.s32.totalorder %s25, 1
      %p253 = scmp.ne.s32.totalorder %s248, %s250
      %p254 = scmp.eq.s32.totalorder %s25, 0
      %p255 = por %p253, %p254
      %p256 = scmp.ne.s32.totalorder %s248, %s250
      %p257 = scmp.eq.s32.totalorder %s30, 1
      %p258 = por %p256, %p257
      %p259 = scmp.ne.s32.totalorder %s250, %s251
      %p260 = scmp.eq.s32.totalorder %s30, 0
      %p261 = por %p259, %p260
      %p262 = scmp.ne.s32.totalorder %s250, %s251
      %p263 = scmp.eq.s32.totalorder %s31, 1
      %p264 = por %p262, %p263
      %p266 = scmp.ne.s32.totalorder %s251, %s265
      %p267 = scmp.eq.s32.totalorder %s31, 0
      %p268 = por %p266, %p267
      %s270 = sadd.s32 %s269, 1
      %p273 = scmp.eq.s32.totalorder %s25, 1
      %p274 = scmp.ne.s32.totalorder %s269, %s271
      %p275 = scmp.eq.s32.totalorder %s25, 0
      %p276 = por %p274, %p275
      %p277 = scmp.ne.s32.totalorder %s269, %s271
      %p278 = scmp.eq.s32.totalorder %s30, 1
      %p279 = por %p277, %p278
      %p280 = scmp.ne.s32.totalorder %s271, %s272
      %p281 = scmp.eq.s32.totalorder %s30, 0
      %p282 = por %p280, %p281
      %p283 = scmp.ne.s32.totalorder %s271, %s272
      %p284 = scmp.eq.s32.totalorder %s31, 1
      %p285 = por %p283, %p284
      %p287 = scmp.ne.s32.totalorder %s272, %s286
      %p288 = scmp.eq.s32.totalorder %s31, 0
      %p289 = por %p287, %p288
      %s291 = sadd.s32 %s290, 1
      %p294 = scmp.eq.s32.totalorder %s25, 1
      %p295 = scmp.ne.s32.totalorder %s290, %s292
      %p296 = scmp.eq.s32.totalorder %s25, 0
      %p297 = por %p295, %p296
      %p298 = scmp.ne.s32.totalorder %s290, %s292
      %p299 = scmp.eq.s32.totalorder %s30, 1
      %p300 = por %p298, %p299
      %p301 = scmp.ne.s32.totalorder %s292, %s293
      %p302 = scmp.eq.s32.totalorder %s30, 0
      %p303 = por %p301, %p302
      %p304 = scmp.ne.s32.totalorder %s292, %s293
      %p305 = scmp.eq.s32.totalorder %s31, 1
      %p306 = por %p304, %p305
      %p308 = scmp.ne.s32.totalorder %s293, %s307
      %p309 = scmp.eq.s32.totalorder %s31, 0
      %p310 = por %p308, %p309
      %s311 = ssub.s32 %s25, %s32
      %p312 = scmp.eq.s32.totalorder %s311, 0
      %s314 = sadd.s32 %s313, 1
      %s315 = scalar_select %p312, %s313, %s314
      %p318 = pneg %p312
      %p319 = scmp.eq.s32.totalorder %s25, 1
      %p320 = por %p318, %p319
      %p321 = scmp.ne.s32.totalorder %s313, %s316
      %p322 = scmp.eq.s32.totalorder %s25, 0
      %p323 = por %p321, %p322
      %p324 = scmp.ne.s32.totalorder %s313, %s316
      %p325 = scmp.eq.s32.totalorder %s30, 1
      %p326 = por %p324, %p325
      %p327 = scmp.ne.s32.totalorder %s316, %s317
      %p328 = scmp.eq.s32.totalorder %s30, 0
      %p329 = por %p327, %p328
      %p330 = scmp.ne.s32.totalorder %s316, %s317
      %p331 = scmp.eq.s32.totalorder %s31, 1
      %p332 = por %p330, %p331
      %p334 = scmp.ne.s32.totalorder %s317, %s333
      %p335 = scmp.eq.s32.totalorder %s31, 0
      %p336 = por %p334, %p335
      %p337 = scmp.le.s32.totalorder 1, %s25
      %p338 = scmp.lt.s32.totalorder %s25, 3
      %p339 = pnand %p337, %p338
      %p340 = pneg %p339
      // Predicated region
      $region9: #{tpu_custom_call.1} parent=5 // pred_check
        _
      $region10: #{tpu_custom_call.1} parent=5 // pred_check_branch
        %342 = sbr.rel (%p339) target = $region12
      $region11: #{tpu_custom_call.1} parent=5 // pred_region
        %s343 = ssub.s32 %s25, 1
        // Predicated region
        $region13: #{tpu_custom_call.1} parent=11 // pred_check
          %p344 = pneg %p72
        $region14: #{tpu_custom_call.1} parent=11 // pred_check_branch
          %346 = sbr.rel (%p344) target = $region16
        $region15: #{tpu_custom_call.1} parent=11 // pred_region
          _
        $region16: #{tpu_custom_call.1} parent=11 // pred_fallthru
          _
        // Predicated region
        $region17: #{tpu_custom_call.1} parent=11 // pred_check
          %p347 = pneg %p93
        $region18: #{tpu_custom_call.1} parent=11 // pred_check_branch
          %349 = sbr.rel (%p347) target = $region20
        $region19: #{tpu_custom_call.1} parent=11 // pred_region
          _
        $region20: #{tpu_custom_call.1} parent=11 // pred_fallthru
          _
        // Predicated region
        $region21: #{tpu_custom_call.1} parent=11 // pred_check
          %p350 = pneg %p114
        $region22: #{tpu_custom_call.1} parent=11 // pred_check_branch
          %352 = sbr.rel (%p350) target = $region24
        $region23: #{tpu_custom_call.1} parent=11 // pred_region
          _
        $region24: #{tpu_custom_call.1} parent=11 // pred_fallthru
          _
        // Predicated region
        $region25: #{tpu_custom_call.1} parent=11 // pred_check
          %p353 = pneg %p135
        $region26: #{tpu_custom_call.1} parent=11 // pred_check_branch
          %355 = sbr.rel (%p353) target = $region28
        $region27: #{tpu_custom_call.1} parent=11 // pred_region
          _
        $region28: #{tpu_custom_call.1} parent=11 // pred_fallthru
          _
        // Predicated region
        $region29: #{tpu_custom_call.1} parent=11 // pred_check
          %p356 = pneg %p156
        $region30: #{tpu_custom_call.1} parent=11 // pred_check_branch
          %358 = sbr.rel (%p356) target = $region32
        $region31: #{tpu_custom_call.1} parent=11 // pred_region
          _
        $region32: #{tpu_custom_call.1} parent=11 // pred_fallthru
          _
        // Predicated region
        $region33: #{tpu_custom_call.1} parent=11 // pred_check
          %p359 = pneg %p177
        $region34: #{tpu_custom_call.1} parent=11 // pred_check_branch
          %361 = sbr.rel (%p359) target = $region36
        $region35: #{tpu_custom_call.1} parent=11 // pred_region
          _
        $region36: #{tpu_custom_call.1} parent=11 // pred_fallthru
          _
        // Predicated region
        $region37: #{tpu_custom_call.1} parent=11 // pred_check
          %p362 = pneg %p198
        $region38: #{tpu_custom_call.1} parent=11 // pred_check_branch
          %364 = sbr.rel (%p362) target = $region40
        $region39: #{tpu_custom_call.1} parent=11 // pred_region
          _
        $region40: #{tpu_custom_call.1} parent=11 // pred_fallthru
          _
        // Predicated region
        $region41: #{tpu_custom_call.1} parent=11 // pred_check
          %p365 = pneg %p219
        $region42: #{tpu_custom_call.1} parent=11 // pred_check_branch
          %367 = sbr.rel (%p365) target = $region44
        $region43: #{tpu_custom_call.1} parent=11 // pred_region
          _
        $region44: #{tpu_custom_call.1} parent=11 // pred_fallthru
          _
        // Predicated region
        $region45: #{tpu_custom_call.1} parent=11 // pred_check
          %p368 = pneg %p240
        $region46: #{tpu_custom_call.1} parent=11 // pred_check_branch
          %370 = sbr.rel (%p368) target = $region48
        $region47: #{tpu_custom_call.1} parent=11 // pred_region
          _
        $region48: #{tpu_custom_call.1} parent=11 // pred_fallthru
          _
        // Predicated region
        $region49: #{tpu_custom_call.1} parent=11 // pred_check
          %p371 = pneg %p261
        $region50: #{tpu_custom_call.1} parent=11 // pred_check_branch
          %373 = sbr.rel (%p371) target = $region52
        $region51: #{tpu_custom_call.1} parent=11 // pred_region
          _
        $region52: #{tpu_custom_call.1} parent=11 // pred_fallthru
          _
        // Predicated region
        $region53: #{tpu_custom_call.1} parent=11 // pred_check
          %p374 = pneg %p282
        $region54: #{tpu_custom_call.1} parent=11 // pred_check_branch
          %376 = sbr.rel (%p374) target = $region56
        $region55: #{tpu_custom_call.1} parent=11 // pred_region
          _
        $region56: #{tpu_custom_call.1} parent=11 // pred_fallthru
          _
        // Predicated region
        $region57: #{tpu_custom_call.1} parent=11 // pred_check
          %p377 = pneg %p303
        $region58: #{tpu_custom_call.1} parent=11 // pred_check_branch
          %379 = sbr.rel (%p377) target = $region60
        $region59: #{tpu_custom_call.1} parent=11 // pred_region
          _
        $region60: #{tpu_custom_call.1} parent=11 // pred_fallthru
          _
      $region12: #{tpu_custom_call.1} parent=5 // pred_fallthru
        _
      %p380 = scmp.lt.s32.totalorder %s25, 2
      // Predicated region
      $region61: #{tpu_custom_call.1} parent=5 // pred_check
        %p381 = pneg %p380
      $region62: #{tpu_custom_call.1} parent=5 // pred_check_branch
        %383 = sbr.rel (%p381) target = $region64
      $region63: #{tpu_custom_call.1} parent=5 // pred_region
        // Predicated region
        $region65: #{tpu_custom_call.1} parent=63 // pred_check
          %p384 = pneg %p45
        $region66: #{tpu_custom_call.1} parent=63 // pred_check_branch
          %386 = sbr.rel (%p384) target = $region68
        $region67: #{tpu_custom_call.1} parent=63 // pred_region
          %s387 = sand.u32 %s35, 1
          %s388 = scalar_lea.sflag [#allocation5], %s387
          %s389 = sand.u32 %s35, 1
          %s390 = smul.addr %s389, 32
          %s391 = scalar_lea.vmem [#allocation4], %s390
          %s392 = smul.u32 4, %s25
          %s394 = ssub.s32 512, 512
          %395 = vsyncadd %s388, %s394
          %s396 = smul.addr %s392, 128
          %s397 = scalar_lea.hbm %s0, %s396
          %s398 = sshll.u32 %s391, 4
          %s399 = int_to_ptr.vmem [resolvable:$true] %s398
          %404 = dma.hbm_to_vmem [thread:$0]  %s397, 512, %s399, %s388, 128, 128, 8
        $region68: #{tpu_custom_call.1} parent=63 // pred_fallthru
          _
      $region64: #{tpu_custom_call.1} parent=5 // pred_fallthru
        _
      %p405 = scmp.le.s32.totalorder 1, %s25
      %p406 = scmp.lt.s32.totalorder %s25, 3
      %p407 = pnand %p405, %p406
      %p408 = pneg %p407
      // Predicated region
      $region69: #{tpu_custom_call.1} parent=5 // pred_check
        _
      $region70: #{tpu_custom_call.1} parent=5 // pred_check_branch
        %410 = sbr.rel (%p407) target = $region72
      $region71: #{tpu_custom_call.1} parent=5 // pred_region
        %s411 = ssub.s32 %s25, 1
        %s412 = sand.u32 %s38, 1
        %s413 = scalar_lea.sflag [#allocation5], %s412
        %s414 = sand.u32 %s38, 1
        %s415 = smul.addr %s414, 32
        %s416 = scalar_lea.vmem [#allocation4], %s415
        // Predicated region
        $region73: #{tpu_custom_call.1} parent=71 // pred_check
          %p417 = pneg %p51
        $region74: #{tpu_custom_call.1} parent=71 // pred_check_branch
          %419 = sbr.rel (%p417) target = $region76
        $region75: #{tpu_custom_call.1} parent=71 // pred_region
          %420 = dma.done %s413, 512
        $region76: #{tpu_custom_call.1} parent=71 // pred_fallthru
          _
        %s421 = sand.u32 %s38, 1
        %s422 = scalar_lea.sflag [#allocation5], %s421
        %s423 = sand.u32 %s38, 1
        %s424 = smul.addr %s423, 32
        %s425 = scalar_lea.vmem [#allocation4], %s424
        %p426 = pneg %p51
        %p427 = pneg %p48
        %p428 = pneg %p72
        %p429 = pneg %p69
        %p430 = pneg %p93
        %p431 = pneg %p90
        %p432 = pneg %p114
        %p433 = pneg %p111
        %p434 = pneg %p135
        %p435 = pneg %p132
        %p436 = pneg %p156
        %p437 = pneg %p153
        %p438 = pneg %p177
        %p439 = pneg %p174
        %p440 = pneg %p198
        %p441 = pneg %p195
        %p442 = pneg %p219
        %p443 = pneg %p216
        %p444 = pneg %p240
        %p445 = pneg %p237
        %p446 = pneg %p261
        %p447 = pneg %p258
        %p448 = pneg %p282
        %p449 = pneg %p279
        %p450 = pneg %p303
        %p451 = pneg %p300
        %p452 = pneg %p329
        %p453 = pneg %p326
        %s454 = sand.u32 %s316, 1
        %s455 = scalar_lea.sflag [#allocation6], %s454
        %s456 = sand.u32 %s316, 1
        %s457 = smul.addr %s456, 32
        %s458 = scalar_lea.vmem [#allocation7], %s457
        %s459 = smul.u32 4, %s30
        %s460 = smul.u32 4, %s30
        %v462 = vld [vmem:[%s416] sm:$0xff]
        %v463 = vld [vmem:[%s416 + $0x8] sm:$0xff]
        %v464 = vld [vmem:[%s416 + $0x10] sm:$0xff]
        %v465 = vld [vmem:[%s416 + $0x18] sm:$0xff]
        %v466 = vpack.c.bf16 %v463, %v462
        %v467 = vpack.c.bf16 %v465, %v464
        %v468 = vld [vmem:[%s1] sm:$0xf]
        %v469 = vld [vmem:[%s1 + $0x4] sm:$0xf]
        %v470 = vld [vmem:[%s1 + $0x8] sm:$0xf]
        %v471 = vld [vmem:[%s1 + $0xc] sm:$0xf]
        %v472 = vld [vmem:[%s2] sm:$0x1]
        %v474 = vlaneseq
        %v475 = vshrl.u32 %v474, 7
        %v476 = vsub.s32 0, %v475
        %v477 = vrot.slane %v472, %v476
        %v483 = vunpack.c.l.b16 %v468
        %v484 = vunpack.c.l.b16 %v469
        %v485 = vunpack.c.l.b16 %v470
        %v486 = vunpack.c.l.b16 %v471
        %v487 = vpack.c.b16 %v484, %v483
        %v488 = vpack.c.b16 %v486, %v485
        %vm491 = vcmask 261120
        %v493 = vsel %vm491, %v466, 0
        %v496 = vsel %vm491, %v467, 0
        %498 = vmatprep.subr.bf16.mxu0 0
        %499 = vmatpush1.bf16.msra.mxu0 %v487
        %500 = vmatprep.subr.bf16.mxu0 0
        %501 = vmatpush1.bf16.msra.mxu0 %v488
        %502 = vmatprep.subr.bf16.mxu0 0
        %503 = vmatpush1.bf16.msra.mxu0 0
        %504 = vmatprep.subr.bf16.mxu0 0
        %505 = vmatpush1.bf16.msra.mxu0 0
        %506 = vmatprep.subr.bf16.mxu0 0
        %507 = vmatpush1.bf16.msra.mxu0 0
        %508 = vmatprep.subr.bf16.mxu0 0
        %509 = vmatpush1.bf16.msra.mxu0 0
        %510 = vmatprep.subr.bf16.mxu0 0
        %511 = vmatpush1.bf16.msra.mxu0 0
        %512 = vmatprep.subr.bf16.mxu0 0
        %513 = vmatpush1.bf16.msra.mxu0 0
        %514 = vmatprep.subr.bf16.mxu0 0
        %515 = vmatpush1.bf16.msra.mxu0 0
        %516 = vmatprep.subr.bf16.mxu0 0
        %517 = vmatpush1.bf16.msra.mxu0 0
        %518 = vmatprep.subr.bf16.mxu0 0
        %519 = vmatpush1.bf16.msra.mxu0 0
        %520 = vmatprep.subr.bf16.mxu0 0
        %521 = vmatpush1.bf16.msra.mxu0 0
        %522 = vmatprep.subr.bf16.mxu0 0
        %523 = vmatpush1.bf16.msra.mxu0 0
        %524 = vmatprep.subr.bf16.mxu0 0
        %525 = vmatpush1.bf16.msra.mxu0 0
        %526 = vmatprep.subr.bf16.mxu0 0
        %527 = vmatpush1.bf16.msra.mxu0 0
        %528 = vmatprep.subr.bf16.mxu0 0
        %529 = vmatpush1.bf16.msra.mxu0 0
        %530 = vmatprep.mubr.bf16.mxu0 0
        %531 = vmatmul.mubr.bf16.gmra.mrb[0].mxu0 %v493
        %v532 = vpop.f32.mrb[0].mxu0
        %v533 = vadd.f32 %v477, %v532
        %v534 = vpop.f32.mrb[0].mxu0
        %v535 = vpop.f32.mrb[0].mxu0
        %v536 = vadd.f32 %v477, %v535
        %v537 = vpop.f32.mrb[0].mxu0
        %538 = vmatprep.mubr.bf16.mxu0 0
        %539 = vmatmul.mubr.bf16.gmra.mrb[0].mxu0 %v496
        %v540 = vpop.f32.mrb[0].mxu0
        %v541 = vadd.f32 %v477, %v540
        %v542 = vpop.f32.mrb[0].mxu0
        %v543 = vpop.f32.mrb[0].mxu0
        %v544 = vadd.f32 %v477, %v543
        %v545 = vpop.f32.mrb[0].mxu0
        %546 = vdwg.mxu0
        %v547 = vpack.c.bf16 %v533, %v533
        %v548 = vpack.c.bf16 %v536, %v536
        %v549 = vpack.c.bf16 %v541, %v541
        %v550 = vpack.c.bf16 %v544, %v544
        %552 = vrot.lane.b32.xlu0 %v547, 96
        %v553 = vpop.permute.xlu0 %552
        %vm554 = vcmask 64512
        %v556 = vsel %vm554, %v547, 0
        %v559 = vsel %vm554, %v553, 0
        %561 = vmatprep.subr.bf16.mxu0 0
        %562 = vmatpush1.bf16.xpose.msra.mxu0 %v559
        %563 = vmatprep.subr.bf16.mxu0 0
        %564 = vmatpush1.bf16.xpose.msra.mxu0 0
        %565 = vmatprep.subr.bf16.mxu0 0
        %566 = vmatpush1.bf16.xpose.msra.mxu0 0
        %567 = vmatprep.subr.bf16.mxu0 0
        %568 = vmatpush1.bf16.xpose.msra.mxu0 0
        %569 = vmatprep.subr.bf16.mxu0 0
        %570 = vmatpush1.bf16.xpose.msra.mxu0 0
        %571 = vmatprep.subr.bf16.mxu0 0
        %572 = vmatpush1.bf16.xpose.msra.mxu0 0
        %573 = vmatprep.subr.bf16.mxu0 0
        %574 = vmatpush1.bf16.xpose.msra.mxu0 0
        %575 = vmatprep.subr.bf16.mxu0 0
        %576 = vmatpush1.bf16.xpose.msra.mxu0 0
        %577 = vmatprep.subr.bf16.mxu0 0
        %578 = vmatpush1.bf16.xpose.msra.mxu0 0
        %579 = vmatprep.subr.bf16.mxu0 0
        %580 = vmatpush1.bf16.xpose.msra.mxu0 0
        %581 = vmatprep.subr.bf16.mxu0 0
        %582 = vmatpush1.bf16.xpose.msra.mxu0 0
        %583 = vmatprep.subr.bf16.mxu0 0
        %584 = vmatpush1.bf16.xpose.msra.mxu0 0
        %585 = vmatprep.subr.bf16.mxu0 0
        %586 = vmatpush1.bf16.xpose.msra.mxu0 0
        %587 = vmatprep.subr.bf16.mxu0 0
        %588 = vmatpush1.bf16.xpose.msra.mxu0 0
        %589 = vmatprep.subr.bf16.mxu0 0
        %590 = vmatpush1.bf16.xpose.msra.mxu0 0
        %591 = vmatprep.subr.bf16.mxu0 0
        %592 = vmatpush1.bf16.xpose.msra.mxu0 0
        %593 = vmatprep.mubr.bf16.mxu0 0
        %594 = vmatmul.mubr.bf16.gmra.mrb[0].mxu0 %v556
        %v595 = vpop.f32.mrb[0].mxu0
        %v596 = vadd.f32 0.0, %v595
        %v597 = vpop.f32.mrb[0].mxu0
        %v598 = vpop.f32.mrb[0].mxu0
        %v599 = vpop.f32.mrb[0].mxu0
        %600 = vdwg.mxu0
        %602 = vrot.lane.b32.xlu0 %v548, 96
        %v603 = vpop.permute.xlu0 %602
        %v605 = vsel %vm554, %v548, 0
        %v608 = vsel %vm554, %v603, 0
        %610 = vmatprep.subr.bf16.mxu0 0
        %611 = vmatpush1.bf16.xpose.msra.mxu0 %v608
        %612 = vmatprep.subr.bf16.mxu0 0
        %613 = vmatpush1.bf16.xpose.msra.mxu0 0
        %614 = vmatprep.subr.bf16.mxu0 0
        %615 = vmatpush1.bf16.xpose.msra.mxu0 0
        %616 = vmatprep.subr.bf16.mxu0 0
        %617 = vmatpush1.bf16.xpose.msra.mxu0 0
        %618 = vmatprep.subr.bf16.mxu0 0
        %619 = vmatpush1.bf16.xpose.msra.mxu0 0
        %620 = vmatprep.subr.bf16.mxu0 0
        %621 = vmatpush1.bf16.xpose.msra.mxu0 0
        %622 = vmatprep.subr.bf16.mxu0 0
        %623 = vmatpush1.bf16.xpose.msra.mxu0 0
        %624 = vmatprep.subr.bf16.mxu0 0
        %625 = vmatpush1.bf16.xpose.msra.mxu0 0
        %626 = vmatprep.subr.bf16.mxu0 0
        %627 = vmatpush1.bf16.xpose.msra.mxu0 0
        %628 = vmatprep.subr.bf16.mxu0 0
        %629 = vmatpush1.bf16.xpose.msra.mxu0 0
        %630 = vmatprep.subr.bf16.mxu0 0
        %631 = vmatpush1.bf16.xpose.msra.mxu0 0
        %632 = vmatprep.subr.bf16.mxu0 0
        %633 = vmatpush1.bf16.xpose.msra.mxu0 0
        %634 = vmatprep.subr.bf16.mxu0 0
        %635 = vmatpush1.bf16.xpose.msra.mxu0 0
        %636 = vmatprep.subr.bf16.mxu0 0
        %637 = vmatpush1.bf16.xpose.msra.mxu0 0
        %638 = vmatprep.subr.bf16.mxu0 0
        %639 = vmatpush1.bf16.xpose.msra.mxu0 0
        %640 = vmatprep.subr.bf16.mxu0 0
        %641 = vmatpush1.bf16.xpose.msra.mxu0 0
        %642 = vmatprep.mubr.bf16.mxu0 0
        %643 = vmatmul.mubr.bf16.gmra.mrb[0].mxu0 %v605
        %v644 = vpop.f32.mrb[0].mxu0
        %v645 = vadd.f32 0.0, %v644
        %v646 = vpop.f32.mrb[0].mxu0
        %v647 = vpop.f32.mrb[0].mxu0
        %v648 = vpop.f32.mrb[0].mxu0
        %649 = vdwg.mxu0
        %651 = vrot.lane.b32.xlu0 %v549, 96
        %v652 = vpop.permute.xlu0 %651
        %v654 = vsel %vm554, %v549, 0
        %v657 = vsel %vm554, %v652, 0
        %659 = vmatprep.subr.bf16.mxu0 0
        %660 = vmatpush1.bf16.xpose.msra.mxu0 %v657
        %661 = vmatprep.subr.bf16.mxu0 0
        %662 = vmatpush1.bf16.xpose.msra.mxu0 0
        %663 = vmatprep.subr.bf16.mxu0 0
        %664 = vmatpush1.bf16.xpose.msra.mxu0 0
        %665 = vmatprep.subr.bf16.mxu0 0
        %666 = vmatpush1.bf16.xpose.msra.mxu0 0
        %667 = vmatprep.subr.bf16.mxu0 0
        %668 = vmatpush1.bf16.xpose.msra.mxu0 0
        %669 = vmatprep.subr.bf16.mxu0 0
        %670 = vmatpush1.bf16.xpose.msra.mxu0 0
        %671 = vmatprep.subr.bf16.mxu0 0
        %672 = vmatpush1.bf16.xpose.msra.mxu0 0
        %673 = vmatprep.subr.bf16.mxu0 0
        %674 = vmatpush1.bf16.xpose.msra.mxu0 0
        %675 = vmatprep.subr.bf16.mxu0 0
        %676 = vmatpush1.bf16.xpose.msra.mxu0 0
        %677 = vmatprep.subr.bf16.mxu0 0
        %678 = vmatpush1.bf16.xpose.msra.mxu0 0
        %679 = vmatprep.subr.bf16.mxu0 0
        %680 = vmatpush1.bf16.xpose.msra.mxu0 0
        %681 = vmatprep.subr.bf16.mxu0 0
        %682 = vmatpush1.bf16.xpose.msra.mxu0 0
        %683 = vmatprep.subr.bf16.mxu0 0
        %684 = vmatpush1.bf16.xpose.msra.mxu0 0
        %685 = vmatprep.subr.bf16.mxu0 0
        %686 = vmatpush1.bf16.xpose.msra.mxu0 0
        %687 = vmatprep.subr.bf16.mxu0 0
        %688 = vmatpush1.bf16.xpose.msra.mxu0 0
        %689 = vmatprep.subr.bf16.mxu0 0
        %690 = vmatpush1.bf16.xpose.msra.mxu0 0
        %691 = vmatprep.mubr.bf16.mxu0 0
        %692 = vmatmul.mubr.bf16.gmra.mrb[0].mxu0 %v654
        %v693 = vpop.f32.mrb[0].mxu0
        %v694 = vadd.f32 0.0, %v693
        %v695 = vpop.f32.mrb[0].mxu0
        %v696 = vpop.f32.mrb[0].mxu0
        %v697 = vpop.f32.mrb[0].mxu0
        %698 = vdwg.mxu0
        %700 = vrot.lane.b32.xlu0 %v550, 96
        %v701 = vpop.permute.xlu0 %700
        %v703 = vsel %vm554, %v550, 0
        %v706 = vsel %vm554, %v701, 0
        %708 = vmatprep.subr.bf16.mxu0 0
        %709 = vmatpush1.bf16.xpose.msra.mxu0 %v706
        %710 = vmatprep.subr.bf16.mxu0 0
        %711 = vmatpush1.bf16.xpose.msra.mxu0 0
        %712 = vmatprep.subr.bf16.mxu0 0
        %713 = vmatpush1.bf16.xpose.msra.mxu0 0
        %714 = vmatprep.subr.bf16.mxu0 0
        %715 = vmatpush1.bf16.xpose.msra.mxu0 0
        %716 = vmatprep.subr.bf16.mxu0 0
        %717 = vmatpush1.bf16.xpose.msra.mxu0 0
        %718 = vmatprep.subr.bf16.mxu0 0
        %719 = vmatpush1.bf16.xpose.msra.mxu0 0
        %720 = vmatprep.subr.bf16.mxu0 0
        %721 = vmatpush1.bf16.xpose.msra.mxu0 0
        %722 = vmatprep.subr.bf16.mxu0 0
        %723 = vmatpush1.bf16.xpose.msra.mxu0 0
        %724 = vmatprep.subr.bf16.mxu0 0
        %725 = vmatpush1.bf16.xpose.msra.mxu0 0
        %726 = vmatprep.subr.bf16.mxu0 0
        %727 = vmatpush1.bf16.xpose.msra.mxu0 0
        %728 = vmatprep.subr.bf16.mxu0 0
        %729 = vmatpush1.bf16.xpose.msra.mxu0 0
        %730 = vmatprep.subr.bf16.mxu0 0
        %731 = vmatpush1.bf16.xpose.msra.mxu0 0
        %732 = vmatprep.subr.bf16.mxu0 0
        %733 = vmatpush1.bf16.xpose.msra.mxu0 0
        %734 = vmatprep.subr.bf16.mxu0 0
        %735 = vmatpush1.bf16.xpose.msra.mxu0 0
        %736 = vmatprep.subr.bf16.mxu0 0
        %737 = vmatpush1.bf16.xpose.msra.mxu0 0
        %738 = vmatprep.subr.bf16.mxu0 0
        %739 = vmatpush1.bf16.xpose.msra.mxu0 0
        %740 = vmatprep.mubr.bf16.mxu0 0
        %741 = vmatmul.mubr.bf16.gmra.mrb[0].mxu0 %v703
        %v742 = vpop.f32.mrb[0].mxu0
        %v743 = vadd.f32 0.0, %v742
        %v744 = vpop.f32.mrb[0].mxu0
        %v745 = vpop.f32.mrb[0].mxu0
        %v746 = vpop.f32.mrb[0].mxu0
        %747 = vdwg.mxu0
        %v748 = vsel %vm554, %v596, -inf
        %749 = vmax.xlane.f32.xlu0 %v748
        %v750 = vpop.xlane.xlu0 %749
        %v751 = vsel %vm554, %v645, -inf
        %752 = vmax.xlane.f32.xlu0 %v751
        %v753 = vpop.xlane.xlu0 %752
        %v754 = vsel %vm554, %v694, -inf
        %755 = vmax.xlane.f32.xlu0 %v754
        %v756 = vpop.xlane.xlu0 %755
        %v757 = vsel %vm554, %v743, -inf
        %758 = vmax.xlane.f32.xlu0 %v757
        %v759 = vpop.xlane.xlu0 %758
        %v760 = vsub.f32 -inf, %v750
        %v761 = vsub.f32 -inf, %v753
        %v762 = vsub.f32 -inf, %v756
        %v763 = vsub.f32 -inf, %v759
        %v764 = vmul.f32 %v760, 1.442695
        %v765 = vpow.pop %v764
        %v766 = vmul.f32 %v761, 1.442695
        %v767 = vpow.pop %v766
        %v768 = vmul.f32 %v762, 1.442695
        %v769 = vpow.pop %v768
        %v770 = vmul.f32 %v763, 1.442695
        %v771 = vpow.pop %v770
        %v772 = vsub.f32 %v596, %v750
        %v773 = vsub.f32 %v645, %v753
        %v774 = vsub.f32 %v694, %v756
        %v775 = vsub.f32 %v743, %v759
        %v776 = vmul.f32 %v772, 1.442695
        %v777 = vpow.pop %v776
        %v778 = vmul.f32 %v773, 1.442695
        %v779 = vpow.pop %v778
        %v780 = vmul.f32 %v774, 1.442695
        %v781 = vpow.pop %v780
        %v782 = vmul.f32 %v775, 1.442695
        %v783 = vpow.pop %v782
        %v784 = vmul.f32 %v765, 0.0
        %v785 = vmul.f32 %v767, 0.0
        %v786 = vmul.f32 %v769, 0.0
        %v787 = vmul.f32 %v771, 0.0
        %v788 = vsel %vm554, %v777, 0.0
        %789 = vadd.xlane.f32.xlu0 %v788
        %v790 = vpop.xlane.xlu0 %789
        %v791 = vsel %vm554, %v779, 0.0
        %792 = vadd.xlane.f32.xlu0 %v791
        %v793 = vpop.xlane.xlu0 %792
        %v794 = vsel %vm554, %v781, 0.0
        %795 = vadd.xlane.f32.xlu0 %v794
        %v796 = vpop.xlane.xlu0 %795
        %v797 = vsel %vm554, %v783, 0.0
        %798 = vadd.xlane.f32.xlu0 %v797
        %v799 = vpop.xlane.xlu0 %798
        %v800 = vadd.f32 %v784, %v790
        %v801 = vadd.f32 %v785, %v793
        %v802 = vadd.f32 %v786, %v796
        %v803 = vadd.f32 %v787, %v799
        %v804 = vpack.c.bf16 %v777, %v777
        %v805 = vpack.c.bf16 %v779, %v779
        %v806 = vpack.c.bf16 %v781, %v781
        %v807 = vpack.c.bf16 %v783, %v783
        %808 = vrot.lane.b32.xlu0 %v547, 64
        %v809 = vpop.permute.xlu0 %808
        %v811 = vsel %vm554, %v804, 0
        %vm813 = vcmask 1043456
        %v815 = vsel %vm813, %v809, 0
        %817 = vmatprep.subr.bf16.mxu0 0
        %818 = vmatpush1.bf16.msra.mxu0 %v815
        %819 = vmatprep.subr.bf16.mxu0 0
        %820 = vmatpush1.bf16.msra.mxu0 0
        %821 = vmatprep.subr.bf16.mxu0 0
        %822 = vmatpush1.bf16.msra.mxu0 0
        %823 = vmatprep.subr.bf16.mxu0 0
        %824 = vmatpush1.bf16.msra.mxu0 0
        %825 = vmatprep.subr.bf16.mxu0 0
        %826 = vmatpush1.bf16.msra.mxu0 0
        %827 = vmatprep.subr.bf16.mxu0 0
        %828 = vmatpush1.bf16.msra.mxu0 0
        %829 = vmatprep.subr.bf16.mxu0 0
        %830 = vmatpush1.bf16.msra.mxu0 0
        %831 = vmatprep.subr.bf16.mxu0 0
        %832 = vmatpush1.bf16.msra.mxu0 0
        %833 = vmatprep.subr.bf16.mxu0 0
        %834 = vmatpush1.bf16.msra.mxu0 0
        %835 = vmatprep.subr.bf16.mxu0 0
        %836 = vmatpush1.bf16.msra.mxu0 0
        %837 = vmatprep.subr.bf16.mxu0 0
        %838 = vmatpush1.bf16.msra.mxu0 0
        %839 = vmatprep.subr.bf16.mxu0 0
        %840 = vmatpush1.bf16.msra.mxu0 0
        %841 = vmatprep.subr.bf16.mxu0 0
        %842 = vmatpush1.bf16.msra.mxu0 0
        %843 = vmatprep.subr.bf16.mxu0 0
        %844 = vmatpush1.bf16.msra.mxu0 0
        %845 = vmatprep.subr.bf16.mxu0 0
        %846 = vmatpush1.bf16.msra.mxu0 0
        %847 = vmatprep.subr.bf16.mxu0 0
        %848 = vmatpush1.bf16.msra.mxu0 0
        %849 = vmatprep.mubr.bf16.mxu0 0
        %850 = vmatmul.mubr.bf16.gmra.mrb[0].mxu0 %v811
        %v851 = vpop.f32.mrb[0].mxu0
        %v852 = vadd.f32 0.0, %v851
        %v853 = vpop.f32.mrb[0].mxu0
        %v854 = vpop.f32.mrb[0].mxu0
        %v855 = vpop.f32.mrb[0].mxu0
        %856 = vdwg.mxu0
        %857 = vrot.lane.b32.xlu0 %v548, 64
        %v858 = vpop.permute.xlu0 %857
        %v860 = vsel %vm554, %v805, 0
        %v863 = vsel %vm813, %v858, 0
        %865 = vmatprep.subr.bf16.mxu0 0
        %866 = vmatpush1.bf16.msra.mxu0 %v863
        %867 = vmatprep.subr.bf16.mxu0 0
        %868 = vmatpush1.bf16.msra.mxu0 0
        %869 = vmatprep.subr.bf16.mxu0 0
        %870 = vmatpush1.bf16.msra.mxu0 0
        %871 = vmatprep.subr.bf16.mxu0 0
        %872 = vmatpush1.bf16.msra.mxu0 0
        %873 = vmatprep.subr.bf16.mxu0 0
        %874 = vmatpush1.bf16.msra.mxu0 0
        %875 = vmatprep.subr.bf16.mxu0 0
        %876 = vmatpush1.bf16.msra.mxu0 0
        %877 = vmatprep.subr.bf16.mxu0 0
        %878 = vmatpush1.bf16.msra.mxu0 0
        %879 = vmatprep.subr.bf16.mxu0 0
        %880 = vmatpush1.bf16.msra.mxu0 0
        %881 = vmatprep.subr.bf16.mxu0 0
        %882 = vmatpush1.bf16.msra.mxu0 0
        %883 = vmatprep.subr.bf16.mxu0 0
        %884 = vmatpush1.bf16.msra.mxu0 0
        %885 = vmatprep.subr.bf16.mxu0 0
        %886 = vmatpush1.bf16.msra.mxu0 0
        %887 = vmatprep.subr.bf16.mxu0 0
        %888 = vmatpush1.bf16.msra.mxu0 0
        %889 = vmatprep.subr.bf16.mxu0 0
        %890 = vmatpush1.bf16.msra.mxu0 0
        %891 = vmatprep.subr.bf16.mxu0 0
        %892 = vmatpush1.bf16.msra.mxu0 0
        %893 = vmatprep.subr.bf16.mxu0 0
        %894 = vmatpush1.bf16.msra.mxu0 0
        %895 = vmatprep.subr.bf16.mxu0 0
        %896 = vmatpush1.bf16.msra.mxu0 0
        %897 = vmatprep.mubr.bf16.mxu0 0
        %898 = vmatmul.mubr.bf16.gmra.mrb[0].mxu0 %v860
        %v899 = vpop.f32.mrb[0].mxu0
        %v900 = vadd.f32 0.0, %v899
        %v901 = vpop.f32.mrb[0].mxu0
        %v902 = vpop.f32.mrb[0].mxu0
        %v903 = vpop.f32.mrb[0].mxu0
        %904 = vdwg.mxu0
        %905 = vrot.lane.b32.xlu0 %v549, 64
        %v906 = vpop.permute.xlu0 %905
        %v908 = vsel %vm554, %v806, 0
        %v911 = vsel %vm813, %v906, 0
        %913 = vmatprep.subr.bf16.mxu0 0
        %914 = vmatpush1.bf16.msra.mxu0 %v911
        %915 = vmatprep.subr.bf16.mxu0 0
        %916 = vmatpush1.bf16.msra.mxu0 0
        %917 = vmatprep.subr.bf16.mxu0 0
        %918 = vmatpush1.bf16.msra.mxu0 0
        %919 = vmatprep.subr.bf16.mxu0 0
        %920 = vmatpush1.bf16.msra.mxu0 0
        %921 = vmatprep.subr.bf16.mxu0 0
        %922 = vmatpush1.bf16.msra.mxu0 0
        %923 = vmatprep.subr.bf16.mxu0 0
        %924 = vmatpush1.bf16.msra.mxu0 0
        %925 = vmatprep.subr.bf16.mxu0 0
        %926 = vmatpush1.bf16.msra.mxu0 0
        %927 = vmatprep.subr.bf16.mxu0 0
        %928 = vmatpush1.bf16.msra.mxu0 0
        %929 = vmatprep.subr.bf16.mxu0 0
        %930 = vmatpush1.bf16.msra.mxu0 0
        %931 = vmatprep.subr.bf16.mxu0 0
        %932 = vmatpush1.bf16.msra.mxu0 0
        %933 = vmatprep.subr.bf16.mxu0 0
        %934 = vmatpush1.bf16.msra.mxu0 0
        %935 = vmatprep.subr.bf16.mxu0 0
        %936 = vmatpush1.bf16.msra.mxu0 0
        %937 = vmatprep.subr.bf16.mxu0 0
        %938 = vmatpush1.bf16.msra.mxu0 0
        %939 = vmatprep.subr.bf16.mxu0 0
        %940 = vmatpush1.bf16.msra.mxu0 0
        %941 = vmatprep.subr.bf16.mxu0 0
        %942 = vmatpush1.bf16.msra.mxu0 0
        %943 = vmatprep.subr.bf16.mxu0 0
        %944 = vmatpush1.bf16.msra.mxu0 0
        %945 = vmatprep.mubr.bf16.mxu0 0
        %946 = vmatmul.mubr.bf16.gmra.mrb[0].mxu0 %v908
        %v947 = vpop.f32.mrb[0].mxu0
        %v948 = vadd.f32 0.0, %v947
        %v949 = vpop.f32.mrb[0].mxu0
        %v950 = vpop.f32.mrb[0].mxu0
        %v951 = vpop.f32.mrb[0].mxu0
        %952 = vdwg.mxu0
        %953 = vrot.lane.b32.xlu0 %v550, 64
        %v954 = vpop.permute.xlu0 %953
        %v956 = vsel %vm554, %v807, 0
        %v959 = vsel %vm813, %v954, 0
        %961 = vmatprep.subr.bf16.mxu0 0
        %962 = vmatpush1.bf16.msra.mxu0 %v959
        %963 = vmatprep.subr.bf16.mxu0 0
        %964 = vmatpush1.bf16.msra.mxu0 0
        %965 = vmatprep.subr.bf16.mxu0 0
        %966 = vmatpush1.bf16.msra.mxu0 0
        %967 = vmatprep.subr.bf16.mxu0 0
        %968 = vmatpush1.bf16.msra.mxu0 0
        %969 = vmatprep.subr.bf16.mxu0 0
        %970 = vmatpush1.bf16.msra.mxu0 0
        %971 = vmatprep.subr.bf16.mxu0 0
        %972 = vmatpush1.bf16.msra.mxu0 0
        %973 = vmatprep.subr.bf16.mxu0 0
        %974 = vmatpush1.bf16.msra.mxu0 0
        %975 = vmatprep.subr.bf16.mxu0 0
        %976 = vmatpush1.bf16.msra.mxu0 0
        %977 = vmatprep.subr.bf16.mxu0 0
        %978 = vmatpush1.bf16.msra.mxu0 0
        %979 = vmatprep.subr.bf16.mxu0 0
        %980 = vmatpush1.bf16.msra.mxu0 0
        %981 = vmatprep.subr.bf16.mxu0 0
        %982 = vmatpush1.bf16.msra.mxu0 0
        %983 = vmatprep.subr.bf16.mxu0 0
        %984 = vmatpush1.bf16.msra.mxu0 0
        %985 = vmatprep.subr.bf16.mxu0 0
        %986 = vmatpush1.bf16.msra.mxu0 0
        %987 = vmatprep.subr.bf16.mxu0 0
        %988 = vmatpush1.bf16.msra.mxu0 0
        %989 = vmatprep.subr.bf16.mxu0 0
        %990 = vmatpush1.bf16.msra.mxu0 0
        %991 = vmatprep.subr.bf16.mxu0 0
        %992 = vmatpush1.bf16.msra.mxu0 0
        %993 = vmatprep.mubr.bf16.mxu0 0
        %994 = vmatmul.mubr.bf16.gmra.mrb[0].mxu0 %v956
        %v995 = vpop.f32.mrb[0].mxu0
        %v996 = vadd.f32 0.0, %v995
        %v997 = vpop.f32.mrb[0].mxu0
        %v998 = vpop.f32.mrb[0].mxu0
        %v999 = vpop.f32.mrb[0].mxu0
        %1000 = vdwg.mxu0
        %v1001 = vadd.f32 %v784, %v852
        %v1002 = vadd.f32 %v785, %v900
        %v1003 = vadd.f32 %v786, %v948
        %v1004 = vadd.f32 %v787, %v996
        %v1005 = vrcp.pop %v800
        %v1006 = vrcp.pop %v801
        %v1007 = vrcp.pop %v802
        %v1008 = vrcp.pop %v803
        %v1009 = vmul.f32 %v1001, %v1005
        %v1010 = vmul.f32 %v1002, %v1006
        %v1011 = vmul.f32 %v1003, %v1007
        %v1012 = vmul.f32 %v1004, %v1008
        %1013 = vst.msk [vmem:[#allocation2] sm:$0xff] %vm554, %v1009
        %1014 = vst.msk [vmem:[#allocation2 + $0x8] sm:$0xff] %vm554, %v1010
        %1015 = vst.msk [vmem:[#allocation2 + $0x10] sm:$0xff] %vm554, %v1011
        %1016 = vst.msk [vmem:[#allocation2 + $0x18] sm:$0xff] %vm554, %v1012
        %1017 = vrot.lane.b32.xlu0 %v547, 120
        %v1018 = vpop.permute.xlu0 %1017
        %1019 = vrot.lane.b32.xlu0 %v547, 88
        %v1020 = vpop.permute.xlu0 %1019
        %v1022 = vsel %vm554, %v1018, 0
        %v1025 = vsel %vm554, %v1020, 0
        %1027 = vmatprep.subr.bf16.mxu0 0
        %1028 = vmatpush1.bf16.xpose.msra.mxu0 %v1025
        %1029 = vmatprep.subr.bf16.mxu0 0
        %1030 = vmatpush1.bf16.xpose.msra.mxu0 0
        %1031 = vmatprep.subr.bf16.mxu0 0
        %1032 = vmatpush1.bf16.xpose.msra.mxu0 0
        %1033 = vmatprep.subr.bf16.mxu0 0
        %1034 = vmatpush1.bf16.xpose.msra.mxu0 0
        %1035 = vmatprep.subr.bf16.mxu0 0
        %1036 = vmatpush1.bf16.xpose.msra.mxu0 0
        %1037 = vmatprep.subr.bf16.mxu0 0
        %1038 = vmatpush1.bf16.xpose.msra.mxu0 0
        %1039 = vmatprep.subr.bf16.mxu0 0
        %1040 = vmatpush1.bf16.xpose.msra.mxu0 0
        %1041 = vmatprep.subr.bf16.mxu0 0
        %1042 = vmatpush1.bf16.xpose.msra.mxu0 0
        %1043 = vmatprep.subr.bf16.mxu0 0
        %1044 = vmatpush1.bf16.xpose.msra.mxu0 0
        %1045 = vmatprep.subr.bf16.mxu0 0
        %1046 = vmatpush1.bf16.xpose.msra.mxu0 0
        %1047 = vmatprep.subr.bf16.mxu0 0
        %1048 = vmatpush1.bf16.xpose.msra.mxu0 0
        %1049 = vmatprep.subr.bf16.mxu0 0
        %1050 = vmatpush1.bf16.xpose.msra.mxu0 0
        %1051 = vmatprep.subr.bf16.mxu0 0
        %1052 = vmatpush1.bf16.xpose.msra.mxu0 0
        %1053 = vmatprep.subr.bf16.mxu0 0
        %1054 = vmatpush1.bf16.xpose.msra.mxu0 0
        %1055 = vmatprep.subr.bf16.mxu0 0
        %1056 = vmatpush1.bf16.xpose.msra.mxu0 0
        %1057 = vmatprep.subr.bf16.mxu0 0
        %1058 = vmatpush1.bf16.xpose.msra.mxu0 0
        %1059 = vmatprep.mubr.bf16.mxu0 0
        %1060 = vmatmul.mubr.bf16.gmra.mrb[0].mxu0 %v1022
        %v1061 = vpop.f32.mrb[0].mxu0
        %v1062 = vadd.f32 0.0, %v1061
        %v1063 = vpop.f32.mrb[0].mxu0
        %v1064 = vpop.f32.mrb[0].mxu0
        %v1065 = vpop.f32.mrb[0].mxu0
        %1066 = vdwg.mxu0
        %1067 = vrot.lane.b32.xlu0 %v548, 120
        %v1068 = vpop.permute.xlu0 %1067
        %1069 = vrot.lane.b32.xlu0 %v548, 88
        %v1070 = vpop.permute.xlu0 %1069
        %v1072 = vsel %vm554, %v1068, 0
        %v1075 = vsel %vm554, %v1070, 0
        %1077 = vmatprep.subr.bf16.mxu0 0
        %1078 = vmatpush1.bf16.xpose.msra.mxu0 %v1075
        %1079 = vmatprep.subr.bf16.mxu0 0
        %1080 = vmatpush1.bf16.xpose.msra.mxu0 0
        %1081 = vmatprep.subr.bf16.mxu0 0
        %1082 = vmatpush1.bf16.xpose.msra.mxu0 0
        %1083 = vmatprep.subr.bf16.mxu0 0
        %1084 = vmatpush1.bf16.xpose.msra.mxu0 0
        %1085 = vmatprep.subr.bf16.mxu0 0
        %1086 = vmatpush1.bf16.xpose.msra.mxu0 0
        %1087 = vmatprep.subr.bf16.mxu0 0
        %1088 = vmatpush1.bf16.xpose.msra.mxu0 0
        %1089 = vmatprep.subr.bf16.mxu0 0
        %1090 = vmatpush1.bf16.xpose.msra.mxu0 0
        %1091 = vmatprep.subr.bf16.mxu0 0
        %1092 = vmatpush1.bf16.xpose.msra.mxu0 0
        %1093 = vmatprep.subr.bf16.mxu0 0
        %1094 = vmatpush1.bf16.xpose.msra.mxu0 0
        %1095 = vmatprep.subr.bf16.mxu0 0
        %1096 = vmatpush1.bf16.xpose.msra.mxu0 0
        %1097 = vmatprep.subr.bf16.mxu0 0
        %1098 = vmatpush1.bf16.xpose.msra.mxu0 0
        %1099 = vmatprep.subr.bf16.mxu0 0
        %1100 = vmatpush1.bf16.xpose.msra.mxu0 0
        %1101 = vmatprep.subr.bf16.mxu0 0
        %1102 = vmatpush1.bf16.xpose.msra.mxu0 0
        %1103 = vmatprep.subr.bf16.mxu0 0
        %1104 = vmatpush1.bf16.xpose.msra.mxu0 0
        %1105 = vmatprep.subr.bf16.mxu0 0
        %1106 = vmatpush1.bf16.xpose.msra.mxu0 0
        %1107 = vmatprep.subr.bf16.mxu0 0
        %1108 = vmatpush1.bf16.xpose.msra.mxu0 0
        %1109 = vmatprep.mubr.bf16.mxu0 0
        %1110 = vmatmul.mubr.bf16.gmra.mrb[0].mxu0 %v1072
        %v1111 = vpop.f32.mrb[0].mxu0
        %v1112 = vadd.f32 0.0, %v1111
        %v1113 = vpop.f32.mrb[0].mxu0
        %v1114 = vpop.f32.mrb[0].mxu0
        %v1115 = vpop.f32.mrb[0].mxu0
        %1116 = vdwg.mxu0
        %1117 = vrot.lane.b32.xlu0 %v549, 120
        %v1118 = vpop.permute.xlu0 %1117
        %1119 = vrot.lane.b32.xlu0 %v549, 88
        %v1120 = vpop.permute.xlu0 %1119
        %v1122 = vsel %vm554, %v1118, 0
        %v1125 = vsel %vm554, %v1120, 0
        %1127 = vmatprep.subr.bf16.mxu0 0
        %1128 = vmatpush1.bf16.xpose.msra.mxu0 %v1125
        %1129 = vmatprep.subr.bf16.mxu0 0
        %1130 = vmatpush1.bf16.xpose.msra.mxu0 0
        %1131 = vmatprep.subr.bf16.mxu0 0
        %1132 = vmatpush1.bf16.xpose.msra.mxu0 0
        %1133 = vmatprep.subr.bf16.mxu0 0
        %1134 = vmatpush1.bf16.xpose.msra.mxu0 0
        %1135 = vmatprep.subr.bf16.mxu0 0
        %1136 = vmatpush1.bf16.xpose.msra.mxu0 0
        %1137 = vmatprep.subr.bf16.mxu0 0
        %1138 = vmatpush1.bf16.xpose.msra.mxu0 0
        %1139 = vmatprep.subr.bf16.mxu0 0
        %1140 = vmatpush1.bf16.xpose.msra.mxu0 0
        %1141 = vmatprep.subr.bf16.mxu0 0
        %1142 = vmatpush1.bf16.xpose.msra.mxu0 0
        %1143 = vmatprep.subr.bf16.mxu0 0
        %1144 = vmatpush1.bf16.xpose.msra.mxu0 0
        %1145 = vmatprep.subr.bf16.mxu0 0
        %1146 = vmatpush1.bf16.xpose.msra.mxu0 0
        %1147 = vmatprep.subr.bf16.mxu0 0
        %1148 = vmatpush1.bf16.xpose.msra.mxu0 0
        %1149 = vmatprep.subr.bf16.mxu0 0
        %1150 = vmatpush1.bf16.xpose.msra.mxu0 0
        %1151 = vmatprep.subr.bf16.mxu0 0
        %1152 = vmatpush1.bf16.xpose.msra.mxu0 0
        %1153 = vmatprep.subr.bf16.mxu0 0
        %1154 = vmatpush1.bf16.xpose.msra.mxu0 0
        %1155 = vmatprep.subr.bf16.mxu0 0
        %1156 = vmatpush1.bf16.xpose.msra.mxu0 0
        %1157 = vmatprep.subr.bf16.mxu0 0
        %1158 = vmatpush1.bf16.xpose.msra.mxu0 0
        %1159 = vmatprep.mubr.bf16.mxu0 0
        %1160 = vmatmul.mubr.bf16.gmra.mrb[0].mxu0 %v1122
        %v1161 = vpop.f32.mrb[0].mxu0
        %v1162 = vadd.f32 0.0, %v1161
        %v1163 = vpop.f32.mrb[0].mxu0
        %v1164 = vpop.f32.mrb[0].mxu0
        %v1165 = vpop.f32.mrb[0].mxu0
        %1166 = vdwg.mxu0
        %1167 = vrot.lane.b32.xlu0 %v550, 120
        %v1168 = vpop.permute.xlu0 %1167
        %1169 = vrot.lane.b32.xlu0 %v550, 88
        %v1170 = vpop.permute.xlu0 %1169
        %v1172 = vsel %vm554, %v1168, 0
        %v1175 = vsel %vm554, %v1170, 0
        %1177 = vmatprep.subr.bf16.mxu0 0
        %1178 = vmatpush1.bf16.xpose.msra.mxu0 %v1175
        %1179 = vmatprep.subr.bf16.mxu0 0
        %1180 = vmatpush1.bf16.xpose.msra.mxu0 0
        %1181 = vmatprep.subr.bf16.mxu0 0
        %1182 = vmatpush1.bf16.xpose.msra.mxu0 0
        %1183 = vmatprep.subr.bf16.mxu0 0
        %1184 = vmatpush1.bf16.xpose.msra.mxu0 0
        %1185 = vmatprep.subr.bf16.mxu0 0
        %1186 = vmatpush1.bf16.xpose.msra.mxu0 0
        %1187 = vmatprep.subr.bf16.mxu0 0
        %1188 = vmatpush1.bf16.xpose.msra.mxu0 0
        %1189 = vmatprep.subr.bf16.mxu0 0
        %1190 = vmatpush1.bf16.xpose.msra.mxu0 0
        %1191 = vmatprep.subr.bf16.mxu0 0
        %1192 = vmatpush1.bf16.xpose.msra.mxu0 0
        %1193 = vmatprep.subr.bf16.mxu0 0
        %1194 = vmatpush1.bf16.xpose.msra.mxu0 0
        %1195 = vmatprep.subr.bf16.mxu0 0
        %1196 = vmatpush1.bf16.xpose.msra.mxu0 0
        %1197 = vmatprep.subr.bf16.mxu0 0
        %1198 = vmatpush1.bf16.xpose.msra.mxu0 0
        %1199 = vmatprep.subr.bf16.mxu0 0
        %1200 = vmatpush1.bf16.xpose.msra.mxu0 0
        %1201 = vmatprep.subr.bf16.mxu0 0
        %1202 = vmatpush1.bf16.xpose.msra.mxu0 0
        %1203 = vmatprep.subr.bf16.mxu0 0
        %1204 = vmatpush1.bf16.xpose.msra.mxu0 0
        %1205 = vmatprep.subr.bf16.mxu0 0
        %1206 = vmatpush1.bf16.xpose.msra.mxu0 0
        %1207 = vmatprep.subr.bf16.mxu0 0
        %1208 = vmatpush1.bf16.xpose.msra.mxu0 0
        %1209 = vmatprep.mubr.bf16.mxu0 0
        %1210 = vmatmul.mubr.bf16.gmra.mrb[0].mxu0 %v1172
        %v1211 = vpop.f32.mrb[0].mxu0
        %v1212 = vadd.f32 0.0, %v1211
        %v1213 = vpop.f32.mrb[0].mxu0
        %v1214 = vpop.f32.mrb[0].mxu0
        %v1215 = vpop.f32.mrb[0].mxu0
        %1216 = vdwg.mxu0
        %v1217 = vsel %vm554, %v1062, -inf
        %1218 = vmax.xlane.f32.xlu0 %v1217
        %v1219 = vpop.xlane.xlu0 %1218
        %v1220 = vsel %vm554, %v1112, -inf
        %1221 = vmax.xlane.f32.xlu0 %v1220
        %v1222 = vpop.xlane.xlu0 %1221
        %v1223 = vsel %vm554, %v1162, -inf
        %1224 = vmax.xlane.f32.xlu0 %v1223
        %v1225 = vpop.xlane.xlu0 %1224
        %v1226 = vsel %vm554, %v1212, -inf
        %1227 = vmax.xlane.f32.xlu0 %v1226
        %v1228 = vpop.xlane.xlu0 %1227
        %v1229 = vsub.f32 -inf, %v1219
        %v1230 = vsub.f32 -inf, %v1222
        %v1231 = vsub.f32 -inf, %v1225
        %v1232 = vsub.f32 -inf, %v1228
        %v1233 = vmul.f32 %v1229, 1.442695
        %v1234 = vpow.pop %v1233
        %v1235 = vmul.f32 %v1230, 1.442695
        %v1236 = vpow.pop %v1235
        %v1237 = vmul.f32 %v1231, 1.442695
        %v1238 = vpow.pop %v1237
        %v1239 = vmul.f32 %v1232, 1.442695
        %v1240 = vpow.pop %v1239
        %v1241 = vsub.f32 %v1062, %v1219
        %v1242 = vsub.f32 %v1112, %v1222
        %v1243 = vsub.f32 %v1162, %v1225
        %v1244 = vsub.f32 %v1212, %v1228
        %v1245 = vmul.f32 %v1241, 1.442695
        %v1246 = vpow.pop %v1245
        %v1247 = vmul.f32 %v1242, 1.442695
        %v1248 = vpow.pop %v1247
        %v1249 = vmul.f32 %v1243, 1.442695
        %v1250 = vpow.pop %v1249
        %v1251 = vmul.f32 %v1244, 1.442695
        %v1252 = vpow.pop %v1251
        %v1253 = vmul.f32 %v1234, 0.0
        %v1254 = vmul.f32 %v1236, 0.0
        %v1255 = vmul.f32 %v1238, 0.0
        %v1256 = vmul.f32 %v1240, 0.0
        %v1257 = vsel %vm554, %v1246, 0.0
        %1258 = vadd.xlane.f32.xlu0 %v1257
        %v1259 = vpop.xlane.xlu0 %1258
        %v1260 = vsel %vm554, %v1248, 0.0
        %1261 = vadd.xlane.f32.xlu0 %v1260
        %v1262 = vpop.xlane.xlu0 %1261
        %v1263 = vsel %vm554, %v1250, 0.0
        %1264 = vadd.xlane.f32.xlu0 %v1263
        %v1265 = vpop.xlane.xlu0 %1264
        %v1266 = vsel %vm554, %v1252, 0.0
        %1267 = vadd.xlane.f32.xlu0 %v1266
        %v1268 = vpop.xlane.xlu0 %1267
        %v1269 = vadd.f32 %v1253, %v1259
        %v1270 = vadd.f32 %v1254, %v1262
        %v1271 = vadd.f32 %v1255, %v1265
        %v1272 = vadd.f32 %v1256, %v1268
        %v1273 = vpack.c.bf16 %v1246, %v1246
        %v1274 = vpack.c.bf16 %v1248, %v1248
        %v1275 = vpack.c.bf16 %v1250, %v1250
        %v1276 = vpack.c.bf16 %v1252, %v1252
        %1277 = vrot.lane.b32.xlu0 %v547, 56
        %v1278 = vpop.permute.xlu0 %1277
        %v1280 = vsel %vm554, %v1273, 0
        %v1283 = vsel %vm813, %v1278, 0
        %1285 = vmatprep.subr.bf16.mxu0 0
        %1286 = vmatpush1.bf16.msra.mxu0 %v1283
        %1287 = vmatprep.subr.bf16.mxu0 0
        %1288 = vmatpush1.bf16.msra.mxu0 0
        %1289 = vmatprep.subr.bf16.mxu0 0
        %1290 = vmatpush1.bf16.msra.mxu0 0
        %1291 = vmatprep.subr.bf16.mxu0 0
        %1292 = vmatpush1.bf16.msra.mxu0 0
        %1293 = vmatprep.subr.bf16.mxu0 0
        %1294 = vmatpush1.bf16.msra.mxu0 0
        %1295 = vmatprep.subr.bf16.mxu0 0
        %1296 = vmatpush1.bf16.msra.mxu0 0
        %1297 = vmatprep.subr.bf16.mxu0 0
        %1298 = vmatpush1.bf16.msra.mxu0 0
        %1299 = vmatprep.subr.bf16.mxu0 0
        %1300 = vmatpush1.bf16.msra.mxu0 0
        %1301 = vmatprep.subr.bf16.mxu0 0
        %1302 = vmatpush1.bf16.msra.mxu0 0
        %1303 = vmatprep.subr.bf16.mxu0 0
        %1304 = vmatpush1.bf16.msra.mxu0 0
        %1305 = vmatprep.subr.bf16.mxu0 0
        %1306 = vmatpush1.bf16.msra.mxu0 0
        %1307 = vmatprep.subr.bf16.mxu0 0
        %1308 = vmatpush1.bf16.msra.mxu0 0
        %1309 = vmatprep.subr.bf16.mxu0 0
        %1310 = vmatpush1.bf16.msra.mxu0 0
        %1311 = vmatprep.subr.bf16.mxu0 0
        %1312 = vmatpush1.bf16.msra.mxu0 0
        %1313 = vmatprep.subr.bf16.mxu0 0
        %1314 = vmatpush1.bf16.msra.mxu0 0
        %1315 = vmatprep.subr.bf16.mxu0 0
        %1316 = vmatpush1.bf16.msra.mxu0 0
        %1317 = vmatprep.mubr.bf16.mxu0 0
        %1318 = vmatmul.mubr.bf16.gmra.mrb[0].mxu0 %v1280
        %v1319 = vpop.f32.mrb[0].mxu0
        %v1320 = vadd.f32 0.0, %v1319
        %v1321 = vpop.f32.mrb[0].mxu0
        %v1322 = vpop.f32.mrb[0].mxu0
        %v1323 = vpop.f32.mrb[0].mxu0
        %1324 = vdwg.mxu0
        %1325 = vrot.lane.b32.xlu0 %v548, 56
        %v1326 = vpop.permute.xlu0 %1325
        %v1328 = vsel %vm554, %v1274, 0
        %v1331 = vsel %vm813, %v1326, 0
        %1333 = vmatprep.subr.bf16.mxu0 0
        %1334 = vmatpush1.bf16.msra.mxu0 %v1331
        %1335 = vmatprep.subr.bf16.mxu0 0
        %1336 = vmatpush1.bf16.msra.mxu0 0
        %1337 = vmatprep.subr.bf16.mxu0 0
        %1338 = vmatpush1.bf16.msra.mxu0 0
        %1339 = vmatprep.subr.bf16.mxu0 0
        %1340 = vmatpush1.bf16.msra.mxu0 0
        %1341 = vmatprep.subr.bf16.mxu0 0
        %1342 = vmatpush1.bf16.msra.mxu0 0
        %1343 = vmatprep.subr.bf16.mxu0 0
        %1344 = vmatpush1.bf16.msra.mxu0 0
        %1345 = vmatprep.subr.bf16.mxu0 0
        %1346 = vmatpush1.bf16.msra.mxu0 0
        %1347 = vmatprep.subr.bf16.mxu0 0
        %1348 = vmatpush1.bf16.msra.mxu0 0
        %1349 = vmatprep.subr.bf16.mxu0 0
        %1350 = vmatpush1.bf16.msra.mxu0 0
        %1351 = vmatprep.subr.bf16.mxu0 0
        %1352 = vmatpush1.bf16.msra.mxu0 0
        %1353 = vmatprep.subr.bf16.mxu0 0
        %1354 = vmatpush1.bf16.msra.mxu0 0
        %1355 = vmatprep.subr.bf16.mxu0 0
        %1356 = vmatpush1.bf16.msra.mxu0 0
        %1357 = vmatprep.subr.bf16.mxu0 0
        %1358 = vmatpush1.bf16.msra.mxu0 0
        %1359 = vmatprep.subr.bf16.mxu0 0
        %1360 = vmatpush1.bf16.msra.mxu0 0
        %1361 = vmatprep.subr.bf16.mxu0 0
        %1362 = vmatpush1.bf16.msra.mxu0 0
        %1363 = vmatprep.subr.bf16.mxu0 0
        %1364 = vmatpush1.bf16.msra.mxu0 0
        %1365 = vmatprep.mubr.bf16.mxu0 0
        %1366 = vmatmul.mubr.bf16.gmra.mrb[0].mxu0 %v1328
        %v1367 = vpop.f32.mrb[0].mxu0
        %v1368 = vadd.f32 0.0, %v1367
        %v1369 = vpop.f32.mrb[0].mxu0
        %v1370 = vpop.f32.mrb[0].mxu0
        %v1371 = vpop.f32.mrb[0].mxu0
        %1372 = vdwg.mxu0
        %1373 = vrot.lane.b32.xlu0 %v549, 56
        %v1374 = vpop.permute.xlu0 %1373
        %v1376 = vsel %vm554, %v1275, 0
        %v1379 = vsel %vm813, %v1374, 0
        %1381 = vmatprep.subr.bf16.mxu0 0
        %1382 = vmatpush1.bf16.msra.mxu0 %v1379
        %1383 = vmatprep.subr.bf16.mxu0 0
        %1384 = vmatpush1.bf16.msra.mxu0 0
        %1385 = vmatprep.subr.bf16.mxu0 0
        %1386 = vmatpush1.bf16.msra.mxu0 0
        %1387 = vmatprep.subr.bf16.mxu0 0
        %1388 = vmatpush1.bf16.msra.mxu0 0
        %1389 = vmatprep.subr.bf16.mxu0 0
        %1390 = vmatpush1.bf16.msra.mxu0 0
        %1391 = vmatprep.subr.bf16.mxu0 0
        %1392 = vmatpush1.bf16.msra.mxu0 0
        %1393 = vmatprep.subr.bf16.mxu0 0
        %1394 = vmatpush1.bf16.msra.mxu0 0
        %1395 = vmatprep.subr.bf16.mxu0 0
        %1396 = vmatpush1.bf16.msra.mxu0 0
        %1397 = vmatprep.subr.bf16.mxu0 0
        %1398 = vmatpush1.bf16.msra.mxu0 0
        %1399 = vmatprep.subr.bf16.mxu0 0
        %1400 = vmatpush1.bf16.msra.mxu0 0
        %1401 = vmatprep.subr.bf16.mxu0 0
        %1402 = vmatpush1.bf16.msra.mxu0 0
        %1403 = vmatprep.subr.bf16.mxu0 0
        %1404 = vmatpush1.bf16.msra.mxu0 0
        %1405 = vmatprep.subr.bf16.mxu0 0
        %1406 = vmatpush1.bf16.msra.mxu0 0
        %1407 = vmatprep.subr.bf16.mxu0 0
        %1408 = vmatpush1.bf16.msra.mxu0 0
        %1409 = vmatprep.subr.bf16.mxu0 0
        %1410 = vmatpush1.bf16.msra.mxu0 0
        %1411 = vmatprep.subr.bf16.mxu0 0
        %1412 = vmatpush1.bf16.msra.mxu0 0
        %1413 = vmatprep.mubr.bf16.mxu0 0
        %1414 = vmatmul.mubr.bf16.gmra.mrb[0].mxu0 %v1376
        %v1415 = vpop.f32.mrb[0].mxu0
        %v1416 = vadd.f32 0.0, %v1415
        %v1417 = vpop.f32.mrb[0].mxu0
        %v1418 = vpop.f32.mrb[0].mxu0
        %v1419 = vpop.f32.mrb[0].mxu0
        %1420 = vdwg.mxu0
        %1421 = vrot.lane.b32.xlu0 %v550, 56
        %v1422 = vpop.permute.xlu0 %1421
        %v1424 = vsel %vm554, %v1276, 0
        %v1427 = vsel %vm813, %v1422, 0
        %1429 = vmatprep.subr.bf16.mxu0 0
        %1430 = vmatpush1.bf16.msra.mxu0 %v1427
        %1431 = vmatprep.subr.bf16.mxu0 0
        %1432 = vmatpush1.bf16.msra.mxu0 0
        %1433 = vmatprep.subr.bf16.mxu0 0
        %1434 = vmatpush1.bf16.msra.mxu0 0
        %1435 = vmatprep.subr.bf16.mxu0 0
        %1436 = vmatpush1.bf16.msra.mxu0 0
        %1437 = vmatprep.subr.bf16.mxu0 0
        %1438 = vmatpush1.bf16.msra.mxu0 0
        %1439 = vmatprep.subr.bf16.mxu0 0
        %1440 = vmatpush1.bf16.msra.mxu0 0
        %1441 = vmatprep.subr.bf16.mxu0 0
        %1442 = vmatpush1.bf16.msra.mxu0 0
        %1443 = vmatprep.subr.bf16.mxu0 0
        %1444 = vmatpush1.bf16.msra.mxu0 0
        %1445 = vmatprep.subr.bf16.mxu0 0
        %1446 = vmatpush1.bf16.msra.mxu0 0
        %1447 = vmatprep.subr.bf16.mxu0 0
        %1448 = vmatpush1.bf16.msra.mxu0 0
        %1449 = vmatprep.subr.bf16.mxu0 0
        %1450 = vmatpush1.bf16.msra.mxu0 0
        %1451 = vmatprep.subr.bf16.mxu0 0
        %1452 = vmatpush1.bf16.msra.mxu0 0
        %1453 = vmatprep.subr.bf16.mxu0 0
        %1454 = vmatpush1.bf16.msra.mxu0 0
        %1455 = vmatprep.subr.bf16.mxu0 0
        %1456 = vmatpush1.bf16.msra.mxu0 0
        %1457 = vmatprep.subr.bf16.mxu0 0
        %1458 = vmatpush1.bf16.msra.mxu0 0
        %1459 = vmatprep.subr.bf16.mxu0 0
        %1460 = vmatpush1.bf16.msra.mxu0 0
        %1461 = vmatprep.mubr.bf16.mxu0 0
        %1462 = vmatmul.mubr.bf16.gmra.mrb[0].mxu0 %v1424
        %v1463 = vpop.f32.mrb[0].mxu0
        %v1464 = vadd.f32 0.0, %v1463
        %v1465 = vpop.f32.mrb[0].mxu0
        %v1466 = vpop.f32.mrb[0].mxu0
        %v1467 = vpop.f32.mrb[0].mxu0
        %1468 = vdwg.mxu0
        %v1469 = vadd.f32 %v1253, %v1320
        %v1470 = vadd.f32 %v1254, %v1368
        %v1471 = vadd.f32 %v1255, %v1416
        %v1472 = vadd.f32 %v1256, %v1464
        %v1473 = vrcp.pop %v1269
        %v1474 = vrcp.pop %v1270
        %v1475 = vrcp.pop %v1271
        %v1476 = vrcp.pop %v1272
        %v1477 = vmul.f32 %v1469, %v1473
        %v1478 = vmul.f32 %v1470, %v1474
        %v1479 = vmul.f32 %v1471, %v1475
        %v1480 = vmul.f32 %v1472, %v1476
        %1485 = vrot.lane.b32.xlu0 %v1477, 8
        %v1486 = vpop.permute.xlu0 %1485
        %1487 = vrot.lane.b32.xlu0 %v1478, 8
        %v1488 = vpop.permute.xlu0 %1487
        %1489 = vrot.lane.b32.xlu0 %v1479, 8
        %v1490 = vpop.permute.xlu0 %1489
        %1491 = vrot.lane.b32.xlu0 %v1480, 8
        %v1492 = vpop.permute.xlu0 %1491
        %vm1497 = vcmask 130112
        %1498 = vst.msk [vmem:[#allocation2] sm:$0xff] %vm1497, %v1486
        %1499 = vst.msk [vmem:[#allocation2 + $0x8] sm:$0xff] %vm1497, %v1488
        %1500 = vst.msk [vmem:[#allocation2 + $0x10] sm:$0xff] %vm1497, %v1490
        %1501 = vst.msk [vmem:[#allocation2 + $0x18] sm:$0xff] %vm1497, %v1492
        %1502 = vrot.lane.b32.xlu0 %v547, 112
        %v1503 = vpop.permute.xlu0 %1502
        %1504 = vrot.lane.b32.xlu0 %v547, 80
        %v1505 = vpop.permute.xlu0 %1504
        %v1507 = vsel %vm554, %v1503, 0
        %v1510 = vsel %vm554, %v1505, 0
        %1512 = vmatprep.subr.bf16.mxu0 0
        %1513 = vmatpush1.bf16.xpose.msra.mxu0 %v1510
        %1514 = vmatprep.subr.bf16.mxu0 0
        %1515 = vmatpush1.bf16.xpose.msra.mxu0 0
        %1516 = vmatprep.subr.bf16.mxu0 0
        %1517 = vmatpush1.bf16.xpose.msra.mxu0 0
        %1518 = vmatprep.subr.bf16.mxu0 0
        %1519 = vmatpush1.bf16.xpose.msra.mxu0 0
        %1520 = vmatprep.subr.bf16.mxu0 0
        %1521 = vmatpush1.bf16.xpose.msra.mxu0 0
        %1522 = vmatprep.subr.bf16.mxu0 0
        %1523 = vmatpush1.bf16.xpose.msra.mxu0 0
        %1524 = vmatprep.subr.bf16.mxu0 0
        %1525 = vmatpush1.bf16.xpose.msra.mxu0 0
        %1526 = vmatprep.subr.bf16.mxu0 0
        %1527 = vmatpush1.bf16.xpose.msra.mxu0 0
        %1528 = vmatprep.subr.bf16.mxu0 0
        %1529 = vmatpush1.bf16.xpose.msra.mxu0 0
        %1530 = vmatprep.subr.bf16.mxu0 0
        %1531 = vmatpush1.bf16.xpose.msra.mxu0 0
        %1532 = vmatprep.subr.bf16.mxu0 0
        %1533 = vmatpush1.bf16.xpose.msra.mxu0 0
        %1534 = vmatprep.subr.bf16.mxu0 0
        %1535 = vmatpush1.bf16.xpose.msra.mxu0 0
        %1536 = vmatprep.subr.bf16.mxu0 0
        %1537 = vmatpush1.bf16.xpose.msra.mxu0 0
        %1538 = vmatprep.subr.bf16.mxu0 0
        %1539 = vmatpush1.bf16.xpose.msra.mxu0 0
        %1540 = vmatprep.subr.bf16.mxu0 0
        %1541 = vmatpush1.bf16.xpose.msra.mxu0 0
        %1542 = vmatprep.subr.bf16.mxu0 0
        %1543 = vmatpush1.bf16.xpose.msra.mxu0 0
        %1544 = vmatprep.mubr.bf16.mxu0 0
        %1545 = vmatmul.mubr.bf16.gmra.mrb[0].mxu0 %v1507
        %v1546 = vpop.f32.mrb[0].mxu0
        %v1547 = vadd.f32 0.0, %v1546
        %v1548 = vpop.f32.mrb[0].mxu0
        %v1549 = vpop.f32.mrb[0].mxu0
        %v1550 = vpop.f32.mrb[0].mxu0
        %1551 = vdwg.mxu0
        %1552 = vrot.lane.b32.xlu0 %v548, 112
        %v1553 = vpop.permute.xlu0 %1552
        %1554 = vrot.lane.b32.xlu0 %v548, 80
        %v1555 = vpop.permute.xlu0 %1554
        %v1557 = vsel %vm554, %v1553, 0
        %v1560 = vsel %vm554, %v1555, 0
        %1562 = vmatprep.subr.bf16.mxu0 0
        %1563 = vmatpush1.bf16.xpose.msra.mxu0 %v1560
        %1564 = vmatprep.subr.bf16.mxu0 0
        %1565 = vmatpush1.bf16.xpose.msra.mxu0 0
        %1566 = vmatprep.subr.bf16.mxu0 0
        %1567 = vmatpush1.bf16.xpose.msra.mxu0 0
        %1568 = vmatprep.subr.bf16.mxu0 0
        %1569 = vmatpush1.bf16.xpose.msra.mxu0 0
        %1570 = vmatprep.subr.bf16.mxu0 0
        %1571 = vmatpush1.bf16.xpose.msra.mxu0 0
        %1572 = vmatprep.subr.bf16.mxu0 0
        %1573 = vmatpush1.bf16.xpose.msra.mxu0 0
        %1574 = vmatprep.subr.bf16.mxu0 0
        %1575 = vmatpush1.bf16.xpose.msra.mxu0 0
        %1576 = vmatprep.subr.bf16.mxu0 0
        %1577 = vmatpush1.bf16.xpose.msra.mxu0 0
        %1578 = vmatprep.subr.bf16.mxu0 0
        %1579 = vmatpush1.bf16.xpose.msra.mxu0 0
        %1580 = vmatprep.subr.bf16.mxu0 0
        %1581 = vmatpush1.bf16.xpose.msra.mxu0 0
        %1582 = vmatprep.subr.bf16.mxu0 0
        %1583 = vmatpush1.bf16.xpose.msra.mxu0 0
        %1584 = vmatprep.subr.bf16.mxu0 0
        %1585 = vmatpush1.bf16.xpose.msra.mxu0 0
        %1586 = vmatprep.subr.bf16.mxu0 0
        %1587 = vmatpush1.bf16.xpose.msra.mxu0 0
        %1588 = vmatprep.subr.bf16.mxu0 0
        %1589 = vmatpush1.bf16.xpose.msra.mxu0 0
        %1590 = vmatprep.subr.bf16.mxu0 0
        %1591 = vmatpush1.bf16.xpose.msra.mxu0 0
        %1592 = vmatprep.subr.bf16.mxu0 0
        %1593 = vmatpush1.bf16.xpose.msra.mxu0 0
        %1594 = vmatprep.mubr.bf16.mxu0 0
        %1595 = vmatmul.mubr.bf16.gmra.mrb[0].mxu0 %v1557
        %v1596 = vpop.f32.mrb[0].mxu0
        %v1597 = vadd.f32 0.0, %v1596
        %v1598 = vpop.f32.mrb[0].mxu0
        %v1599 = vpop.f32.mrb[0].mxu0
        %v1600 = vpop.f32.mrb[0].mxu0
        %1601 = vdwg.mxu0
        %1602 = vrot.lane.b32.xlu0 %v549, 112
        %v1603 = vpop.permute.xlu0 %1602
        %1604 = vrot.lane.b32.xlu0 %v549, 80
        %v1605 = vpop.permute.xlu0 %1604
        %v1607 = vsel %vm554, %v1603, 0
        %v1610 = vsel %vm554, %v1605, 0
        %1612 = vmatprep.subr.bf16.mxu0 0
        %1613 = vmatpush1.bf16.xpose.msra.mxu0 %v1610
        %1614 = vmatprep.subr.bf16.mxu0 0
        %1615 = vmatpush1.bf16.xpose.msra.mxu0 0
        %1616 = vmatprep.subr.bf16.mxu0 0
        %1617 = vmatpush1.bf16.xpose.msra.mxu0 0
        %1618 = vmatprep.subr.bf16.mxu0 0
        %1619 = vmatpush1.bf16.xpose.msra.mxu0 0
        %1620 = vmatprep.subr.bf16.mxu0 0
        %1621 = vmatpush1.bf16.xpose.msra.mxu0 0
        %1622 = vmatprep.subr.bf16.mxu0 0
        %1623 = vmatpush1.bf16.xpose.msra.mxu0 0
        %1624 = vmatprep.subr.bf16.mxu0 0
        %1625 = vmatpush1.bf16.xpose.msra.mxu0 0
        %1626 = vmatprep.subr.bf16.mxu0 0
        %1627 = vmatpush1.bf16.xpose.msra.mxu0 0
        %1628 = vmatprep.subr.bf16.mxu0 0
        %1629 = vmatpush1.bf16.xpose.msra.mxu0 0
        %1630 = vmatprep.subr.bf16.mxu0 0
        %1631 = vmatpush1.bf16.xpose.msra.mxu0 0
        %1632 = vmatprep.subr.bf16.mxu0 0
        %1633 = vmatpush1.bf16.xpose.msra.mxu0 0
        %1634 = vmatprep.subr.bf16.mxu0 0
        %1635 = vmatpush1.bf16.xpose.msra.mxu0 0
        %1636 = vmatprep.subr.bf16.mxu0 0
        %1637 = vmatpush1.bf16.xpose.msra.mxu0 0
        %1638 = vmatprep.subr.bf16.mxu0 0
        %1639 = vmatpush1.bf16.xpose.msra.mxu0 0
        %1640 = vmatprep.subr.bf16.mxu0 0
        %1641 = vmatpush1.bf16.xpose.msra.mxu0 0
        %1642 = vmatprep.subr.bf16.mxu0 0
        %1643 = vmatpush1.bf16.xpose.msra.mxu0 0
        %1644 = vmatprep.mubr.bf16.mxu0 0
        %1645 = vmatmul.mubr.bf16.gmra.mrb[0].mxu0 %v1607
        %v1646 = vpop.f32.mrb[0].mxu0
        %v1647 = vadd.f32 0.0, %v1646
        %v1648 = vpop.f32.mrb[0].mxu0
        %v1649 = vpop.f32.mrb[0].mxu0
        %v1650 = vpop.f32.mrb[0].mxu0
        %1651 = vdwg.mxu0
        %1652 = vrot.lane.b32.xlu0 %v550, 112
        %v1653 = vpop.permute.xlu0 %1652
        %1654 = vrot.lane.b32.xlu0 %v550, 80
        %v1655 = vpop.permute.xlu0 %1654
        %v1657 = vsel %vm554, %v1653, 0
        %v1660 = vsel %vm554, %v1655, 0
        %1662 = vmatprep.subr.bf16.mxu0 0
        %1663 = vmatpush1.bf16.xpose.msra.mxu0 %v1660
        %1664 = vmatprep.subr.bf16.mxu0 0
        %1665 = vmatpush1.bf16.xpose.msra.mxu0 0
        %1666 = vmatprep.subr.bf16.mxu0 0
        %1667 = vmatpush1.bf16.xpose.msra.mxu0 0
        %1668 = vmatprep.subr.bf16.mxu0 0
        %1669 = vmatpush1.bf16.xpose.msra.mxu0 0
        %1670 = vmatprep.subr.bf16.mxu0 0
        %1671 = vmatpush1.bf16.xpose.msra.mxu0 0
        %1672 = vmatprep.subr.bf16.mxu0 0
        %1673 = vmatpush1.bf16.xpose.msra.mxu0 0
        %1674 = vmatprep.subr.bf16.mxu0 0
        %1675 = vmatpush1.bf16.xpose.msra.mxu0 0
        %1676 = vmatprep.subr.bf16.mxu0 0
        %1677 = vmatpush1.bf16.xpose.msra.mxu0 0
        %1678 = vmatprep.subr.bf16.mxu0 0
        %1679 = vmatpush1.bf16.xpose.msra.mxu0 0
        %1680 = vmatprep.subr.bf16.mxu0 0
        %1681 = vmatpush1.bf16.xpose.msra.mxu0 0
        %1682 = vmatprep.subr.bf16.mxu0 0
        %1683 = vmatpush1.bf16.xpose.msra.mxu0 0
        %1684 = vmatprep.subr.bf16.mxu0 0
        %1685 = vmatpush1.bf16.xpose.msra.mxu0 0
        %1686 = vmatprep.subr.bf16.mxu0 0
        %1687 = vmatpush1.bf16.xpose.msra.mxu0 0
        %1688 = vmatprep.subr.bf16.mxu0 0
        %1689 = vmatpush1.bf16.xpose.msra.mxu0 0
        %1690 = vmatprep.subr.bf16.mxu0 0
        %1691 = vmatpush1.bf16.xpose.msra.mxu0 0
        %1692 = vmatprep.subr.bf16.mxu0 0
        %1693 = vmatpush1.bf16.xpose.msra.mxu0 0
        %1694 = vmatprep.mubr.bf16.mxu0 0
        %1695 = vmatmul.mubr.bf16.gmra.mrb[0].mxu0 %v1657
        %v1696 = vpop.f32.mrb[0].mxu0
        %v1697 = vadd.f32 0.0, %v1696
        %v1698 = vpop.f32.mrb[0].mxu0
        %v1699 = vpop.f32.mrb[0].mxu0
        %v1700 = vpop.f32.mrb[0].mxu0
        %1701 = vdwg.mxu0
        %v1702 = vsel %vm554, %v1547, -inf
        %1703 = vmax.xlane.f32.xlu0 %v1702
        %v1704 = vpop.xlane.xlu0 %1703
        %v1705 = vsel %vm554, %v1597, -inf
        %1706 = vmax.xlane.f32.xlu0 %v1705
        %v1707 = vpop.xlane.xlu0 %1706
        %v1708 = vsel %vm554, %v1647, -inf
        %1709 = vmax.xlane.f32.xlu0 %v1708
        %v1710 = vpop.xlane.xlu0 %1709
        %v1711 = vsel %vm554, %v1697, -inf
        %1712 = vmax.xlane.f32.xlu0 %v1711
        %v1713 = vpop.xlane.xlu0 %1712
        %v1714 = vsub.f32 -inf, %v1704
        %v1715 = vsub.f32 -inf, %v1707
        %v1716 = vsub.f32 -inf, %v1710
        %v1717 = vsub.f32 -inf, %v1713
        %v1718 = vmul.f32 %v1714, 1.442695
        %v1719 = vpow.pop %v1718
        %v1720 = vmul.f32 %v1715, 1.442695
        %v1721 = vpow.pop %v1720
        %v1722 = vmul.f32 %v1716, 1.442695
        %v1723 = vpow.pop %v1722
        %v1724 = vmul.f32 %v1717, 1.442695
        %v1725 = vpow.pop %v1724
        %v1726 = vsub.f32 %v1547, %v1704
        %v1727 = vsub.f32 %v1597, %v1707
        %v1728 = vsub.f32 %v1647, %v1710
        %v1729 = vsub.f32 %v1697, %v1713
        %v1730 = vmul.f32 %v1726, 1.442695
        %v1731 = vpow.pop %v1730
        %v1732 = vmul.f32 %v1727, 1.442695
        %v1733 = vpow.pop %v1732
        %v1734 = vmul.f32 %v1728, 1.442695
        %v1735 = vpow.pop %v1734
        %v1736 = vmul.f32 %v1729, 1.442695
        %v1737 = vpow.pop %v1736
        %v1738 = vmul.f32 %v1719, 0.0
        %v1739 = vmul.f32 %v1721, 0.0
        %v1740 = vmul.f32 %v1723, 0.0
        %v1741 = vmul.f32 %v1725, 0.0
        %v1742 = vsel %vm554, %v1731, 0.0
        %1743 = vadd.xlane.f32.xlu0 %v1742
        %v1744 = vpop.xlane.xlu0 %1743
        %v1745 = vsel %vm554, %v1733, 0.0
        %1746 = vadd.xlane.f32.xlu0 %v1745
        %v1747 = vpop.xlane.xlu0 %1746
        %v1748 = vsel %vm554, %v1735, 0.0
        %1749 = vadd.xlane.f32.xlu0 %v1748
        %v1750 = vpop.xlane.xlu0 %1749
        %v1751 = vsel %vm554, %v1737, 0.0
        %1752 = vadd.xlane.f32.xlu0 %v1751
        %v1753 = vpop.xlane.xlu0 %1752
        %v1754 = vadd.f32 %v1738, %v1744
        %v1755 = vadd.f32 %v1739, %v1747
        %v1756 = vadd.f32 %v1740, %v1750
        %v1757 = vadd.f32 %v1741, %v1753
        %v1758 = vpack.c.bf16 %v1731, %v1731
        %v1759 = vpack.c.bf16 %v1733, %v1733
        %v1760 = vpack.c.bf16 %v1735, %v1735
        %v1761 = vpack.c.bf16 %v1737, %v1737
        %1762 = vrot.lane.b32.xlu0 %v547, 48
        %v1763 = vpop.permute.xlu0 %1762
        %v1765 = vsel %vm554, %v1758, 0
        %v1768 = vsel %vm813, %v1763, 0
        %1770 = vmatprep.subr.bf16.mxu0 0
        %1771 = vmatpush1.bf16.msra.mxu0 %v1768
        %1772 = vmatprep.subr.bf16.mxu0 0
        %1773 = vmatpush1.bf16.msra.mxu0 0
        %1774 = vmatprep.subr.bf16.mxu0 0
        %1775 = vmatpush1.bf16.msra.mxu0 0
        %1776 = vmatprep.subr.bf16.mxu0 0
        %1777 = vmatpush1.bf16.msra.mxu0 0
        %1778 = vmatprep.subr.bf16.mxu0 0
        %1779 = vmatpush1.bf16.msra.mxu0 0
        %1780 = vmatprep.subr.bf16.mxu0 0
        %1781 = vmatpush1.bf16.msra.mxu0 0
        %1782 = vmatprep.subr.bf16.mxu0 0
        %1783 = vmatpush1.bf16.msra.mxu0 0
        %1784 = vmatprep.subr.bf16.mxu0 0
        %1785 = vmatpush1.bf16.msra.mxu0 0
        %1786 = vmatprep.subr.bf16.mxu0 0
        %1787 = vmatpush1.bf16.msra.mxu0 0
        %1788 = vmatprep.subr.bf16.mxu0 0
        %1789 = vmatpush1.bf16.msra.mxu0 0
        %1790 = vmatprep.subr.bf16.mxu0 0
        %1791 = vmatpush1.bf16.msra.mxu0 0
        %1792 = vmatprep.subr.bf16.mxu0 0
        %1793 = vmatpush1.bf16.msra.mxu0 0
        %1794 = vmatprep.subr.bf16.mxu0 0
        %1795 = vmatpush1.bf16.msra.mxu0 0
        %1796 = vmatprep.subr.bf16.mxu0 0
        %1797 = vmatpush1.bf16.msra.mxu0 0
        %1798 = vmatprep.subr.bf16.mxu0 0
        %1799 = vmatpush1.bf16.msra.mxu0 0
        %1800 = vmatprep.subr.bf16.mxu0 0
        %1801 = vmatpush1.bf16.msra.mxu0 0
        %1802 = vmatprep.mubr.bf16.mxu0 0
        %1803 = vmatmul.mubr.bf16.gmra.mrb[0].mxu0 %v1765
        %v1804 = vpop.f32.mrb[0].mxu0
        %v1805 = vadd.f32 0.0, %v1804
        %v1806 = vpop.f32.mrb[0].mxu0
        %v1807 = vpop.f32.mrb[0].mxu0
        %v1808 = vpop.f32.mrb[0].mxu0
        %1809 = vdwg.mxu0
        %1810 = vrot.lane.b32.xlu0 %v548, 48
        %v1811 = vpop.permute.xlu0 %1810
        %v1813 = vsel %vm554, %v1759, 0
        %v1816 = vsel %vm813, %v1811, 0
        %1818 = vmatprep.subr.bf16.mxu0 0
        %1819 = vmatpush1.bf16.msra.mxu0 %v1816
        %1820 = vmatprep.subr.bf16.mxu0 0
        %1821 = vmatpush1.bf16.msra.mxu0 0
        %1822 = vmatprep.subr.bf16.mxu0 0
        %1823 = vmatpush1.bf16.msra.mxu0 0
        %1824 = vmatprep.subr.bf16.mxu0 0
        %1825 = vmatpush1.bf16.msra.mxu0 0
        %1826 = vmatprep.subr.bf16.mxu0 0
        %1827 = vmatpush1.bf16.msra.mxu0 0
        %1828 = vmatprep.subr.bf16.mxu0 0
        %1829 = vmatpush1.bf16.msra.mxu0 0
        %1830 = vmatprep.subr.bf16.mxu0 0
        %1831 = vmatpush1.bf16.msra.mxu0 0
        %1832 = vmatprep.subr.bf16.mxu0 0
        %1833 = vmatpush1.bf16.msra.mxu0 0
        %1834 = vmatprep.subr.bf16.mxu0 0
        %1835 = vmatpush1.bf16.msra.mxu0 0
        %1836 = vmatprep.subr.bf16.mxu0 0
        %1837 = vmatpush1.bf16.msra.mxu0 0
        %1838 = vmatprep.subr.bf16.mxu0 0
        %1839 = vmatpush1.bf16.msra.mxu0 0
        %1840 = vmatprep.subr.bf16.mxu0 0
        %1841 = vmatpush1.bf16.msra.mxu0 0
        %1842 = vmatprep.subr.bf16.mxu0 0
        %1843 = vmatpush1.bf16.msra.mxu0 0
        %1844 = vmatprep.subr.bf16.mxu0 0
        %1845 = vmatpush1.bf16.msra.mxu0 0
        %1846 = vmatprep.subr.bf16.mxu0 0
        %1847 = vmatpush1.bf16.msra.mxu0 0
        %1848 = vmatprep.subr.bf16.mxu0 0
        %1849 = vmatpush1.bf16.msra.mxu0 0
        %1850 = vmatprep.mubr.bf16.mxu0 0
        %1851 = vmatmul.mubr.bf16.gmra.mrb[0].mxu0 %v1813
        %v1852 = vpop.f32.mrb[0].mxu0
        %v1853 = vadd.f32 0.0, %v1852
        %v1854 = vpop.f32.mrb[0].mxu0
        %v1855 = vpop.f32.mrb[0].mxu0
        %v1856 = vpop.f32.mrb[0].mxu0
        %1857 = vdwg.mxu0
        %1858 = vrot.lane.b32.xlu0 %v549, 48
        %v1859 = vpop.permute.xlu0 %1858
        %v1861 = vsel %vm554, %v1760, 0
        %v1864 = vsel %vm813, %v1859, 0
        %1866 = vmatprep.subr.bf16.mxu0 0
        %1867 = vmatpush1.bf16.msra.mxu0 %v1864
        %1868 = vmatprep.subr.bf16.mxu0 0
        %1869 = vmatpush1.bf16.msra.mxu0 0
        %1870 = vmatprep.subr.bf16.mxu0 0
        %1871 = vmatpush1.bf16.msra.mxu0 0
        %1872 = vmatprep.subr.bf16.mxu0 0
        %1873 = vmatpush1.bf16.msra.mxu0 0
        %1874 = vmatprep.subr.bf16.mxu0 0
        %1875 = vmatpush1.bf16.msra.mxu0 0
        %1876 = vmatprep.subr.bf16.mxu0 0
        %1877 = vmatpush1.bf16.msra.mxu0 0
        %1878 = vmatprep.subr.bf16.mxu0 0
        %1879 = vmatpush1.bf16.msra.mxu0 0
        %1880 = vmatprep.subr.bf16.mxu0 0
        %1881 = vmatpush1.bf16.msra.mxu0 0
        %1882 = vmatprep.subr.bf16.mxu0 0
        %1883 = vmatpush1.bf16.msra.mxu0 0
        %1884 = vmatprep.subr.bf16.mxu0 0
        %1885 = vmatpush1.bf16.msra.mxu0 0
        %1886 = vmatprep.subr.bf16.mxu0 0
        %1887 = vmatpush1.bf16.msra.mxu0 0
        %1888 = vmatprep.subr.bf16.mxu0 0
        %1889 = vmatpush1.bf16.msra.mxu0 0
        %1890 = vmatprep.subr.bf16.mxu0 0
        %1891 = vmatpush1.bf16.msra.mxu0 0
        %1892 = vmatprep.subr.bf16.mxu0 0
        %1893 = vmatpush1.bf16.msra.mxu0 0
        %1894 = vmatprep.subr.bf16.mxu0 0
        %1895 = vmatpush1.bf16.msra.mxu0 0
        %1896 = vmatprep.subr.bf16.mxu0 0
        %1897 = vmatpush1.bf16.msra.mxu0 0
        %1898 = vmatprep.mubr.bf16.mxu0 0
        %1899 = vmatmul.mubr.bf16.gmra.mrb[0].mxu0 %v1861
        %v1900 = vpop.f32.mrb[0].mxu0
        %v1901 = vadd.f32 0.0, %v1900
        %v1902 = vpop.f32.mrb[0].mxu0
        %v1903 = vpop.f32.mrb[0].mxu0
        %v1904 = vpop.f32.mrb[0].mxu0
        %1905 = vdwg.mxu0
        %1906 = vrot.lane.b32.xlu0 %v550, 48
        %v1907 = vpop.permute.xlu0 %1906
        %v1909 = vsel %vm554, %v1761, 0
        %v1912 = vsel %vm813, %v1907, 0
        %1914 = vmatprep.subr.bf16.mxu0 0
        %1915 = vmatpush1.bf16.msra.mxu0 %v1912
        %1916 = vmatprep.subr.bf16.mxu0 0
        %1917 = vmatpush1.bf16.msra.mxu0 0
        %1918 = vmatprep.subr.bf16.mxu0 0
        %1919 = vmatpush1.bf16.msra.mxu0 0
        %1920 = vmatprep.subr.bf16.mxu0 0
        %1921 = vmatpush1.bf16.msra.mxu0 0
        %1922 = vmatprep.subr.bf16.mxu0 0
        %1923 = vmatpush1.bf16.msra.mxu0 0
        %1924 = vmatprep.subr.bf16.mxu0 0
        %1925 = vmatpush1.bf16.msra.mxu0 0
        %1926 = vmatprep.subr.bf16.mxu0 0
        %1927 = vmatpush1.bf16.msra.mxu0 0
        %1928 = vmatprep.subr.bf16.mxu0 0
        %1929 = vmatpush1.bf16.msra.mxu0 0
        %1930 = vmatprep.subr.bf16.mxu0 0
        %1931 = vmatpush1.bf16.msra.mxu0 0
        %1932 = vmatprep.subr.bf16.mxu0 0
        %1933 = vmatpush1.bf16.msra.mxu0 0
        %1934 = vmatprep.subr.bf16.mxu0 0
        %1935 = vmatpush1.bf16.msra.mxu0 0
        %1936 = vmatprep.subr.bf16.mxu0 0
        %1937 = vmatpush1.bf16.msra.mxu0 0
        %1938 = vmatprep.subr.bf16.mxu0 0
        %1939 = vmatpush1.bf16.msra.mxu0 0
        %1940 = vmatprep.subr.bf16.mxu0 0
        %1941 = vmatpush1.bf16.msra.mxu0 0
        %1942 = vmatprep.subr.bf16.mxu0 0
        %1943 = vmatpush1.bf16.msra.mxu0 0
        %1944 = vmatprep.subr.bf16.mxu0 0
        %1945 = vmatpush1.bf16.msra.mxu0 0
        %1946 = vmatprep.mubr.bf16.mxu0 0
        %1947 = vmatmul.mubr.bf16.gmra.mrb[0].mxu0 %v1909
        %v1948 = vpop.f32.mrb[0].mxu0
        %v1949 = vadd.f32 0.0, %v1948
        %v1950 = vpop.f32.mrb[0].mxu0
        %v1951 = vpop.f32.mrb[0].mxu0
        %v1952 = vpop.f32.mrb[0].mxu0
        %1953 = vdwg.mxu0
        %v1954 = vadd.f32 %v1738, %v1805
        %v1955 = vadd.f32 %v1739, %v1853
        %v1956 = vadd.f32 %v1740, %v1901
        %v1957 = vadd.f32 %v1741, %v1949
        %v1958 = vrcp.pop %v1754
        %v1959 = vrcp.pop %v1755
        %v1960 = vrcp.pop %v1756
        %v1961 = vrcp.pop %v1757
        %v1962 = vmul.f32 %v1954, %v1958
        %v1963 = vmul.f32 %v1955, %v1959
        %v1964 = vmul.f32 %v1956, %v1960
        %v1965 = vmul.f32 %v1957, %v1961
        %1970 = vrot.lane.b32.xlu0 %v1962, 16
        %v1971 = vpop.permute.xlu0 %1970
        %1972 = vrot.lane.b32.xlu0 %v1963, 16
        %v1973 = vpop.permute.xlu0 %1972
        %1974 = vrot.lane.b32.xlu0 %v1964, 16
        %v1975 = vpop.permute.xlu0 %1974
        %1976 = vrot.lane.b32.xlu0 %v1965, 16
        %v1977 = vpop.permute.xlu0 %1976
        %vm1982 = vcmask 195712
        %1983 = vst.msk [vmem:[#allocation2] sm:$0xff] %vm1982, %v1971
        %1984 = vst.msk [vmem:[#allocation2 + $0x8] sm:$0xff] %vm1982, %v1973
        %1985 = vst.msk [vmem:[#allocation2 + $0x10] sm:$0xff] %vm1982, %v1975
        %1986 = vst.msk [vmem:[#allocation2 + $0x18] sm:$0xff] %vm1982, %v1977
        %1987 = vrot.lane.b32.xlu0 %v547, 104
        %v1988 = vpop.permute.xlu0 %1987
        %1989 = vrot.lane.b32.xlu0 %v547, 72
        %v1990 = vpop.permute.xlu0 %1989
        %v1992 = vsel %vm554, %v1988, 0
        %v1995 = vsel %vm554, %v1990, 0
        %1997 = vmatprep.subr.bf16.mxu0 0
        %1998 = vmatpush1.bf16.xpose.msra.mxu0 %v1995
        %1999 = vmatprep.subr.bf16.mxu0 0
        %2000 = vmatpush1.bf16.xpose.msra.mxu0 0
        %2001 = vmatprep.subr.bf16.mxu0 0
        %2002 = vmatpush1.bf16.xpose.msra.mxu0 0
        %2003 = vmatprep.subr.bf16.mxu0 0
        %2004 = vmatpush1.bf16.xpose.msra.mxu0 0
        %2005 = vmatprep.subr.bf16.mxu0 0
        %2006 = vmatpush1.bf16.xpose.msra.mxu0 0
        %2007 = vmatprep.subr.bf16.mxu0 0
        %2008 = vmatpush1.bf16.xpose.msra.mxu0 0
        %2009 = vmatprep.subr.bf16.mxu0 0
        %2010 = vmatpush1.bf16.xpose.msra.mxu0 0
        %2011 = vmatprep.subr.bf16.mxu0 0
        %2012 = vmatpush1.bf16.xpose.msra.mxu0 0
        %2013 = vmatprep.subr.bf16.mxu0 0
        %2014 = vmatpush1.bf16.xpose.msra.mxu0 0
        %2015 = vmatprep.subr.bf16.mxu0 0
        %2016 = vmatpush1.bf16.xpose.msra.mxu0 0
        %2017 = vmatprep.subr.bf16.mxu0 0
        %2018 = vmatpush1.bf16.xpose.msra.mxu0 0
        %2019 = vmatprep.subr.bf16.mxu0 0
        %2020 = vmatpush1.bf16.xpose.msra.mxu0 0
        %2021 = vmatprep.subr.bf16.mxu0 0
        %2022 = vmatpush1.bf16.xpose.msra.mxu0 0
        %2023 = vmatprep.subr.bf16.mxu0 0
        %2024 = vmatpush1.bf16.xpose.msra.mxu0 0
        %2025 = vmatprep.subr.bf16.mxu0 0
        %2026 = vmatpush1.bf16.xpose.msra.mxu0 0
        %2027 = vmatprep.subr.bf16.mxu0 0
        %2028 = vmatpush1.bf16.xpose.msra.mxu0 0
        %2029 = vmatprep.mubr.bf16.mxu0 0
        %2030 = vmatmul.mubr.bf16.gmra.mrb[0].mxu0 %v1992
        %v2031 = vpop.f32.mrb[0].mxu0
        %v2032 = vadd.f32 0.0, %v2031
        %v2033 = vpop.f32.mrb[0].mxu0
        %v2034 = vpop.f32.mrb[0].mxu0
        %v2035 = vpop.f32.mrb[0].mxu0
        %2036 = vdwg.mxu0
        %2037 = vrot.lane.b32.xlu0 %v548, 104
        %v2038 = vpop.permute.xlu0 %2037
        %2039 = vrot.lane.b32.xlu0 %v548, 72
        %v2040 = vpop.permute.xlu0 %2039
        %v2042 = vsel %vm554, %v2038, 0
        %v2045 = vsel %vm554, %v2040, 0
        %2047 = vmatprep.subr.bf16.mxu0 0
        %2048 = vmatpush1.bf16.xpose.msra.mxu0 %v2045
        %2049 = vmatprep.subr.bf16.mxu0 0
        %2050 = vmatpush1.bf16.xpose.msra.mxu0 0
        %2051 = vmatprep.subr.bf16.mxu0 0
        %2052 = vmatpush1.bf16.xpose.msra.mxu0 0
        %2053 = vmatprep.subr.bf16.mxu0 0
        %2054 = vmatpush1.bf16.xpose.msra.mxu0 0
        %2055 = vmatprep.subr.bf16.mxu0 0
        %2056 = vmatpush1.bf16.xpose.msra.mxu0 0
        %2057 = vmatprep.subr.bf16.mxu0 0
        %2058 = vmatpush1.bf16.xpose.msra.mxu0 0
        %2059 = vmatprep.subr.bf16.mxu0 0
        %2060 = vmatpush1.bf16.xpose.msra.mxu0 0
        %2061 = vmatprep.subr.bf16.mxu0 0
        %2062 = vmatpush1.bf16.xpose.msra.mxu0 0
        %2063 = vmatprep.subr.bf16.mxu0 0
        %2064 = vmatpush1.bf16.xpose.msra.mxu0 0
        %2065 = vmatprep.subr.bf16.mxu0 0
        %2066 = vmatpush1.bf16.xpose.msra.mxu0 0
        %2067 = vmatprep.subr.bf16.mxu0 0
        %2068 = vmatpush1.bf16.xpose.msra.mxu0 0
        %2069 = vmatprep.subr.bf16.mxu0 0
        %2070 = vmatpush1.bf16.xpose.msra.mxu0 0
        %2071 = vmatprep.subr.bf16.mxu0 0
        %2072 = vmatpush1.bf16.xpose.msra.mxu0 0
        %2073 = vmatprep.subr.bf16.mxu0 0
        %2074 = vmatpush1.bf16.xpose.msra.mxu0 0
        %2075 = vmatprep.subr.bf16.mxu0 0
        %2076 = vmatpush1.bf16.xpose.msra.mxu0 0
        %2077 = vmatprep.subr.bf16.mxu0 0
        %2078 = vmatpush1.bf16.xpose.msra.mxu0 0
        %2079 = vmatprep.mubr.bf16.mxu0 0
        %2080 = vmatmul.mubr.bf16.gmra.mrb[0].mxu0 %v2042
        %v2081 = vpop.f32.mrb[0].mxu0
        %v2082 = vadd.f32 0.0, %v2081
        %v2083 = vpop.f32.mrb[0].mxu0
        %v2084 = vpop.f32.mrb[0].mxu0
        %v2085 = vpop.f32.mrb[0].mxu0
        %2086 = vdwg.mxu0
        %2087 = vrot.lane.b32.xlu0 %v549, 104
        %v2088 = vpop.permute.xlu0 %2087
        %2089 = vrot.lane.b32.xlu0 %v549, 72
        %v2090 = vpop.permute.xlu0 %2089
        %v2092 = vsel %vm554, %v2088, 0
        %v2095 = vsel %vm554, %v2090, 0
        %2097 = vmatprep.subr.bf16.mxu0 0
        %2098 = vmatpush1.bf16.xpose.msra.mxu0 %v2095
        %2099 = vmatprep.subr.bf16.mxu0 0
        %2100 = vmatpush1.bf16.xpose.msra.mxu0 0
        %2101 = vmatprep.subr.bf16.mxu0 0
        %2102 = vmatpush1.bf16.xpose.msra.mxu0 0
        %2103 = vmatprep.subr.bf16.mxu0 0
        %2104 = vmatpush1.bf16.xpose.msra.mxu0 0
        %2105 = vmatprep.subr.bf16.mxu0 0
        %2106 = vmatpush1.bf16.xpose.msra.mxu0 0
        %2107 = vmatprep.subr.bf16.mxu0 0
        %2108 = vmatpush1.bf16.xpose.msra.mxu0 0
        %2109 = vmatprep.subr.bf16.mxu0 0
        %2110 = vmatpush1.bf16.xpose.msra.mxu0 0
        %2111 = vmatprep.subr.bf16.mxu0 0
        %2112 = vmatpush1.bf16.xpose.msra.mxu0 0
        %2113 = vmatprep.subr.bf16.mxu0 0
        %2114 = vmatpush1.bf16.xpose.msra.mxu0 0
        %2115 = vmatprep.subr.bf16.mxu0 0
        %2116 = vmatpush1.bf16.xpose.msra.mxu0 0
        %2117 = vmatprep.subr.bf16.mxu0 0
        %2118 = vmatpush1.bf16.xpose.msra.mxu0 0
        %2119 = vmatprep.subr.bf16.mxu0 0
        %2120 = vmatpush1.bf16.xpose.msra.mxu0 0
        %2121 = vmatprep.subr.bf16.mxu0 0
        %2122 = vmatpush1.bf16.xpose.msra.mxu0 0
        %2123 = vmatprep.subr.bf16.mxu0 0
        %2124 = vmatpush1.bf16.xpose.msra.mxu0 0
        %2125 = vmatprep.subr.bf16.mxu0 0
        %2126 = vmatpush1.bf16.xpose.msra.mxu0 0
        %2127 = vmatprep.subr.bf16.mxu0 0
        %2128 = vmatpush1.bf16.xpose.msra.mxu0 0
        %2129 = vmatprep.mubr.bf16.mxu0 0
        %2130 = vmatmul.mubr.bf16.gmra.mrb[0].mxu0 %v2092
        %v2131 = vpop.f32.mrb[0].mxu0
        %v2132 = vadd.f32 0.0, %v2131
        %v2133 = vpop.f32.mrb[0].mxu0
        %v2134 = vpop.f32.mrb[0].mxu0
        %v2135 = vpop.f32.mrb[0].mxu0
        %2136 = vdwg.mxu0
        %2137 = vrot.lane.b32.xlu0 %v550, 104
        %v2138 = vpop.permute.xlu0 %2137
        %2139 = vrot.lane.b32.xlu0 %v550, 72
        %v2140 = vpop.permute.xlu0 %2139
        %v2142 = vsel %vm554, %v2138, 0
        %v2145 = vsel %vm554, %v2140, 0
        %2147 = vmatprep.subr.bf16.mxu0 0
        %2148 = vmatpush1.bf16.xpose.msra.mxu0 %v2145
        %2149 = vmatprep.subr.bf16.mxu0 0
        %2150 = vmatpush1.bf16.xpose.msra.mxu0 0
        %2151 = vmatprep.subr.bf16.mxu0 0
        %2152 = vmatpush1.bf16.xpose.msra.mxu0 0
        %2153 = vmatprep.subr.bf16.mxu0 0
        %2154 = vmatpush1.bf16.xpose.msra.mxu0 0
        %2155 = vmatprep.subr.bf16.mxu0 0
        %2156 = vmatpush1.bf16.xpose.msra.mxu0 0
        %2157 = vmatprep.subr.bf16.mxu0 0
        %2158 = vmatpush1.bf16.xpose.msra.mxu0 0
        %2159 = vmatprep.subr.bf16.mxu0 0
        %2160 = vmatpush1.bf16.xpose.msra.mxu0 0
        %2161 = vmatprep.subr.bf16.mxu0 0
        %2162 = vmatpush1.bf16.xpose.msra.mxu0 0
        %2163 = vmatprep.subr.bf16.mxu0 0
        %2164 = vmatpush1.bf16.xpose.msra.mxu0 0
        %2165 = vmatprep.subr.bf16.mxu0 0
        %2166 = vmatpush1.bf16.xpose.msra.mxu0 0
        %2167 = vmatprep.subr.bf16.mxu0 0
        %2168 = vmatpush1.bf16.xpose.msra.mxu0 0
        %2169 = vmatprep.subr.bf16.mxu0 0
        %2170 = vmatpush1.bf16.xpose.msra.mxu0 0
        %2171 = vmatprep.subr.bf16.mxu0 0
        %2172 = vmatpush1.bf16.xpose.msra.mxu0 0
        %2173 = vmatprep.subr.bf16.mxu0 0
        %2174 = vmatpush1.bf16.xpose.msra.mxu0 0
        %2175 = vmatprep.subr.bf16.mxu0 0
        %2176 = vmatpush1.bf16.xpose.msra.mxu0 0
        %2177 = vmatprep.subr.bf16.mxu0 0
        %2178 = vmatpush1.bf16.xpose.msra.mxu0 0
        %2179 = vmatprep.mubr.bf16.mxu0 0
        %2180 = vmatmul.mubr.bf16.gmra.mrb[0].mxu0 %v2142
        %v2181 = vpop.f32.mrb[0].mxu0
        %v2182 = vadd.f32 0.0, %v2181
        %v2183 = vpop.f32.mrb[0].mxu0
        %v2184 = vpop.f32.mrb[0].mxu0
        %v2185 = vpop.f32.mrb[0].mxu0
        %2186 = vdwg.mxu0
        %v2187 = vsel %vm554, %v2032, -inf
        %2188 = vmax.xlane.f32.xlu0 %v2187
        %v2189 = vpop.xlane.xlu0 %2188
        %v2190 = vsel %vm554, %v2082, -inf
        %2191 = vmax.xlane.f32.xlu0 %v2190
        %v2192 = vpop.xlane.xlu0 %2191
        %v2193 = vsel %vm554, %v2132, -inf
        %2194 = vmax.xlane.f32.xlu0 %v2193
        %v2195 = vpop.xlane.xlu0 %2194
        %v2196 = vsel %vm554, %v2182, -inf
        %2197 = vmax.xlane.f32.xlu0 %v2196
        %v2198 = vpop.xlane.xlu0 %2197
        %v2199 = vsub.f32 -inf, %v2189
        %v2200 = vsub.f32 -inf, %v2192
        %v2201 = vsub.f32 -inf, %v2195
        %v2202 = vsub.f32 -inf, %v2198
        %v2203 = vmul.f32 %v2199, 1.442695
        %v2204 = vpow.pop %v2203
        %v2205 = vmul.f32 %v2200, 1.442695
        %v2206 = vpow.pop %v2205
        %v2207 = vmul.f32 %v2201, 1.442695
        %v2208 = vpow.pop %v2207
        %v2209 = vmul.f32 %v2202, 1.442695
        %v2210 = vpow.pop %v2209
        %v2211 = vsub.f32 %v2032, %v2189
        %v2212 = vsub.f32 %v2082, %v2192
        %v2213 = vsub.f32 %v2132, %v2195
        %v2214 = vsub.f32 %v2182, %v2198
        %v2215 = vmul.f32 %v2211, 1.442695
        %v2216 = vpow.pop %v2215
        %v2217 = vmul.f32 %v2212, 1.442695
        %v2218 = vpow.pop %v2217
        %v2219 = vmul.f32 %v2213, 1.442695
        %v2220 = vpow.pop %v2219
        %v2221 = vmul.f32 %v2214, 1.442695
        %v2222 = vpow.pop %v2221
        %v2223 = vmul.f32 %v2204, 0.0
        %v2224 = vmul.f32 %v2206, 0.0
        %v2225 = vmul.f32 %v2208, 0.0
        %v2226 = vmul.f32 %v2210, 0.0
        %v2227 = vsel %vm554, %v2216, 0.0
        %2228 = vadd.xlane.f32.xlu0 %v2227
        %v2229 = vpop.xlane.xlu0 %2228
        %v2230 = vsel %vm554, %v2218, 0.0
        %2231 = vadd.xlane.f32.xlu0 %v2230
        %v2232 = vpop.xlane.xlu0 %2231
        %v2233 = vsel %vm554, %v2220, 0.0
        %2234 = vadd.xlane.f32.xlu0 %v2233
        %v2235 = vpop.xlane.xlu0 %2234
        %v2236 = vsel %vm554, %v2222, 0.0
        %2237 = vadd.xlane.f32.xlu0 %v2236
        %v2238 = vpop.xlane.xlu0 %2237
        %v2239 = vadd.f32 %v2223, %v2229
        %v2240 = vadd.f32 %v2224, %v2232
        %v2241 = vadd.f32 %v2225, %v2235
        %v2242 = vadd.f32 %v2226, %v2238
        %v2243 = vpack.c.bf16 %v2216, %v2216
        %v2244 = vpack.c.bf16 %v2218, %v2218
        %v2245 = vpack.c.bf16 %v2220, %v2220
        %v2246 = vpack.c.bf16 %v2222, %v2222
        %2247 = vrot.lane.b32.xlu0 %v547, 40
        %v2248 = vpop.permute.xlu0 %2247
        %v2250 = vsel %vm554, %v2243, 0
        %v2253 = vsel %vm813, %v2248, 0
        %2255 = vmatprep.subr.bf16.mxu0 0
        %2256 = vmatpush1.bf16.msra.mxu0 %v2253
        %2257 = vmatprep.subr.bf16.mxu0 0
        %2258 = vmatpush1.bf16.msra.mxu0 0
        %2259 = vmatprep.subr.bf16.mxu0 0
        %2260 = vmatpush1.bf16.msra.mxu0 0
        %2261 = vmatprep.subr.bf16.mxu0 0
        %2262 = vmatpush1.bf16.msra.mxu0 0
        %2263 = vmatprep.subr.bf16.mxu0 0
        %2264 = vmatpush1.bf16.msra.mxu0 0
        %2265 = vmatprep.subr.bf16.mxu0 0
        %2266 = vmatpush1.bf16.msra.mxu0 0
        %2267 = vmatprep.subr.bf16.mxu0 0
        %2268 = vmatpush1.bf16.msra.mxu0 0
        %2269 = vmatprep.subr.bf16.mxu0 0
        %2270 = vmatpush1.bf16.msra.mxu0 0
        %2271 = vmatprep.subr.bf16.mxu0 0
        %2272 = vmatpush1.bf16.msra.mxu0 0
        %2273 = vmatprep.subr.bf16.mxu0 0
        %2274 = vmatpush1.bf16.msra.mxu0 0
        %2275 = vmatprep.subr.bf16.mxu0 0
        %2276 = vmatpush1.bf16.msra.mxu0 0
        %2277 = vmatprep.subr.bf16.mxu0 0
        %2278 = vmatpush1.bf16.msra.mxu0 0
        %2279 = vmatprep.subr.bf16.mxu0 0
        %2280 = vmatpush1.bf16.msra.mxu0 0
        %2281 = vmatprep.subr.bf16.mxu0 0
        %2282 = vmatpush1.bf16.msra.mxu0 0
        %2283 = vmatprep.subr.bf16.mxu0 0
        %2284 = vmatpush1.bf16.msra.mxu0 0
        %2285 = vmatprep.subr.bf16.mxu0 0
        %2286 = vmatpush1.bf16.msra.mxu0 0
        %2287 = vmatprep.mubr.bf16.mxu0 0
        %2288 = vmatmul.mubr.bf16.gmra.mrb[0].mxu0 %v2250
        %v2289 = vpop.f32.mrb[0].mxu0
        %v2290 = vadd.f32 0.0, %v2289
        %v2291 = vpop.f32.mrb[0].mxu0
        %v2292 = vpop.f32.mrb[0].mxu0
        %v2293 = vpop.f32.mrb[0].mxu0
        %2294 = vdwg.mxu0
        %2295 = vrot.lane.b32.xlu0 %v548, 40
        %v2296 = vpop.permute.xlu0 %2295
        %v2298 = vsel %vm554, %v2244, 0
        %v2301 = vsel %vm813, %v2296, 0
        %2303 = vmatprep.subr.bf16.mxu0 0
        %2304 = vmatpush1.bf16.msra.mxu0 %v2301
        %2305 = vmatprep.subr.bf16.mxu0 0
        %2306 = vmatpush1.bf16.msra.mxu0 0
        %2307 = vmatprep.subr.bf16.mxu0 0
        %2308 = vmatpush1.bf16.msra.mxu0 0
        %2309 = vmatprep.subr.bf16.mxu0 0
        %2310 = vmatpush1.bf16.msra.mxu0 0
        %2311 = vmatprep.subr.bf16.mxu0 0
        %2312 = vmatpush1.bf16.msra.mxu0 0
        %2313 = vmatprep.subr.bf16.mxu0 0
        %2314 = vmatpush1.bf16.msra.mxu0 0
        %2315 = vmatprep.subr.bf16.mxu0 0
        %2316 = vmatpush1.bf16.msra.mxu0 0
        %2317 = vmatprep.subr.bf16.mxu0 0
        %2318 = vmatpush1.bf16.msra.mxu0 0
        %2319 = vmatprep.subr.bf16.mxu0 0
        %2320 = vmatpush1.bf16.msra.mxu0 0
        %2321 = vmatprep.subr.bf16.mxu0 0
        %2322 = vmatpush1.bf16.msra.mxu0 0
        %2323 = vmatprep.subr.bf16.mxu0 0
        %2324 = vmatpush1.bf16.msra.mxu0 0
        %2325 = vmatprep.subr.bf16.mxu0 0
        %2326 = vmatpush1.bf16.msra.mxu0 0
        %2327 = vmatprep.subr.bf16.mxu0 0
        %2328 = vmatpush1.bf16.msra.mxu0 0
        %2329 = vmatprep.subr.bf16.mxu0 0
        %2330 = vmatpush1.bf16.msra.mxu0 0
        %2331 = vmatprep.subr.bf16.mxu0 0
        %2332 = vmatpush1.bf16.msra.mxu0 0
        %2333 = vmatprep.subr.bf16.mxu0 0
        %2334 = vmatpush1.bf16.msra.mxu0 0
        %2335 = vmatprep.mubr.bf16.mxu0 0
        %2336 = vmatmul.mubr.bf16.gmra.mrb[0].mxu0 %v2298
        %v2337 = vpop.f32.mrb[0].mxu0
        %v2338 = vadd.f32 0.0, %v2337
        %v2339 = vpop.f32.mrb[0].mxu0
        %v2340 = vpop.f32.mrb[0].mxu0
        %v2341 = vpop.f32.mrb[0].mxu0
        %2342 = vdwg.mxu0
        %2343 = vrot.lane.b32.xlu0 %v549, 40
        %v2344 = vpop.permute.xlu0 %2343
        %v2346 = vsel %vm554, %v2245, 0
        %v2349 = vsel %vm813, %v2344, 0
        %2351 = vmatprep.subr.bf16.mxu0 0
        %2352 = vmatpush1.bf16.msra.mxu0 %v2349
        %2353 = vmatprep.subr.bf16.mxu0 0
        %2354 = vmatpush1.bf16.msra.mxu0 0
        %2355 = vmatprep.subr.bf16.mxu0 0
        %2356 = vmatpush1.bf16.msra.mxu0 0
        %2357 = vmatprep.subr.bf16.mxu0 0
        %2358 = vmatpush1.bf16.msra.mxu0 0
        %2359 = vmatprep.subr.bf16.mxu0 0
        %2360 = vmatpush1.bf16.msra.mxu0 0
        %2361 = vmatprep.subr.bf16.mxu0 0
        %2362 = vmatpush1.bf16.msra.mxu0 0
        %2363 = vmatprep.subr.bf16.mxu0 0
        %2364 = vmatpush1.bf16.msra.mxu0 0
        %2365 = vmatprep.subr.bf16.mxu0 0
        %2366 = vmatpush1.bf16.msra.mxu0 0
        %2367 = vmatprep.subr.bf16.mxu0 0
        %2368 = vmatpush1.bf16.msra.mxu0 0
        %2369 = vmatprep.subr.bf16.mxu0 0
        %2370 = vmatpush1.bf16.msra.mxu0 0
        %2371 = vmatprep.subr.bf16.mxu0 0
        %2372 = vmatpush1.bf16.msra.mxu0 0
        %2373 = vmatprep.subr.bf16.mxu0 0
        %2374 = vmatpush1.bf16.msra.mxu0 0
        %2375 = vmatprep.subr.bf16.mxu0 0
        %2376 = vmatpush1.bf16.msra.mxu0 0
        %2377 = vmatprep.subr.bf16.mxu0 0
        %2378 = vmatpush1.bf16.msra.mxu0 0
        %2379 = vmatprep.subr.bf16.mxu0 0
        %2380 = vmatpush1.bf16.msra.mxu0 0
        %2381 = vmatprep.subr.bf16.mxu0 0
        %2382 = vmatpush1.bf16.msra.mxu0 0
        %2383 = vmatprep.mubr.bf16.mxu0 0
        %2384 = vmatmul.mubr.bf16.gmra.mrb[0].mxu0 %v2346
        %v2385 = vpop.f32.mrb[0].mxu0
        %v2386 = vadd.f32 0.0, %v2385
        %v2387 = vpop.f32.mrb[0].mxu0
        %v2388 = vpop.f32.mrb[0].mxu0
        %v2389 = vpop.f32.mrb[0].mxu0
        %2390 = vdwg.mxu0
        %2391 = vrot.lane.b32.xlu0 %v550, 40
        %v2392 = vpop.permute.xlu0 %2391
        %v2394 = vsel %vm554, %v2246, 0
        %v2397 = vsel %vm813, %v2392, 0
        %2399 = vmatprep.subr.bf16.mxu0 0
        %2400 = vmatpush1.bf16.msra.mxu0 %v2397
        %2401 = vmatprep.subr.bf16.mxu0 0
        %2402 = vmatpush1.bf16.msra.mxu0 0
        %2403 = vmatprep.subr.bf16.mxu0 0
        %2404 = vmatpush1.bf16.msra.mxu0 0
        %2405 = vmatprep.subr.bf16.mxu0 0
        %2406 = vmatpush1.bf16.msra.mxu0 0
        %2407 = vmatprep.subr.bf16.mxu0 0
        %2408 = vmatpush1.bf16.msra.mxu0 0
        %2409 = vmatprep.subr.bf16.mxu0 0
        %2410 = vmatpush1.bf16.msra.mxu0 0
        %2411 = vmatprep.subr.bf16.mxu0 0
        %2412 = vmatpush1.bf16.msra.mxu0 0
        %2413 = vmatprep.subr.bf16.mxu0 0
        %2414 = vmatpush1.bf16.msra.mxu0 0
        %2415 = vmatprep.subr.bf16.mxu0 0
        %2416 = vmatpush1.bf16.msra.mxu0 0
        %2417 = vmatprep.subr.bf16.mxu0 0
        %2418 = vmatpush1.bf16.msra.mxu0 0
        %2419 = vmatprep.subr.bf16.mxu0 0
        %2420 = vmatpush1.bf16.msra.mxu0 0
        %2421 = vmatprep.subr.bf16.mxu0 0
        %2422 = vmatpush1.bf16.msra.mxu0 0
        %2423 = vmatprep.subr.bf16.mxu0 0
        %2424 = vmatpush1.bf16.msra.mxu0 0
        %2425 = vmatprep.subr.bf16.mxu0 0
        %2426 = vmatpush1.bf16.msra.mxu0 0
        %2427 = vmatprep.subr.bf16.mxu0 0
        %2428 = vmatpush1.bf16.msra.mxu0 0
        %2429 = vmatprep.subr.bf16.mxu0 0
        %2430 = vmatpush1.bf16.msra.mxu0 0
        %2431 = vmatprep.mubr.bf16.mxu0 0
        %2432 = vmatmul.mubr.bf16.gmra.mrb[0].mxu0 %v2394
        %v2433 = vpop.f32.mrb[0].mxu0
        %v2434 = vadd.f32 0.0, %v2433
        %v2435 = vpop.f32.mrb[0].mxu0
        %v2436 = vpop.f32.mrb[0].mxu0
        %v2437 = vpop.f32.mrb[0].mxu0
        %2438 = vdwg.mxu0
        %v2439 = vadd.f32 %v2223, %v2290
        %v2440 = vadd.f32 %v2224, %v2338
        %v2441 = vadd.f32 %v2225, %v2386
        %v2442 = vadd.f32 %v2226, %v2434
        %v2443 = vrcp.pop %v2239
        %v2444 = vrcp.pop %v2240
        %v2445 = vrcp.pop %v2241
        %v2446 = vrcp.pop %v2242
        %v2447 = vmul.f32 %v2439, %v2443
        %v2448 = vmul.f32 %v2440, %v2444
        %v2449 = vmul.f32 %v2441, %v2445
        %v2450 = vmul.f32 %v2442, %v2446
        %2455 = vrot.lane.b32.xlu0 %v2447, 24
        %v2456 = vpop.permute.xlu0 %2455
        %2457 = vrot.lane.b32.xlu0 %v2448, 24
        %v2458 = vpop.permute.xlu0 %2457
        %2459 = vrot.lane.b32.xlu0 %v2449, 24
        %v2460 = vpop.permute.xlu0 %2459
        %2461 = vrot.lane.b32.xlu0 %v2450, 24
        %v2462 = vpop.permute.xlu0 %2461
        %vm2467 = vcmask 261312
        %2468 = vst.msk [vmem:[#allocation2] sm:$0xff] %vm2467, %v2456
        %2469 = vst.msk [vmem:[#allocation2 + $0x8] sm:$0xff] %vm2467, %v2458
        %2470 = vst.msk [vmem:[#allocation2 + $0x10] sm:$0xff] %vm2467, %v2460
        %2471 = vst.msk [vmem:[#allocation2 + $0x18] sm:$0xff] %vm2467, %v2462
        %v2472 = vld [vmem:[#allocation2] sm:$0xff]
        %v2473 = vld [vmem:[#allocation2 + $0x8] sm:$0xff]
        %v2474 = vld [vmem:[#allocation2 + $0x10] sm:$0xff]
        %v2475 = vld [vmem:[#allocation2 + $0x18] sm:$0xff]
        %v2476 = vpack.c.bf16 %v2473, %v2472
        %v2477 = vpack.c.bf16 %v2475, %v2474
        %v2478 = vld [vmem:[%s3] sm:$0xf]
        %v2479 = vld [vmem:[%s3 + $0x4] sm:$0xf]
        %v2480 = vld [vmem:[%s3 + $0x8] sm:$0xf]
        %v2481 = vld [vmem:[%s3 + $0xc] sm:$0xf]
        %v2482 = vld [vmem:[%s4] sm:$0x1]
        %v2484 = vlaneseq
        %v2485 = vshrl.u32 %v2484, 7
        %v2486 = vsub.s32 0, %v2485
        %v2487 = vrot.slane %v2482, %v2486
        %v2493 = vunpack.c.l.b16 %v2478
        %v2494 = vunpack.c.l.b16 %v2479
        %v2495 = vunpack.c.l.b16 %v2480
        %v2496 = vunpack.c.l.b16 %v2481
        %v2497 = vpack.c.b16 %v2494, %v2493
        %v2498 = vpack.c.b16 %v2496, %v2495
        %v2502 = vsel %vm491, %v2476, 0
        %v2505 = vsel %vm491, %v2477, 0
        %2507 = vmatprep.subr.bf16.mxu0 0
        %2508 = vmatpush1.bf16.msra.mxu0 %v2497
        %2509 = vmatprep.subr.bf16.mxu0 0
        %2510 = vmatpush1.bf16.msra.mxu0 %v2498
        %2511 = vmatprep.subr.bf16.mxu0 0
        %2512 = vmatpush1.bf16.msra.mxu0 0
        %2513 = vmatprep.subr.bf16.mxu0 0
        %2514 = vmatpush1.bf16.msra.mxu0 0
        %2515 = vmatprep.subr.bf16.mxu0 0
        %2516 = vmatpush1.bf16.msra.mxu0 0
        %2517 = vmatprep.subr.bf16.mxu0 0
        %2518 = vmatpush1.bf16.msra.mxu0 0
        %2519 = vmatprep.subr.bf16.mxu0 0
        %2520 = vmatpush1.bf16.msra.mxu0 0
        %2521 = vmatprep.subr.bf16.mxu0 0
        %2522 = vmatpush1.bf16.msra.mxu0 0
        %2523 = vmatprep.subr.bf16.mxu0 0
        %2524 = vmatpush1.bf16.msra.mxu0 0
        %2525 = vmatprep.subr.bf16.mxu0 0
        %2526 = vmatpush1.bf16.msra.mxu0 0
        %2527 = vmatprep.subr.bf16.mxu0 0
        %2528 = vmatpush1.bf16.msra.mxu0 0
        %2529 = vmatprep.subr.bf16.mxu0 0
        %2530 = vmatpush1.bf16.msra.mxu0 0
        %2531 = vmatprep.subr.bf16.mxu0 0
        %2532 = vmatpush1.bf16.msra.mxu0 0
        %2533 = vmatprep.subr.bf16.mxu0 0
        %2534 = vmatpush1.bf16.msra.mxu0 0
        %2535 = vmatprep.subr.bf16.mxu0 0
        %2536 = vmatpush1.bf16.msra.mxu0 0
        %2537 = vmatprep.subr.bf16.mxu0 0
        %2538 = vmatpush1.bf16.msra.mxu0 0
        %2539 = vmatprep.mubr.bf16.mxu0 0
        %2540 = vmatmul.mubr.bf16.gmra.mrb[0].mxu0 %v2502
        %v2541 = vpop.f32.mrb[0].mxu0
        %v2542 = vadd.f32 %v2487, %v2541
        %v2543 = vpop.f32.mrb[0].mxu0
        %v2544 = vpop.f32.mrb[0].mxu0
        %v2545 = vadd.f32 %v2487, %v2544
        %v2546 = vpop.f32.mrb[0].mxu0
        %2547 = vmatprep.mubr.bf16.mxu0 0
        %2548 = vmatmul.mubr.bf16.gmra.mrb[0].mxu0 %v2505
        %v2549 = vpop.f32.mrb[0].mxu0
        %v2550 = vadd.f32 %v2487, %v2549
        %v2551 = vpop.f32.mrb[0].mxu0
        %v2552 = vpop.f32.mrb[0].mxu0
        %v2553 = vadd.f32 %v2487, %v2552
        %v2554 = vpop.f32.mrb[0].mxu0
        %2555 = vdwg.mxu0
        %v2556 = vadd.f32 %v462, %v2542
        %v2557 = vadd.f32 %v463, %v2545
        %v2558 = vadd.f32 %v464, %v2550
        %v2559 = vadd.f32 %v465, %v2553
        %v2560 = vsel %vm491, %v2556, 0.0
        %2561 = vadd.xlane.f32.xlu0 %v2560
        %v2562 = vpop.xlane.xlu0 %2561
        %v2563 = vsel %vm491, %v2557, 0.0
        %2564 = vadd.xlane.f32.xlu0 %v2563
        %v2565 = vpop.xlane.xlu0 %2564
        %v2566 = vsel %vm491, %v2558, 0.0
        %2567 = vadd.xlane.f32.xlu0 %v2566
        %v2568 = vpop.xlane.xlu0 %2567
        %v2569 = vsel %vm491, %v2559, 0.0
        %2570 = vadd.xlane.f32.xlu0 %v2569
        %v2571 = vpop.xlane.xlu0 %2570
        %v2572 = vrcp.pop 32.0
        %v2573 = vmul.f32 %v2562, %v2572
        %v2574 = vmul.f32 %v2565, %v2572
        %v2575 = vmul.f32 %v2568, %v2572
        %v2576 = vmul.f32 %v2571, %v2572
        %v2577 = vsub.f32 %v2556, %v2573
        %v2578 = vsub.f32 %v2557, %v2574
        %v2579 = vsub.f32 %v2558, %v2575
        %v2580 = vsub.f32 %v2559, %v2576
        %v2581 = vmul.f32 %v2577, %v2577
        %v2582 = vmul.f32 %v2578, %v2578
        %v2583 = vmul.f32 %v2579, %v2579
        %v2584 = vmul.f32 %v2580, %v2580
        %v2585 = vsel %vm491, %v2581, 0.0
        %2586 = vadd.xlane.f32.xlu0 %v2585
        %v2587 = vpop.xlane.xlu0 %2586
        %v2588 = vsel %vm491, %v2582, 0.0
        %2589 = vadd.xlane.f32.xlu0 %v2588
        %v2590 = vpop.xlane.xlu0 %2589
        %v2591 = vsel %vm491, %v2583, 0.0
        %2592 = vadd.xlane.f32.xlu0 %v2591
        %v2593 = vpop.xlane.xlu0 %2592
        %v2594 = vsel %vm491, %v2584, 0.0
        %2595 = vadd.xlane.f32.xlu0 %v2594
        %v2596 = vpop.xlane.xlu0 %2595
        %v2597 = vmul.f32 %v2587, %v2572
        %v2598 = vmul.f32 %v2590, %v2572
        %v2599 = vmul.f32 %v2593, %v2572
        %v2600 = vmul.f32 %v2596, %v2572
        %v2601 = vadd.f32 %v2597, 1e-05
        %v2602 = vadd.f32 %v2598, 1e-05
        %v2603 = vadd.f32 %v2599, 1e-05
        %v2604 = vadd.f32 %v2600, 1e-05
        %v2605 = vrsqrt.pop %v2601
        %v2606 = vrsqrt.pop %v2602
        %v2607 = vrsqrt.pop %v2603
        %v2608 = vrsqrt.pop %v2604
        %v2609 = vmul.f32 %v2577, %v2605
        %v2610 = vmul.f32 %v2578, %v2606
        %v2611 = vmul.f32 %v2579, %v2607
        %v2612 = vmul.f32 %v2580, %v2608
        %v2613 = vld [vmem:[%s9] sm:$0x1]
        %v2615 = vlaneseq
        %v2616 = vshrl.u32 %v2615, 7
        %v2617 = vsub.s32 0, %v2616
        %v2618 = vrot.slane %v2613, %v2617
        %v2620 = vmul.f32 %v2609, %v2618
        %v2621 = vmul.f32 %v2610, %v2618
        %v2622 = vmul.f32 %v2611, %v2618
        %v2623 = vmul.f32 %v2612, %v2618
        %v2624 = vld [vmem:[%s10] sm:$0x1]
        %v2626 = vlaneseq
        %v2627 = vshrl.u32 %v2626, 7
        %v2628 = vsub.s32 0, %v2627
        %v2629 = vrot.slane %v2624, %v2628
        %v2631 = vadd.f32 %v2620, %v2629
        %v2632 = vadd.f32 %v2621, %v2629
        %v2633 = vadd.f32 %v2622, %v2629
        %v2634 = vadd.f32 %v2623, %v2629
        %v2635 = vpack.c.bf16 %v2632, %v2631
        %v2636 = vpack.c.bf16 %v2634, %v2633
        %2637 = vst.msk [vmem:[#allocation3] sm:$0xff] %vm491, 0.0
        %2638 = vst.msk [vmem:[#allocation3 + $0x8] sm:$0xff] %vm491, 0.0
        %2639 = vst.msk [vmem:[#allocation3 + $0x10] sm:$0xff] %vm491, 0.0
        %2640 = vst.msk [vmem:[#allocation3 + $0x18] sm:$0xff] %vm491, 0.0
        %v2641 = vld [vmem:[%s5] sm:$0xf]
        %v2642 = vld [vmem:[%s5 + $0x4] sm:$0xf]
        %v2643 = vld [vmem:[%s5 + $0x8] sm:$0xf]
        %v2644 = vld [vmem:[%s5 + $0xc] sm:$0xf]
        %v2645 = vld [vmem:[%s6] sm:$0x1]
        %v2647 = vlaneseq
        %v2648 = vshrl.u32 %v2647, 7
        %v2649 = vsub.s32 0, %v2648
        %v2650 = vrot.slane %v2645, %v2649
        %v2656 = vunpack.c.l.b16 %v2641
        %v2657 = vunpack.c.l.b16 %v2642
        %v2658 = vunpack.c.l.b16 %v2643
        %v2659 = vunpack.c.l.b16 %v2644
        %v2660 = vpack.c.b16 %v2657, %v2656
        %v2661 = vpack.c.b16 %v2659, %v2658
        %v2665 = vsel %vm491, %v2635, 0
        %v2668 = vsel %vm491, %v2636, 0
        %2670 = vmatprep.subr.bf16.mxu0 0
        %2671 = vmatpush1.bf16.msra.mxu0 %v2660
        %2672 = vmatprep.subr.bf16.mxu0 0
        %2673 = vmatpush1.bf16.msra.mxu0 %v2661
        %2674 = vmatprep.subr.bf16.mxu0 0
        %2675 = vmatpush1.bf16.msra.mxu0 0
        %2676 = vmatprep.subr.bf16.mxu0 0
        %2677 = vmatpush1.bf16.msra.mxu0 0
        %2678 = vmatprep.subr.bf16.mxu0 0
        %2679 = vmatpush1.bf16.msra.mxu0 0
        %2680 = vmatprep.subr.bf16.mxu0 0
        %2681 = vmatpush1.bf16.msra.mxu0 0
        %2682 = vmatprep.subr.bf16.mxu0 0
        %2683 = vmatpush1.bf16.msra.mxu0 0
        %2684 = vmatprep.subr.bf16.mxu0 0
        %2685 = vmatpush1.bf16.msra.mxu0 0
        %2686 = vmatprep.subr.bf16.mxu0 0
        %2687 = vmatpush1.bf16.msra.mxu0 0
        %2688 = vmatprep.subr.bf16.mxu0 0
        %2689 = vmatpush1.bf16.msra.mxu0 0
        %2690 = vmatprep.subr.bf16.mxu0 0
        %2691 = vmatpush1.bf16.msra.mxu0 0
        %2692 = vmatprep.subr.bf16.mxu0 0
        %2693 = vmatpush1.bf16.msra.mxu0 0
        %2694 = vmatprep.subr.bf16.mxu0 0
        %2695 = vmatpush1.bf16.msra.mxu0 0
        %2696 = vmatprep.subr.bf16.mxu0 0
        %2697 = vmatpush1.bf16.msra.mxu0 0
        %2698 = vmatprep.subr.bf16.mxu0 0
        %2699 = vmatpush1.bf16.msra.mxu0 0
        %2700 = vmatprep.subr.bf16.mxu0 0
        %2701 = vmatpush1.bf16.msra.mxu0 0
        %2702 = vmatprep.mubr.bf16.mxu0 0
        %2703 = vmatmul.mubr.bf16.gmra.mrb[0].mxu0 %v2665
        %v2704 = vpop.f32.mrb[0].mxu0
        %v2705 = vadd.f32 %v2650, %v2704
        %v2706 = vpop.f32.mrb[0].mxu0
        %v2707 = vpop.f32.mrb[0].mxu0
        %v2708 = vadd.f32 %v2650, %v2707
        %v2709 = vpop.f32.mrb[0].mxu0
        %2710 = vmatprep.mubr.bf16.mxu0 0
        %2711 = vmatmul.mubr.bf16.gmra.mrb[0].mxu0 %v2668
        %v2712 = vpop.f32.mrb[0].mxu0
        %v2713 = vadd.f32 %v2650, %v2712
        %v2714 = vpop.f32.mrb[0].mxu0
        %v2715 = vpop.f32.mrb[0].mxu0
        %v2716 = vadd.f32 %v2650, %v2715
        %v2717 = vpop.f32.mrb[0].mxu0
        %2718 = vdwg.mxu0
        %v2719 = vmax.f32 %v2705, 0.0
        %v2720 = vmax.f32 %v2708, 0.0
        %v2721 = vmax.f32 %v2713, 0.0
        %v2722 = vmax.f32 %v2716, 0.0
        %v2723 = vpack.c.bf16 %v2720, %v2719
        %v2724 = vpack.c.bf16 %v2722, %v2721
        %v2725 = vld [vmem:[#allocation3] sm:$0xff]
        %v2726 = vld [vmem:[#allocation3 + $0x8] sm:$0xff]
        %v2727 = vld [vmem:[#allocation3 + $0x10] sm:$0xff]
        %v2728 = vld [vmem:[#allocation3 + $0x18] sm:$0xff]
        %v2729 = vld [vmem:[%s7] sm:$0xf]
        %v2730 = vld [vmem:[%s7 + $0x4] sm:$0xf]
        %v2731 = vld [vmem:[%s7 + $0x8] sm:$0xf]
        %v2732 = vld [vmem:[%s7 + $0xc] sm:$0xf]
        %v2733 = vld [vmem:[%s7 + $0x10] sm:$0xf]
        %v2734 = vld [vmem:[%s7 + $0x14] sm:$0xf]
        %v2735 = vld [vmem:[%s7 + $0x18] sm:$0xf]
        %v2736 = vld [vmem:[%s7 + $0x1c] sm:$0xf]
        %v2745 = vunpack.c.l.b16 %v2729
        %v2746 = vunpack.c.l.b16 %v2730
        %v2747 = vunpack.c.l.b16 %v2731
        %v2748 = vunpack.c.l.b16 %v2732
        %v2749 = vunpack.c.l.b16 %v2733
        %v2750 = vunpack.c.l.b16 %v2734
        %v2751 = vunpack.c.l.b16 %v2735
        %v2752 = vunpack.c.l.b16 %v2736
        %v2753 = vpack.c.b16 %v2746, %v2745
        %v2754 = vpack.c.b16 %v2748, %v2747
        %v2755 = vpack.c.b16 %v2750, %v2749
        %v2756 = vpack.c.b16 %v2752, %v2751
        %vm2761 = vcmask 523264
        %v2763 = vsel %vm2761, %v2723, 0
        %v2766 = vsel %vm2761, %v2724, 0
        %2768 = vmatprep.subr.bf16.mxu0 0
        %2769 = vmatpush1.bf16.msra.mxu0 %v2753
        %2770 = vmatprep.subr.bf16.mxu0 0
        %2771 = vmatpush1.bf16.msra.mxu0 %v2754
        %2772 = vmatprep.subr.bf16.mxu0 0
        %2773 = vmatpush1.bf16.msra.mxu0 %v2755
        %2774 = vmatprep.subr.bf16.mxu0 0
        %2775 = vmatpush1.bf16.msra.mxu0 %v2756
        %2776 = vmatprep.subr.bf16.mxu0 0
        %2777 = vmatpush1.bf16.msra.mxu0 0
        %2778 = vmatprep.subr.bf16.mxu0 0
        %2779 = vmatpush1.bf16.msra.mxu0 0
        %2780 = vmatprep.subr.bf16.mxu0 0
        %2781 = vmatpush1.bf16.msra.mxu0 0
        %2782 = vmatprep.subr.bf16.mxu0 0
        %2783 = vmatpush1.bf16.msra.mxu0 0
        %2784 = vmatprep.subr.bf16.mxu0 0
        %2785 = vmatpush1.bf16.msra.mxu0 0
        %2786 = vmatprep.subr.bf16.mxu0 0
        %2787 = vmatpush1.bf16.msra.mxu0 0
        %2788 = vmatprep.subr.bf16.mxu0 0
        %2789 = vmatpush1.bf16.msra.mxu0 0
        %2790 = vmatprep.subr.bf16.mxu0 0
        %2791 = vmatpush1.bf16.msra.mxu0 0
        %2792 = vmatprep.subr.bf16.mxu0 0
        %2793 = vmatpush1.bf16.msra.mxu0 0
        %2794 = vmatprep.subr.bf16.mxu0 0
        %2795 = vmatpush1.bf16.msra.mxu0 0
        %2796 = vmatprep.subr.bf16.mxu0 0
        %2797 = vmatpush1.bf16.msra.mxu0 0
        %2798 = vmatprep.subr.bf16.mxu0 0
        %2799 = vmatpush1.bf16.msra.mxu0 0
        %2800 = vmatprep.mubr.bf16.mxu0 0
        %2801 = vmatmul.mubr.bf16.gmra.mrb[0].mxu0 %v2763
        %v2802 = vpop.f32.mrb[0].mxu0
        %v2803 = vadd.f32 0.0, %v2802
        %v2804 = vpop.f32.mrb[0].mxu0
        %v2805 = vpop.f32.mrb[0].mxu0
        %v2806 = vadd.f32 0.0, %v2805
        %v2807 = vpop.f32.mrb[0].mxu0
        %2808 = vmatprep.mubr.bf16.mxu0 0
        %2809 = vmatmul.mubr.bf16.gmra.mrb[0].mxu0 %v2766
        %v2810 = vpop.f32.mrb[0].mxu0
        %v2811 = vadd.f32 0.0, %v2810
        %v2812 = vpop.f32.mrb[0].mxu0
        %v2813 = vpop.f32.mrb[0].mxu0
        %v2814 = vadd.f32 0.0, %v2813
        %v2815 = vpop.f32.mrb[0].mxu0
        %2816 = vdwg.mxu0
        %v2817 = vadd.f32 %v2725, %v2803
        %v2818 = vadd.f32 %v2726, %v2806
        %v2819 = vadd.f32 %v2727, %v2811
        %v2820 = vadd.f32 %v2728, %v2814
        %2821 = vst.msk [vmem:[#allocation3] sm:$0xff] %vm491, %v2817
        %2822 = vst.msk [vmem:[#allocation3 + $0x8] sm:$0xff] %vm491, %v2818
        %2823 = vst.msk [vmem:[#allocation3 + $0x10] sm:$0xff] %vm491, %v2819
        %2824 = vst.msk [vmem:[#allocation3 + $0x18] sm:$0xff] %vm491, %v2820
        %v2825 = vld [vmem:[#allocation3] sm:$0xff]
        %v2826 = vld [vmem:[#allocation3 + $0x8] sm:$0xff]
        %v2827 = vld [vmem:[#allocation3 + $0x10] sm:$0xff]
        %v2828 = vld [vmem:[#allocation3 + $0x18] sm:$0xff]
        %v2829 = vadd.f32 %v2631, %v2825
        %v2830 = vadd.f32 %v2632, %v2826
        %v2831 = vadd.f32 %v2633, %v2827
        %v2832 = vadd.f32 %v2634, %v2828
        %v2833 = vld [vmem:[%s8] sm:$0x1]
        %v2835 = vlaneseq
        %v2836 = vshrl.u32 %v2835, 7
        %v2837 = vsub.s32 0, %v2836
        %v2838 = vrot.slane %v2833, %v2837
        %v2840 = vadd.f32 %v2829, %v2838
        %v2841 = vadd.f32 %v2830, %v2838
        %v2842 = vadd.f32 %v2831, %v2838
        %v2843 = vadd.f32 %v2832, %v2838
        %v2844 = vsel %vm491, %v2840, 0.0
        %2845 = vadd.xlane.f32.xlu0 %v2844
        %v2846 = vpop.xlane.xlu0 %2845
        %v2847 = vsel %vm491, %v2841, 0.0
        %2848 = vadd.xlane.f32.xlu0 %v2847
        %v2849 = vpop.xlane.xlu0 %2848
        %v2850 = vsel %vm491, %v2842, 0.0
        %2851 = vadd.xlane.f32.xlu0 %v2850
        %v2852 = vpop.xlane.xlu0 %2851
        %v2853 = vsel %vm491, %v2843, 0.0
        %2854 = vadd.xlane.f32.xlu0 %v2853
        %v2855 = vpop.xlane.xlu0 %2854
        %v2856 = vmul.f32 %v2846, %v2572
        %v2857 = vmul.f32 %v2849, %v2572
        %v2858 = vmul.f32 %v2852, %v2572
        %v2859 = vmul.f32 %v2855, %v2572
        %v2860 = vsub.f32 %v2840, %v2856
        %v2861 = vsub.f32 %v2841, %v2857
        %v2862 = vsub.f32 %v2842, %v2858
        %v2863 = vsub.f32 %v2843, %v2859
        %v2864 = vmul.f32 %v2860, %v2860
        %v2865 = vmul.f32 %v2861, %v2861
        %v2866 = vmul.f32 %v2862, %v2862
        %v2867 = vmul.f32 %v2863, %v2863
        %v2868 = vsel %vm491, %v2864, 0.0
        %2869 = vadd.xlane.f32.xlu0 %v2868
        %v2870 = vpop.xlane.xlu0 %2869
        %v2871 = vsel %vm491, %v2865, 0.0
        %2872 = vadd.xlane.f32.xlu0 %v2871
        %v2873 = vpop.xlane.xlu0 %2872
        %v2874 = vsel %vm491, %v2866, 0.0
        %2875 = vadd.xlane.f32.xlu0 %v2874
        %v2876 = vpop.xlane.xlu0 %2875
        %v2877 = vsel %vm491, %v2867, 0.0
        %2878 = vadd.xlane.f32.xlu0 %v2877
        %v2879 = vpop.xlane.xlu0 %2878
        %v2880 = vmul.f32 %v2870, %v2572
        %v2881 = vmul.f32 %v2873, %v2572
        %v2882 = vmul.f32 %v2876, %v2572
        %v2883 = vmul.f32 %v2879, %v2572
        %v2884 = vadd.f32 %v2880, 1e-05
        %v2885 = vadd.f32 %v2881, 1e-05
        %v2886 = vadd.f32 %v2882, 1e-05
        %v2887 = vadd.f32 %v2883, 1e-05
        %v2888 = vrsqrt.pop %v2884
        %v2889 = vrsqrt.pop %v2885
        %v2890 = vrsqrt.pop %v2886
        %v2891 = vrsqrt.pop %v2887
        %v2892 = vmul.f32 %v2860, %v2888
        %v2893 = vmul.f32 %v2861, %v2889
        %v2894 = vmul.f32 %v2862, %v2890
        %v2895 = vmul.f32 %v2863, %v2891
        %v2896 = vld [vmem:[%s11] sm:$0x1]
        %v2898 = vlaneseq
        %v2899 = vshrl.u32 %v2898, 7
        %v2900 = vsub.s32 0, %v2899
        %v2901 = vrot.slane %v2896, %v2900
        %v2903 = vmul.f32 %v2892, %v2901
        %v2904 = vmul.f32 %v2893, %v2901
        %v2905 = vmul.f32 %v2894, %v2901
        %v2906 = vmul.f32 %v2895, %v2901
        %v2907 = vld [vmem:[%s12] sm:$0x1]
        %v2909 = vlaneseq
        %v2910 = vshrl.u32 %v2909, 7
        %v2911 = vsub.s32 0, %v2910
        %v2912 = vrot.slane %v2907, %v2911
        %v2914 = vadd.f32 %v2903, %v2912
        %v2915 = vadd.f32 %v2904, %v2912
        %v2916 = vadd.f32 %v2905, %v2912
        %v2917 = vadd.f32 %v2906, %v2912
        %2918 = vst.msk [vmem:[%s458] sm:$0xff] %vm491, %v2914
        %2919 = vst.msk [vmem:[%s458 + $0x8] sm:$0xff] %vm491, %v2915
        %2920 = vst.msk [vmem:[%s458 + $0x10] sm:$0xff] %vm491, %v2916
        %2921 = vst.msk [vmem:[%s458 + $0x18] sm:$0xff] %vm491, %v2917
        %s2922 = sand.u32 %s316, 1
        %s2923 = scalar_lea.sflag [#allocation6], %s2922
        %s2924 = sand.u32 %s316, 1
        %s2925 = smul.addr %s2924, 32
        %s2926 = scalar_lea.vmem [#allocation7], %s2925
        // Predicated region
        $region77: #{tpu_custom_call.1} parent=71 // pred_check
          %p2927 = pneg %p326
        $region78: #{tpu_custom_call.1} parent=71 // pred_check_branch
          %2929 = sbr.rel (%p2927) target = $region80
        $region79: #{tpu_custom_call.1} parent=71 // pred_region
          %s2930 = smul.u32 4, %s30
          %s2932 = ssub.s32 512, 512
          %2933 = vsyncadd %s2923, %s2932
          %s2934 = smul.addr %s2930, 128
          %s2935 = scalar_lea.hbm %s13, %s2934
          %s2936 = sshll.u32 %s2926, 4
          %s2937 = int_to_ptr.vmem [resolvable:$true] %s2936
          %2942 = dma.vmem_to_hbm [thread:$0]  %s2937, 512, %s2935, %s2923, 128, 128, 8
        $region80: #{tpu_custom_call.1} parent=71 // pred_fallthru
          _
      $region72: #{tpu_custom_call.1} parent=5 // pred_fallthru
        _
      %p2943 = scmp.le.s32.totalorder 2, %s25
      // Predicated region
      $region81: #{tpu_custom_call.1} parent=5 // pred_check
        %p2944 = pneg %p2943
      $region82: #{tpu_custom_call.1} parent=5 // pred_check_branch
        %2946 = sbr.rel (%p2944) target = $region84
      $region83: #{tpu_custom_call.1} parent=5 // pred_region
        %s2947 = ssub.s32 %s25, 2
        // Predicated region
        $region85: #{tpu_custom_call.1} parent=83 // pred_check
          %p2948 = pneg %p332
        $region86: #{tpu_custom_call.1} parent=83 // pred_check_branch
          %2950 = sbr.rel (%p2948) target = $region88
        $region87: #{tpu_custom_call.1} parent=83 // pred_region
          %s2951 = sand.u32 %s317, 1
          %s2952 = scalar_lea.sflag [#allocation6], %s2951
          %s2953 = sand.u32 %s317, 1
          %s2954 = smul.addr %s2953, 32
          %s2955 = scalar_lea.vmem [#allocation7], %s2954
          %2956 = dma.done %s2952, 512
        $region88: #{tpu_custom_call.1} parent=83 // pred_fallthru
          _
      $region84: #{tpu_custom_call.1} parent=5 // pred_fallthru
        _
    $region6: #{tpu_custom_call.1} parent=1 // loop_footer
      %s29 = sadd.s32 1, %s25
    $region7: #{tpu_custom_call.1} parent=1 // loop_footer_branch
      %24 = sbr.rel target = $region3
    $region8: #{tpu_custom_call.1} parent=1 // loop_exit
      _
    %2957 = vsyncpa [#allocation5], 1
    %s2958 = scalar_lea.sflag [#allocation5], 1
    %2959 = vsyncpa %s2958, 1
    %2960 = vsyncpa [#allocation6], 1
    %s2961 = scalar_lea.sflag [#allocation6], 1
    %2962 = vsyncpa %s2961, 1

// kernel: tpu_custom_call.1
$region0: #{tpu_custom_call.1}
  #allocation0 [shape = 'u32[]', space=smem, size = 0x4, offset = 0x4, fixed_abs, tag = 'smem constant byte address 0x4 - core index']
  #allocation1 [shape = 'u32[144,128]{1,0:T(1,128)}', space=vmem, size = 0x12000, scoped, tag = 'internal scratch']
  #allocation2 [shape = 'f32[32,32]{1,0:T(8,128)}', space=vmem, size = 0x4000, scoped, tag = 'scratch operand']
  #allocation3 [shape = 'f32[32,32]{1,0:T(8,128)}', space=vmem, size = 0x4000, scoped, tag = 'scratch operand']
  %s0 = inlined_call_operand.hbm [shape: f32[8,8,32], index: 0, kind: input, shape index: {}]
  %s1 = inlined_call_operand.vmem [shape: bf16[32,96], index: 1, kind: input, shape index: {}]
  %s2 = inlined_call_operand.vmem [shape: f32[1,96], index: 2, kind: input, shape index: {}]
  %s3 = inlined_call_operand.vmem [shape: bf16[32,32], index: 3, kind: input, shape index: {}]
  %s4 = inlined_call_operand.vmem [shape: f32[1,32], index: 4, kind: input, shape index: {}]
  %s5 = inlined_call_operand.vmem [shape: bf16[32,64], index: 5, kind: input, shape index: {}]
  %s6 = inlined_call_operand.vmem [shape: f32[1,64], index: 6, kind: input, shape index: {}]
  %s7 = inlined_call_operand.vmem [shape: bf16[64,32], index: 7, kind: input, shape index: {}]
  %s8 = inlined_call_operand.vmem [shape: f32[1,32], index: 8, kind: input, shape index: {}]
  %s9 = inlined_call_operand.vmem [shape: f32[1,32], index: 9, kind: input, shape index: {}]
  %s10 = inlined_call_operand.vmem [shape: f32[1,32], index: 10, kind: input, shape index: {}]
  %s11 = inlined_call_operand.vmem [shape: f32[1,32], index: 11, kind: input, shape index: {}]
  %s12 = inlined_call_operand.vmem [shape: f32[1,32], index: 12, kind: input, shape index: {}]
  %s13 = inlined_call_operand.hbm [shape: f32[8,8,32], index: 13, kind: output, shape index: {}]
  %s14 = sld [smem:[#allocation0]]
  $region89: #{tpu_custom_call.1} parent=0
    _
  %s16 = ssub.s32 1, %s14
  %s17 = scalar_select 0, %s16, %s14
  $region1: #{tpu_custom_call.1} parent=0
    #allocation4 [shape = 'u8[32768]{0}', space=vmem, size = 0x8000, scoped, tag = 'input window, operand 0']
    #allocation5 [shape = 's32[2]{0}', space=sflag, size = 0x8, scoped, tag = 'scoped memory for tpu_custom_call.1']
    #allocation6 [shape = 's32[2]{0}', space=sflag, size = 0x8, scoped, tag = 'scoped memory for tpu_custom_call.1']
    #allocation7 [shape = 'u8[32768]{0}', space=vmem, size = 0x8000, scoped, tag = 'output window, operand 0']
    %18 = vsyncpa [#allocation5], 0
    %s19 = scalar_lea.sflag [#allocation5], 1
    %20 = vsyncpa %s19, 0
    %21 = vsyncpa [#allocation6], 0
    %s22 = scalar_lea.sflag [#allocation6], 1
    %23 = vsyncpa %s22, 0
    loop: start=0, step=1, limit=4
    $region2: #{tpu_custom_call.1} parent=1 // loop_pre_header
      _
    $region3: #{tpu_custom_call.1} parent=1 // loop_header
      %s25 = sphi 0, %s29
      %p26 = scmp.ge.s32.totalorder %s25, 4
      %s35 = sphi 0, %s37
      %s38 = sphi 0, %s35
      %s39 = sphi 0, %s38
      %s55 = sphi 0, %s39
      %s59 = sphi 0, %s59
      %s61 = sphi 0, %s59
      %s62 = sphi 0, %s61
      %s76 = sphi 0, %s62
      %s80 = sphi 0, %s80
      %s82 = sphi 0, %s80
      %s83 = sphi 0, %s82
      %s97 = sphi 0, %s83
      %s101 = sphi 0, %s101
      %s103 = sphi 0, %s101
      %s104 = sphi 0, %s103
      %s118 = sphi 0, %s104
      %s122 = sphi 0, %s122
      %s124 = sphi 0, %s122
      %s125 = sphi 0, %s124
      %s139 = sphi 0, %s125
      %s143 = sphi 0, %s143
      %s145 = sphi 0, %s143
      %s146 = sphi 0, %s145
      %s160 = sphi 0, %s146
      %s164 = sphi 0, %s164
      %s166 = sphi 0, %s164
      %s167 = sphi 0, %s166
      %s181 = sphi 0, %s167
      %s185 = sphi 0, %s185
      %s187 = sphi 0, %s185
      %s188 = sphi 0, %s187
      %s202 = sphi 0, %s188
      %s206 = sphi 0, %s206
      %s208 = sphi 0, %s206
      %s209 = sphi 0, %s208
      %s223 = sphi 0, %s209
      %s227 = sphi 0, %s227
      %s229 = sphi 0, %s227
      %s230 = sphi 0, %s229
      %s244 = sphi 0, %s230
      %s248 = sphi 0, %s248
      %s250 = sphi 0, %s248
      %s251 = sphi 0, %s250
      %s265 = sphi 0, %s251
      %s269 = sphi 0, %s269
      %s271 = sphi 0, %s269
      %s272 = sphi 0, %s271
      %s286 = sphi 0, %s272
      %s290 = sphi 0, %s290
      %s292 = sphi 0, %s290
      %s293 = sphi 0, %s292
      %s307 = sphi 0, %s293
      %s313 = sphi 0, %s315
      %s316 = sphi 0, %s313
      %s317 = sphi 0, %s316
      %s333 = sphi 0, %s317
    $region4: #{tpu_custom_call.1} parent=1 // loop_header_branch
      %28 = sbr.rel (%p26) target = $region8
    $region5: #{tpu_custom_call.1} parent=1 // loop_body
      %s30 = ssub.s32 %s25, 1
      %s31 = ssub.s32 %s25, 2
      %s32 = sadd.s32 %s25, 1
      %s33 = ssub.s32 %s25, %s32
      %p34 = scmp.eq.s32.totalorder %s33, 0
      %s36 = sadd.s32 %s35, 1
      %s37 = scalar_select %p34, %s35, %s36
      %p40 = pneg %p34
      %p41 = scmp.eq.s32.totalorder %s25, 1
      %p42 = por %p40, %p41
      %p43 = scmp.ne.s32.totalorder %s35, %s38
      %p44 = scmp.eq.s32.totalorder %s25, 0
      %p45 = por %p43, %p44
      %p46 = scmp.ne.s32.totalorder %s35, %s38
      %p47 = scmp.eq.s32.totalorder %s30, 1
      %p48 = por %p46, %p47
      %p49 = scmp.ne.s32.totalorder %s38, %s39
      %p50 = scmp.eq.s32.totalorder %s30, 0
      %p51 = por %p49, %p50
      %p52 = scmp.ne.s32.totalorder %s38, %s39
      %p53 = scmp.eq.s32.totalorder %s31, 1
      %p54 = por %p52, %p53
      %p56 = scmp.ne.s32.totalorder %s39, %s55
      %p57 = scmp.eq.s32.totalorder %s31, 0
      %p58 = por %p56, %p57
      %s60 = sadd.s32 %s59, 1
      %p63 = scmp.eq.s32.totalorder %s25, 1
      %p64 = scmp.ne.s32.totalorder %s59, %s61
      %p65 = scmp.eq.s32.totalorder %s25, 0
      %p66 = por %p64, %p65
      %p67 = scmp.ne.s32.totalorder %s59, %s61
      %p68 = scmp.eq.s32.totalorder %s30, 1
      %p69 = por %p67, %p68
      %p70 = scmp.ne.s32.totalorder %s61, %s62
      %p71 = scmp.eq.s32.totalorder %s30, 0
      %p72 = por %p70, %p71
      %p73 = scmp.ne.s32.totalorder %s61, %s62
      %p74 = scmp.eq.s32.totalorder %s31, 1
      %p75 = por %p73, %p74
      %p77 = scmp.ne.s32.totalorder %s62, %s76
      %p78 = scmp.eq.s32.totalorder %s31, 0
      %p79 = por %p77, %p78
      %s81 = sadd.s32 %s80, 1
      %p84 = scmp.eq.s32.totalorder %s25, 1
      %p85 = scmp.ne.s32.totalorder %s80, %s82
      %p86 = scmp.eq.s32.totalorder %s25, 0
      %p87 = por %p85, %p86
      %p88 = scmp.ne.s32.totalorder %s80, %s82
      %p89 = scmp.eq.s32.totalorder %s30, 1
      %p90 = por %p88, %p89
      %p91 = scmp.ne.s32.totalorder %s82, %s83
      %p92 = scmp.eq.s32.totalorder %s30, 0
      %p93 = por %p91, %p92
      %p94 = scmp.ne.s32.totalorder %s82, %s83
      %p95 = scmp.eq.s32.totalorder %s31, 1
      %p96 = por %p94, %p95
      %p98 = scmp.ne.s32.totalorder %s83, %s97
      %p99 = scmp.eq.s32.totalorder %s31, 0
      %p100 = por %p98, %p99
      %s102 = sadd.s32 %s101, 1
      %p105 = scmp.eq.s32.totalorder %s25, 1
      %p106 = scmp.ne.s32.totalorder %s101, %s103
      %p107 = scmp.eq.s32.totalorder %s25, 0
      %p108 = por %p106, %p107
      %p109 = scmp.ne.s32.totalorder %s101, %s103
      %p110 = scmp.eq.s32.totalorder %s30, 1
      %p111 = por %p109, %p110
      %p112 = scmp.ne.s32.totalorder %s103, %s104
      %p113 = scmp.eq.s32.totalorder %s30, 0
      %p114 = por %p112, %p113
      %p115 = scmp.ne.s32.totalorder %s103, %s104
      %p116 = scmp.eq.s32.totalorder %s31, 1
      %p117 = por %p115, %p116
      %p119 = scmp.ne.s32.totalorder %s104, %s118
      %p120 = scmp.eq.s32.totalorder %s31, 0
      %p121 = por %p119, %p120
      %s123 = sadd.s32 %s122, 1
      %p126 = scmp.eq.s32.totalorder %s25, 1
      %p127 = scmp.ne.s32.totalorder %s122, %s124
      %p128 = scmp.eq.s32.totalorder %s25, 0
      %p129 = por %p127, %p128
      %p130 = scmp.ne.s32.totalorder %s122, %s124
      %p131 = scmp.eq.s32.totalorder %s30, 1
      %p132 = por %p130, %p131
      %p133 = scmp.ne.s32.totalorder %s124, %s125
      %p134 = scmp.eq.s32.totalorder %s30, 0
      %p135 = por %p133, %p134
      %p136 = scmp.ne.s32.totalorder %s124, %s125
      %p137 = scmp.eq.s32.totalorder %s31, 1
      %p138 = por %p136, %p137
      %p140 = scmp.ne.s32.totalorder %s125, %s139
      %p141 = scmp.eq.s32.totalorder %s31, 0
      %p142 = por %p140, %p141
      %s144 = sadd.s32 %s143, 1
      %p147 = scmp.eq.s32.totalorder %s25, 1
      %p148 = scmp.ne.s32.totalorder %s143, %s145
      %p149 = scmp.eq.s32.totalorder %s25, 0
      %p150 = por %p148, %p149
      %p151 = scmp.ne.s32.totalorder %s143, %s145
      %p152 = scmp.eq.s32.totalorder %s30, 1
      %p153 = por %p151, %p152
      %p154 = scmp.ne.s32.totalorder %s145, %s146
      %p155 = scmp.eq.s32.totalorder %s30, 0
      %p156 = por %p154, %p155
      %p157 = scmp.ne.s32.totalorder %s145, %s146
      %p158 = scmp.eq.s32.totalorder %s31, 1
      %p159 = por %p157, %p158
      %p161 = scmp.ne.s32.totalorder %s146, %s160
      %p162 = scmp.eq.s32.totalorder %s31, 0
      %p163 = por %p161, %p162
      %s165 = sadd.s32 %s164, 1
      %p168 = scmp.eq.s32.totalorder %s25, 1
      %p169 = scmp.ne.s32.totalorder %s164, %s166
      %p170 = scmp.eq.s32.totalorder %s25, 0
      %p171 = por %p169, %p170
      %p172 = scmp.ne.s32.totalorder %s164, %s166
      %p173 = scmp.eq.s32.totalorder %s30, 1
      %p174 = por %p172, %p173
      %p175 = scmp.ne.s32.totalorder %s166, %s167
      %p176 = scmp.eq.s32.totalorder %s30, 0
      %p177 = por %p175, %p176
      %p178 = scmp.ne.s32.totalorder %s166, %s167
      %p179 = scmp.eq.s32.totalorder %s31, 1
      %p180 = por %p178, %p179
      %p182 = scmp.ne.s32.totalorder %s167, %s181
      %p183 = scmp.eq.s32.totalorder %s31, 0
      %p184 = por %p182, %p183
      %s186 = sadd.s32 %s185, 1
      %p189 = scmp.eq.s32.totalorder %s25, 1
      %p190 = scmp.ne.s32.totalorder %s185, %s187
      %p191 = scmp.eq.s32.totalorder %s25, 0
      %p192 = por %p190, %p191
      %p193 = scmp.ne.s32.totalorder %s185, %s187
      %p194 = scmp.eq.s32.totalorder %s30, 1
      %p195 = por %p193, %p194
      %p196 = scmp.ne.s32.totalorder %s187, %s188
      %p197 = scmp.eq.s32.totalorder %s30, 0
      %p198 = por %p196, %p197
      %p199 = scmp.ne.s32.totalorder %s187, %s188
      %p200 = scmp.eq.s32.totalorder %s31, 1
      %p201 = por %p199, %p200
      %p203 = scmp.ne.s32.totalorder %s188, %s202
      %p204 = scmp.eq.s32.totalorder %s31, 0
      %p205 = por %p203, %p204
      %s207 = sadd.s32 %s206, 1
      %p210 = scmp.eq.s32.totalorder %s25, 1
      %p211 = scmp.ne.s32.totalorder %s206, %s208
      %p212 = scmp.eq.s32.totalorder %s25, 0
      %p213 = por %p211, %p212
      %p214 = scmp.ne.s32.totalorder %s206, %s208
      %p215 = scmp.eq.s32.totalorder %s30, 1
      %p216 = por %p214, %p215
      %p217 = scmp.ne.s32.totalorder %s208, %s209
      %p218 = scmp.eq.s32.totalorder %s30, 0
      %p219 = por %p217, %p218
      %p220 = scmp.ne.s32.totalorder %s208, %s209
      %p221 = scmp.eq.s32.totalorder %s31, 1
      %p222 = por %p220, %p221
      %p224 = scmp.ne.s32.totalorder %s209, %s223
      %p225 = scmp.eq.s32.totalorder %s31, 0
      %p226 = por %p224, %p225
      %s228 = sadd.s32 %s227, 1
      %p231 = scmp.eq.s32.totalorder %s25, 1
      %p232 = scmp.ne.s32.totalorder %s227, %s229
      %p233 = scmp.eq.s32.totalorder %s25, 0
      %p234 = por %p232, %p233
      %p235 = scmp.ne.s32.totalorder %s227, %s229
      %p236 = scmp.eq.s32.totalorder %s30, 1
      %p237 = por %p235, %p236
      %p238 = scmp.ne.s32.totalorder %s229, %s230
      %p239 = scmp.eq.s32.totalorder %s30, 0
      %p240 = por %p238, %p239
      %p241 = scmp.ne.s32.totalorder %s229, %s230
      %p242 = scmp.eq.s32.totalorder %s31, 1
      %p243 = por %p241, %p242
      %p245 = scmp.ne.s32.totalorder %s230, %s244
      %p246 = scmp.eq.s32.totalorder %s31, 0
      %p247 = por %p245, %p246
      %s249 = sadd.s32 %s248, 1
      %p252 = scmp.eq.s32.totalorder %s25, 1
      %p253 = scmp.ne.s32.totalorder %s248, %s250
      %p254 = scmp.eq.s32.totalorder %s25, 0
      %p255 = por %p253, %p254
      %p256 = scmp.ne.s32.totalorder %s248, %s250
      %p257 = scmp.eq.s32.totalorder %s30, 1
      %p258 = por %p256, %p257
      %p259 = scmp.ne.s32.totalorder %s250, %s251
      %p260 = scmp.eq.s32.totalorder %s30, 0
      %p261 = por %p259, %p260
      %p262 = scmp.ne.s32.totalorder %s250, %s251
      %p263 = scmp.eq.s32.totalorder %s31, 1
      %p264 = por %p262, %p263
      %p266 = scmp.ne.s32.totalorder %s251, %s265
      %p267 = scmp.eq.s32.totalorder %s31, 0
      %p268 = por %p266, %p267
      %s270 = sadd.s32 %s269, 1
      %p273 = scmp.eq.s32.totalorder %s25, 1
      %p274 = scmp.ne.s32.totalorder %s269, %s271
      %p275 = scmp.eq.s32.totalorder %s25, 0
      %p276 = por %p274, %p275
      %p277 = scmp.ne.s32.totalorder %s269, %s271
      %p278 = scmp.eq.s32.totalorder %s30, 1
      %p279 = por %p277, %p278
      %p280 = scmp.ne.s32.totalorder %s271, %s272
      %p281 = scmp.eq.s32.totalorder %s30, 0
      %p282 = por %p280, %p281
      %p283 = scmp.ne.s32.totalorder %s271, %s272
      %p284 = scmp.eq.s32.totalorder %s31, 1
      %p285 = por %p283, %p284
      %p287 = scmp.ne.s32.totalorder %s272, %s286
      %p288 = scmp.eq.s32.totalorder %s31, 0
      %p289 = por %p287, %p288
      %s291 = sadd.s32 %s290, 1
      %p294 = scmp.eq.s32.totalorder %s25, 1
      %p295 = scmp.ne.s32.totalorder %s290, %s292
      %p296 = scmp.eq.s32.totalorder %s25, 0
      %p297 = por %p295, %p296
      %p298 = scmp.ne.s32.totalorder %s290, %s292
      %p299 = scmp.eq.s32.totalorder %s30, 1
      %p300 = por %p298, %p299
      %p301 = scmp.ne.s32.totalorder %s292, %s293
      %p302 = scmp.eq.s32.totalorder %s30, 0
      %p303 = por %p301, %p302
      %p304 = scmp.ne.s32.totalorder %s292, %s293
      %p305 = scmp.eq.s32.totalorder %s31, 1
      %p306 = por %p304, %p305
      %p308 = scmp.ne.s32.totalorder %s293, %s307
      %p309 = scmp.eq.s32.totalorder %s31, 0
      %p310 = por %p308, %p309
      %s311 = ssub.s32 %s25, %s32
      %p312 = scmp.eq.s32.totalorder %s311, 0
      %s314 = sadd.s32 %s313, 1
      %s315 = scalar_select %p312, %s313, %s314
      %p318 = pneg %p312
      %p319 = scmp.eq.s32.totalorder %s25, 1
      %p320 = por %p318, %p319
      %p321 = scmp.ne.s32.totalorder %s313, %s316
      %p322 = scmp.eq.s32.totalorder %s25, 0
      %p323 = por %p321, %p322
      %p324 = scmp.ne.s32.totalorder %s313, %s316
      %p325 = scmp.eq.s32.totalorder %s30, 1
      %p326 = por %p324, %p325
      %p327 = scmp.ne.s32.totalorder %s316, %s317
      %p328 = scmp.eq.s32.totalorder %s30, 0
      %p329 = por %p327, %p328
      %p330 = scmp.ne.s32.totalorder %s316, %s317
      %p331 = scmp.eq.s32.totalorder %s31, 1
      %p332 = por %p330, %p331
      %p334 = scmp.ne.s32.totalorder %s317, %s333
      %p335 = scmp.eq.s32.totalorder %s31, 0
      %p336 = por %p334, %p335
      %p337 = scmp.le.s32.totalorder 1, %s25
      %p338 = scmp.lt.s32.totalorder %s25, 3
      %p339 = pnand %p337, %p338
      %p340 = pneg %p339
      // Predicated region
      $region9: #{tpu_custom_call.1} parent=5 // pred_check
        _
      $region10: #{tpu_custom_call.1} parent=5 // pred_check_branch
        %342 = sbr.rel (%p339) target = $region12
      $region11: #{tpu_custom_call.1} parent=5 // pred_region
        %s343 = ssub.s32 %s25, 1
        // Predicated region
        $region13: #{tpu_custom_call.1} parent=11 // pred_check
          %p344 = pneg %p72
        $region14: #{tpu_custom_call.1} parent=11 // pred_check_branch
          %346 = sbr.rel (%p344) target = $region16
        $region15: #{tpu_custom_call.1} parent=11 // pred_region
          _
        $region16: #{tpu_custom_call.1} parent=11 // pred_fallthru
          _
        // Predicated region
        $region17: #{tpu_custom_call.1} parent=11 // pred_check
          %p347 = pneg %p93
        $region18: #{tpu_custom_call.1} parent=11 // pred_check_branch
          %349 = sbr.rel (%p347) target = $region20
        $region19: #{tpu_custom_call.1} parent=11 // pred_region
          _
        $region20: #{tpu_custom_call.1} parent=11 // pred_fallthru
          _
        // Predicated region
        $region21: #{tpu_custom_call.1} parent=11 // pred_check
          %p350 = pneg %p114
        $region22: #{tpu_custom_call.1} parent=11 // pred_check_branch
          %352 = sbr.rel (%p350) target = $region24
        $region23: #{tpu_custom_call.1} parent=11 // pred_region
          _
        $region24: #{tpu_custom_call.1} parent=11 // pred_fallthru
          _
        // Predicated region
        $region25: #{tpu_custom_call.1} parent=11 // pred_check
          %p353 = pneg %p135
        $region26: #{tpu_custom_call.1} parent=11 // pred_check_branch
          %355 = sbr.rel (%p353) target = $region28
        $region27: #{tpu_custom_call.1} parent=11 // pred_region
          _
        $region28: #{tpu_custom_call.1} parent=11 // pred_fallthru
          _
        // Predicated region
        $region29: #{tpu_custom_call.1} parent=11 // pred_check
          %p356 = pneg %p156
        $region30: #{tpu_custom_call.1} parent=11 // pred_check_branch
          %358 = sbr.rel (%p356) target = $region32
        $region31: #{tpu_custom_call.1} parent=11 // pred_region
          _
        $region32: #{tpu_custom_call.1} parent=11 // pred_fallthru
          _
        // Predicated region
        $region33: #{tpu_custom_call.1} parent=11 // pred_check
          %p359 = pneg %p177
        $region34: #{tpu_custom_call.1} parent=11 // pred_check_branch
          %361 = sbr.rel (%p359) target = $region36
        $region35: #{tpu_custom_call.1} parent=11 // pred_region
          _
        $region36: #{tpu_custom_call.1} parent=11 // pred_fallthru
          _
        // Predicated region
        $region37: #{tpu_custom_call.1} parent=11 // pred_check
          %p362 = pneg %p198
        $region38: #{tpu_custom_call.1} parent=11 // pred_check_branch
          %364 = sbr.rel (%p362) target = $region40
        $region39: #{tpu_custom_call.1} parent=11 // pred_region
          _
        $region40: #{tpu_custom_call.1} parent=11 // pred_fallthru
          _
        // Predicated region
        $region41: #{tpu_custom_call.1} parent=11 // pred_check
          %p365 = pneg %p219
        $region42: #{tpu_custom_call.1} parent=11 // pred_check_branch
          %367 = sbr.rel (%p365) target = $region44
        $region43: #{tpu_custom_call.1} parent=11 // pred_region
          _
        $region44: #{tpu_custom_call.1} parent=11 // pred_fallthru
          _
        // Predicated region
        $region45: #{tpu_custom_call.1} parent=11 // pred_check
          %p368 = pneg %p240
        $region46: #{tpu_custom_call.1} parent=11 // pred_check_branch
          %370 = sbr.rel (%p368) target = $region48
        $region47: #{tpu_custom_call.1} parent=11 // pred_region
          _
        $region48: #{tpu_custom_call.1} parent=11 // pred_fallthru
          _
        // Predicated region
        $region49: #{tpu_custom_call.1} parent=11 // pred_check
          %p371 = pneg %p261
        $region50: #{tpu_custom_call.1} parent=11 // pred_check_branch
          %373 = sbr.rel (%p371) target = $region52
        $region51: #{tpu_custom_call.1} parent=11 // pred_region
          _
        $region52: #{tpu_custom_call.1} parent=11 // pred_fallthru
          _
        // Predicated region
        $region53: #{tpu_custom_call.1} parent=11 // pred_check
          %p374 = pneg %p282
        $region54: #{tpu_custom_call.1} parent=11 // pred_check_branch
          %376 = sbr.rel (%p374) target = $region56
        $region55: #{tpu_custom_call.1} parent=11 // pred_region
          _
        $region56: #{tpu_custom_call.1} parent=11 // pred_fallthru
          _
        // Predicated region
        $region57: #{tpu_custom_call.1} parent=11 // pred_check
          %p377 = pneg %p303
        $region58: #{tpu_custom_call.1} parent=11 // pred_check_branch
          %379 = sbr.rel (%p377) target = $region60
        $region59: #{tpu_custom_call.1} parent=11 // pred_region
          _
        $region60: #{tpu_custom_call.1} parent=11 // pred_fallthru
          _
      $region12: #{tpu_custom_call.1} parent=5 // pred_fallthru
        _
      %p380 = scmp.lt.s32.totalorder %s25, 2
      // Predicated region
      $region61: #{tpu_custom_call.1} parent=5 // pred_check
        %p381 = pneg %p380
      $region62: #{tpu_custom_call.1} parent=5 // pred_check_branch
        %383 = sbr.rel (%p381) target = $region64
      $region63: #{tpu_custom_call.1} parent=5 // pred_region
        // Predicated region
        $region65: #{tpu_custom_call.1} parent=63 // pred_check
          %p384 = pneg %p45
        $region66: #{tpu_custom_call.1} parent=63 // pred_check_branch
          %386 = sbr.rel (%p384) target = $region68
        $region67: #{tpu_custom_call.1} parent=63 // pred_region
          %s387 = sand.u32 %s35, 1
          %s388 = scalar_lea.sflag [#allocation5], %s387
          %s389 = sand.u32 %s35, 1
          %s390 = smul.addr %s389, 32
          %s391 = scalar_lea.vmem [#allocation4], %s390
          %s392 = smul.u32 4, %s25
          %s394 = ssub.s32 512, 512
          %395 = vsyncadd %s388, %s394
          %s396 = smul.addr %s392, 128
          %s397 = scalar_lea.hbm %s0, %s396
          %s398 = sshll.u32 %s391, 4
          %s399 = int_to_ptr.vmem [resolvable:$true] %s398
          %404 = dma.hbm_to_vmem [thread:$0]  %s397, 512, %s399, %s388, 128, 128, 8
        $region68: #{tpu_custom_call.1} parent=63 // pred_fallthru
          _
      $region64: #{tpu_custom_call.1} parent=5 // pred_fallthru
        _
      %p405 = scmp.le.s32.totalorder 1, %s25
      %p406 = scmp.lt.s32.totalorder %s25, 3
      %p407 = pnand %p405, %p406
      %p408 = pneg %p407
      // Predicated region
      $region69: #{tpu_custom_call.1} parent=5 // pred_check
        _
      $region70: #{tpu_custom_call.1} parent=5 // pred_check_branch
        %410 = sbr.rel (%p407) target = $region72
      $region71: #{tpu_custom_call.1} parent=5 // pred_region
        %s411 = ssub.s32 %s25, 1
        %s412 = sand.u32 %s38, 1
        %s413 = scalar_lea.sflag [#allocation5], %s412
        %s414 = sand.u32 %s38, 1
        %s415 = smul.addr %s414, 32
        %s416 = scalar_lea.vmem [#allocation4], %s415
        // Predicated region
        $region73: #{tpu_custom_call.1} parent=71 // pred_check
          %p417 = pneg %p51
        $region74: #{tpu_custom_call.1} parent=71 // pred_check_branch
          %419 = sbr.rel (%p417) target = $region76
        $region75: #{tpu_custom_call.1} parent=71 // pred_region
          %420 = dma.done %s413, 512
        $region76: #{tpu_custom_call.1} parent=71 // pred_fallthru
          _
        %s421 = sand.u32 %s38, 1
        %s422 = scalar_lea.sflag [#allocation5], %s421
        %s423 = sand.u32 %s38, 1
        %s424 = smul.addr %s423, 32
        %s425 = scalar_lea.vmem [#allocation4], %s424
        %p426 = pneg %p51
        %p427 = pneg %p48
        %p428 = pneg %p72
        %p429 = pneg %p69
        %p430 = pneg %p93
        %p431 = pneg %p90
        %p432 = pneg %p114
        %p433 = pneg %p111
        %p434 = pneg %p135
        %p435 = pneg %p132
        %p436 = pneg %p156
        %p437 = pneg %p153
        %p438 = pneg %p177
        %p439 = pneg %p174
        %p440 = pneg %p198
        %p441 = pneg %p195
        %p442 = pneg %p219
        %p443 = pneg %p216
        %p444 = pneg %p240
        %p445 = pneg %p237
        %p446 = pneg %p261
        %p447 = pneg %p258
        %p448 = pneg %p282
        %p449 = pneg %p279
        %p450 = pneg %p303
        %p451 = pneg %p300
        %p452 = pneg %p329
        %p453 = pneg %p326
        %s454 = sand.u32 %s316, 1
        %s455 = scalar_lea.sflag [#allocation6], %s454
        %s456 = sand.u32 %s316, 1
        %s457 = smul.addr %s456, 32
        %s458 = scalar_lea.vmem [#allocation7], %s457
        %s459 = smul.u32 4, %s30
        %s460 = smul.u32 4, %s30
        %v462 = vld [vmem:[%s416] sm:$0xff]
        %v463 = vld [vmem:[%s416 + $0x8] sm:$0xff]
        %v464 = vld [vmem:[%s416 + $0x10] sm:$0xff]
        %v465 = vld [vmem:[%s416 + $0x18] sm:$0xff]
        %v466 = vpack.c.bf16 %v463, %v462
        %v467 = vpack.c.bf16 %v465, %v464
        %v468 = vld [vmem:[%s1] sm:$0xf]
        %v469 = vld [vmem:[%s1 + $0x4] sm:$0xf]
        %v470 = vld [vmem:[%s1 + $0x8] sm:$0xf]
        %v471 = vld [vmem:[%s1 + $0xc] sm:$0xf]
        %v472 = vld [vmem:[%s2] sm:$0x1]
        %v474 = vlaneseq
        %v475 = vshrl.u32 %v474, 7
        %v476 = vsub.s32 0, %v475
        %v477 = vrot.slane %v472, %v476
        %v483 = vunpack.c.l.b16 %v468
        %v484 = vunpack.c.l.b16 %v469
        %v485 = vunpack.c.l.b16 %v470
        %v486 = vunpack.c.l.b16 %v471
        %v487 = vpack.c.b16 %v484, %v483
        %v488 = vpack.c.b16 %v486, %v485
        %vm491 = vcmask 261120
        %v493 = vsel %vm491, %v466, 0
        %v496 = vsel %vm491, %v467, 0
        %498 = vmatprep.subr.bf16.mxu0 0
        %499 = vmatpush1.bf16.msra.mxu0 %v487
        %500 = vmatprep.subr.bf16.mxu0 0
        %501 = vmatpush1.bf16.msra.mxu0 %v488
        %502 = vmatprep.subr.bf16.mxu0 0
        %503 = vmatpush1.bf16.msra.mxu0 0
        %504 = vmatprep.subr.bf16.mxu0 0
        %505 = vmatpush1.bf16.msra.mxu0 0
        %506 = vmatprep.subr.bf16.mxu0 0
        %507 = vmatpush1.bf16.msra.mxu0 0
        %508 = vmatprep.subr.bf16.mxu0 0
        %509 = vmatpush1.bf16.msra.mxu0 0
        %510 = vmatprep.subr.bf16.mxu0 0
        %511 = vmatpush1.bf16.msra.mxu0 0
        %512 = vmatprep.subr.bf16.mxu0 0
        %513 = vmatpush1.bf16.msra.mxu0 0
        %514 = vmatprep.subr.bf16.mxu0 0
        %515 = vmatpush1.bf16.msra.mxu0 0
        %516 = vmatprep.subr.bf16.mxu0 0
        %517 = vmatpush1.bf16.msra.mxu0 0
        %518 = vmatprep.subr.bf16.mxu0 0
        %519 = vmatpush1.bf16.msra.mxu0 0
        %520 = vmatprep.subr.bf16.mxu0 0
        %521 = vmatpush1.bf16.msra.mxu0 0
        %522 = vmatprep.subr.bf16.mxu0 0
        %523 = vmatpush1.bf16.msra.mxu0 0
        %524 = vmatprep.subr.bf16.mxu0 0
        %525 = vmatpush1.bf16.msra.mxu0 0
        %526 = vmatprep.subr.bf16.mxu0 0
        %527 = vmatpush1.bf16.msra.mxu0 0
        %528 = vmatprep.subr.bf16.mxu0 0
        %529 = vmatpush1.bf16.msra.mxu0 0
        %530 = vmatprep.mubr.bf16.mxu0 0
        %531 = vmatmul.mubr.bf16.gmra.mrb[0].mxu0 %v493
        %v532 = vpop.f32.mrb[0].mxu0
        %v533 = vadd.f32 %v477, %v532
        %v534 = vpop.f32.mrb[0].mxu0
        %v535 = vpop.f32.mrb[0].mxu0
        %v536 = vadd.f32 %v477, %v535
        %v537 = vpop.f32.mrb[0].mxu0
        %538 = vmatprep.mubr.bf16.mxu0 0
        %539 = vmatmul.mubr.bf16.gmra.mrb[0].mxu0 %v496
        %v540 = vpop.f32.mrb[0].mxu0
        %v541 = vadd.f32 %v477, %v540
        %v542 = vpop.f32.mrb[0].mxu0
        %v543 = vpop.f32.mrb[0].mxu0
        %v544 = vadd.f32 %v477, %v543
        %v545 = vpop.f32.mrb[0].mxu0
        %546 = vdwg.mxu0
        %v547 = vpack.c.bf16 %v533, %v533
        %v548 = vpack.c.bf16 %v536, %v536
        %v549 = vpack.c.bf16 %v541, %v541
        %v550 = vpack.c.bf16 %v544, %v544
        %552 = vrot.lane.b32.xlu0 %v547, 96
        %v553 = vpop.permute.xlu0 %552
        %vm554 = vcmask 64512
        %v556 = vsel %vm554, %v547, 0
        %v559 = vsel %vm554, %v553, 0
        %561 = vmatprep.subr.bf16.mxu0 0
        %562 = vmatpush1.bf16.xpose.msra.mxu0 %v559
        %563 = vmatprep.subr.bf16.mxu0 0
        %564 = vmatpush1.bf16.xpose.msra.mxu0 0
        %565 = vmatprep.subr.bf16.mxu0 0
        %566 = vmatpush1.bf16.xpose.msra.mxu0 0
        %567 = vmatprep.subr.bf16.mxu0 0
        %568 = vmatpush1.bf16.xpose.msra.mxu0 0
        %569 = vmatprep.subr.bf16.mxu0 0
        %570 = vmatpush1.bf16.xpose.msra.mxu0 0
        %571 = vmatprep.subr.bf16.mxu0 0
        %572 = vmatpush1.bf16.xpose.msra.mxu0 0
        %573 = vmatprep.subr.bf16.mxu0 0
        %574 = vmatpush1.bf16.xpose.msra.mxu0 0
        %575 = vmatprep.subr.bf16.mxu0 0
        %576 = vmatpush1.bf16.xpose.msra.mxu0 0
        %577 = vmatprep.subr.bf16.mxu0 0
        %578 = vmatpush1.bf16.xpose.msra.mxu0 0
        %579 = vmatprep.subr.bf16.mxu0 0
        %580 = vmatpush1.bf16.xpose.msra.mxu0 0
        %581 = vmatprep.subr.bf16.mxu0 0
        %582 = vmatpush1.bf16.xpose.msra.mxu0 0
        %583 = vmatprep.subr.bf16.mxu0 0
        %584 = vmatpush1.bf16.xpose.msra.mxu0 0
        %585 = vmatprep.subr.bf16.mxu0 0
        %586 = vmatpush1.bf16.xpose.msra.mxu0 0
        %587 = vmatprep.subr.bf16.mxu0 0
        %588 = vmatpush1.bf16.xpose.msra.mxu0 0
        %589 = vmatprep.subr.bf16.mxu0 0
        %590 = vmatpush1.bf16.xpose.msra.mxu0 0
        %591 = vmatprep.subr.bf16.mxu0 0
        %592 = vmatpush1.bf16.xpose.msra.mxu0 0
        %593 = vmatprep.mubr.bf16.mxu0 0
        %594 = vmatmul.mubr.bf16.gmra.mrb[0].mxu0 %v556
        %v595 = vpop.f32.mrb[0].mxu0
        %v596 = vadd.f32 0.0, %v595
        %v597 = vpop.f32.mrb[0].mxu0
        %v598 = vpop.f32.mrb[0].mxu0
        %v599 = vpop.f32.mrb[0].mxu0
        %600 = vdwg.mxu0
        %602 = vrot.lane.b32.xlu0 %v548, 96
        %v603 = vpop.permute.xlu0 %602
        %v605 = vsel %vm554, %v548, 0
        %v608 = vsel %vm554, %v603, 0
        %610 = vmatprep.subr.bf16.mxu0 0
        %611 = vmatpush1.bf16.xpose.msra.mxu0 %v608
        %612 = vmatprep.subr.bf16.mxu0 0
        %613 = vmatpush1.bf16.xpose.msra.mxu0 0
        %614 = vmatprep.subr.bf16.mxu0 0
        %615 = vmatpush1.bf16.xpose.msra.mxu0 0
        %616 = vmatprep.subr.bf16.mxu0 0
        %617 = vmatpush1.bf16.xpose.msra.mxu0 0
        %618 = vmatprep.subr.bf16.mxu0 0
        %619 = vmatpush1.bf16.xpose.msra.mxu0 0
        %620 = vmatprep.subr.bf16.mxu0 0
        %621 = vmatpush1.bf16.xpose.msra.mxu0 0
        %622 = vmatprep.subr.bf16.mxu0 0
        %623 = vmatpush1.bf16.xpose.msra.mxu0 0
        %624 = vmatprep.subr.bf16.mxu0 0
        %625 = vmatpush1.bf16.xpose.msra.mxu0 0
        %626 = vmatprep.subr.bf16.mxu0 0
        %627 = vmatpush1.bf16.xpose.msra.mxu0 0
        %628 = vmatprep.subr.bf16.mxu0 0
        %629 = vmatpush1.bf16.xpose.msra.mxu0 0
        %630 = vmatprep.subr.bf16.mxu0 0
        %631 = vmatpush1.bf16.xpose.msra.mxu0 0
        %632 = vmatprep.subr.bf16.mxu0 0
        %633 = vmatpush1.bf16.xpose.msra.mxu0 0
        %634 = vmatprep.subr.bf16.mxu0 0
        %635 = vmatpush1.bf16.xpose.msra.mxu0 0
        %636 = vmatprep.subr.bf16.mxu0 0
        %637 = vmatpush1.bf16.xpose.msra.mxu0 0
        %638 = vmatprep.subr.bf16.mxu0 0
        %639 = vmatpush1.bf16.xpose.msra.mxu0 0
        %640 = vmatprep.subr.bf16.mxu0 0
        %641 = vmatpush1.bf16.xpose.msra.mxu0 0
        %642 = vmatprep.mubr.bf16.mxu0 0
        %643 = vmatmul.mubr.bf16.gmra.mrb[0].mxu0 %v605
        %v644 = vpop.f32.mrb[0].mxu0
        %v645 = vadd.f32 0.0, %v644
        %v646 = vpop.f32.mrb[0].mxu0
        %v647 = vpop.f32.mrb[0].mxu0
        %v648 = vpop.f32.mrb[0].mxu0
        %649 = vdwg.mxu0
        %651 = vrot.lane.b32.xlu0 %v549, 96
        %v652 = vpop.permute.xlu0 %651
        %v654 = vsel %vm554, %v549, 0
        %v657 = vsel %vm554, %v652, 0
        %659 = vmatprep.subr.bf16.mxu0 0
        %660 = vmatpush1.bf16.xpose.msra.mxu0 %v657
        %661 = vmatprep.subr.bf16.mxu0 0
        %662 = vmatpush1.bf16.xpose.msra.mxu0 0
        %663 = vmatprep.subr.bf16.mxu0 0
        %664 = vmatpush1.bf16.xpose.msra.mxu0 0
        %665 = vmatprep.subr.bf16.mxu0 0
        %666 = vmatpush1.bf16.xpose.msra.mxu0 0
        %667 = vmatprep.subr.bf16.mxu0 0
        %668 = vmatpush1.bf16.xpose.msra.mxu0 0
        %669 = vmatprep.subr.bf16.mxu0 0
        %670 = vmatpush1.bf16.xpose.msra.mxu0 0
        %671 = vmatprep.subr.bf16.mxu0 0
        %672 = vmatpush1.bf16.xpose.msra.mxu0 0
        %673 = vmatprep.subr.bf16.mxu0 0
        %674 = vmatpush1.bf16.xpose.msra.mxu0 0
        %675 = vmatprep.subr.bf16.mxu0 0
        %676 = vmatpush1.bf16.xpose.msra.mxu0 0
        %677 = vmatprep.subr.bf16.mxu0 0
        %678 = vmatpush1.bf16.xpose.msra.mxu0 0
        %679 = vmatprep.subr.bf16.mxu0 0
        %680 = vmatpush1.bf16.xpose.msra.mxu0 0
        %681 = vmatprep.subr.bf16.mxu0 0
        %682 = vmatpush1.bf16.xpose.msra.mxu0 0
        %683 = vmatprep.subr.bf16.mxu0 0
        %684 = vmatpush1.bf16.xpose.msra.mxu0 0
        %685 = vmatprep.subr.bf16.mxu0 0
        %686 = vmatpush1.bf16.xpose.msra.mxu0 0
        %687 = vmatprep.subr.bf16.mxu0 0
        %688 = vmatpush1.bf16.xpose.msra.mxu0 0
        %689 = vmatprep.subr.bf16.mxu0 0
        %690 = vmatpush1.bf16.xpose.msra.mxu0 0
        %691 = vmatprep.mubr.bf16.mxu0 0
        %692 = vmatmul.mubr.bf16.gmra.mrb[0].mxu0 %v654
        %v693 = vpop.f32.mrb[0].mxu0
        %v694 = vadd.f32 0.0, %v693
        %v695 = vpop.f32.mrb[0].mxu0
        %v696 = vpop.f32.mrb[0].mxu0
        %v697 = vpop.f32.mrb[0].mxu0
        %698 = vdwg.mxu0
        %700 = vrot.lane.b32.xlu0 %v550, 96
        %v701 = vpop.permute.xlu0 %700
        %v703 = vsel %vm554, %v550, 0
        %v706 = vsel %vm554, %v701, 0
        %708 = vmatprep.subr.bf16.mxu0 0
        %709 = vmatpush1.bf16.xpose.msra.mxu0 %v706
        %710 = vmatprep.subr.bf16.mxu0 0
        %711 = vmatpush1.bf16.xpose.msra.mxu0 0
        %712 = vmatprep.subr.bf16.mxu0 0
        %713 = vmatpush1.bf16.xpose.msra.mxu0 0
        %714 = vmatprep.subr.bf16.mxu0 0
        %715 = vmatpush1.bf16.xpose.msra.mxu0 0
        %716 = vmatprep.subr.bf16.mxu0 0
        %717 = vmatpush1.bf16.xpose.msra.mxu0 0
        %718 = vmatprep.subr.bf16.mxu0 0
        %719 = vmatpush1.bf16.xpose.msra.mxu0 0
        %720 = vmatprep.subr.bf16.mxu0 0
        %721 = vmatpush1.bf16.xpose.msra.mxu0 0
        %722 = vmatprep.subr.bf16.mxu0 0
        %723 = vmatpush1.bf16.xpose.msra.mxu0 0
        %724 = vmatprep.subr.bf16.mxu0 0
        %725 = vmatpush1.bf16.xpose.msra.mxu0 0
        %726 = vmatprep.subr.bf16.mxu0 0
        %727 = vmatpush1.bf16.xpose.msra.mxu0 0
        %728 = vmatprep.subr.bf16.mxu0 0
        %729 = vmatpush1.bf16.xpose.msra.mxu0 0
        %730 = vmatprep.subr.bf16.mxu0 0
        %731 = vmatpush1.bf16.xpose.msra.mxu0 0
        %732 = vmatprep.subr.bf16.mxu0 0
        %733 = vmatpush1.bf16.xpose.msra.mxu0 0
        %734 = vmatprep.subr.bf16.mxu0 0
        %735 = vmatpush1.bf16.xpose.msra.mxu0 0
        %736 = vmatprep.subr.bf16.mxu0 0
        %737 = vmatpush1.bf16.xpose.msra.mxu0 0
        %738 = vmatprep.subr.bf16.mxu0 0
        %739 = vmatpush1.bf16.xpose.msra.mxu0 0
        %740 = vmatprep.mubr.bf16.mxu0 0
        %741 = vmatmul.mubr.bf16.gmra.mrb[0].mxu0 %v703
        %v742 = vpop.f32.mrb[0].mxu0
        %v743 = vadd.f32 0.0, %v742
        %v744 = vpop.f32.mrb[0].mxu0
        %v745 = vpop.f32.mrb[0].mxu0
        %v746 = vpop.f32.mrb[0].mxu0
        %747 = vdwg.mxu0
        %v748 = vsel %vm554, %v596, -inf
        %749 = vmax.xlane.f32.xlu0 %v748
        %v750 = vpop.xlane.xlu0 %749
        %v751 = vsel %vm554, %v645, -inf
        %752 = vmax.xlane.f32.xlu0 %v751
        %v753 = vpop.xlane.xlu0 %752
        %v754 = vsel %vm554, %v694, -inf
        %755 = vmax.xlane.f32.xlu0 %v754
        %v756 = vpop.xlane.xlu0 %755
        %v757 = vsel %vm554, %v743, -inf
        %758 = vmax.xlane.f32.xlu0 %v757
        %v759 = vpop.xlane.xlu0 %758
        %v760 = vsub.f32 -inf, %v750
        %v761 = vsub.f32 -inf, %v753
        %v762 = vsub.f32 -inf, %v756
        %v763 = vsub.f32 -inf, %v759
        %v764 = vmul.f32 %v760, 1.442695
        %v765 = vpow.pop %v764
        %v766 = vmul.f32 %v761, 1.442695
        %v767 = vpow.pop %v766
        %v768 = vmul.f32 %v762, 1.442695
        %v769 = vpow.pop %v768
        %v770 = vmul.f32 %v763, 1.442695
        %v771 = vpow.pop %v770
        %v772 = vsub.f32 %v596, %v750
        %v773 = vsub.f32 %v645, %v753
        %v774 = vsub.f32 %v694, %v756
        %v775 = vsub.f32 %v743, %v759
        %v776 = vmul.f32 %v772, 1.442695
        %v777 = vpow.pop %v776
        %v778 = vmul.f32 %v773, 1.442695
        %v779 = vpow.pop %v778
        %v780 = vmul.f32 %v774, 1.442695
        %v781 = vpow.pop %v780
        %v782 = vmul.f32 %v775, 1.442695
        %v783 = vpow.pop %v782
        %v784 = vmul.f32 %v765, 0.0
        %v785 = vmul.f32 %v767, 0.0
        %v786 = vmul.f32 %v769, 0.0
        %v787 = vmul.f32 %v771, 0.0
        %v788 = vsel %vm554, %v777, 0.0
        %789 = vadd.xlane.f32.xlu0 %v788
        %v790 = vpop.xlane.xlu0 %789
        %v791 = vsel %vm554, %v779, 0.0
        %792 = vadd.xlane.f32.xlu0 %v791
        %v793 = vpop.xlane.xlu0 %792
        %v794 = vsel %vm554, %v781, 0.0
        %795 = vadd.xlane.f32.xlu0 %v794
        %v796 = vpop.xlane.xlu0 %795
        %v797 = vsel %vm554, %v783, 0.0
        %798 = vadd.xlane.f32.xlu0 %v797
        %v799 = vpop.xlane.xlu0 %798
        %v800 = vadd.f32 %v784, %v790
        %v801 = vadd.f32 %v785, %v793
        %v802 = vadd.f32 %v786, %v796
        %v803 = vadd.f32 %v787, %v799
        %v804 = vpack.c.bf16 %v777, %v777
        %v805 = vpack.c.bf16 %v779, %v779
        %v806 = vpack.c.bf16 %v781, %v781
        %v807 = vpack.c.bf16 %v783, %v783
        %808 = vrot.lane.b32.xlu0 %v547, 64
        %v809 = vpop.permute.xlu0 %808
        %v811 = vsel %vm554, %v804, 0
        %vm813 = vcmask 1043456
        %v815 = vsel %vm813, %v809, 0
        %817 = vmatprep.subr.bf16.mxu0 0
        %818 = vmatpush1.bf16.msra.mxu0 %v815
        %819 = vmatprep.subr.bf16.mxu0 0
        %820 = vmatpush1.bf16.msra.mxu0 0
        %821 = vmatprep.subr.bf16.mxu0 0
        %822 = vmatpush1.bf16.msra.mxu0 0
        %823 = vmatprep.subr.bf16.mxu0 0
        %824 = vmatpush1.bf16.msra.mxu0 0
        %825 = vmatprep.subr.bf16.mxu0 0
        %826 = vmatpush1.bf16.msra.mxu0 0
        %827 = vmatprep.subr.bf16.mxu0 0
        %828 = vmatpush1.bf16.msra.mxu0 0
        %829 = vmatprep.subr.bf16.mxu0 0
        %830 = vmatpush1.bf16.msra.mxu0 0
        %831 = vmatprep.subr.bf16.mxu0 0
        %832 = vmatpush1.bf16.msra.mxu0 0
        %833 = vmatprep.subr.bf16.mxu0 0
        %834 = vmatpush1.bf16.msra.mxu0 0
        %835 = vmatprep.subr.bf16.mxu0 0
        %836 = vmatpush1.bf16.msra.mxu0 0
        %837 = vmatprep.subr.bf16.mxu0 0
        %838 = vmatpush1.bf16.msra.mxu0 0
        %839 = vmatprep.subr.bf16.mxu0 0
        %840 = vmatpush1.bf16.msra.mxu0 0
        %841 = vmatprep.subr.bf16.mxu0 0
        %842 = vmatpush1.bf16.msra.mxu0 0
        %843 = vmatprep.subr.bf16.mxu0 0
        %844 = vmatpush1.bf16.msra.mxu0 0
        %845 = vmatprep.subr.bf16.mxu0 0
        %846 = vmatpush1.bf16.msra.mxu0 0
        %847 = vmatprep.subr.bf16.mxu0 0
        %848 = vmatpush1.bf16.msra.mxu0 0
        %849 = vmatprep.mubr.bf16.mxu0 0
        %850 = vmatmul.mubr.bf16.gmra.mrb[0].mxu0 %v811
        %v851 = vpop.f32.mrb[0].mxu0
        %v852 = vadd.f32 0.0, %v851
        %v853 = vpop.f32.mrb[0].mxu0
        %v854 = vpop.f32.mrb[0].mxu0
        %v855 = vpop.f32.mrb[0].mxu0
        %856 = vdwg.mxu0
        %857 = vrot.lane.b32.xlu0 %v548, 64
        %v858 = vpop.permute.xlu0 %857
        %v860 = vsel %vm554, %v805, 0
        %v863 = vsel %vm813, %v858, 0
        %865 = vmatprep.subr.bf16.mxu0 0
        %866 = vmatpush1.bf16.msra.mxu0 %v863
        %867 = vmatprep.subr.bf16.mxu0 0
        %868 = vmatpush1.bf16.msra.mxu0 0
        %869 = vmatprep.subr.bf16.mxu0 0
        %870 = vmatpush1.bf16.msra.mxu0 0
        %871 = vmatprep.subr.bf16.mxu0 0
        %872 = vmatpush1.bf16.msra.mxu0 0
        %873 = vmatprep.subr.bf16.mxu0 0
        %874 = vmatpush1.bf16.msra.mxu0 0
        %875 = vmatprep.subr.bf16.mxu0 0
        %876 = vmatpush1.bf16.msra.mxu0 0
        %877 = vmatprep.subr.bf16.mxu0 0
        %878 = vmatpush1.bf16.msra.mxu0 0
        %879 = vmatprep.subr.bf16.mxu0 0
        %880 = vmatpush1.bf16.msra.mxu0 0
        %881 = vmatprep.subr.bf16.mxu0 0
        %882 = vmatpush1.bf16.msra.mxu0 0
        %883 = vmatprep.subr.bf16.mxu0 0
        %884 = vmatpush1.bf16.msra.mxu0 0
        %885 = vmatprep.subr.bf16.mxu0 0
        %886 = vmatpush1.bf16.msra.mxu0 0
        %887 = vmatprep.subr.bf16.mxu0 0
        %888 = vmatpush1.bf16.msra.mxu0 0
        %889 = vmatprep.subr.bf16.mxu0 0
        %890 = vmatpush1.bf16.msra.mxu0 0
        %891 = vmatprep.subr.bf16.mxu0 0
        %892 = vmatpush1.bf16.msra.mxu0 0
        %893 = vmatprep.subr.bf16.mxu0 0
        %894 = vmatpush1.bf16.msra.mxu0 0
        %895 = vmatprep.subr.bf16.mxu0 0
        %896 = vmatpush1.bf16.msra.mxu0 0
        %897 = vmatprep.mubr.bf16.mxu0 0
        %898 = vmatmul.mubr.bf16.gmra.mrb[0].mxu0 %v860
        %v899 = vpop.f32.mrb[0].mxu0
        %v900 = vadd.f32 0.0, %v899
        %v901 = vpop.f32.mrb[0].mxu0
        %v902 = vpop.f32.mrb[0].mxu0
        %v903 = vpop.f32.mrb[0].mxu0
        %904 = vdwg.mxu0
        %905 = vrot.lane.b32.xlu0 %v549, 64
        %v906 = vpop.permute.xlu0 %905
        %v908 = vsel %vm554, %v806, 0
        %v911 = vsel %vm813, %v906, 0
        %913 = vmatprep.subr.bf16.mxu0 0
        %914 = vmatpush1.bf16.msra.mxu0 %v911
        %915 = vmatprep.subr.bf16.mxu0 0
        %916 = vmatpush1.bf16.msra.mxu0 0
        %917 = vmatprep.subr.bf16.mxu0 0
        %918 = vmatpush1.bf16.msra.mxu0 0
        %919 = vmatprep.subr.bf16.mxu0 0
        %920 = vmatpush1.bf16.msra.mxu0 0
        %921 = vmatprep.subr.bf16.mxu0 0
        %922 = vmatpush1.bf16.msra.mxu0 0
        %923 = vmatprep.subr.bf16.mxu0 0
        %924 = vmatpush1.bf16.msra.mxu0 0
        %925 = vmatprep.subr.bf16.mxu0 0
        %926 = vmatpush1.bf16.msra.mxu0 0
        %927 = vmatprep.subr.bf16.mxu0 0
        %928 = vmatpush1.bf16.msra.mxu0 0
        %929 = vmatprep.subr.bf16.mxu0 0
        %930 = vmatpush1.bf16.msra.mxu0 0
        %931 = vmatprep.subr.bf16.mxu0 0
        %932 = vmatpush1.bf16.msra.mxu0 0
        %933 = vmatprep.subr.bf16.mxu0 0
        %934 = vmatpush1.bf16.msra.mxu0 0
        %935 = vmatprep.subr.bf16.mxu0 0
        %936 = vmatpush1.bf16.msra.mxu0 0
        %937 = vmatprep.subr.bf16.mxu0 0
        %938 = vmatpush1.bf16.msra.mxu0 0
        %939 = vmatprep.subr.bf16.mxu0 0
        %940 = vmatpush1.bf16.msra.mxu0 0
        %941 = vmatprep.subr.bf16.mxu0 0
        %942 = vmatpush1.bf16.msra.mxu0 0
        %943 = vmatprep.subr.bf16.mxu0 0
        %944 = vmatpush1.bf16.msra.mxu0 0
        %945 = vmatprep.mubr.bf16.mxu0 0
        %946 = vmatmul.mubr.bf16.gmra.mrb[0].mxu0 %v908
        %v947 = vpop.f32.mrb[0].mxu0
        %v948 = vadd.f32 0.0, %v947
        %v949 = vpop.f32.mrb[0].mxu0
        %v950 = vpop.f32.mrb[0].mxu0
        %v951 = vpop.f32.mrb[0].mxu0
        %952 = vdwg.mxu0
        %953 = vrot.lane.b32.xlu0 %v550, 64
        %v954 = vpop.permute.xlu0 %953
        %v956 = vsel %vm554, %v807, 0
        %v959 = vsel %vm813, %v954, 0
        %961 = vmatprep.subr.bf16.mxu0 0
        %962 = vmatpush1.bf16.msra.mxu0 %v959
        %963 = vmatprep.subr.bf16.mxu0 0
        %964 = vmatpush1.bf16.msra.mxu0 0
        %965 = vmatprep.subr.bf16.mxu0 0
        %966 = vmatpush1.bf16.msra.mxu0 0
        %967 = vmatprep.subr.bf16.mxu0 0
        %968 = vmatpush1.bf16.msra.mxu0 0
        %969 = vmatprep.subr.bf16.mxu0 0
        %970 = vmatpush1.bf16.msra.mxu0 0
        %971 = vmatprep.subr.bf16.mxu0 0
        %972 = vmatpush1.bf16.msra.mxu0 0
        %973 = vmatprep.subr.bf16.mxu0 0
        %974 = vmatpush1.bf16.msra.mxu0 0
        %975 = vmatprep.subr.bf16.mxu0 0
        %976 = vmatpush1.bf16.msra.mxu0 0
        %977 = vmatprep.subr.bf16.mxu0 0
        %978 = vmatpush1.bf16.msra.mxu0 0
        %979 = vmatprep.subr.bf16.mxu0 0
        %980 = vmatpush1.bf16.msra.mxu0 0
        %981 = vmatprep.subr.bf16.mxu0 0
        %982 = vmatpush1.bf16.msra.mxu0 0
        %983 = vmatprep.subr.bf16.mxu0 0
        %984 = vmatpush1.bf16.msra.mxu0 0
        %985 = vmatprep.subr.bf16.mxu0 0
        %986 = vmatpush1.bf16.msra.mxu0 0
        %987 = vmatprep.subr.bf16.mxu0 0
        %988 = vmatpush1.bf16.msra.mxu0 0
        %989 = vmatprep.subr.bf16.mxu0 0
        %990 = vmatpush1.bf16.msra.mxu0 0
        %991 = vmatprep.subr.bf16.mxu0 0
        %992 = vmatpush1.bf16.msra.mxu0 0
        %993 = vmatprep.mubr.bf16.mxu0 0
        %994 = vmatmul.mubr.bf16.gmra.mrb[0].mxu0 %v956
        %v995 = vpop.f32.mrb[0].mxu0
        %v996 = vadd.f32 0.0, %v995
        %v997 = vpop.f32.mrb[0].mxu0
        %v998 = vpop.f32.mrb[0].mxu0
        %v999 = vpop.f32.mrb[0].mxu0
        %1000 = vdwg.mxu0
        %v1001 = vadd.f32 %v784, %v852
        %v1002 = vadd.f32 %v785, %v900
        %v1003 = vadd.f32 %v786, %v948
        %v1004 = vadd.f32 %v787, %v996
        %v1005 = vrcp.pop %v800
        %v1006 = vrcp.pop %v801
        %v1007 = vrcp.pop %v802
        %v1008 = vrcp.pop %v803
        %v1009 = vmul.f32 %v1001, %v1005
        %v1010 = vmul.f32 %v1002, %v1006
        %v1011 = vmul.f32 %v1003, %v1007
        %v1012 = vmul.f32 %v1004, %v1008
        %1013 = vst.msk [vmem:[#allocation2] sm:$0xff] %vm554, %v1009
        %1014 = vst.msk [vmem:[#allocation2 + $0x8] sm:$0xff] %vm554, %v1010
        %1015 = vst.msk [vmem:[#allocation2 + $0x10] sm:$0xff] %vm554, %v1011
        %1016 = vst.msk [vmem:[#allocation2 + $0x18] sm:$0xff] %vm554, %v1012
        %1017 = vrot.lane.b32.xlu0 %v547, 120
        %v1018 = vpop.permute.xlu0 %1017
        %1019 = vrot.lane.b32.xlu0 %v547, 88
        %v1020 = vpop.permute.xlu0 %1019
        %v1022 = vsel %vm554, %v1018, 0
        %v1025 = vsel %vm554, %v1020, 0
        %1027 = vmatprep.subr.bf16.mxu0 0
        %1028 = vmatpush1.bf16.xpose.msra.mxu0 %v1025
        %1029 = vmatprep.subr.bf16.mxu0 0
        %1030 = vmatpush1.bf16.xpose.msra.mxu0 0
        %1031 = vmatprep.subr.bf16.mxu0 0
        %1032 = vmatpush1.bf16.xpose.msra.mxu0 0
        %1033 = vmatprep.subr.bf16.mxu0 0
        %1034 = vmatpush1.bf16.xpose.msra.mxu0 0
        %1035 = vmatprep.subr.bf16.mxu0 0
        %1036 = vmatpush1.bf16.xpose.msra.mxu0 0
        %1037 = vmatprep.subr.bf16.mxu0 0
        %1038 = vmatpush1.bf16.xpose.msra.mxu0 0
        %1039 = vmatprep.subr.bf16.mxu0 0
        %1040 = vmatpush1.bf16.xpose.msra.mxu0 0
        %1041 = vmatprep.subr.bf16.mxu0 0
        %1042 = vmatpush1.bf16.xpose.msra.mxu0 0
        %1043 = vmatprep.subr.bf16.mxu0 0
        %1044 = vmatpush1.bf16.xpose.msra.mxu0 0
        %1045 = vmatprep.subr.bf16.mxu0 0
        %1046 = vmatpush1.bf16.xpose.msra.mxu0 0
        %1047 = vmatprep.subr.bf16.mxu0 0
        %1048 = vmatpush1.bf16.xpose.msra.mxu0 0
        %1049 = vmatprep.subr.bf16.mxu0 0
        %1050 = vmatpush1.bf16.xpose.msra.mxu0 0
        %1051 = vmatprep.subr.bf16.mxu0 0
        %1052 = vmatpush1.bf16.xpose.msra.mxu0 0
        %1053 = vmatprep.subr.bf16.mxu0 0
        %1054 = vmatpush1.bf16.xpose.msra.mxu0 0
        %1055 = vmatprep.subr.bf16.mxu0 0
        %1056 = vmatpush1.bf16.xpose.msra.mxu0 0
        %1057 = vmatprep.subr.bf16.mxu0 0
        %1058 = vmatpush1.bf16.xpose.msra.mxu0 0
        %1059 = vmatprep.mubr.bf16.mxu0 0
        %1060 = vmatmul.mubr.bf16.gmra.mrb[0].mxu0 %v1022
        %v1061 = vpop.f32.mrb[0].mxu0
        %v1062 = vadd.f32 0.0, %v1061
        %v1063 = vpop.f32.mrb[0].mxu0
        %v1064 = vpop.f32.mrb[0].mxu0
        %v1065 = vpop.f32.mrb[0].mxu0
        %1066 = vdwg.mxu0
        %1067 = vrot.lane.b32.xlu0 %v548, 120
        %v1068 = vpop.permute.xlu0 %1067
        %1069 = vrot.lane.b32.xlu0 %v548, 88
        %v1070 = vpop.permute.xlu0 %1069
        %v1072 = vsel %vm554, %v1068, 0
        %v1075 = vsel %vm554, %v1070, 0
        %1077 = vmatprep.subr.bf16.mxu0 0
        %1078 = vmatpush1.bf16.xpose.msra.mxu0 %v1075
        %1079 = vmatprep.subr.bf16.mxu0 0
        %1080 = vmatpush1.bf16.xpose.msra.mxu0 0
        %1081 = vmatprep.subr.bf16.mxu0 0
        %1082 = vmatpush1.bf16.xpose.msra.mxu0 0
        %1083 = vmatprep.subr.bf16.mxu0 0
        %1084 = vmatpush1.bf16.xpose.msra.mxu0 0
        %1085 = vmatprep.subr.bf16.mxu0 0
        %1086 = vmatpush1.bf16.xpose.msra.mxu0 0
        %1087 = vmatprep.subr.bf16.mxu0 0
        %1088 = vmatpush1.bf16.xpose.msra.mxu0 0
        %1089 = vmatprep.subr.bf16.mxu0 0
        %1090 = vmatpush1.bf16.xpose.msra.mxu0 0
        %1091 = vmatprep.subr.bf16.mxu0 0
        %1092 = vmatpush1.bf16.xpose.msra.mxu0 0
        %1093 = vmatprep.subr.bf16.mxu0 0
        %1094 = vmatpush1.bf16.xpose.msra.mxu0 0
        %1095 = vmatprep.subr.bf16.mxu0 0
        %1096 = vmatpush1.bf16.xpose.msra.mxu0 0
        %1097 = vmatprep.subr.bf16.mxu0 0
        %1098 = vmatpush1.bf16.xpose.msra.mxu0 0
        %1099 = vmatprep.subr.bf16.mxu0 0
        %1100 = vmatpush1.bf16.xpose.msra.mxu0 0
        %1101 = vmatprep.subr.bf16.mxu0 0
        %1102 = vmatpush1.bf16.xpose.msra.mxu0 0
        %1103 = vmatprep.subr.bf16.mxu0 0
        %1104 = vmatpush1.bf16.xpose.msra.mxu0 0
        %1105 = vmatprep.subr.bf16.mxu0 0
        %1106 = vmatpush1.bf16.xpose.msra.mxu0 0
        %1107 = vmatprep.subr.bf16.mxu0 0
        %1108 = vmatpush1.bf16.xpose.msra.mxu0 0
        %1109 = vmatprep.mubr.bf16.mxu0 0
        %1110 = vmatmul.mubr.bf16.gmra.mrb[0].mxu0 %v1072
        %v1111 = vpop.f32.mrb[0].mxu0
        %v1112 = vadd.f32 0.0, %v1111
        %v1113 = vpop.f32.mrb[0].mxu0
        %v1114 = vpop.f32.mrb[0].mxu0
        %v1115 = vpop.f32.mrb[0].mxu0
        %1116 = vdwg.mxu0
        %1117 = vrot.lane.b32.xlu0 %v549, 120
        %v1118 = vpop.permute.xlu0 %1117
        %1119 = vrot.lane.b32.xlu0 %v549, 88
        %v1120 = vpop.permute.xlu0 %1119
        %v1122 = vsel %vm554, %v1118, 0
        %v1125 = vsel %vm554, %v1120, 0
        %1127 = vmatprep.subr.bf16.mxu0 0
        %1128 = vmatpush1.bf16.xpose.msra.mxu0 %v1125
        %1129 = vmatprep.subr.bf16.mxu0 0
        %1130 = vmatpush1.bf16.xpose.msra.mxu0 0
        %1131 = vmatprep.subr.bf16.mxu0 0
        %1132 = vmatpush1.bf16.xpose.msra.mxu0 0
        %1133 = vmatprep.subr.bf16.mxu0 0
        %1134 = vmatpush1.bf16.xpose.msra.mxu0 0
        %1135 = vmatprep.subr.bf16.mxu0 0
        %1136 = vmatpush1.bf16.xpose.msra.mxu0 0
        %1137 = vmatprep.subr.bf16.mxu0 0
        %1138 = vmatpush1.bf16.xpose.msra.mxu0 0
        %1139 = vmatprep.subr.bf16.mxu0 0
        %1140 = vmatpush1.bf16.xpose.msra.mxu0 0
        %1141 = vmatprep.subr.bf16.mxu0 0
        %1142 = vmatpush1.bf16.xpose.msra.mxu0 0
        %1143 = vmatprep.subr.bf16.mxu0 0
        %1144 = vmatpush1.bf16.xpose.msra.mxu0 0
        %1145 = vmatprep.subr.bf16.mxu0 0
        %1146 = vmatpush1.bf16.xpose.msra.mxu0 0
        %1147 = vmatprep.subr.bf16.mxu0 0
        %1148 = vmatpush1.bf16.xpose.msra.mxu0 0
        %1149 = vmatprep.subr.bf16.mxu0 0
        %1150 = vmatpush1.bf16.xpose.msra.mxu0 0
        %1151 = vmatprep.subr.bf16.mxu0 0
        %1152 = vmatpush1.bf16.xpose.msra.mxu0 0
        %1153 = vmatprep.subr.bf16.mxu0 0
        %1154 = vmatpush1.bf16.xpose.msra.mxu0 0
        %1155 = vmatprep.subr.bf16.mxu0 0
        %1156 = vmatpush1.bf16.xpose.msra.mxu0 0
        %1157 = vmatprep.subr.bf16.mxu0 0
        %1158 = vmatpush1.bf16.xpose.msra.mxu0 0
        %1159 = vmatprep.mubr.bf16.mxu0 0
        %1160 = vmatmul.mubr.bf16.gmra.mrb[0].mxu0 %v1122
        %v1161 = vpop.f32.mrb[0].mxu0
        %v1162 = vadd.f32 0.0, %v1161
        %v1163 = vpop.f32.mrb[0].mxu0
        %v1164 = vpop.f32.mrb[0].mxu0
        %v1165 = vpop.f32.mrb[0].mxu0
        %1166 = vdwg.mxu0
        %1167 = vrot.lane.b32.xlu0 %v550, 120
        %v1168 = vpop.permute.xlu0 %1167
        %1169 = vrot.lane.b32.xlu0 %v550, 88
        %v1170 = vpop.permute.xlu0 %1169
        %v1172 = vsel %vm554, %v1168, 0
        %v1175 = vsel %vm554, %v1170, 0
        %1177 = vmatprep.subr.bf16.mxu0 0
        %1178 = vmatpush1.bf16.xpose.msra.mxu0 %v1175
        %1179 = vmatprep.subr.bf16.mxu0 0
        %1180 = vmatpush1.bf16.xpose.msra.mxu0 0
        %1181 = vmatprep.subr.bf16.mxu0 0
        %1182 = vmatpush1.bf16.xpose.msra.mxu0 0
        %1183 = vmatprep.subr.bf16.mxu0 0
        %1184 = vmatpush1.bf16.xpose.msra.mxu0 0
        %1185 = vmatprep.subr.bf16.mxu0 0
        %1186 = vmatpush1.bf16.xpose.msra.mxu0 0
        %1187 = vmatprep.subr.bf16.mxu0 0
        %1188 = vmatpush1.bf16.xpose.msra.mxu0 0
        %1189 = vmatprep.subr.bf16.mxu0 0
        %1190 = vmatpush1.bf16.xpose.msra.mxu0 0
        %1191 = vmatprep.subr.bf16.mxu0 0
        %1192 = vmatpush1.bf16.xpose.msra.mxu0 0
        %1193 = vmatprep.subr.bf16.mxu0 0
        %1194 = vmatpush1.bf16.xpose.msra.mxu0 0
        %1195 = vmatprep.subr.bf16.mxu0 0
        %1196 = vmatpush1.bf16.xpose.msra.mxu0 0
        %1197 = vmatprep.subr.bf16.mxu0 0
        %1198 = vmatpush1.bf16.xpose.msra.mxu0 0
        %1199 = vmatprep.subr.bf16.mxu0 0
        %1200 = vmatpush1.bf16.xpose.msra.mxu0 0
        %1201 = vmatprep.subr.bf16.mxu0 0
        %1202 = vmatpush1.bf16.xpose.msra.mxu0 0
        %1203 = vmatprep.subr.bf16.mxu0 0
        %1204 = vmatpush1.bf16.xpose.msra.mxu0 0
        %1205 = vmatprep.subr.bf16.mxu0 0
        %1206 = vmatpush1.bf16.xpose.msra.mxu0 0
        %1207 = vmatprep.subr.bf16.mxu0 0
        %1208 = vmatpush1.bf16.xpose.msra.mxu0 0
        %1209 = vmatprep.mubr.bf16.mxu0 0
        %1210 = vmatmul.mubr.bf16.gmra.mrb[0].mxu0 %v1172
        %v1211 = vpop.f32.mrb[0].mxu0
        %v1212 = vadd.f32 0.0, %v1211
        %v1213 = vpop.f32.mrb[0].mxu0
        %v1214 = vpop.f32.mrb[0].mxu0
        %v1215 = vpop.f32.mrb[0].mxu0
        %1216 = vdwg.mxu0
        %v1217 = vsel %vm554, %v1062, -inf
        %1218 = vmax.xlane.f32.xlu0 %v1217
        %v1219 = vpop.xlane.xlu0 %1218
        %v1220 = vsel %vm554, %v1112, -inf
        %1221 = vmax.xlane.f32.xlu0 %v1220
        %v1222 = vpop.xlane.xlu0 %1221
        %v1223 = vsel %vm554, %v1162, -inf
        %1224 = vmax.xlane.f32.xlu0 %v1223
        %v1225 = vpop.xlane.xlu0 %1224
        %v1226 = vsel %vm554, %v1212, -inf
        %1227 = vmax.xlane.f32.xlu0 %v1226
        %v1228 = vpop.xlane.xlu0 %1227
        %v1229 = vsub.f32 -inf, %v1219
        %v1230 = vsub.f32 -inf, %v1222
        %v1231 = vsub.f32 -inf, %v1225
        %v1232 = vsub.f32 -inf, %v1228
        %v1233 = vmul.f32 %v1229, 1.442695
        %v1234 = vpow.pop %v1233
        %v1235 = vmul.f32 %v1230, 1.442695
        %v1236 = vpow.pop %v1235
        %v1237 = vmul.f32 %v1231, 1.442695
        %v1238 = vpow.pop %v1237
        %v1239 = vmul.f32 %v1232, 1.442695
        %v1240 = vpow.pop %v1239
        %v1241 = vsub.f32 %v1062, %v1219
        %v1242 = vsub.f32 %v1112, %v1222
        %v1243 = vsub.f32 %v1162, %v1225
        %v1244 = vsub.f32 %v1212, %v1228
        %v1245 = vmul.f32 %v1241, 1.442695
        %v1246 = vpow.pop %v1245
        %v1247 = vmul.f32 %v1242, 1.442695
        %v1248 = vpow.pop %v1247
        %v1249 = vmul.f32 %v1243, 1.442695
        %v1250 = vpow.pop %v1249
        %v1251 = vmul.f32 %v1244, 1.442695
        %v1252 = vpow.pop %v1251
        %v1253 = vmul.f32 %v1234, 0.0
        %v1254 = vmul.f32 %v1236, 0.0
        %v1255 = vmul.f32 %v1238, 0.0
        %v1256 = vmul.f32 %v1240, 0.0
        %v1257 = vsel %vm554, %v1246, 0.0
        %1258 = vadd.xlane.f32.xlu0 %v1257
        %v1259 = vpop.xlane.xlu0 %1258
        %v1260 = vsel %vm554, %v1248, 0.0
        %1261 = vadd.xlane.f32.xlu0 %v1260
        %v1262 = vpop.xlane.xlu0 %1261
        %v1263 = vsel %vm554, %v1250, 0.0
        %1264 = vadd.xlane.f32.xlu0 %v1263
        %v1265 = vpop.xlane.xlu0 %1264
        %v1266 = vsel %vm554, %v1252, 0.0
        %1267 = vadd.xlane.f32.xlu0 %v1266
        %v1268 = vpop.xlane.xlu0 %1267
        %v1269 = vadd.f32 %v1253, %v1259
        %v1270 = vadd.f32 %v1254, %v1262
        %v1271 = vadd.f32 %v1255, %v1265
        %v1272 = vadd.f32 %v1256, %v1268
        %v1273 = vpack.c.bf16 %v1246, %v1246
        %v1274 = vpack.c.bf16 %v1248, %v1248
        %v1275 = vpack.c.bf16 %v1250, %v1250
        %v1276 = vpack.c.bf16 %v1252, %v1252
        %1277 = vrot.lane.b32.xlu0 %v547, 56
        %v1278 = vpop.permute.xlu0 %1277
        %v1280 = vsel %vm554, %v1273, 0
        %v1283 = vsel %vm813, %v1278, 0
        %1285 = vmatprep.subr.bf16.mxu0 0
        %1286 = vmatpush1.bf16.msra.mxu0 %v1283
        %1287 = vmatprep.subr.bf16.mxu0 0
        %1288 = vmatpush1.bf16.msra.mxu0 0
        %1289 = vmatprep.subr.bf16.mxu0 0
        %1290 = vmatpush1.bf16.msra.mxu0 0
        %1291 = vmatprep.subr.bf16.mxu0 0
        %1292 = vmatpush1.bf16.msra.mxu0 0
        %1293 = vmatprep.subr.bf16.mxu0 0
        %1294 = vmatpush1.bf16.msra.mxu0 0
        %1295 = vmatprep.subr.bf16.mxu0 0
        %1296 = vmatpush1.bf16.msra.mxu0 0
        %1297 = vmatprep.subr.bf16.mxu0 0
        %1298 = vmatpush1.bf16.msra.mxu0 0
        %1299 = vmatprep.subr.bf16.mxu0 0
        %1300 = vmatpush1.bf16.msra.mxu0 0
        %1301 = vmatprep.subr.bf16.mxu0 0
        %1302 = vmatpush1.bf16.msra.mxu0 0
        %1303 = vmatprep.subr.bf16.mxu0 0
        %1304 = vmatpush1.bf16.msra.mxu0 0
        %1305 = vmatprep.subr.bf16.mxu0 0
        %1306 = vmatpush1.bf16.msra.mxu0 0
        %1307 = vmatprep.subr.bf16.mxu0 0
        %1308 = vmatpush1.bf16.msra.mxu0 0
        %1309 = vmatprep.subr.bf16.mxu0 0
        %1310 = vmatpush1.bf16.msra.mxu0 0
        %1311 = vmatprep.subr.bf16.mxu0 0
        %1312 = vmatpush1.bf16.msra.mxu0 0
        %1313 = vmatprep.subr.bf16.mxu0 0
        %1314 = vmatpush1.bf16.msra.mxu0 0
        %1315 = vmatprep.subr.bf16.mxu0 0
        %1316 = vmatpush1.bf16.msra.mxu0 0
        %1317 = vmatprep.mubr.bf16.mxu0 0
        %1318 = vmatmul.mubr.bf16.gmra.mrb[0].mxu0 %v1280
        %v1319 = vpop.f32.mrb[0].mxu0
        %v1320 = vadd.f32 0.0, %v1319
        %v1321 = vpop.f32.mrb[0].mxu0
        %v1322 = vpop.f32.mrb[0].mxu0
        %v1323 = vpop.f32.mrb[0].mxu0
        %1324 = vdwg.mxu0
        %1325 = vrot.lane.b32.xlu0 %v548, 56
        %v1326 = vpop.permute.xlu0 %1325
        %v1328 = vsel %vm554, %v1274, 0
        %v1331 = vsel %vm813, %v1326, 0
        %1333 = vmatprep.subr.bf16.mxu0 0
        %1334 = vmatpush1.bf16.msra.mxu0 %v1331
        %1335 = vmatprep.subr.bf16.mxu0 0
        %1336 = vmatpush1.bf16.msra.mxu0 0
        %1337 = vmatprep.subr.bf16.mxu0 0
        %1338 = vmatpush1.bf16.msra.mxu0 0
        %1339 = vmatprep.subr.bf16.mxu0 0
        %1340 = vmatpush1.bf16.msra.mxu0 0
        %1341 = vmatprep.subr.bf16.mxu0 0
        %1342 = vmatpush1.bf16.msra.mxu0 0
        %1343 = vmatprep.subr.bf16.mxu0 0
        %1344 = vmatpush1.bf16.msra.mxu0 0
        %1345 = vmatprep.subr.bf16.mxu0 0
        %1346 = vmatpush1.bf16.msra.mxu0 0
        %1347 = vmatprep.subr.bf16.mxu0 0
        %1348 = vmatpush1.bf16.msra.mxu0 0
        %1349 = vmatprep.subr.bf16.mxu0 0
        %1350 = vmatpush1.bf16.msra.mxu0 0
        %1351 = vmatprep.subr.bf16.mxu0 0
        %1352 = vmatpush1.bf16.msra.mxu0 0
        %1353 = vmatprep.subr.bf16.mxu0 0
        %1354 = vmatpush1.bf16.msra.mxu0 0
        %1355 = vmatprep.subr.bf16.mxu0 0
        %1356 = vmatpush1.bf16.msra.mxu0 0
        %1357 = vmatprep.subr.bf16.mxu0 0
        %1358 = vmatpush1.bf16.msra.mxu0 0
        %1359 = vmatprep.subr.bf16.mxu0 0
        %1360 = vmatpush1.bf16.msra.mxu0 0
        %1361 = vmatprep.subr.bf16.mxu0 0
        %1362 = vmatpush1.bf16.msra.mxu0 0
        %1363 = vmatprep.subr.bf16.mxu0 0
        %1364 = vmatpush1.bf16.msra.mxu0 0
        %1365 = vmatprep.mubr.bf16.mxu0 0
        %1366 = vmatmul.mubr.bf16.gmra.mrb[0].mxu0 %v1328
        %v1367 = vpop.f32.mrb[0].mxu0
        %v1368 = vadd.f32 0.0, %v1367
        %v1369 = vpop.f32.mrb[0].mxu0
        %v1370 = vpop.f32.mrb[0].mxu0
        %v1371 = vpop.f32.mrb[0].mxu0
        %1372 = vdwg.mxu0
        %1373 = vrot.lane.b32.xlu0 %v549, 56
        %v1374 = vpop.permute.xlu0 %1373
        %v1376 = vsel %vm554, %v1275, 0
        %v1379 = vsel %vm813, %v1374, 0
        %1381 = vmatprep.subr.bf16.mxu0 0
        %1382 = vmatpush1.bf16.msra.mxu0 %v1379
        %1383 = vmatprep.subr.bf16.mxu0 0
        %1384 = vmatpush1.bf16.msra.mxu0 0
        %1385 = vmatprep.subr.bf16.mxu0 0
        %1386 = vmatpush1.bf16.msra.mxu0 0
        %1387 = vmatprep.subr.bf16.mxu0 0
        %1388 = vmatpush1.bf16.msra.mxu0 0
        %1389 = vmatprep.subr.bf16.mxu0 0
        %1390 = vmatpush1.bf16.msra.mxu0 0
        %1391 = vmatprep.subr.bf16.mxu0 0
        %1392 = vmatpush1.bf16.msra.mxu0 0
        %1393 = vmatprep.subr.bf16.mxu0 0
        %1394 = vmatpush1.bf16.msra.mxu0 0
        %1395 = vmatprep.subr.bf16.mxu0 0
        %1396 = vmatpush1.bf16.msra.mxu0 0
        %1397 = vmatprep.subr.bf16.mxu0 0
        %1398 = vmatpush1.bf16.msra.mxu0 0
        %1399 = vmatprep.subr.bf16.mxu0 0
        %1400 = vmatpush1.bf16.msra.mxu0 0
        %1401 = vmatprep.subr.bf16.mxu0 0
        %1402 = vmatpush1.bf16.msra.mxu0 0
        %1403 = vmatprep.subr.bf16.mxu0 0
        %1404 = vmatpush1.bf16.msra.mxu0 0
        %1405 = vmatprep.subr.bf16.mxu0 0
        %1406 = vmatpush1.bf16.msra.mxu0 0
        %1407 = vmatprep.subr.bf16.mxu0 0
        %1408 = vmatpush1.bf16.msra.mxu0 0
        %1409 = vmatprep.subr.bf16.mxu0 0
        %1410 = vmatpush1.bf16.msra.mxu0 0
        %1411 = vmatprep.subr.bf16.mxu0 0
        %1412 = vmatpush1.bf16.msra.mxu0 0
        %1413 = vmatprep.mubr.bf16.mxu0 0
        %1414 = vmatmul.mubr.bf16.gmra.mrb[0].mxu0 %v1376
        %v1415 = vpop.f32.mrb[0].mxu0
        %v1416 = vadd.f32 0.0, %v1415
        %v1417 = vpop.f32.mrb[0].mxu0
        %v1418 = vpop.f32.mrb[0].mxu0
        %v1419 = vpop.f32.mrb[0].mxu0
        %1420 = vdwg.mxu0
        %1421 = vrot.lane.b32.xlu0 %v550, 56
        %v1422 = vpop.permute.xlu0 %1421
        %v1424 = vsel %vm554, %v1276, 0
        %v1427 = vsel %vm813, %v1422, 0
        %1429 = vmatprep.subr.bf16.mxu0 0
        %1430 = vmatpush1.bf16.msra.mxu0 %v1427
        %1431 = vmatprep.subr.bf16.mxu0 0
        %1432 = vmatpush1.bf16.msra.mxu0 0
        %1433 = vmatprep.subr.bf16.mxu0 0
        %1434 = vmatpush1.bf16.msra.mxu0 0
        %1435 = vmatprep.subr.bf16.mxu0 0
        %1436 = vmatpush1.bf16.msra.mxu0 0
        %1437 = vmatprep.subr.bf16.mxu0 0
        %1438 = vmatpush1.bf16.msra.mxu0 0
        %1439 = vmatprep.subr.bf16.mxu0 0
        %1440 = vmatpush1.bf16.msra.mxu0 0
        %1441 = vmatprep.subr.bf16.mxu0 0
        %1442 = vmatpush1.bf16.msra.mxu0 0
        %1443 = vmatprep.subr.bf16.mxu0 0
        %1444 = vmatpush1.bf16.msra.mxu0 0
        %1445 = vmatprep.subr.bf16.mxu0 0
        %1446 = vmatpush1.bf16.msra.mxu0 0
        %1447 = vmatprep.subr.bf16.mxu0 0
        %1448 = vmatpush1.bf16.msra.mxu0 0
        %1449 = vmatprep.subr.bf16.mxu0 0
        %1450 = vmatpush1.bf16.msra.mxu0 0
        %1451 = vmatprep.subr.bf16.mxu0 0
        %1452 = vmatpush1.bf16.msra.mxu0 0
        %1453 = vmatprep.subr.bf16.mxu0 0
        %1454 = vmatpush1.bf16.msra.mxu0 0
        %1455 = vmatprep.subr.bf16.mxu0 0
        %1456 = vmatpush1.bf16.msra.mxu0 0
        %1457 = vmatprep.subr.bf16.mxu0 0
        %1458 = vmatpush1.bf16.msra.mxu0 0
        %1459 = vmatprep.subr.bf16.mxu0 0
        %1460 = vmatpush1.bf16.msra.mxu0 0
        %1461 = vmatprep.mubr.bf16.mxu0 0
        %1462 = vmatmul.mubr.bf16.gmra.mrb[0].mxu0 %v1424
        %v1463 = vpop.f32.mrb[0].mxu0
        %v1464 = vadd.f32 0.0, %v1463
        %v1465 = vpop.f32.mrb[0].mxu0
        %v1466 = vpop.f32.mrb[0].mxu0
        %v1467 = vpop.f32.mrb[0].mxu0
        %1468 = vdwg.mxu0
        %v1469 = vadd.f32 %v1253, %v1320
        %v1470 = vadd.f32 %v1254, %v1368
        %v1471 = vadd.f32 %v1255, %v1416
        %v1472 = vadd.f32 %v1256, %v1464
        %v1473 = vrcp.pop %v1269
        %v1474 = vrcp.pop %v1270
        %v1475 = vrcp.pop %v1271
        %v1476 = vrcp.pop %v1272
        %v1477 = vmul.f32 %v1469, %v1473
        %v1478 = vmul.f32 %v1470, %v1474
        %v1479 = vmul.f32 %v1471, %v1475
        %v1480 = vmul.f32 %v1472, %v1476
        %1485 = vrot.lane.b32.xlu0 %v1477, 8
        %v1486 = vpop.permute.xlu0 %1485
        %1487 = vrot.lane.b32.xlu0 %v1478, 8
        %v1488 = vpop.permute.xlu0 %1487
        %1489 = vrot.lane.b32.xlu0 %v1479, 8
        %v1490 = vpop.permute.xlu0 %1489
        %1491 = vrot.lane.b32.xlu0 %v1480, 8
        %v1492 = vpop.permute.xlu0 %1491
        %vm1497 = vcmask 130112
        %1498 = vst.msk [vmem:[#allocation2] sm:$0xff] %vm1497, %v1486
        %1499 = vst.msk [vmem:[#allocation2 + $0x8] sm:$0xff] %vm1497, %v1488
        %1500 = vst.msk [vmem:[#allocation2 + $0x10] sm:$0xff] %vm1497, %v1490
        %1501 = vst.msk [vmem:[#allocation2 + $0x18] sm:$0xff] %vm1497, %v1492
        %1502 = vrot.lane.b32.xlu0 %v547, 112
        %v1503 = vpop.permute.xlu0 %1502
        %1504 = vrot.lane.b32.xlu0 %v547, 80
        %v1505 = vpop.permute.xlu0 %1504
        %v1507 = vsel %vm554, %v1503, 0
        %v1510 = vsel %vm554, %v1505, 0
        %1512 = vmatprep.subr.bf16.mxu0 0
        %1513 = vmatpush1.bf16.xpose.msra.mxu0 %v1510
        %1514 = vmatprep.subr.bf16.mxu0 0
        %1515 = vmatpush1.bf16.xpose.msra.mxu0 0
        %1516 = vmatprep.subr.bf16.mxu0 0
        %1517 = vmatpush1.bf16.xpose.msra.mxu0 0
        %1518 = vmatprep.subr.bf16.mxu0 0
        %1519 = vmatpush1.bf16.xpose.msra.mxu0 0
        %1520 = vmatprep.subr.bf16.mxu0 0
        %1521 = vmatpush1.bf16.xpose.msra.mxu0 0
        %1522 = vmatprep.subr.bf16.mxu0 0
        %1523 = vmatpush1.bf16.xpose.msra.mxu0 0
        %1524 = vmatprep.subr.bf16.mxu0 0
        %1525 = vmatpush1.bf16.xpose.msra.mxu0 0
        %1526 = vmatprep.subr.bf16.mxu0 0
        %1527 = vmatpush1.bf16.xpose.msra.mxu0 0
        %1528 = vmatprep.subr.bf16.mxu0 0
        %1529 = vmatpush1.bf16.xpose.msra.mxu0 0
        %1530 = vmatprep.subr.bf16.mxu0 0
        %1531 = vmatpush1.bf16.xpose.msra.mxu0 0
        %1532 = vmatprep.subr.bf16.mxu0 0
        %1533 = vmatpush1.bf16.xpose.msra.mxu0 0
        %1534 = vmatprep.subr.bf16.mxu0 0
        %1535 = vmatpush1.bf16.xpose.msra.mxu0 0
        %1536 = vmatprep.subr.bf16.mxu0 0
        %1537 = vmatpush1.bf16.xpose.msra.mxu0 0
        %1538 = vmatprep.subr.bf16.mxu0 0
        %1539 = vmatpush1.bf16.xpose.msra.mxu0 0
        %1540 = vmatprep.subr.bf16.mxu0 0
        %1541 = vmatpush1.bf16.xpose.msra.mxu0 0
        %1542 = vmatprep.subr.bf16.mxu0 0
        %1543 = vmatpush1.bf16.xpose.msra.mxu0 0
        %1544 = vmatprep.mubr.bf16.mxu0 0
        %1545 = vmatmul.mubr.bf16.gmra.mrb[0].mxu0 %v1507
        %v1546 = vpop.f32.mrb[0].mxu0
        %v1547 = vadd.f32 0.0, %v1546
        %v1548 = vpop.f32.mrb[0].mxu0
        %v1549 = vpop.f32.mrb[0].mxu0
        %v1550 = vpop.f32.mrb[0].mxu0
        %1551 = vdwg.mxu0
        %1552 = vrot.lane.b32.xlu0 %v548, 112
        %v1553 = vpop.permute.xlu0 %1552
        %1554 = vrot.lane.b32.xlu0 %v548, 80
        %v1555 = vpop.permute.xlu0 %1554
        %v1557 = vsel %vm554, %v1553, 0
        %v1560 = vsel %vm554, %v1555, 0
        %1562 = vmatprep.subr.bf16.mxu0 0
        %1563 = vmatpush1.bf16.xpose.msra.mxu0 %v1560
        %1564 = vmatprep.subr.bf16.mxu0 0
        %1565 = vmatpush1.bf16.xpose.msra.mxu0 0
        %1566 = vmatprep.subr.bf16.mxu0 0
        %1567 = vmatpush1.bf16.xpose.msra.mxu0 0
        %1568 = vmatprep.subr.bf16.mxu0 0
        %1569 = vmatpush1.bf16.xpose.msra.mxu0 0
        %1570 = vmatprep.subr.bf16.mxu0 0
        %1571 = vmatpush1.bf16.xpose.msra.mxu0 0
        %1572 = vmatprep.subr.bf16.mxu0 0
        %1573 = vmatpush1.bf16.xpose.msra.mxu0 0
        %1574 = vmatprep.subr.bf16.mxu0 0
        %1575 = vmatpush1.bf16.xpose.msra.mxu0 0
        %1576 = vmatprep.subr.bf16.mxu0 0
        %1577 = vmatpush1.bf16.xpose.msra.mxu0 0
        %1578 = vmatprep.subr.bf16.mxu0 0
        %1579 = vmatpush1.bf16.xpose.msra.mxu0 0
        %1580 = vmatprep.subr.bf16.mxu0 0
        %1581 = vmatpush1.bf16.xpose.msra.mxu0 0
        %1582 = vmatprep.subr.bf16.mxu0 0
        %1583 = vmatpush1.bf16.xpose.msra.mxu0 0
        %1584 = vmatprep.subr.bf16.mxu0 0
        %1585 = vmatpush1.bf16.xpose.msra.mxu0 0
        %1586 = vmatprep.subr.bf16.mxu0 0
        %1587 = vmatpush1.bf16.xpose.msra.mxu0 0
        %1588 = vmatprep.subr.bf16.mxu0 0
        %1589 = vmatpush1.bf16.xpose.msra.mxu0 0
        %1590 = vmatprep.subr.bf16.mxu0 0
        %1591 = vmatpush1.bf16.xpose.msra.mxu0 0
        %1592 = vmatprep.subr.bf16.mxu0 0
        %1593 = vmatpush1.bf16.xpose.msra.mxu0 0
        %1594 = vmatprep.mubr.bf16.mxu0 0
        %1595 = vmatmul.mubr.bf16.gmra.mrb[0].mxu0 %v1557
        %v1596 = vpop.f32.mrb[0].mxu0
        %v1597 = vadd.f32 0.0, %v1596
        %v1598 = vpop.f32.mrb[0].mxu0
        %v1599 = vpop.f32.mrb[0].mxu0
        %v1600 = vpop.f32.mrb[0].mxu0
        %1601 = vdwg.mxu0
        %1602 = vrot.lane.b32.xlu0 %v549, 112
        %v1603 = vpop.permute.xlu0 %1602
        %1604 = vrot.lane.b32.xlu0 %v549, 80
        %v1605 = vpop.permute.xlu0 %1604
        %v1607 = vsel %vm554, %v1603, 0
        %v1610 = vsel %vm554, %v1605, 0
        %1612 = vmatprep.subr.bf16.mxu0 0
        %1613 = vmatpush1.bf16.xpose.msra.mxu0 %v1610
        %1614 = vmatprep.subr.bf16.mxu0 0
        %1615 = vmatpush1.bf16.xpose.msra.mxu0 0
        %1616 = vmatprep.subr.bf16.mxu0 0
        %1617 = vmatpush1.bf16.xpose.msra.mxu0 0
        %1618 = vmatprep.subr.bf16.mxu0 0
        %1619 = vmatpush1.bf16.xpose.msra.mxu0 0
        %1620 = vmatprep.subr.bf16.mxu0 0
        %1621 = vmatpush1.bf16.xpose.msra.mxu0 0
        %1622 = vmatprep.subr.bf16.mxu0 0
        %1623 = vmatpush1.bf16.xpose.msra.mxu0 0
        %1624 = vmatprep.subr.bf16.mxu0 0
        %1625 = vmatpush1.bf16.xpose.msra.mxu0 0
        %1626 = vmatprep.subr.bf16.mxu0 0
        %1627 = vmatpush1.bf16.xpose.msra.mxu0 0
        %1628 = vmatprep.subr.bf16.mxu0 0
        %1629 = vmatpush1.bf16.xpose.msra.mxu0 0
        %1630 = vmatprep.subr.bf16.mxu0 0
        %1631 = vmatpush1.bf16.xpose.msra.mxu0 0
        %1632 = vmatprep.subr.bf16.mxu0 0
        %1633 = vmatpush1.bf16.xpose.msra.mxu0 0
        %1634 = vmatprep.subr.bf16.mxu0 0
        %1635 = vmatpush1.bf16.xpose.msra.mxu0 0
        %1636 = vmatprep.subr.bf16.mxu0 0
        %1637 = vmatpush1.bf16.xpose.msra.mxu0 0
        %1638 = vmatprep.subr.bf16.mxu0 0
        %1639 = vmatpush1.bf16.xpose.msra.mxu0 0
        %1640 = vmatprep.subr.bf16.mxu0 0
        %1641 = vmatpush1.bf16.xpose.msra.mxu0 0
        %1642 = vmatprep.subr.bf16.mxu0 0
        %1643 = vmatpush1.bf16.xpose.msra.mxu0 0
        %1644 = vmatprep.mubr.bf16.mxu0 0
        %1645 = vmatmul.mubr.bf16.gmra.mrb[0].mxu0 %v1607
        %v1646 = vpop.f32.mrb[0].mxu0
        %v1647 = vadd.f32 0.0, %v1646
        %v1648 = vpop.f32.mrb[0].mxu0
        %v1649 = vpop.f32.mrb[0].mxu0
        %v1650 = vpop.f32.mrb[0].mxu0
        %1651 = vdwg.mxu0
        %1652 = vrot.lane.b32.xlu0 %v550, 112
        %v1653 = vpop.permute.xlu0 %1652
        %1654 = vrot.lane.b32.xlu0 %v550, 80
        %v1655 = vpop.permute.xlu0 %1654
        %v1657 = vsel %vm554, %v1653, 0
        %v1660 = vsel %vm554, %v1655, 0
        %1662 = vmatprep.subr.bf16.mxu0 0
        %1663 = vmatpush1.bf16.xpose.msra.mxu0 %v1660
        %1664 = vmatprep.subr.bf16.mxu0 0
        %1665 = vmatpush1.bf16.xpose.msra.mxu0 0
        %1666 = vmatprep.subr.bf16.mxu0 0
        %1667 = vmatpush1.bf16.xpose.msra.mxu0 0
        %1668 = vmatprep.subr.bf16.mxu0 0
        %1669 = vmatpush1.bf16.xpose.msra.mxu0 0
        %1670 = vmatprep.subr.bf16.mxu0 0
        %1671 = vmatpush1.bf16.xpose.msra.mxu0 0
        %1672 = vmatprep.subr.bf16.mxu0 0
        %1673 = vmatpush1.bf16.xpose.msra.mxu0 0
        %1674 = vmatprep.subr.bf16.mxu0 0
        %1675 = vmatpush1.bf16.xpose.msra.mxu0 0
        %1676 = vmatprep.subr.bf16.mxu0 0
        %1677 = vmatpush1.bf16.xpose.msra.mxu0 0
        %1678 = vmatprep.subr.bf16.mxu0 0
        %1679 = vmatpush1.bf16.xpose.msra.mxu0 0
        %1680 = vmatprep.subr.bf16.mxu0 0
        %1681 = vmatpush1.bf16.xpose.msra.mxu0 0
        %1682 = vmatprep.subr.bf16.mxu0 0
        %1683 = vmatpush1.bf16.xpose.msra.mxu0 0
        %1684 = vmatprep.subr.bf16.mxu0 0
        %1685 = vmatpush1.bf16.xpose.msra.mxu0 0
        %1686 = vmatprep.subr.bf16.mxu0 0
        %1687 = vmatpush1.bf16.xpose.msra.mxu0 0
        %1688 = vmatprep.subr.bf16.mxu0 0
        %1689 = vmatpush1.bf16.xpose.msra.mxu0 0
        %1690 = vmatprep.subr.bf16.mxu0 0
        %1691 = vmatpush1.bf16.xpose.msra.mxu0 0
        %1692 = vmatprep.subr.bf16.mxu0 0
        %1693 = vmatpush1.bf16.xpose.msra.mxu0 0
        %1694 = vmatprep.mubr.bf16.mxu0 0
        %1695 = vmatmul.mubr.bf16.gmra.mrb[0].mxu0 %v1657
        %v1696 = vpop.f32.mrb[0].mxu0
        %v1697 = vadd.f32 0.0, %v1696
        %v1698 = vpop.f32.mrb[0].mxu0
        %v1699 = vpop.f32.mrb[0].mxu0
        %v1700 = vpop.f32.mrb[0].mxu0
        %1701 = vdwg.mxu0
        %v1702 = vsel %vm554, %v1547, -inf
        %1703 = vmax.xlane.f32.xlu0 %v1702
        %v1704 = vpop.xlane.xlu0 %1703
        %v1705 = vsel %vm554, %v1597, -inf
        %1706 = vmax.xlane.f32.xlu0 %v1705
        %v1707 = vpop.xlane.xlu0 %1706
        %v1708 = vsel %vm554, %v1647, -inf
        %1709 = vmax.xlane.f32.xlu0 %v1708
        %v1710 = vpop.xlane.xlu0 %1709
        %v1711 = vsel %vm554, %v1697, -inf
        %1712 = vmax.xlane.f32.xlu0 %v1711
        %v1713 = vpop.xlane.xlu0 %1712
        %v1714 = vsub.f32 -inf, %v1704
        %v1715 = vsub.f32 -inf, %v1707
        %v1716 = vsub.f32 -inf, %v1710
        %v1717 = vsub.f32 -inf, %v1713
        %v1718 = vmul.f32 %v1714, 1.442695
        %v1719 = vpow.pop %v1718
        %v1720 = vmul.f32 %v1715, 1.442695
        %v1721 = vpow.pop %v1720
        %v1722 = vmul.f32 %v1716, 1.442695
        %v1723 = vpow.pop %v1722
        %v1724 = vmul.f32 %v1717, 1.442695
        %v1725 = vpow.pop %v1724
        %v1726 = vsub.f32 %v1547, %v1704
        %v1727 = vsub.f32 %v1597, %v1707
        %v1728 = vsub.f32 %v1647, %v1710
        %v1729 = vsub.f32 %v1697, %v1713
        %v1730 = vmul.f32 %v1726, 1.442695
        %v1731 = vpow.pop %v1730
        %v1732 = vmul.f32 %v1727, 1.442695
        %v1733 = vpow.pop %v1732
        %v1734 = vmul.f32 %v1728, 1.442695
        %v1735 = vpow.pop %v1734
        %v1736 = vmul.f32 %v1729, 1.442695
        %v1737 = vpow.pop %v1736
        %v1738 = vmul.f32 %v1719, 0.0
        %v1739 = vmul.f32 %v1721, 0.0
        %v1740 = vmul.f32 %v1723, 0.0
        %v1741 = vmul.f32 %v1725, 0.0
        %v1742 = vsel %vm554, %v1731, 0.0
        %1743 = vadd.xlane.f32.xlu0 %v1742
        %v1744 = vpop.xlane.xlu0 %1743
        %v1745 = vsel %vm554, %v1733, 0.0
        %1746 = vadd.xlane.f32.xlu0 %v1745
        %v1747 = vpop.xlane.xlu0 %1746
        %v1748 = vsel %vm554, %v1735, 0.0
        %1749 = vadd.xlane.f32.xlu0 %v1748
        %v1750 = vpop.xlane.xlu0 %1749
        %v1751 = vsel %vm554, %v1737, 0.0
        %1752 = vadd.xlane.f32.xlu0 %v1751
        %v1753 = vpop.xlane.xlu0 %1752
        %v1754 = vadd.f32 %v1738, %v1744
        %v1755 = vadd.f32 %v1739, %v1747
        %v1756 = vadd.f32 %v1740, %v1750
        %v1757 = vadd.f32 %v1741, %v1753
        %v1758 = vpack.c.bf16 %v1731, %v1731
        %v1759 = vpack.c.bf16 %v1733, %v1733
        %v1760 = vpack.c.bf16 %v1735, %v1735
        %v1761 = vpack.c.bf16 %v1737, %v1737
        %1762 = vrot.lane.b32.xlu0 %v547, 48
        %v1763 = vpop.permute.xlu0 %1762
        %v1765 = vsel %vm554, %v1758, 0
        %v1768 = vsel %vm813, %v1763, 0
        %1770 = vmatprep.subr.bf16.mxu0 0
        %1771 = vmatpush1.bf16.msra.mxu0 %v1768
        %1772 = vmatprep.subr.bf16.mxu0 0
        %1773 = vmatpush1.bf16.msra.mxu0 0
        %1774 = vmatprep.subr.bf16.mxu0 0
        %1775 = vmatpush1.bf16.msra.mxu0 0
        %1776 = vmatprep.subr.bf16.mxu0 0
        %1777 = vmatpush1.bf16.msra.mxu0 0
        %1778 = vmatprep.subr.bf16.mxu0 0
        %1779 = vmatpush1.bf16.msra.mxu0 0
        %1780 = vmatprep.subr.bf16.mxu0 0
        %1781 = vmatpush1.bf16.msra.mxu0 0
        %1782 = vmatprep.subr.bf16.mxu0 0
        %1783 = vmatpush1.bf16.msra.mxu0 0
        %1784 = vmatprep.subr.bf16.mxu0 0
        %1785 = vmatpush1.bf16.msra.mxu0 0
        %1786 = vmatprep.subr.bf16.mxu0 0
        %1787 = vmatpush1.bf16.msra.mxu0 0
        %1788 = vmatprep.subr.bf16.mxu0 0
        %1789 = vmatpush1.bf16.msra.mxu0 0
        %1790 = vmatprep.subr.bf16.mxu0 0
        %1791 = vmatpush1.bf16.msra.mxu0 0
        %1792 = vmatprep.subr.bf16.mxu0 0
        %1793 = vmatpush1.bf16.msra.mxu0 0
        %1794 = vmatprep.subr.bf16.mxu0 0
        %1795 = vmatpush1.bf16.msra.mxu0 0
        %1796 = vmatprep.subr.bf16.mxu0 0
        %1797 = vmatpush1.bf16.msra.mxu0 0
        %1798 = vmatprep.subr.bf16.mxu0 0
        %1799 = vmatpush1.bf16.msra.mxu0 0
        %1800 = vmatprep.subr.bf16.mxu0 0
        %1801 = vmatpush1.bf16.msra.mxu0 0
        %1802 = vmatprep.mubr.bf16.mxu0 0
        %1803 = vmatmul.mubr.bf16.gmra.mrb[0].mxu0 %v1765
        %v1804 = vpop.f32.mrb[0].mxu0
        %v1805 = vadd.f32 0.0, %v1804
        %v1806 = vpop.f32.mrb[0].mxu0
        %v1807 = vpop.f32.mrb[0].mxu0
        %v1808 = vpop.f32.mrb[0].mxu0
        %1809 = vdwg.mxu0
        %1810 = vrot.lane.b32.xlu0 %v548, 48
        %v1811 = vpop.permute.xlu0 %1810
        %v1813 = vsel %vm554, %v1759, 0
        %v1816 = vsel %vm813, %v1811, 0
        %1818 = vmatprep.subr.bf16.mxu0 0
        %1819 = vmatpush1.bf16.msra.mxu0 %v1816
        %1820 = vmatprep.subr.bf16.mxu0 0
        %1821 = vmatpush1.bf16.msra.mxu0 0
        %1822 = vmatprep.subr.bf16.mxu0 0
        %1823 = vmatpush1.bf16.msra.mxu0 0
        %1824 = vmatprep.subr.bf16.mxu0 0
        %1825 = vmatpush1.bf16.msra.mxu0 0
        %1826 = vmatprep.subr.bf16.mxu0 0
        %1827 = vmatpush1.bf16.msra.mxu0 0
        %1828 = vmatprep.subr.bf16.mxu0 0
        %1829 = vmatpush1.bf16.msra.mxu0 0
        %1830 = vmatprep.subr.bf16.mxu0 0
        %1831 = vmatpush1.bf16.msra.mxu0 0
        %1832 = vmatprep.subr.bf16.mxu0 0
        %1833 = vmatpush1.bf16.msra.mxu0 0
        %1834 = vmatprep.subr.bf16.mxu0 0
        %1835 = vmatpush1.bf16.msra.mxu0 0
        %1836 = vmatprep.subr.bf16.mxu0 0
        %1837 = vmatpush1.bf16.msra.mxu0 0
        %1838 = vmatprep.subr.bf16.mxu0 0
        %1839 = vmatpush1.bf16.msra.mxu0 0
        %1840 = vmatprep.subr.bf16.mxu0 0
        %1841 = vmatpush1.bf16.msra.mxu0 0
        %1842 = vmatprep.subr.bf16.mxu0 0
        %1843 = vmatpush1.bf16.msra.mxu0 0
        %1844 = vmatprep.subr.bf16.mxu0 0
        %1845 = vmatpush1.bf16.msra.mxu0 0
        %1846 = vmatprep.subr.bf16.mxu0 0
        %1847 = vmatpush1.bf16.msra.mxu0 0
        %1848 = vmatprep.subr.bf16.mxu0 0
        %1849 = vmatpush1.bf16.msra.mxu0 0
        %1850 = vmatprep.mubr.bf16.mxu0 0
        %1851 = vmatmul.mubr.bf16.gmra.mrb[0].mxu0 %v1813
        %v1852 = vpop.f32.mrb[0].mxu0
        %v1853 = vadd.f32 0.0, %v1852
        %v1854 = vpop.f32.mrb[0].mxu0
        %v1855 = vpop.f32.mrb[0].mxu0
        %v1856 = vpop.f32.mrb[0].mxu0
        %1857 = vdwg.mxu0
        %1858 = vrot.lane.b32.xlu0 %v549, 48
        %v1859 = vpop.permute.xlu0 %1858
        %v1861 = vsel %vm554, %v1760, 0
        %v1864 = vsel %vm813, %v1859, 0
        %1866 = vmatprep.subr.bf16.mxu0 0
        %1867 = vmatpush1.bf16.msra.mxu0 %v1864
        %1868 = vmatprep.subr.bf16.mxu0 0
        %1869 = vmatpush1.bf16.msra.mxu0 0
        %1870 = vmatprep.subr.bf16.mxu0 0
        %1871 = vmatpush1.bf16.msra.mxu0 0
        %1872 = vmatprep.subr.bf16.mxu0 0
        %1873 = vmatpush1.bf16.msra.mxu0 0
        %1874 = vmatprep.subr.bf16.mxu0 0
        %1875 = vmatpush1.bf16.msra.mxu0 0
        %1876 = vmatprep.subr.bf16.mxu0 0
        %1877 = vmatpush1.bf16.msra.mxu0 0
        %1878 = vmatprep.subr.bf16.mxu0 0
        %1879 = vmatpush1.bf16.msra.mxu0 0
        %1880 = vmatprep.subr.bf16.mxu0 0
        %1881 = vmatpush1.bf16.msra.mxu0 0
        %1882 = vmatprep.subr.bf16.mxu0 0
        %1883 = vmatpush1.bf16.msra.mxu0 0
        %1884 = vmatprep.subr.bf16.mxu0 0
        %1885 = vmatpush1.bf16.msra.mxu0 0
        %1886 = vmatprep.subr.bf16.mxu0 0
        %1887 = vmatpush1.bf16.msra.mxu0 0
        %1888 = vmatprep.subr.bf16.mxu0 0
        %1889 = vmatpush1.bf16.msra.mxu0 0
        %1890 = vmatprep.subr.bf16.mxu0 0
        %1891 = vmatpush1.bf16.msra.mxu0 0
        %1892 = vmatprep.subr.bf16.mxu0 0
        %1893 = vmatpush1.bf16.msra.mxu0 0
        %1894 = vmatprep.subr.bf16.mxu0 0
        %1895 = vmatpush1.bf16.msra.mxu0 0
        %1896 = vmatprep.subr.bf16.mxu0 0
        %1897 = vmatpush1.bf16.msra.mxu0 0
        %1898 = vmatprep.mubr.bf16.mxu0 0
        %1899 = vmatmul.mubr.bf16.gmra.mrb[0].mxu0 %v1861
        %v1900 = vpop.f32.mrb[0].mxu0
        %v1901 = vadd.f32 0.0, %v1900
        %v1902 = vpop.f32.mrb[0].mxu0
        %v1903 = vpop.f32.mrb[0].mxu0
        %v1904 = vpop.f32.mrb[0].mxu0
        %1905 = vdwg.mxu0
        %1906 = vrot.lane.b32.xlu0 %v550, 48
        %v1907 = vpop.permute.xlu0 %1906
        %v1909 = vsel %vm554, %v1761, 0
        %v1912 = vsel %vm813, %v1907, 0
        %1914 = vmatprep.subr.bf16.mxu0 0
        %1915 = vmatpush1.bf16.msra.mxu0 %v1912
        %1916 = vmatprep.subr.bf16.mxu0 0
        %1917 = vmatpush1.bf16.msra.mxu0 0
        %1918 = vmatprep.subr.bf16.mxu0 0
        %1919 = vmatpush1.bf16.msra.mxu0 0
        %1920 = vmatprep.subr.bf16.mxu0 0
        %1921 = vmatpush1.bf16.msra.mxu0 0
        %1922 = vmatprep.subr.bf16.mxu0 0
        %1923 = vmatpush1.bf16.msra.mxu0 0
        %1924 = vmatprep.subr.bf16.mxu0 0
        %1925 = vmatpush1.bf16.msra.mxu0 0
        %1926 = vmatprep.subr.bf16.mxu0 0
        %1927 = vmatpush1.bf16.msra.mxu0 0
        %1928 = vmatprep.subr.bf16.mxu0 0
        %1929 = vmatpush1.bf16.msra.mxu0 0
        %1930 = vmatprep.subr.bf16.mxu0 0
        %1931 = vmatpush1.bf16.msra.mxu0 0
        %1932 = vmatprep.subr.bf16.mxu0 0
        %1933 = vmatpush1.bf16.msra.mxu0 0
        %1934 = vmatprep.subr.bf16.mxu0 0
        %1935 = vmatpush1.bf16.msra.mxu0 0
        %1936 = vmatprep.subr.bf16.mxu0 0
        %1937 = vmatpush1.bf16.msra.mxu0 0
        %1938 = vmatprep.subr.bf16.mxu0 0
        %1939 = vmatpush1.bf16.msra.mxu0 0
        %1940 = vmatprep.subr.bf16.mxu0 0
        %1941 = vmatpush1.bf16.msra.mxu0 0
        %1942 = vmatprep.subr.bf16.mxu0 0
        %1943 = vmatpush1.bf16.msra.mxu0 0
        %1944 = vmatprep.subr.bf16.mxu0 0
        %1945 = vmatpush1.bf16.msra.mxu0 0
        %1946 = vmatprep.mubr.bf16.mxu0 0
        %1947 = vmatmul.mubr.bf16.gmra.mrb[0].mxu0 %v1909
        %v1948 = vpop.f32.mrb[0].mxu0
        %v1949 = vadd.f32 0.0, %v1948
        %v1950 = vpop.f32.mrb[0].mxu0
        %v1951 = vpop.f32.mrb[0].mxu0
        %v1952 = vpop.f32.mrb[0].mxu0
        %1953 = vdwg.mxu0
        %v1954 = vadd.f32 %v1738, %v1805
        %v1955 = vadd.f32 %v1739, %v1853
        %v1956 = vadd.f32 %v1740, %v1901
        %v1957 = vadd.f32 %v1741, %v1949
        %v1958 = vrcp.pop %v1754
        %v1959 = vrcp.pop %v1755
        %v1960 = vrcp.pop %v1756
        %v1961 = vrcp.pop %v1757
        %v1962 = vmul.f32 %v1954, %v1958
        %v1963 = vmul.f32 %v1955, %v1959
        %v1964 = vmul.f32 %v1956, %v1960
        %v1965 = vmul.f32 %v1957, %v1961
        %1970 = vrot.lane.b32.xlu0 %v1962, 16
        %v1971 = vpop.permute.xlu0 %1970
        %1972 = vrot.lane.b32.xlu0 %v1963, 16
        %v1973 = vpop.permute.xlu0 %1972
        %1974 = vrot.lane.b32.xlu0 %v1964, 16
        %v1975 = vpop.permute.xlu0 %1974
        %1976 = vrot.lane.b32.xlu0 %v1965, 16
        %v1977 = vpop.permute.xlu0 %1976
        %vm1982 = vcmask 195712
        %1983 = vst.msk [vmem:[#allocation2] sm:$0xff] %vm1982, %v1971
        %1984 = vst.msk [vmem:[#allocation2 + $0x8] sm:$0xff] %vm1982, %v1973
        %1985 = vst.msk [vmem:[#allocation2 + $0x10] sm:$0xff] %vm1982, %v1975
        %1986 = vst.msk [vmem:[#allocation2 + $0x18] sm:$0xff] %vm1982, %v1977
        %1987 = vrot.lane.b32.xlu0 %v547, 104
        %v1988 = vpop.permute.xlu0 %1987
        %1989 = vrot.lane.b32.xlu0 %v547, 72
        %v1990 = vpop.permute.xlu0 %1989
        %v1992 = vsel %vm554, %v1988, 0
        %v1995 = vsel %vm554, %v1990, 0
        %1997 = vmatprep.subr.bf16.mxu0 0
        %1998 = vmatpush1.bf16.xpose.msra.mxu0 %v1995
        %1999 = vmatprep.subr.bf16.mxu0 0
        %2000 = vmatpush1.bf16.xpose.msra.mxu0 0
        %2001 = vmatprep.subr.bf16.mxu0 0
        %2002 = vmatpush1.bf16.xpose.msra.mxu0 0
        %2003 = vmatprep.subr.bf16.mxu0 0
        %2004 = vmatpush1.bf16.xpose.msra.mxu0 0
        %2005 = vmatprep.subr.bf16.mxu0 0
        %2006 = vmatpush1.bf16.xpose.msra.mxu0 0
        %2007 = vmatprep.subr.bf16.mxu0 0
        %2008 = vmatpush1.bf16.xpose.msra.mxu0 0
        %2009 = vmatprep.subr.bf16.mxu0 0
        %2010 = vmatpush1.bf16.xpose.msra.mxu0 0
        %2011 = vmatprep.subr.bf16.mxu0 0
        %2012 = vmatpush1.bf16.xpose.msra.mxu0 0
        %2013 = vmatprep.subr.bf16.mxu0 0
        %2014 = vmatpush1.bf16.xpose.msra.mxu0 0
        %2015 = vmatprep.subr.bf16.mxu0 0
        %2016 = vmatpush1.bf16.xpose.msra.mxu0 0
        %2017 = vmatprep.subr.bf16.mxu0 0
        %2018 = vmatpush1.bf16.xpose.msra.mxu0 0
        %2019 = vmatprep.subr.bf16.mxu0 0
        %2020 = vmatpush1.bf16.xpose.msra.mxu0 0
        %2021 = vmatprep.subr.bf16.mxu0 0
        %2022 = vmatpush1.bf16.xpose.msra.mxu0 0
        %2023 = vmatprep.subr.bf16.mxu0 0
        %2024 = vmatpush1.bf16.xpose.msra.mxu0 0
        %2025 = vmatprep.subr.bf16.mxu0 0
        %2026 = vmatpush1.bf16.xpose.msra.mxu0 0
        %2027 = vmatprep.subr.bf16.mxu0 0
        %2028 = vmatpush1.bf16.xpose.msra.mxu0 0
        %2029 = vmatprep.mubr.bf16.mxu0 0
        %2030 = vmatmul.mubr.bf16.gmra.mrb[0].mxu0 %v1992
        %v2031 = vpop.f32.mrb[0].mxu0
        %v2032 = vadd.f32 0.0, %v2031
        %v2033 = vpop.f32.mrb[0].mxu0
        %v2034 = vpop.f32.mrb[0].mxu0
        %v2035 = vpop.f32.mrb[0].mxu0
        %2036 = vdwg.mxu0
        %2037 = vrot.lane.b32.xlu0 %v548, 104
        %v2038 = vpop.permute.xlu0 %2037
        %2039 = vrot.lane.b32.xlu0 %v548, 72
        %v2040 = vpop.permute.xlu0 %2039
        %v2042 = vsel %vm554, %v2038, 0
        %v2045 = vsel %vm554, %v2040, 0
        %2047 = vmatprep.subr.bf16.mxu0 0
        %2048 = vmatpush1.bf16.xpose.msra.mxu0 %v2045
        %2049 = vmatprep.subr.bf16.mxu0 0
        %2050 = vmatpush1.bf16.xpose.msra.mxu0 0
        %2051 = vmatprep.subr.bf16.mxu0 0
        %2052 = vmatpush1.bf16.xpose.msra.mxu0 0
        %2053 = vmatprep.subr.bf16.mxu0 0
        %2054 = vmatpush1.bf16.xpose.msra.mxu0 0
        %2055 = vmatprep.subr.bf16.mxu0 0
        %2056 = vmatpush1.bf16.xpose.msra.mxu0 0
        %2057 = vmatprep.subr.bf16.mxu0 0
        %2058 = vmatpush1.bf16.xpose.msra.mxu0 0
        %2059 = vmatprep.subr.bf16.mxu0 0
        %2060 = vmatpush1.bf16.xpose.msra.mxu0 0
        %2061 = vmatprep.subr.bf16.mxu0 0
        %2062 = vmatpush1.bf16.xpose.msra.mxu0 0
        %2063 = vmatprep.subr.bf16.mxu0 0
        %2064 = vmatpush1.bf16.xpose.msra.mxu0 0
        %2065 = vmatprep.subr.bf16.mxu0 0
        %2066 = vmatpush1.bf16.xpose.msra.mxu0 0
        %2067 = vmatprep.subr.bf16.mxu0 0
        %2068 = vmatpush1.bf16.xpose.msra.mxu0 0
        %2069 = vmatprep.subr.bf16.mxu0 0
        %2070 = vmatpush1.bf16.xpose.msra.mxu0 0
        %2071 = vmatprep.subr.bf16.mxu0 0
        %2072 = vmatpush1.bf16.xpose.msra.mxu0 0
        %2073 = vmatprep.subr.bf16.mxu0 0
        %2074 = vmatpush1.bf16.xpose.msra.mxu0 0
        %2075 = vmatprep.subr.bf16.mxu0 0
        %2076 = vmatpush1.bf16.xpose.msra.mxu0 0
        %2077 = vmatprep.subr.bf16.mxu0 0
        %2078 = vmatpush1.bf16.xpose.msra.mxu0 0
        %2079 = vmatprep.mubr.bf16.mxu0 0
        %2080 = vmatmul.mubr.bf16.gmra.mrb[0].mxu0 %v2042
        %v2081 = vpop.f32.mrb[0].mxu0
        %v2082 = vadd.f32 0.0, %v2081
        %v2083 = vpop.f32.mrb[0].mxu0
        %v2084 = vpop.f32.mrb[0].mxu0
        %v2085 = vpop.f32.mrb[0].mxu0
        %2086 = vdwg.mxu0
        %2087 = vrot.lane.b32.xlu0 %v549, 104
        %v2088 = vpop.permute.xlu0 %2087
        %2089 = vrot.lane.b32.xlu0 %v549, 72
        %v2090 = vpop.permute.xlu0 %2089
        %v2092 = vsel %vm554, %v2088, 0
        %v2095 = vsel %vm554, %v2090, 0
        %2097 = vmatprep.subr.bf16.mxu0 0
        %2098 = vmatpush1.bf16.xpose.msra.mxu0 %v2095
        %2099 = vmatprep.subr.bf16.mxu0 0
        %2100 = vmatpush1.bf16.xpose.msra.mxu0 0
        %2101 = vmatprep.subr.bf16.mxu0 0
        %2102 = vmatpush1.bf16.xpose.msra.mxu0 0
        %2103 = vmatprep.subr.bf16.mxu0 0
        %2104 = vmatpush1.bf16.xpose.msra.mxu0 0
        %2105 = vmatprep.subr.bf16.mxu0 0
        %2106 = vmatpush1.bf16.xpose.msra.mxu0 0
        %2107 = vmatprep.subr.bf16.mxu0 0
        %2108 = vmatpush1.bf16.xpose.msra.mxu0 0
        %2109 = vmatprep.subr.bf16.mxu0 0
        %2110 = vmatpush1.bf16.xpose.msra.mxu0 0
        %2111 = vmatprep.subr.bf16.mxu0 0
        %2112 = vmatpush1.bf16.xpose.msra.mxu0 0
        %2113 = vmatprep.subr.bf16.mxu0 0
        %2114 = vmatpush1.bf16.xpose.msra.mxu0 0
        %2115 = vmatprep.subr.bf16.mxu0 0
        %2116 = vmatpush1.bf16.xpose.msra.mxu0 0
        %2117 = vmatprep.subr.bf16.mxu0 0
        %2118 = vmatpush1.bf16.xpose.msra.mxu0 0
        %2119 = vmatprep.subr.bf16.mxu0 0
        %2120 = vmatpush1.bf16.xpose.msra.mxu0 0
        %2121 = vmatprep.subr.bf16.mxu0 0
        %2122 = vmatpush1.bf16.xpose.msra.mxu0 0
        %2123 = vmatprep.subr.bf16.mxu0 0
        %2124 = vmatpush1.bf16.xpose.msra.mxu0 0
        %2125 = vmatprep.subr.bf16.mxu0 0
        %2126 = vmatpush1.bf16.xpose.msra.mxu0 0
        %2127 = vmatprep.subr.bf16.mxu0 0
        %2128 = vmatpush1.bf16.xpose.msra.mxu0 0
        %2129 = vmatprep.mubr.bf16.mxu0 0
        %2130 = vmatmul.mubr.bf16.gmra.mrb[0].mxu0 %v2092
        %v2131 = vpop.f32.mrb[0].mxu0
        %v2132 = vadd.f32 0.0, %v2131
        %v2133 = vpop.f32.mrb[0].mxu0
        %v2134 = vpop.f32.mrb[0].mxu0
        %v2135 = vpop.f32.mrb[0].mxu0
        %2136 = vdwg.mxu0
        %2137 = vrot.lane.b32.xlu0 %v550, 104
        %v2138 = vpop.permute.xlu0 %2137
        %2139 = vrot.lane.b32.xlu0 %v550, 72
        %v2140 = vpop.permute.xlu0 %2139
        %v2142 = vsel %vm554, %v2138, 0
        %v2145 = vsel %vm554, %v2140, 0
        %2147 = vmatprep.subr.bf16.mxu0 0
        %2148 = vmatpush1.bf16.xpose.msra.mxu0 %v2145
        %2149 = vmatprep.subr.bf16.mxu0 0
        %2150 = vmatpush1.bf16.xpose.msra.mxu0 0
        %2151 = vmatprep.subr.bf16.mxu0 0
        %2152 = vmatpush1.bf16.xpose.msra.mxu0 0
        %2153 = vmatprep.subr.bf16.mxu0 0
        %2154 = vmatpush1.bf16.xpose.msra.mxu0 0
        %2155 = vmatprep.subr.bf16.mxu0 0
        %2156 = vmatpush1.bf16.xpose.msra.mxu0 0
        %2157 = vmatprep.subr.bf16.mxu0 0
        %2158 = vmatpush1.bf16.xpose.msra.mxu0 0
        %2159 = vmatprep.subr.bf16.mxu0 0
        %2160 = vmatpush1.bf16.xpose.msra.mxu0 0
        %2161 = vmatprep.subr.bf16.mxu0 0
        %2162 = vmatpush1.bf16.xpose.msra.mxu0 0
        %2163 = vmatprep.subr.bf16.mxu0 0
        %2164 = vmatpush1.bf16.xpose.msra.mxu0 0
        %2165 = vmatprep.subr.bf16.mxu0 0
        %2166 = vmatpush1.bf16.xpose.msra.mxu0 0
        %2167 = vmatprep.subr.bf16.mxu0 0
        %2168 = vmatpush1.bf16.xpose.msra.mxu0 0
        %2169 = vmatprep.subr.bf16.mxu0 0
        %2170 = vmatpush1.bf16.xpose.msra.mxu0 0
        %2171 = vmatprep.subr.bf16.mxu0 0
        %2172 = vmatpush1.bf16.xpose.msra.mxu0 0
        %2173 = vmatprep.subr.bf16.mxu0 0
        %2174 = vmatpush1.bf16.xpose.msra.mxu0 0
        %2175 = vmatprep.subr.bf16.mxu0 0
        %2176 = vmatpush1.bf16.xpose.msra.mxu0 0
        %2177 = vmatprep.subr.bf16.mxu0 0
        %2178 = vmatpush1.bf16.xpose.msra.mxu0 0
        %2179 = vmatprep.mubr.bf16.mxu0 0
        %2180 = vmatmul.mubr.bf16.gmra.mrb[0].mxu0 %v2142
        %v2181 = vpop.f32.mrb[0].mxu0
        %v2182 = vadd.f32 0.0, %v2181
        %v2183 = vpop.f32.mrb[0].mxu0
        %v2184 = vpop.f32.mrb[0].mxu0
        %v2185 = vpop.f32.mrb[0].mxu0
        %2186 = vdwg.mxu0
        %v2187 = vsel %vm554, %v2032, -inf
        %2188 = vmax.xlane.f32.xlu0 %v2187
        %v2189 = vpop.xlane.xlu0 %2188
        %v2190 = vsel %vm554, %v2082, -inf
        %2191 = vmax.xlane.f32.xlu0 %v2190
        %v2192 = vpop.xlane.xlu0 %2191
        %v2193 = vsel %vm554, %v2132, -inf
        %2194 = vmax.xlane.f32.xlu0 %v2193
        %v2195 = vpop.xlane.xlu0 %2194
        %v2196 = vsel %vm554, %v2182, -inf
        %2197 = vmax.xlane.f32.xlu0 %v2196
        %v2198 = vpop.xlane.xlu0 %2197
        %v2199 = vsub.f32 -inf, %v2189
        %v2200 = vsub.f32 -inf, %v2192
        %v2201 = vsub.f32 -inf, %v2195
        %v2202 = vsub.f32 -inf, %v2198
        %v2203 = vmul.f32 %v2199, 1.442695
        %v2204 = vpow.pop %v2203
        %v2205 = vmul.f32 %v2200, 1.442695
        %v2206 = vpow.pop %v2205
        %v2207 = vmul.f32 %v2201, 1.442695
        %v2208 = vpow.pop %v2207
        %v2209 = vmul.f32 %v2202, 1.442695
        %v2210 = vpow.pop %v2209
        %v2211 = vsub.f32 %v2032, %v2189
        %v2212 = vsub.f32 %v2082, %v2192
        %v2213 = vsub.f32 %v2132, %v2195
        %v2214 = vsub.f32 %v2182, %v2198
        %v2215 = vmul.f32 %v2211, 1.442695
        %v2216 = vpow.pop %v2215
        %v2217 = vmul.f32 %v2212, 1.442695
        %v2218 = vpow.pop %v2217
        %v2219 = vmul.f32 %v2213, 1.442695
        %v2220 = vpow.pop %v2219
        %v2221 = vmul.f32 %v2214, 1.442695
        %v2222 = vpow.pop %v2221
        %v2223 = vmul.f32 %v2204, 0.0
        %v2224 = vmul.f32 %v2206, 0.0
        %v2225 = vmul.f32 %v2208, 0.0
        %v2226 = vmul.f32 %v2210, 0.0
        %v2227 = vsel %vm554, %v2216, 0.0
        %2228 = vadd.xlane.f32.xlu0 %v2227
        %v2229 = vpop.xlane.xlu0 %2228
        %v2230 = vsel %vm554, %v2218, 0.0
        %2231 = vadd.xlane.f32.xlu0 %v2230
        %v2232 = vpop.xlane.xlu0 %2231
        %v2233 = vsel %vm554, %v2220, 0.0
        %2234 = vadd.xlane.f32.xlu0 %v2233
        %v2235 = vpop.xlane.xlu0 %2234
        %v2236 = vsel %vm554, %v2222, 0.0
        %2237 = vadd.xlane.f32.xlu0 %v2236
        %v2238 = vpop.xlane.xlu0 %2237
        %v2239 = vadd.f32 %v2223, %v2229
        %v2240 = vadd.f32 %v2224, %v2232
        %v2241 = vadd.f32 %v2225, %v2235
        %v2242 = vadd.f32 %v2226, %v2238
        %v2243 = vpack.c.bf16 %v2216, %v2216
        %v2244 = vpack.c.bf16 %v2218, %v2218
        %v2245 = vpack.c.bf16 %v2220, %v2220
        %v2246 = vpack.c.bf16 %v2222, %v2222
        %2247 = vrot.lane.b32.xlu0 %v547, 40
        %v2248 = vpop.permute.xlu0 %2247
        %v2250 = vsel %vm554, %v2243, 0
        %v2253 = vsel %vm813, %v2248, 0
        %2255 = vmatprep.subr.bf16.mxu0 0
        %2256 = vmatpush1.bf16.msra.mxu0 %v2253
        %2257 = vmatprep.subr.bf16.mxu0 0
        %2258 = vmatpush1.bf16.msra.mxu0 0
        %2259 = vmatprep.subr.bf16.mxu0 0
        %2260 = vmatpush1.bf16.msra.mxu0 0
        %2261 = vmatprep.subr.bf16.mxu0 0
        %2262 = vmatpush1.bf16.msra.mxu0 0
        %2263 = vmatprep.subr.bf16.mxu0 0
        %2264 = vmatpush1.bf16.msra.mxu0 0
        %2265 = vmatprep.subr.bf16.mxu0 0
        %2266 = vmatpush1.bf16.msra.mxu0 0
        %2267 = vmatprep.subr.bf16.mxu0 0
        %2268 = vmatpush1.bf16.msra.mxu0 0
        %2269 = vmatprep.subr.bf16.mxu0 0
        %2270 = vmatpush1.bf16.msra.mxu0 0
        %2271 = vmatprep.subr.bf16.mxu0 0
        %2272 = vmatpush1.bf16.msra.mxu0 0
        %2273 = vmatprep.subr.bf16.mxu0 0
        %2274 = vmatpush1.bf16.msra.mxu0 0
        %2275 = vmatprep.subr.bf16.mxu0 0
        %2276 = vmatpush1.bf16.msra.mxu0 0
        %2277 = vmatprep.subr.bf16.mxu0 0
        %2278 = vmatpush1.bf16.msra.mxu0 0
        %2279 = vmatprep.subr.bf16.mxu0 0
        %2280 = vmatpush1.bf16.msra.mxu0 0
        %2281 = vmatprep.subr.bf16.mxu0 0
        %2282 = vmatpush1.bf16.msra.mxu0 0
        %2283 = vmatprep.subr.bf16.mxu0 0
        %2284 = vmatpush1.bf16.msra.mxu0 0
        %2285 = vmatprep.subr.bf16.mxu0 0
        %2286 = vmatpush1.bf16.msra.mxu0 0
        %2287 = vmatprep.mubr.bf16.mxu0 0
        %2288 = vmatmul.mubr.bf16.gmra.mrb[0].mxu0 %v2250
        %v2289 = vpop.f32.mrb[0].mxu0
        %v2290 = vadd.f32 0.0, %v2289
        %v2291 = vpop.f32.mrb[0].mxu0
        %v2292 = vpop.f32.mrb[0].mxu0
        %v2293 = vpop.f32.mrb[0].mxu0
        %2294 = vdwg.mxu0
        %2295 = vrot.lane.b32.xlu0 %v548, 40
        %v2296 = vpop.permute.xlu0 %2295
        %v2298 = vsel %vm554, %v2244, 0
        %v2301 = vsel %vm813, %v2296, 0
        %2303 = vmatprep.subr.bf16.mxu0 0
        %2304 = vmatpush1.bf16.msra.mxu0 %v2301
        %2305 = vmatprep.subr.bf16.mxu0 0
        %2306 = vmatpush1.bf16.msra.mxu0 0
        %2307 = vmatprep.subr.bf16.mxu0 0
        %2308 = vmatpush1.bf16.msra.mxu0 0
        %2309 = vmatprep.subr.bf16.mxu0 0
        %2310 = vmatpush1.bf16.msra.mxu0 0
        %2311 = vmatprep.subr.bf16.mxu0 0
        %2312 = vmatpush1.bf16.msra.mxu0 0
        %2313 = vmatprep.subr.bf16.mxu0 0
        %2314 = vmatpush1.bf16.msra.mxu0 0
        %2315 = vmatprep.subr.bf16.mxu0 0
        %2316 = vmatpush1.bf16.msra.mxu0 0
        %2317 = vmatprep.subr.bf16.mxu0 0
        %2318 = vmatpush1.bf16.msra.mxu0 0
        %2319 = vmatprep.subr.bf16.mxu0 0
        %2320 = vmatpush1.bf16.msra.mxu0 0
        %2321 = vmatprep.subr.bf16.mxu0 0
        %2322 = vmatpush1.bf16.msra.mxu0 0
        %2323 = vmatprep.subr.bf16.mxu0 0
        %2324 = vmatpush1.bf16.msra.mxu0 0
        %2325 = vmatprep.subr.bf16.mxu0 0
        %2326 = vmatpush1.bf16.msra.mxu0 0
        %2327 = vmatprep.subr.bf16.mxu0 0
        %2328 = vmatpush1.bf16.msra.mxu0 0
        %2329 = vmatprep.subr.bf16.mxu0 0
        %2330 = vmatpush1.bf16.msra.mxu0 0
        %2331 = vmatprep.subr.bf16.mxu0 0
        %2332 = vmatpush1.bf16.msra.mxu0 0
        %2333 = vmatprep.subr.bf16.mxu0 0
        %2334 = vmatpush1.bf16.msra.mxu0 0
        %2335 = vmatprep.mubr.bf16.mxu0 0
        %2336 = vmatmul.mubr.bf16.gmra.mrb[0].mxu0 %v2298
        %v2337 = vpop.f32.mrb[0].mxu0
        %v2338 = vadd.f32 0.0, %v2337
        %v2339 = vpop.f32.mrb[0].mxu0
        %v2340 = vpop.f32.mrb[0].mxu0
        %v2341 = vpop.f32.mrb[0].mxu0
        %2342 = vdwg.mxu0
        %2343 = vrot.lane.b32.xlu0 %v549, 40
        %v2344 = vpop.permute.xlu0 %2343
        %v2346 = vsel %vm554, %v2245, 0
        %v2349 = vsel %vm813, %v2344, 0
        %2351 = vmatprep.subr.bf16.mxu0 0
        %2352 = vmatpush1.bf16.msra.mxu0 %v2349
        %2353 = vmatprep.subr.bf16.mxu0 0
        %2354 = vmatpush1.bf16.msra.mxu0 0
        %2355 = vmatprep.subr.bf16.mxu0 0
        %2356 = vmatpush1.bf16.msra.mxu0 0
        %2357 = vmatprep.subr.bf16.mxu0 0
        %2358 = vmatpush1.bf16.msra.mxu0 0
        %2359 = vmatprep.subr.bf16.mxu0 0
        %2360 = vmatpush1.bf16.msra.mxu0 0
        %2361 = vmatprep.subr.bf16.mxu0 0
        %2362 = vmatpush1.bf16.msra.mxu0 0
        %2363 = vmatprep.subr.bf16.mxu0 0
        %2364 = vmatpush1.bf16.msra.mxu0 0
        %2365 = vmatprep.subr.bf16.mxu0 0
        %2366 = vmatpush1.bf16.msra.mxu0 0
        %2367 = vmatprep.subr.bf16.mxu0 0
        %2368 = vmatpush1.bf16.msra.mxu0 0
        %2369 = vmatprep.subr.bf16.mxu0 0
        %2370 = vmatpush1.bf16.msra.mxu0 0
        %2371 = vmatprep.subr.bf16.mxu0 0
        %2372 = vmatpush1.bf16.msra.mxu0 0
        %2373 = vmatprep.subr.bf16.mxu0 0
        %2374 = vmatpush1.bf16.msra.mxu0 0
        %2375 = vmatprep.subr.bf16.mxu0 0
        %2376 = vmatpush1.bf16.msra.mxu0 0
        %2377 = vmatprep.subr.bf16.mxu0 0
        %2378 = vmatpush1.bf16.msra.mxu0 0
        %2379 = vmatprep.subr.bf16.mxu0 0
        %2380 = vmatpush1.bf16.msra.mxu0 0
        %2381 = vmatprep.subr.bf16.mxu0 0
        %2382 = vmatpush1.bf16.msra.mxu0 0
        %2383 = vmatprep.mubr.bf16.mxu0 0
        %2384 = vmatmul.mubr.bf16.gmra.mrb[0].mxu0 %v2346
        %v2385 = vpop.f32.mrb[0].mxu0
        %v2386 = vadd.f32 0.0, %v2385
        %v2387 = vpop.f32.mrb[0].mxu0
        %v2388 = vpop.f32.mrb[0].mxu0
        %v2389 = vpop.f32.mrb[0].mxu0
        %2390 = vdwg.mxu0
        %2391 = vrot.lane.b32.xlu0 %v550, 40
        %v2392 = vpop.permute.xlu0 %2391
        %v2394 = vsel %vm554, %v2246, 0
        %v2397 = vsel %vm813, %v2392, 0
        %2399 = vmatprep.subr.bf16.mxu0 0
        %2400 = vmatpush1.bf16.msra.mxu0 %v2397
        %2401 = vmatprep.subr.bf16.mxu0 0
        %2402 = vmatpush1.bf16.msra.mxu0 0
        %2403 = vmatprep.subr.bf16.mxu0 0
        %2404 = vmatpush1.bf16.msra.mxu0 0
        %2405 = vmatprep.subr.bf16.mxu0 0
        %2406 = vmatpush1.bf16.msra.mxu0 0
        %2407 = vmatprep.subr.bf16.mxu0 0
        %2408 = vmatpush1.bf16.msra.mxu0 0
        %2409 = vmatprep.subr.bf16.mxu0 0
        %2410 = vmatpush1.bf16.msra.mxu0 0
        %2411 = vmatprep.subr.bf16.mxu0 0
        %2412 = vmatpush1.bf16.msra.mxu0 0
        %2413 = vmatprep.subr.bf16.mxu0 0
        %2414 = vmatpush1.bf16.msra.mxu0 0
        %2415 = vmatprep.subr.bf16.mxu0 0
        %2416 = vmatpush1.bf16.msra.mxu0 0
        %2417 = vmatprep.subr.bf16.mxu0 0
        %2418 = vmatpush1.bf16.msra.mxu0 0
        %2419 = vmatprep.subr.bf16.mxu0 0
        %2420 = vmatpush1.bf16.msra.mxu0 0
        %2421 = vmatprep.subr.bf16.mxu0 0
        %2422 = vmatpush1.bf16.msra.mxu0 0
        %2423 = vmatprep.subr.bf16.mxu0 0
        %2424 = vmatpush1.bf16.msra.mxu0 0
        %2425 = vmatprep.subr.bf16.mxu0 0
        %2426 = vmatpush1.bf16.msra.mxu0 0
        %2427 = vmatprep.subr.bf16.mxu0 0
        %2428 = vmatpush1.bf16.msra.mxu0 0
        %2429 = vmatprep.subr.bf16.mxu0 0
        %2430 = vmatpush1.bf16.msra.mxu0 0
        %2431 = vmatprep.mubr.bf16.mxu0 0
        %2432 = vmatmul.mubr.bf16.gmra.mrb[0].mxu0 %v2394
        %v2433 = vpop.f32.mrb[0].mxu0
        %v2434 = vadd.f32 0.0, %v2433
        %v2435 = vpop.f32.mrb[0].mxu0
        %v2436 = vpop.f32.mrb[0].mxu0
        %v2437 = vpop.f32.mrb[0].mxu0
        %2438 = vdwg.mxu0
        %v2439 = vadd.f32 %v2223, %v2290
        %v2440 = vadd.f32 %v2224, %v2338
        %v2441 = vadd.f32 %v2225, %v2386
        %v2442 = vadd.f32 %v2226, %v2434
        %v2443 = vrcp.pop %v2239
        %v2444 = vrcp.pop %v2240
        %v2445 = vrcp.pop %v2241
        %v2446 = vrcp.pop %v2242
        %v2447 = vmul.f32 %v2439, %v2443
        %v2448 = vmul.f32 %v2440, %v2444
        %v2449 = vmul.f32 %v2441, %v2445
        %v2450 = vmul.f32 %v2442, %v2446
        %2455 = vrot.lane.b32.xlu0 %v2447, 24
        %v2456 = vpop.permute.xlu0 %2455
        %2457 = vrot.lane.b32.xlu0 %v2448, 24
        %v2458 = vpop.permute.xlu0 %2457
        %2459 = vrot.lane.b32.xlu0 %v2449, 24
        %v2460 = vpop.permute.xlu0 %2459
        %2461 = vrot.lane.b32.xlu0 %v2450, 24
        %v2462 = vpop.permute.xlu0 %2461
        %vm2467 = vcmask 261312
        %2468 = vst.msk [vmem:[#allocation2] sm:$0xff] %vm2467, %v2456
        %2469 = vst.msk [vmem:[#allocation2 + $0x8] sm:$0xff] %vm2467, %v2458
        %2470 = vst.msk [vmem:[#allocation2 + $0x10] sm:$0xff] %vm2467, %v2460
        %2471 = vst.msk [vmem:[#allocation2 + $0x18] sm:$0xff] %vm2467, %v2462
        %v2472 = vld [vmem:[#allocation2] sm:$0xff]
        %v2473 = vld [vmem:[#allocation2 + $0x8] sm:$0xff]
        %v2474 = vld [vmem:[#allocation2 + $0x10] sm:$0xff]
        %v2475 = vld [vmem:[#allocation2 + $0x18] sm:$0xff]
        %v2476 = vpack.c.bf16 %v2473, %v2472
        %v2477 = vpack.c.bf16 %v2475, %v2474
        %v2478 = vld [vmem:[%s3] sm:$0xf]
        %v2479 = vld [vmem:[%s3 + $0x4] sm:$0xf]
        %v2480 = vld [vmem:[%s3 + $0x8] sm:$0xf]
        %v2481 = vld [vmem:[%s3 + $0xc] sm:$0xf]
        %v2482 = vld [vmem:[%s4] sm:$0x1]
        %v2484 = vlaneseq
        %v2485 = vshrl.u32 %v2484, 7
        %v2486 = vsub.s32 0, %v2485
        %v2487 = vrot.slane %v2482, %v2486
        %v2493 = vunpack.c.l.b16 %v2478
        %v2494 = vunpack.c.l.b16 %v2479
        %v2495 = vunpack.c.l.b16 %v2480
        %v2496 = vunpack.c.l.b16 %v2481
        %v2497 = vpack.c.b16 %v2494, %v2493
        %v2498 = vpack.c.b16 %v2496, %v2495
        %v2502 = vsel %vm491, %v2476, 0
        %v2505 = vsel %vm491, %v2477, 0
        %2507 = vmatprep.subr.bf16.mxu0 0
        %2508 = vmatpush1.bf16.msra.mxu0 %v2497
        %2509 = vmatprep.subr.bf16.mxu0 0
        %2510 = vmatpush1.bf16.msra.mxu0 %v2498
        %2511 = vmatprep.subr.bf16.mxu0 0
        %2512 = vmatpush1.bf16.msra.mxu0 0
        %2513 = vmatprep.subr.bf16.mxu0 0
        %2514 = vmatpush1.bf16.msra.mxu0 0
        %2515 = vmatprep.subr.bf16.mxu0 0
        %2516 = vmatpush1.bf16.msra.mxu0 0
        %2517 = vmatprep.subr.bf16.mxu0 0
        %2518 = vmatpush1.bf16.msra.mxu0 0
        %2519 = vmatprep.subr.bf16.mxu0 0
        %2520 = vmatpush1.bf16.msra.mxu0 0
        %2521 = vmatprep.subr.bf16.mxu0 0
        %2522 = vmatpush1.bf16.msra.mxu0 0
        %2523 = vmatprep.subr.bf16.mxu0 0
        %2524 = vmatpush1.bf16.msra.mxu0 0
        %2525 = vmatprep.subr.bf16.mxu0 0
        %2526 = vmatpush1.bf16.msra.mxu0 0
        %2527 = vmatprep.subr.bf16.mxu0 0
        %2528 = vmatpush1.bf16.msra.mxu0 0
        %2529 = vmatprep.subr.bf16.mxu0 0
        %2530 = vmatpush1.bf16.msra.mxu0 0
        %2531 = vmatprep.subr.bf16.mxu0 0
        %2532 = vmatpush1.bf16.msra.mxu0 0
        %2533 = vmatprep.subr.bf16.mxu0 0
        %2534 = vmatpush1.bf16.msra.mxu0 0
        %2535 = vmatprep.subr.bf16.mxu0 0
        %2536 = vmatpush1.bf16.msra.mxu0 0
        %2537 = vmatprep.subr.bf16.mxu0 0
        %2538 = vmatpush1.bf16.msra.mxu0 0
        %2539 = vmatprep.mubr.bf16.mxu0 0
        %2540 = vmatmul.mubr.bf16.gmra.mrb[0].mxu0 %v2502
        %v2541 = vpop.f32.mrb[0].mxu0
        %v2542 = vadd.f32 %v2487, %v2541
        %v2543 = vpop.f32.mrb[0].mxu0
        %v2544 = vpop.f32.mrb[0].mxu0
        %v2545 = vadd.f32 %v2487, %v2544
        %v2546 = vpop.f32.mrb[0].mxu0
        %2547 = vmatprep.mubr.bf16.mxu0 0
        %2548 = vmatmul.mubr.bf16.gmra.mrb[0].mxu0 %v2505
        %v2549 = vpop.f32.mrb[0].mxu0
        %v2550 = vadd.f32 %v2487, %v2549
        %v2551 = vpop.f32.mrb[0].mxu0
        %v2552 = vpop.f32.mrb[0].mxu0
        %v2553 = vadd.f32 %v2487, %v2552
        %v2554 = vpop.f32.mrb[0].mxu0
        %2555 = vdwg.mxu0
        %v2556 = vadd.f32 %v462, %v2542
        %v2557 = vadd.f32 %v463, %v2545
        %v2558 = vadd.f32 %v464, %v2550
        %v2559 = vadd.f32 %v465, %v2553
        %v2560 = vsel %vm491, %v2556, 0.0
        %2561 = vadd.xlane.f32.xlu0 %v2560
        %v2562 = vpop.xlane.xlu0 %2561
        %v2563 = vsel %vm491, %v2557, 0.0
        %2564 = vadd.xlane.f32.xlu0 %v2563
        %v2565 = vpop.xlane.xlu0 %2564
        %v2566 = vsel %vm491, %v2558, 0.0
        %2567 = vadd.xlane.f32.xlu0 %v2566
        %v2568 = vpop.xlane.xlu0 %2567
        %v2569 = vsel %vm491, %v2559, 0.0
        %2570 = vadd.xlane.f32.xlu0 %v2569
        %v2571 = vpop.xlane.xlu0 %2570
        %v2572 = vrcp.pop 32.0
        %v2573 = vmul.f32 %v2562, %v2572
        %v2574 = vmul.f32 %v2565, %v2572
        %v2575 = vmul.f32 %v2568, %v2572
        %v2576 = vmul.f32 %v2571, %v2572
        %v2577 = vsub.f32 %v2556, %v2573
        %v2578 = vsub.f32 %v2557, %v2574
        %v2579 = vsub.f32 %v2558, %v2575
        %v2580 = vsub.f32 %v2559, %v2576
        %v2581 = vmul.f32 %v2577, %v2577
        %v2582 = vmul.f32 %v2578, %v2578
        %v2583 = vmul.f32 %v2579, %v2579
        %v2584 = vmul.f32 %v2580, %v2580
        %v2585 = vsel %vm491, %v2581, 0.0
        %2586 = vadd.xlane.f32.xlu0 %v2585
        %v2587 = vpop.xlane.xlu0 %2586
        %v2588 = vsel %vm491, %v2582, 0.0
        %2589 = vadd.xlane.f32.xlu0 %v2588
        %v2590 = vpop.xlane.xlu0 %2589
        %v2591 = vsel %vm491, %v2583, 0.0
        %2592 = vadd.xlane.f32.xlu0 %v2591
        %v2593 = vpop.xlane.xlu0 %2592
        %v2594 = vsel %vm491, %v2584, 0.0
        %2595 = vadd.xlane.f32.xlu0 %v2594
        %v2596 = vpop.xlane.xlu0 %2595
        %v2597 = vmul.f32 %v2587, %v2572
        %v2598 = vmul.f32 %v2590, %v2572
        %v2599 = vmul.f32 %v2593, %v2572
        %v2600 = vmul.f32 %v2596, %v2572
        %v2601 = vadd.f32 %v2597, 1e-05
        %v2602 = vadd.f32 %v2598, 1e-05
        %v2603 = vadd.f32 %v2599, 1e-05
        %v2604 = vadd.f32 %v2600, 1e-05
        %v2605 = vrsqrt.pop %v2601
        %v2606 = vrsqrt.pop %v2602
        %v2607 = vrsqrt.pop %v2603
        %v2608 = vrsqrt.pop %v2604
        %v2609 = vmul.f32 %v2577, %v2605
        %v2610 = vmul.f32 %v2578, %v2606
        %v2611 = vmul.f32 %v2579, %v2607
        %v2612 = vmul.f32 %v2580, %v2608
        %v2613 = vld [vmem:[%s9] sm:$0x1]
        %v2615 = vlaneseq
        %v2616 = vshrl.u32 %v2615, 7
        %v2617 = vsub.s32 0, %v2616
        %v2618 = vrot.slane %v2613, %v2617
        %v2620 = vmul.f32 %v2609, %v2618
        %v2621 = vmul.f32 %v2610, %v2618
        %v2622 = vmul.f32 %v2611, %v2618
        %v2623 = vmul.f32 %v2612, %v2618
        %v2624 = vld [vmem:[%s10] sm:$0x1]
        %v2626 = vlaneseq
        %v2627 = vshrl.u32 %v2626, 7
        %v2628 = vsub.s32 0, %v2627
        %v2629 = vrot.slane %v2624, %v2628
        %v2631 = vadd.f32 %v2620, %v2629
        %v2632 = vadd.f32 %v2621, %v2629
        %v2633 = vadd.f32 %v2622, %v2629
        %v2634 = vadd.f32 %v2623, %v2629
        %v2635 = vpack.c.bf16 %v2632, %v2631
        %v2636 = vpack.c.bf16 %v2634, %v2633
        %2637 = vst.msk [vmem:[#allocation3] sm:$0xff] %vm491, 0.0
        %2638 = vst.msk [vmem:[#allocation3 + $0x8] sm:$0xff] %vm491, 0.0
        %2639 = vst.msk [vmem:[#allocation3 + $0x10] sm:$0xff] %vm491, 0.0
        %2640 = vst.msk [vmem:[#allocation3 + $0x18] sm:$0xff] %vm491, 0.0
        %v2641 = vld [vmem:[%s5] sm:$0xf]
        %v2642 = vld [vmem:[%s5 + $0x4] sm:$0xf]
        %v2643 = vld [vmem:[%s5 + $0x8] sm:$0xf]
        %v2644 = vld [vmem:[%s5 + $0xc] sm:$0xf]
        %v2645 = vld [vmem:[%s6] sm:$0x1]
        %v2647 = vlaneseq
        %v2648 = vshrl.u32 %v2647, 7
        %v2649 = vsub.s32 0, %v2648
        %v2650 = vrot.slane %v2645, %v2649
        %v2656 = vunpack.c.l.b16 %v2641
        %v2657 = vunpack.c.l.b16 %v2642
        %v2658 = vunpack.c.l.b16 %v2643
        %v2659 = vunpack.c.l.b16 %v2644
        %v2660 = vpack.c.b16 %v2657, %v2656
        %v2661 = vpack.c.b16 %v2659, %v2658
        %v2665 = vsel %vm491, %v2635, 0
        %v2668 = vsel %vm491, %v2636, 0
        %2670 = vmatprep.subr.bf16.mxu0 0
        %2671 = vmatpush1.bf16.msra.mxu0 %v2660
        %2672 = vmatprep.subr.bf16.mxu0 0
        %2673 = vmatpush1.bf16.msra.mxu0 %v2661
        %2674 = vmatprep.subr.bf16.mxu0 0
        %2675 = vmatpush1.bf16.msra.mxu0 0
        %2676 = vmatprep.subr.bf16.mxu0 0
        %2677 = vmatpush1.bf16.msra.mxu0 0
        %2678 = vmatprep.subr.bf16.mxu0 0
        %2679 = vmatpush1.bf16.msra.mxu0 0
        %2680 = vmatprep.subr.bf16.mxu0 0
        %2681 = vmatpush1.bf16.msra.mxu0 0
        %2682 = vmatprep.subr.bf16.mxu0 0
        %2683 = vmatpush1.bf16.msra.mxu0 0
        %2684 = vmatprep.subr.bf16.mxu0 0
        %2685 = vmatpush1.bf16.msra.mxu0 0
        %2686 = vmatprep.subr.bf16.mxu0 0
        %2687 = vmatpush1.bf16.msra.mxu0 0
        %2688 = vmatprep.subr.bf16.mxu0 0
        %2689 = vmatpush1.bf16.msra.mxu0 0
        %2690 = vmatprep.subr.bf16.mxu0 0
        %2691 = vmatpush1.bf16.msra.mxu0 0
        %2692 = vmatprep.subr.bf16.mxu0 0
        %2693 = vmatpush1.bf16.msra.mxu0 0
        %2694 = vmatprep.subr.bf16.mxu0 0
        %2695 = vmatpush1.bf16.msra.mxu0 0
        %2696 = vmatprep.subr.bf16.mxu0 0
        %2697 = vmatpush1.bf16.msra.mxu0 0
        %2698 = vmatprep.subr.bf16.mxu0 0
        %2699 = vmatpush1.bf16.msra.mxu0 0
        %2700 = vmatprep.subr.bf16.mxu0 0
        %2701 = vmatpush1.bf16.msra.mxu0 0
        %2702 = vmatprep.mubr.bf16.mxu0 0
        %2703 = vmatmul.mubr.bf16.gmra.mrb[0].mxu0 %v2665
        %v2704 = vpop.f32.mrb[0].mxu0
        %v2705 = vadd.f32 %v2650, %v2704
        %v2706 = vpop.f32.mrb[0].mxu0
        %v2707 = vpop.f32.mrb[0].mxu0
        %v2708 = vadd.f32 %v2650, %v2707
        %v2709 = vpop.f32.mrb[0].mxu0
        %2710 = vmatprep.mubr.bf16.mxu0 0
        %2711 = vmatmul.mubr.bf16.gmra.mrb[0].mxu0 %v2668
        %v2712 = vpop.f32.mrb[0].mxu0
        %v2713 = vadd.f32 %v2650, %v2712
        %v2714 = vpop.f32.mrb[0].mxu0
        %v2715 = vpop.f32.mrb[0].mxu0
        %v2716 = vadd.f32 %v2650, %v2715
        %v2717 = vpop.f32.mrb[0].mxu0
        %2718 = vdwg.mxu0
        %v2719 = vmax.f32 %v2705, 0.0
        %v2720 = vmax.f32 %v2708, 0.0
        %v2721 = vmax.f32 %v2713, 0.0
        %v2722 = vmax.f32 %v2716, 0.0
        %v2723 = vpack.c.bf16 %v2720, %v2719
        %v2724 = vpack.c.bf16 %v2722, %v2721
        %v2725 = vld [vmem:[#allocation3] sm:$0xff]
        %v2726 = vld [vmem:[#allocation3 + $0x8] sm:$0xff]
        %v2727 = vld [vmem:[#allocation3 + $0x10] sm:$0xff]
        %v2728 = vld [vmem:[#allocation3 + $0x18] sm:$0xff]
        %v2729 = vld [vmem:[%s7] sm:$0xf]
        %v2730 = vld [vmem:[%s7 + $0x4] sm:$0xf]
        %v2731 = vld [vmem:[%s7 + $0x8] sm:$0xf]
        %v2732 = vld [vmem:[%s7 + $0xc] sm:$0xf]
        %v2733 = vld [vmem:[%s7 + $0x10] sm:$0xf]
        %v2734 = vld [vmem:[%s7 + $0x14] sm:$0xf]
        %v2735 = vld [vmem:[%s7 + $0x18] sm:$0xf]
        %v2736 = vld [vmem:[%s7 + $0x1c] sm:$0xf]
        %v2745 = vunpack.c.l.b16 %v2729
        %v2746 = vunpack.c.l.b16 %v2730
        %v2747 = vunpack.c.l.b16 %v2731
        %v2748 = vunpack.c.l.b16 %v2732
        %v2749 = vunpack.c.l.b16 %v2733
        %v2750 = vunpack.c.l.b16 %v2734
        %v2751 = vunpack.c.l.b16 %v2735
        %v2752 = vunpack.c.l.b16 %v2736
        %v2753 = vpack.c.b16 %v2746, %v2745
        %v2754 = vpack.c.b16 %v2748, %v2747
        %v2755 = vpack.c.b16 %v2750, %v2749
        %v2756 = vpack.c.b16 %v2752, %v2751
        %vm2761 = vcmask 523264
        %v2763 = vsel %vm2761, %v2723, 0
        %v2766 = vsel %vm2761, %v2724, 0
        %2768 = vmatprep.subr.bf16.mxu0 0
        %2769 = vmatpush1.bf16.msra.mxu0 %v2753
        %2770 = vmatprep.subr.bf16.mxu0 0
        %2771 = vmatpush1.bf16.msra.mxu0 %v2754
        %2772 = vmatprep.subr.bf16.mxu0 0
        %2773 = vmatpush1.bf16.msra.mxu0 %v2755
        %2774 = vmatprep.subr.bf16.mxu0 0
        %2775 = vmatpush1.bf16.msra.mxu0 %v2756
        %2776 = vmatprep.subr.bf16.mxu0 0
        %2777 = vmatpush1.bf16.msra.mxu0 0
        %2778 = vmatprep.subr.bf16.mxu0 0
        %2779 = vmatpush1.bf16.msra.mxu0 0
        %2780 = vmatprep.subr.bf16.mxu0 0
        %2781 = vmatpush1.bf16.msra.mxu0 0
        %2782 = vmatprep.subr.bf16.mxu0 0
        %2783 = vmatpush1.bf16.msra.mxu0 0
        %2784 = vmatprep.subr.bf16.mxu0 0
        %2785 = vmatpush1.bf16.msra.mxu0 0
        %2786 = vmatprep.subr.bf16.mxu0 0
        %2787 = vmatpush1.bf16.msra.mxu0 0
        %2788 = vmatprep.subr.bf16.mxu0 0
        %2789 = vmatpush1.bf16.msra.mxu0 0
        %2790 = vmatprep.subr.bf16.mxu0 0
        %2791 = vmatpush1.bf16.msra.mxu0 0
        %2792 = vmatprep.subr.bf16.mxu0 0
        %2793 = vmatpush1.bf16.msra.mxu0 0
        %2794 = vmatprep.subr.bf16.mxu0 0
        %2795 = vmatpush1.bf16.msra.mxu0 0
        %2796 = vmatprep.subr.bf16.mxu0 0
        %2797 = vmatpush1.bf16.msra.mxu0 0
        %2798 = vmatprep.subr.bf16.mxu0 0
        %2799 = vmatpush1.bf16.msra.mxu0 0
        %2800 = vmatprep.mubr.bf16.mxu0 0
        %2801 = vmatmul.mubr.bf16.gmra.mrb[0].mxu0 %v2763
        %v2802 = vpop.f32.mrb[0].mxu0
        %v2803 = vadd.f32 0.0, %v2802
        %v2804 = vpop.f32.mrb[0].mxu0
        %v2805 = vpop.f32.mrb[0].mxu0
        %v2806 = vadd.f32 0.0, %v2805
        %v2807 = vpop.f32.mrb[0].mxu0
        %2808 = vmatprep.mubr.bf16.mxu0 0
        %2809 = vmatmul.mubr.bf16.gmra.mrb[0].mxu0 %v2766
        %v2810 = vpop.f32.mrb[0].mxu0
        %v2811 = vadd.f32 0.0, %v2810
        %v2812 = vpop.f32.mrb[0].mxu0
        %v2813 = vpop.f32.mrb[0].mxu0
        %v2814 = vadd.f32 0.0, %v2813
        %v2815 = vpop.f32.mrb[0].mxu0
        %2816 = vdwg.mxu0
        %v2817 = vadd.f32 %v2725, %v2803
        %v2818 = vadd.f32 %v2726, %v2806
        %v2819 = vadd.f32 %v2727, %v2811
        %v2820 = vadd.f32 %v2728, %v2814
        %2821 = vst.msk [vmem:[#allocation3] sm:$0xff] %vm491, %v2817
        %2822 = vst.msk [vmem:[#allocation3 + $0x8] sm:$0xff] %vm491, %v2818
        %2823 = vst.msk [vmem:[#allocation3 + $0x10] sm:$0xff] %vm491, %v2819
        %2824 = vst.msk [vmem:[#allocation3 + $0x18] sm:$0xff] %vm491, %v2820
        %v2825 = vld [vmem:[#allocation3] sm:$0xff]
        %v2826 = vld [vmem:[#allocation3 + $0x8] sm:$0xff]
        %v2827 = vld [vmem:[#allocation3 + $0x10] sm:$0xff]
        %v2828 = vld [vmem:[#allocation3 + $0x18] sm:$0xff]
        %v2829 = vadd.f32 %v2631, %v2825
        %v2830 = vadd.f32 %v2632, %v2826
        %v2831 = vadd.f32 %v2633, %v2827
        %v2832 = vadd.f32 %v2634, %v2828
        %v2833 = vld [vmem:[%s8] sm:$0x1]
        %v2835 = vlaneseq
        %v2836 = vshrl.u32 %v2835, 7
        %v2837 = vsub.s32 0, %v2836
        %v2838 = vrot.slane %v2833, %v2837
        %v2840 = vadd.f32 %v2829, %v2838
        %v2841 = vadd.f32 %v2830, %v2838
        %v2842 = vadd.f32 %v2831, %v2838
        %v2843 = vadd.f32 %v2832, %v2838
        %v2844 = vsel %vm491, %v2840, 0.0
        %2845 = vadd.xlane.f32.xlu0 %v2844
        %v2846 = vpop.xlane.xlu0 %2845
        %v2847 = vsel %vm491, %v2841, 0.0
        %2848 = vadd.xlane.f32.xlu0 %v2847
        %v2849 = vpop.xlane.xlu0 %2848
        %v2850 = vsel %vm491, %v2842, 0.0
        %2851 = vadd.xlane.f32.xlu0 %v2850
        %v2852 = vpop.xlane.xlu0 %2851
        %v2853 = vsel %vm491, %v2843, 0.0
        %2854 = vadd.xlane.f32.xlu0 %v2853
        %v2855 = vpop.xlane.xlu0 %2854
        %v2856 = vmul.f32 %v2846, %v2572
        %v2857 = vmul.f32 %v2849, %v2572
        %v2858 = vmul.f32 %v2852, %v2572
        %v2859 = vmul.f32 %v2855, %v2572
        %v2860 = vsub.f32 %v2840, %v2856
        %v2861 = vsub.f32 %v2841, %v2857
        %v2862 = vsub.f32 %v2842, %v2858
        %v2863 = vsub.f32 %v2843, %v2859
        %v2864 = vmul.f32 %v2860, %v2860
        %v2865 = vmul.f32 %v2861, %v2861
        %v2866 = vmul.f32 %v2862, %v2862
        %v2867 = vmul.f32 %v2863, %v2863
        %v2868 = vsel %vm491, %v2864, 0.0
        %2869 = vadd.xlane.f32.xlu0 %v2868
        %v2870 = vpop.xlane.xlu0 %2869
        %v2871 = vsel %vm491, %v2865, 0.0
        %2872 = vadd.xlane.f32.xlu0 %v2871
        %v2873 = vpop.xlane.xlu0 %2872
        %v2874 = vsel %vm491, %v2866, 0.0
        %2875 = vadd.xlane.f32.xlu0 %v2874
        %v2876 = vpop.xlane.xlu0 %2875
        %v2877 = vsel %vm491, %v2867, 0.0
        %2878 = vadd.xlane.f32.xlu0 %v2877
        %v2879 = vpop.xlane.xlu0 %2878
        %v2880 = vmul.f32 %v2870, %v2572
        %v2881 = vmul.f32 %v2873, %v2572
        %v2882 = vmul.f32 %v2876, %v2572
        %v2883 = vmul.f32 %v2879, %v2572
        %v2884 = vadd.f32 %v2880, 1e-05
        %v2885 = vadd.f32 %v2881, 1e-05
        %v2886 = vadd.f32 %v2882, 1e-05
        %v2887 = vadd.f32 %v2883, 1e-05
        %v2888 = vrsqrt.pop %v2884
        %v2889 = vrsqrt.pop %v2885
        %v2890 = vrsqrt.pop %v2886
        %v2891 = vrsqrt.pop %v2887
        %v2892 = vmul.f32 %v2860, %v2888
        %v2893 = vmul.f32 %v2861, %v2889
        %v2894 = vmul.f32 %v2862, %v2890
        %v2895 = vmul.f32 %v2863, %v2891
        %v2896 = vld [vmem:[%s11] sm:$0x1]
        %v2898 = vlaneseq
        %v2899 = vshrl.u32 %v2898, 7
        %v2900 = vsub.s32 0, %v2899
        %v2901 = vrot.slane %v2896, %v2900
        %v2903 = vmul.f32 %v2892, %v2901
        %v2904 = vmul.f32 %v2893, %v2901
        %v2905 = vmul.f32 %v2894, %v2901
        %v2906 = vmul.f32 %v2895, %v2901
        %v2907 = vld [vmem:[%s12] sm:$0x1]
        %v2909 = vlaneseq
        %v2910 = vshrl.u32 %v2909, 7
        %v2911 = vsub.s32 0, %v2910
        %v2912 = vrot.slane %v2907, %v2911
        %v2914 = vadd.f32 %v2903, %v2912
        %v2915 = vadd.f32 %v2904, %v2912
        %v2916 = vadd.f32 %v2905, %v2912
        %v2917 = vadd.f32 %v2906, %v2912
        %2918 = vst.msk [vmem:[%s458] sm:$0xff] %vm491, %v2914
        %2919 = vst.msk [vmem:[%s458 + $0x8] sm:$0xff] %vm491, %v2915
        %2920 = vst.msk [vmem:[%s458 + $0x10] sm:$0xff] %vm491, %v2916
        %2921 = vst.msk [vmem:[%s458 + $0x18] sm:$0xff] %vm491, %v2917
        %s2922 = sand.u32 %s316, 1
        %s2923 = scalar_lea.sflag [#allocation6], %s2922
        %s2924 = sand.u32 %s316, 1
        %s2925 = smul.addr %s2924, 32
        %s2926 = scalar_lea.vmem [#allocation7], %s2925
        // Predicated region
        $region77: #{tpu_custom_call.1} parent=71 // pred_check
          %p2927 = pneg %p326
        $region78: #{tpu_custom_call.1} parent=71 // pred_check_branch
          %2929 = sbr.rel (%p2927) target = $region80
        $region79: #{tpu_custom_call.1} parent=71 // pred_region
          %s2930 = smul.u32 4, %s30
          %s2932 = ssub.s32 512, 512
          %2933 = vsyncadd %s2923, %s2932
          %s2934 = smul.addr %s2930, 128
          %s2935 = scalar_lea.hbm %s13, %s2934
          %s2936 = sshll.u32 %s2926, 4
          %s2937 = int_to_ptr.vmem [resolvable:$true] %s2936
          %2942 = dma.vmem_to_hbm [thread:$0]  %s2937, 512, %s2935, %s2923, 128, 128, 8
        $region80: #{tpu_custom_call.1} parent=71 // pred_fallthru
          _
      $region72: #{tpu_custom_call.1} parent=5 // pred_fallthru
        _
      %p2943 = scmp.le.s32.totalorder 2, %s25
      // Predicated region
      $region81: #{tpu_custom_call.1} parent=5 // pred_check
        %p2944 = pneg %p2943
      $region82: #{tpu_custom_call.1} parent=5 // pred_check_branch
        %2946 = sbr.rel (%p2944) target = $region84
      $region83: #{tpu_custom_call.1} parent=5 // pred_region
        %s2947 = ssub.s32 %s25, 2
        // Predicated region
        $region85: #{tpu_custom_call.1} parent=83 // pred_check
          %p2948 = pneg %p332
        $region86: #{tpu_custom_call.1} parent=83 // pred_check_branch
          %2950 = sbr.rel (%p2948) target = $region88
        $region87: #{tpu_custom_call.1} parent=83 // pred_region
          %s2951 = sand.u32 %s317, 1
          %s2952 = scalar_lea.sflag [#allocation6], %s2951
          %s2953 = sand.u32 %s317, 1
          %s2954 = smul.addr %s2953, 32
          %s2955 = scalar_lea.vmem [#allocation7], %s2954
          %2956 = dma.done %s2952, 512
        $region88: #{tpu_custom_call.1} parent=83 // pred_fallthru
          _
      $region84: #{tpu_custom_call.1} parent=5 // pred_fallthru
        _
    $region6: #{tpu_custom_call.1} parent=1 // loop_footer
      %s29 = sadd.s32 1, %s25
    $region7: #{tpu_custom_call.1} parent=1 // loop_footer_branch
      %24 = sbr.rel target = $region3
    $region8: #{tpu_custom_call.1} parent=1 // loop_exit
      _
    %2957 = vsyncpa [#allocation5], 1
    %s2958 = scalar_lea.sflag [#allocation5], 1
    %2959 = vsyncpa %s2958, 1
    %2960 = vsyncpa [#allocation6], 1
    %s2961 = scalar_lea.sflag [#allocation6], 1
    %2962 = vsyncpa %s2961, 1

</llo_original>
